<compile_context>
chip_gen: v5e
topology: v5e:2x2
jax: 0.10.0
libtpu: 0.0.40
codegen_flags: <defaults>
</compile_context>

<pallas_src>
import functools

import jax
import jax.numpy as jnp
from jax.experimental import pallas as pl
from jax.experimental.pallas import tpu as pltpu

D_IN = 784
D_H = 1024
D_OUT = 10

D_OUT_PAD = 128     # 10 -> one full lane tile (unmasked, lane-dense vst)
NEG_BIG = -1e30     # finite bias for padded logit columns -> exp underflows to 0


def _round_up(n, m):
    return ((n + m - 1) // m) * m


def _silu_bf16(h_f32):
    # SiLU in bf16: halves EUP (sigmoid) + VPU (mul) work on v6e/v7x.
    h = h_f32.astype(jnp.bfloat16)
    return h * jax.nn.sigmoid(h)


def fcnn_kernel(x_ref, w1_ref, b1_ref, w2_ref, b2_ref, w3_ref, b3_ref,
                w4_ref, b4_ref, o_ref):
    # bf16 operands on the MXU, f32 accumulation, f32 bias add.
    x = x_ref[...].astype(jnp.bfloat16)

    h = jnp.dot(x, w1_ref[...], preferred_element_type=jnp.float32) + b1_ref[...]
    h = _silu_bf16(h)          # dropout1 = identity (eval)

    h = jnp.dot(h, w2_ref[...], preferred_element_type=jnp.float32) + b2_ref[...]
    h = _silu_bf16(h)          # dropout2 = identity (eval)

    h = jnp.dot(h, w3_ref[...], preferred_element_type=jnp.float32) + b3_ref[...]
    h = _silu_bf16(h)          # dropout3 = identity (eval)

    logits = jnp.dot(h, w4_ref[...], preferred_element_type=jnp.float32) + b4_ref[...]
    # Padded columns have bias -1e30 (finite) -> exp(logit - m) underflows to
    # exactly 0, so softmax over the 128-wide tile == softmax over the real 10.
    m = jnp.max(logits, axis=-1, keepdims=True)
    e = jnp.exp(logits - m)
    denom = jnp.sum(e, axis=-1, keepdims=True)
    o_ref[...] = (e * pl.reciprocal(denom, approx=True)).astype(o_ref.dtype)


def prepare_params(params):
    """One-time prep: cast weights to bf16; pad only the 10-wide output to 128.

    Input params are f32 with weights stored as (in_features, out_features)
    (i.e. PyTorch W.T) and biases as (1, out_features)."""
    w1, b1, w2, b2, w3, b3, w4, b4 = params
    pad_out = D_OUT_PAD - D_OUT

    w4p = jnp.pad(w4, ((0, 0), (0, pad_out))).astype(jnp.bfloat16)
    b4p = jnp.pad(b4, ((0, 0), (0, pad_out)),
                  constant_values=NEG_BIG).astype(jnp.float32)
    return (w1.astype(jnp.bfloat16), b1.astype(jnp.float32),
            w2.astype(jnp.bfloat16), b2.astype(jnp.float32),
            w3.astype(jnp.bfloat16), b3.astype(jnp.float32),
            w4p, b4p)


@functools.partial(jax.jit, static_argnames=("block_b",))
def fcnn_forward(x, prepared_params, block_b=512):
    """x: (B, 784) float32 -> (B, 10) float32 softmax probabilities."""
    w1, b1, w2, b2, w3, b3, w4, b4 = prepared_params
    B = x.shape[0]

    # Batch tile: 8-aligned (x is f32), at most block_b, and at most
    # round_up(ceil(B/2), 8) so small/medium batches still yield >= 2 grid
    # steps (lets the "parallel" axis shard across v7x's two TensorCores;
    # one extra ~0.35us step is negligible on single-TC v5e/v6e).
    half = -(-B // 2)
    bb = min(block_b, max(8, _round_up(half, 8)))
    B_pad = _round_up(B, bb)

    # Only pad batch rows when needed; never pad the feature dim (no extra
    # wrapper-side HBM pass over the activations in the common case).
    xp = x if B_pad == B else jnp.pad(x, ((0, B_pad - B), (0, 0)))
    grid = (B_pad // bb,)

    # Weights/biases: full blocks with constant index_map -> DMA'd once and
    # resident in VMEM across all batch tiles (bf16 keeps the footprint small;
    # ~20 MiB total at bb=512 incl. default double-buffering, under 48 MiB).
    def full_spec(arr):
        nd = arr.ndim
        return pl.BlockSpec(arr.shape, lambda i: (0,) * nd)

    out = pl.pallas_call(
        fcnn_kernel,
        out_shape=jax.ShapeDtypeStruct((B_pad, D_OUT_PAD), jnp.float32),
        grid_spec=pltpu.PrefetchScalarGridSpec(
            num_scalar_prefetch=0,
            grid=grid,
            in_specs=[
                pl.BlockSpec((bb, D_IN), lambda i: (i, 0)),   # x tile (784 = full dim)
                full_spec(w1), full_spec(b1),
                full_spec(w2), full_spec(b2),
                full_spec(w3), full_spec(b3),
                full_spec(w4), full_spec(b4),
            ],
            out_specs=pl.BlockSpec((bb, D_OUT_PAD), lambda i: (i, 0)),
        ),
        compiler_params=pltpu.CompilerParams(
            dimension_semantics=("parallel",),
            vmem_limit_bytes=48 << 20,   # <= v7x's 64 MiB physical VMEM
        ),
    )(xp, w1, b1, w2, b2, w3, b3, w4, b4)

    return out[:B, :D_OUT]


def init_params(key):
    """Deterministic parameter init (PyTorch-Linear-style uniform bounds).

    Weights are stored transposed relative to PyTorch: shape (in, out)."""
    ks = jax.random.split(key, 8)

    def linear(kw, kb, fan_in, fan_out):
        bound = 1.0 / jnp.sqrt(fan_in)
        w = jax.random.uniform(kw, (fan_in, fan_out), jnp.float32, -bound, bound)
        b = jax.random.uniform(kb, (1, fan_out), jnp.float32, -bound, bound)
        return w, b

    w1, b1 = linear(ks[0], ks[1], D_IN, D_H)
    w2, b2 = linear(ks[2], ks[3], D_H, D_H)
    w3, b3 = linear(ks[4], ks[5], D_H, D_IN)
    w4, b4 = linear(ks[6], ks[7], D_IN, D_OUT)
    return (w1, b1, w2, b2, w3, b3, w4, b4)


def fcnn_reference(x, params):
    """Pure-JAX f32 reference for correctness check."""
    def silu(v):
        return v * jax.nn.sigmoid(v)
    w1, b1, w2, b2, w3, b3, w4, b4 = params
    h = silu(x @ w1 + b1)
    h = silu(h @ w2 + b2)
    h = silu(h @ w3 + b3)
    return jax.nn.softmax(h @ w4 + b4, axis=-1)


if __name__ == "__main__":
    key = jax.random.PRNGKey(0)
    k_x, k_p = jax.random.split(key)

    B = 37  # small batch; exercises row-padding + 2-step-grid path
    x = jax.random.normal(k_x, (B, D_IN), dtype=jnp.float32)
    params = init_params(k_p)
    prepared = prepare_params(params)

    out = fcnn_forward(x, prepared)
    out = jax.block_until_ready(out)

    ref = fcnn_reference(x, params)
    assert out.shape == (B, D_OUT), out.shape
    # bf16 matmuls + bf16 SiLU + approx reciprocal -> loosened tolerance vs f32.
    assert jnp.allclose(out, ref, atol=2e-2, rtol=2e-2), "mismatch vs reference"
    assert jnp.allclose(jnp.sum(out, axis=-1), 1.0, atol=5e-3), "softmax rows != 1"

    print("KERNEL_OK")
</pallas_src>

<mosaic_0001>
module attributes {stable_mosaic.version = 11 : i64} {
  func.func @fcnn_kernel(%arg0: i32, %arg1: memref<24x784xf32, #tpu.memory_space<vmem>>, %arg2: memref<784x1024xbf16, #tpu.memory_space<vmem>>, %arg3: memref<1x1024xf32, #tpu.memory_space<vmem>>, %arg4: memref<1024x1024xbf16, #tpu.memory_space<vmem>>, %arg5: memref<1x1024xf32, #tpu.memory_space<vmem>>, %arg6: memref<1024x784xbf16, #tpu.memory_space<vmem>>, %arg7: memref<1x784xf32, #tpu.memory_space<vmem>>, %arg8: memref<784x128xbf16, #tpu.memory_space<vmem>>, %arg9: memref<1x128xf32, #tpu.memory_space<vmem>>, %arg10: memref<24x128xf32, #tpu.memory_space<vmem>>) attributes {dimension_semantics = [#tpu.dimension_semantics<parallel>], iteration_bounds = array<i64: 2>, scalar_prefetch = 0 : i64, scratch_operands = 0 : i64, tpu.core_type = #tpu.core_type<tc>, window_params = [{transform_indices = @transform_0, window_bounds = array<i64: 24, 784>}, {pipeline_mode = #tpu.pipeline_mode<synchronous>, transform_indices = @transform_1, window_bounds = array<i64: 784, 1024>}, {pipeline_mode = #tpu.pipeline_mode<synchronous>, transform_indices = @transform_2, window_bounds = array<i64: 1, 1024>}, {pipeline_mode = #tpu.pipeline_mode<synchronous>, transform_indices = @transform_3, window_bounds = array<i64: 1024, 1024>}, {pipeline_mode = #tpu.pipeline_mode<synchronous>, transform_indices = @transform_4, window_bounds = array<i64: 1, 1024>}, {pipeline_mode = #tpu.pipeline_mode<synchronous>, transform_indices = @transform_5, window_bounds = array<i64: 1024, 784>}, {pipeline_mode = #tpu.pipeline_mode<synchronous>, transform_indices = @transform_6, window_bounds = array<i64: 1, 784>}, {pipeline_mode = #tpu.pipeline_mode<synchronous>, transform_indices = @transform_7, window_bounds = array<i64: 784, 128>}, {pipeline_mode = #tpu.pipeline_mode<synchronous>, transform_indices = @transform_8, window_bounds = array<i64: 1, 128>}, {transform_indices = @transform_9, window_bounds = array<i64: 24, 128>}]} {
    %c0 = arith.constant 0 : index
    %c0_0 = arith.constant 0 : index
    %0 = vector.load %arg1[%c0, %c0_0] : memref<24x784xf32, #tpu.memory_space<vmem>>, vector<24x784xf32>
    %1 = arith.truncf %0 : vector<24x784xf32> to vector<24x784xbf16>
    %c0_1 = arith.constant 0 : index
    %c0_2 = arith.constant 0 : index
    %2 = vector.load %arg2[%c0_1, %c0_2] : memref<784x1024xbf16, #tpu.memory_space<vmem>>, vector<784x1024xbf16>
    %cst = arith.constant dense<0.000000e+00> : vector<24x1024xf32>
    %3 = tpu.matmul %1, %2, %cst {dimension_numbers = #tpu.dot_dimension_numbers<[1], [0], [0], [1], [0, 0, 1, 1], [], []>} : vector<24x784xbf16>, vector<784x1024xbf16>, vector<24x1024xf32> -> vector<24x1024xf32>
    %c0_3 = arith.constant 0 : index
    %c0_4 = arith.constant 0 : index
    %4 = vector.load %arg3[%c0_3, %c0_4] : memref<1x1024xf32, #tpu.memory_space<vmem>>, vector<1x1024xf32>
    %5 = vector.broadcast %4 : vector<1x1024xf32> to vector<24x1024xf32>
    %6 = arith.addf %3, %5 : vector<24x1024xf32>
    %7 = arith.truncf %6 : vector<24x1024xf32> to vector<24x1024xbf16>
    %8 = arith.negf %7 : vector<24x1024xbf16>
    %9 = math.exp %8 : vector<24x1024xbf16>
    %cst_5 = arith.constant 1.000000e+00 : bf16
    %10 = vector.broadcast %cst_5 : bf16 to vector<24x1024xbf16>
    %11 = arith.addf %10, %9 : vector<24x1024xbf16>
    %12 = arith.divf %10, %11 : vector<24x1024xbf16>
    %13 = arith.mulf %7, %12 : vector<24x1024xbf16>
    %c0_6 = arith.constant 0 : index
    %c0_7 = arith.constant 0 : index
    %14 = vector.load %arg4[%c0_6, %c0_7] : memref<1024x1024xbf16, #tpu.memory_space<vmem>>, vector<1024x1024xbf16>
    %cst_8 = arith.constant dense<0.000000e+00> : vector<24x1024xf32>
    %15 = tpu.matmul %13, %14, %cst_8 {dimension_numbers = #tpu.dot_dimension_numbers<[1], [0], [0], [1], [0, 0, 1, 1], [], []>} : vector<24x1024xbf16>, vector<1024x1024xbf16>, vector<24x1024xf32> -> vector<24x1024xf32>
    %c0_9 = arith.constant 0 : index
    %c0_10 = arith.constant 0 : index
    %16 = vector.load %arg5[%c0_9, %c0_10] : memref<1x1024xf32, #tpu.memory_space<vmem>>, vector<1x1024xf32>
    %17 = vector.broadcast %16 : vector<1x1024xf32> to vector<24x1024xf32>
    %18 = arith.addf %15, %17 : vector<24x1024xf32>
    %19 = arith.truncf %18 : vector<24x1024xf32> to vector<24x1024xbf16>
    %20 = arith.negf %19 : vector<24x1024xbf16>
    %21 = math.exp %20 : vector<24x1024xbf16>
    %cst_11 = arith.constant 1.000000e+00 : bf16
    %22 = vector.broadcast %cst_11 : bf16 to vector<24x1024xbf16>
    %23 = arith.addf %22, %21 : vector<24x1024xbf16>
    %24 = arith.divf %22, %23 : vector<24x1024xbf16>
    %25 = arith.mulf %19, %24 : vector<24x1024xbf16>
    %c0_12 = arith.constant 0 : index
    %c0_13 = arith.constant 0 : index
    %26 = vector.load %arg6[%c0_12, %c0_13] : memref<1024x784xbf16, #tpu.memory_space<vmem>>, vector<1024x784xbf16>
    %cst_14 = arith.constant dense<0.000000e+00> : vector<24x784xf32>
    %27 = tpu.matmul %25, %26, %cst_14 {dimension_numbers = #tpu.dot_dimension_numbers<[1], [0], [0], [1], [0, 0, 1, 1], [], []>} : vector<24x1024xbf16>, vector<1024x784xbf16>, vector<24x784xf32> -> vector<24x784xf32>
    %c0_15 = arith.constant 0 : index
    %c0_16 = arith.constant 0 : index
    %28 = vector.load %arg7[%c0_15, %c0_16] : memref<1x784xf32, #tpu.memory_space<vmem>>, vector<1x784xf32>
    %29 = vector.broadcast %28 : vector<1x784xf32> to vector<24x784xf32>
    %30 = arith.addf %27, %29 : vector<24x784xf32>
    %31 = arith.truncf %30 : vector<24x784xf32> to vector<24x784xbf16>
    %32 = arith.negf %31 : vector<24x784xbf16>
    %33 = math.exp %32 : vector<24x784xbf16>
    %cst_17 = arith.constant 1.000000e+00 : bf16
    %34 = vector.broadcast %cst_17 : bf16 to vector<24x784xbf16>
    %35 = arith.addf %34, %33 : vector<24x784xbf16>
    %36 = arith.divf %34, %35 : vector<24x784xbf16>
    %37 = arith.mulf %31, %36 : vector<24x784xbf16>
    %c0_18 = arith.constant 0 : index
    %c0_19 = arith.constant 0 : index
    %38 = vector.load %arg8[%c0_18, %c0_19] : memref<784x128xbf16, #tpu.memory_space<vmem>>, vector<784x128xbf16>
    %cst_20 = arith.constant dense<0.000000e+00> : vector<24x128xf32>
    %39 = tpu.matmul %37, %38, %cst_20 {dimension_numbers = #tpu.dot_dimension_numbers<[1], [0], [0], [1], [0, 0, 1, 1], [], []>} : vector<24x784xbf16>, vector<784x128xbf16>, vector<24x128xf32> -> vector<24x128xf32>
    %c0_21 = arith.constant 0 : index
    %c0_22 = arith.constant 0 : index
    %40 = vector.load %arg9[%c0_21, %c0_22] : memref<1x128xf32, #tpu.memory_space<vmem>>, vector<1x128xf32>
    %41 = vector.broadcast %40 : vector<1x128xf32> to vector<24x128xf32>
    %42 = arith.addf %39, %41 : vector<24x128xf32>
    %cst_23 = arith.constant dense<0xFF800000> : vector<24xf32>
    %43 = vector.multi_reduction <maximumf>, %42, %cst_23 [1] : vector<24x128xf32> to vector<24xf32>
    %44 = vector.shape_cast %43 : vector<24xf32> to vector<24x1xf32>
    %45 = vector.broadcast %44 : vector<24x1xf32> to vector<24x128xf32>
    %46 = arith.subf %42, %45 : vector<24x128xf32>
    %47 = math.exp %46 : vector<24x128xf32>
    %cst_24 = arith.constant dense<0.000000e+00> : vector<24xf32>
    %48 = vector.multi_reduction <add>, %47, %cst_24 [1] : vector<24x128xf32> to vector<24xf32>
    %49 = vector.shape_cast %48 : vector<24xf32> to vector<24x1xf32>
    %50 = tpu.reciprocal %49 {approx = true} : vector<24x1xf32> -> vector<24x1xf32>
    %51 = vector.broadcast %50 : vector<24x1xf32> to vector<24x128xf32>
    %52 = arith.mulf %47, %51 : vector<24x128xf32>
    %c0_25 = arith.constant 0 : index
    %c0_26 = arith.constant 0 : index
    %53 = vector.load %arg10[%c0_25, %c0_26] : memref<24x128xf32, #tpu.memory_space<vmem>>, vector<24x128xf32>
    tpu.vector_store %arg10[%c0_25, %c0_26], %52 {strides = array<i32>} : memref<24x128xf32, #tpu.memory_space<vmem>>, vector<24x128xf32>,
    return
  }
  func.func @transform_0(%arg0: i32) -> (i32, i32) {
    %c0_i32 = arith.constant 0 : i32
    %c0_i32_0 = arith.constant 0 : i32
    return %arg0, %c0_i32 : i32, i32
  }
  func.func @transform_1(%arg0: i32) -> (i32, i32) {
    %c0_i32 = arith.constant 0 : i32
    %c0_i32_0 = arith.constant 0 : i32
    %c0_i32_1 = arith.constant 0 : i32
    return %c0_i32, %c0_i32_0 : i32, i32
  }
  func.func @transform_2(%arg0: i32) -> (i32, i32) {
    %c0_i32 = arith.constant 0 : i32
    %c0_i32_0 = arith.constant 0 : i32
    %c0_i32_1 = arith.constant 0 : i32
    return %c0_i32, %c0_i32_0 : i32, i32
  }
  func.func @transform_3(%arg0: i32) -> (i32, i32) {
    %c0_i32 = arith.constant 0 : i32
    %c0_i32_0 = arith.constant 0 : i32
    %c0_i32_1 = arith.constant 0 : i32
    return %c0_i32, %c0_i32_0 : i32, i32
  }
  func.func @transform_4(%arg0: i32) -> (i32, i32) {
    %c0_i32 = arith.constant 0 : i32
    %c0_i32_0 = arith.constant 0 : i32
    %c0_i32_1 = arith.constant 0 : i32
    return %c0_i32, %c0_i32_0 : i32, i32
  }
  func.func @transform_5(%arg0: i32) -> (i32, i32) {
    %c0_i32 = arith.constant 0 : i32
    %c0_i32_0 = arith.constant 0 : i32
    %c0_i32_1 = arith.constant 0 : i32
    return %c0_i32, %c0_i32_0 : i32, i32
  }
  func.func @transform_6(%arg0: i32) -> (i32, i32) {
    %c0_i32 = arith.constant 0 : i32
    %c0_i32_0 = arith.constant 0 : i32
    %c0_i32_1 = arith.constant 0 : i32
    return %c0_i32, %c0_i32_0 : i32, i32
  }
  func.func @transform_7(%arg0: i32) -> (i32, i32) {
    %c0_i32 = arith.constant 0 : i32
    %c0_i32_0 = arith.constant 0 : i32
    %c0_i32_1 = arith.constant 0 : i32
    return %c0_i32, %c0_i32_0 : i32, i32
  }
  func.func @transform_8(%arg0: i32) -> (i32, i32) {
    %c0_i32 = arith.constant 0 : i32
    %c0_i32_0 = arith.constant 0 : i32
    %c0_i32_1 = arith.constant 0 : i32
    return %c0_i32, %c0_i32_0 : i32, i32
  }
  func.func @transform_9(%arg0: i32) -> (i32, i32) {
    %c0_i32 = arith.constant 0 : i32
    %c0_i32_0 = arith.constant 0 : i32
    return %arg0, %c0_i32 : i32, i32
  }
}

</mosaic_0001>

<llo_original>
// kernel: fcnn_forward.1
$region0: #{fcnn_forward.1}
  #allocation0 [shape = 'u32[]', space=smem, size = 0x4, offset = 0x4, fixed_abs, tag = 'smem constant byte address 0x4 - core index']
  #allocation1 [shape = 'u32[72,128]{1,0:T(1,128)}', space=vmem, size = 0x9000, scoped, tag = 'internal scratch']
  %s0 = inlined_call_operand.vmem [shape: f32[48,784], index: 0, kind: input, shape index: {}]
  %s1 = inlined_call_operand.vmem [shape: bf16[784,1024], index: 1, kind: input, shape index: {}]
  %s2 = inlined_call_operand.vmem [shape: f32[1,1024], index: 2, kind: input, shape index: {}]
  %s3 = inlined_call_operand.vmem [shape: bf16[1024,1024], index: 3, kind: input, shape index: {}]
  %s4 = inlined_call_operand.vmem [shape: f32[1,1024], index: 4, kind: input, shape index: {}]
  %s5 = inlined_call_operand.vmem [shape: bf16[1024,784], index: 5, kind: input, shape index: {}]
  %s6 = inlined_call_operand.vmem [shape: f32[1,784], index: 6, kind: input, shape index: {}]
  %s7 = inlined_call_operand.hbm [shape: bf16[784,128], index: 7, kind: input, shape index: {}]
  %s8 = inlined_call_operand.vmem [shape: f32[1,128], index: 8, kind: input, shape index: {}]
  %s9 = inlined_call_operand.vmem [shape: f32[48,128], index: 9, kind: output, shape index: {}]
  %s10 = sld [smem:[#allocation0]]
  $region73: #{fcnn_forward.1} parent=0
    _
  %s12 = ssub.s32 1, %s10
  %s13 = scalar_select 0, %s12, %s10
  $region1: #{fcnn_forward.1} parent=0
    #allocation2 [shape = 'u8[200704]{0}', space=vmem, size = 0x31000, scoped, tag = 'input window, operand 7, single buffered']
    #allocation3 [shape = 's32[2]{0}', space=sflag, size = 0x8, scoped, tag = 'scoped memory for fcnn_forward.1']
    %14 = vsyncpa [#allocation3], 0
    loop: start=0, step=1, limit=4
    $region2: #{fcnn_forward.1} parent=1 // loop_pre_header
      _
    $region3: #{fcnn_forward.1} parent=1 // loop_header
      %s16 = sphi 0, %s20
      %p17 = scmp.ge.s32.totalorder %s16, 4
      %s26 = sphi 0, %s28
      %s29 = sphi 0, %s26
      %s30 = sphi 0, %s29
      %s46 = sphi 0, %s30
      %s50 = sphi 0, %s50
      %s52 = sphi 0, %s50
      %s53 = sphi 0, %s52
      %s67 = sphi 0, %s53
      %s71 = sphi 0, %s71
      %s73 = sphi 0, %s71
      %s74 = sphi 0, %s73
      %s88 = sphi 0, %s74
      %s92 = sphi 0, %s92
      %s94 = sphi 0, %s92
      %s95 = sphi 0, %s94
      %s109 = sphi 0, %s95
      %s113 = sphi 0, %s113
      %s115 = sphi 0, %s113
      %s116 = sphi 0, %s115
      %s130 = sphi 0, %s116
      %s134 = sphi 0, %s134
      %s136 = sphi 0, %s134
      %s137 = sphi 0, %s136
      %s151 = sphi 0, %s137
      %s155 = sphi 0, %s155
      %s157 = sphi 0, %s155
      %s158 = sphi 0, %s157
      %s172 = sphi 0, %s158
      %s176 = sphi 0, %s176
      %s178 = sphi 0, %s176
      %s179 = sphi 0, %s178
      %s193 = sphi 0, %s179
      %s197 = sphi 0, %s197
      %s199 = sphi 0, %s197
      %s200 = sphi 0, %s199
      %s214 = sphi 0, %s200
      %s220 = sphi 0, %s222
      %s223 = sphi 0, %s220
      %s224 = sphi 0, %s223
      %s240 = sphi 0, %s224
    $region4: #{fcnn_forward.1} parent=1 // loop_header_branch
      %19 = sbr.rel (%p17) target = $region8
    $region5: #{fcnn_forward.1} parent=1 // loop_body
      %s21 = ssub.s32 %s16, 1
      %s22 = ssub.s32 %s16, 2
      %s23 = sadd.s32 %s16, 1
      %s24 = ssub.s32 %s16, %s23
      %p25 = scmp.eq.s32.totalorder %s24, 0
      %s27 = sadd.s32 %s26, 1
      %s28 = scalar_select %p25, %s26, %s27
      %p31 = pneg %p25
      %p32 = scmp.eq.s32.totalorder %s16, 1
      %p33 = por %p31, %p32
      %p34 = scmp.ne.s32.totalorder %s26, %s29
      %p35 = scmp.eq.s32.totalorder %s16, 0
      %p36 = por %p34, %p35
      %p37 = scmp.ne.s32.totalorder %s26, %s29
      %p38 = scmp.eq.s32.totalorder %s21, 1
      %p39 = por %p37, %p38
      %p40 = scmp.ne.s32.totalorder %s29, %s30
      %p41 = scmp.eq.s32.totalorder %s21, 0
      %p42 = por %p40, %p41
      %p43 = scmp.ne.s32.totalorder %s29, %s30
      %p44 = scmp.eq.s32.totalorder %s22, 1
      %p45 = por %p43, %p44
      %p47 = scmp.ne.s32.totalorder %s30, %s46
      %p48 = scmp.eq.s32.totalorder %s22, 0
      %p49 = por %p47, %p48
      %s51 = sadd.s32 %s50, 1
      %p54 = scmp.eq.s32.totalorder %s16, 1
      %p55 = scmp.ne.s32.totalorder %s50, %s52
      %p56 = scmp.eq.s32.totalorder %s16, 0
      %p57 = por %p55, %p56
      %p58 = scmp.ne.s32.totalorder %s50, %s52
      %p59 = scmp.eq.s32.totalorder %s21, 1
      %p60 = por %p58, %p59
      %p61 = scmp.ne.s32.totalorder %s52, %s53
      %p62 = scmp.eq.s32.totalorder %s21, 0
      %p63 = por %p61, %p62
      %p64 = scmp.ne.s32.totalorder %s52, %s53
      %p65 = scmp.eq.s32.totalorder %s22, 1
      %p66 = por %p64, %p65
      %p68 = scmp.ne.s32.totalorder %s53, %s67
      %p69 = scmp.eq.s32.totalorder %s22, 0
      %p70 = por %p68, %p69
      %s72 = sadd.s32 %s71, 1
      %p75 = scmp.eq.s32.totalorder %s16, 1
      %p76 = scmp.ne.s32.totalorder %s71, %s73
      %p77 = scmp.eq.s32.totalorder %s16, 0
      %p78 = por %p76, %p77
      %p79 = scmp.ne.s32.totalorder %s71, %s73
      %p80 = scmp.eq.s32.totalorder %s21, 1
      %p81 = por %p79, %p80
      %p82 = scmp.ne.s32.totalorder %s73, %s74
      %p83 = scmp.eq.s32.totalorder %s21, 0
      %p84 = por %p82, %p83
      %p85 = scmp.ne.s32.totalorder %s73, %s74
      %p86 = scmp.eq.s32.totalorder %s22, 1
      %p87 = por %p85, %p86
      %p89 = scmp.ne.s32.totalorder %s74, %s88
      %p90 = scmp.eq.s32.totalorder %s22, 0
      %p91 = por %p89, %p90
      %s93 = sadd.s32 %s92, 1
      %p96 = scmp.eq.s32.totalorder %s16, 1
      %p97 = scmp.ne.s32.totalorder %s92, %s94
      %p98 = scmp.eq.s32.totalorder %s16, 0
      %p99 = por %p97, %p98
      %p100 = scmp.ne.s32.totalorder %s92, %s94
      %p101 = scmp.eq.s32.totalorder %s21, 1
      %p102 = por %p100, %p101
      %p103 = scmp.ne.s32.totalorder %s94, %s95
      %p104 = scmp.eq.s32.totalorder %s21, 0
      %p105 = por %p103, %p104
      %p106 = scmp.ne.s32.totalorder %s94, %s95
      %p107 = scmp.eq.s32.totalorder %s22, 1
      %p108 = por %p106, %p107
      %p110 = scmp.ne.s32.totalorder %s95, %s109
      %p111 = scmp.eq.s32.totalorder %s22, 0
      %p112 = por %p110, %p111
      %s114 = sadd.s32 %s113, 1
      %p117 = scmp.eq.s32.totalorder %s16, 1
      %p118 = scmp.ne.s32.totalorder %s113, %s115
      %p119 = scmp.eq.s32.totalorder %s16, 0
      %p120 = por %p118, %p119
      %p121 = scmp.ne.s32.totalorder %s113, %s115
      %p122 = scmp.eq.s32.totalorder %s21, 1
      %p123 = por %p121, %p122
      %p124 = scmp.ne.s32.totalorder %s115, %s116
      %p125 = scmp.eq.s32.totalorder %s21, 0
      %p126 = por %p124, %p125
      %p127 = scmp.ne.s32.totalorder %s115, %s116
      %p128 = scmp.eq.s32.totalorder %s22, 1
      %p129 = por %p127, %p128
      %p131 = scmp.ne.s32.totalorder %s116, %s130
      %p132 = scmp.eq.s32.totalorder %s22, 0
      %p133 = por %p131, %p132
      %s135 = sadd.s32 %s134, 1
      %p138 = scmp.eq.s32.totalorder %s16, 1
      %p139 = scmp.ne.s32.totalorder %s134, %s136
      %p140 = scmp.eq.s32.totalorder %s16, 0
      %p141 = por %p139, %p140
      %p142 = scmp.ne.s32.totalorder %s134, %s136
      %p143 = scmp.eq.s32.totalorder %s21, 1
      %p144 = por %p142, %p143
      %p145 = scmp.ne.s32.totalorder %s136, %s137
      %p146 = scmp.eq.s32.totalorder %s21, 0
      %p147 = por %p145, %p146
      %p148 = scmp.ne.s32.totalorder %s136, %s137
      %p149 = scmp.eq.s32.totalorder %s22, 1
      %p150 = por %p148, %p149
      %p152 = scmp.ne.s32.totalorder %s137, %s151
      %p153 = scmp.eq.s32.totalorder %s22, 0
      %p154 = por %p152, %p153
      %s156 = sadd.s32 %s155, 1
      %p159 = scmp.eq.s32.totalorder %s16, 1
      %p160 = scmp.ne.s32.totalorder %s155, %s157
      %p161 = scmp.eq.s32.totalorder %s16, 0
      %p162 = por %p160, %p161
      %p163 = scmp.ne.s32.totalorder %s155, %s157
      %p164 = scmp.eq.s32.totalorder %s21, 1
      %p165 = por %p163, %p164
      %p166 = scmp.ne.s32.totalorder %s157, %s158
      %p167 = scmp.eq.s32.totalorder %s21, 0
      %p168 = por %p166, %p167
      %p169 = scmp.ne.s32.totalorder %s157, %s158
      %p170 = scmp.eq.s32.totalorder %s22, 1
      %p171 = por %p169, %p170
      %p173 = scmp.ne.s32.totalorder %s158, %s172
      %p174 = scmp.eq.s32.totalorder %s22, 0
      %p175 = por %p173, %p174
      %s177 = sadd.s32 %s176, 1
      %p180 = scmp.eq.s32.totalorder %s16, 1
      %p181 = scmp.ne.s32.totalorder %s176, %s178
      %p182 = scmp.eq.s32.totalorder %s16, 0
      %p183 = por %p181, %p182
      %p184 = scmp.ne.s32.totalorder %s176, %s178
      %p185 = scmp.eq.s32.totalorder %s21, 1
      %p186 = por %p184, %p185
      %p187 = scmp.ne.s32.totalorder %s178, %s179
      %p188 = scmp.eq.s32.totalorder %s21, 0
      %p189 = por %p187, %p188
      %p190 = scmp.ne.s32.totalorder %s178, %s179
      %p191 = scmp.eq.s32.totalorder %s22, 1
      %p192 = por %p190, %p191
      %p194 = scmp.ne.s32.totalorder %s179, %s193
      %p195 = scmp.eq.s32.totalorder %s22, 0
      %p196 = por %p194, %p195
      %s198 = sadd.s32 %s197, 1
      %p201 = scmp.eq.s32.totalorder %s16, 1
      %p202 = scmp.ne.s32.totalorder %s197, %s199
      %p203 = scmp.eq.s32.totalorder %s16, 0
      %p204 = por %p202, %p203
      %p205 = scmp.ne.s32.totalorder %s197, %s199
      %p206 = scmp.eq.s32.totalorder %s21, 1
      %p207 = por %p205, %p206
      %p208 = scmp.ne.s32.totalorder %s199, %s200
      %p209 = scmp.eq.s32.totalorder %s21, 0
      %p210 = por %p208, %p209
      %p211 = scmp.ne.s32.totalorder %s199, %s200
      %p212 = scmp.eq.s32.totalorder %s22, 1
      %p213 = por %p211, %p212
      %p215 = scmp.ne.s32.totalorder %s200, %s214
      %p216 = scmp.eq.s32.totalorder %s22, 0
      %p217 = por %p215, %p216
      %s218 = ssub.s32 %s16, %s23
      %p219 = scmp.eq.s32.totalorder %s218, 0
      %s221 = sadd.s32 %s220, 1
      %s222 = scalar_select %p219, %s220, %s221
      %p225 = pneg %p219
      %p226 = scmp.eq.s32.totalorder %s16, 1
      %p227 = por %p225, %p226
      %p228 = scmp.ne.s32.totalorder %s220, %s223
      %p229 = scmp.eq.s32.totalorder %s16, 0
      %p230 = por %p228, %p229
      %p231 = scmp.ne.s32.totalorder %s220, %s223
      %p232 = scmp.eq.s32.totalorder %s21, 1
      %p233 = por %p231, %p232
      %p234 = scmp.ne.s32.totalorder %s223, %s224
      %p235 = scmp.eq.s32.totalorder %s21, 0
      %p236 = por %p234, %p235
      %p237 = scmp.ne.s32.totalorder %s223, %s224
      %p238 = scmp.eq.s32.totalorder %s22, 1
      %p239 = por %p237, %p238
      %p241 = scmp.ne.s32.totalorder %s224, %s240
      %p242 = scmp.eq.s32.totalorder %s22, 0
      %p243 = por %p241, %p242
      %p244 = scmp.le.s32.totalorder 1, %s16
      %p245 = scmp.lt.s32.totalorder %s16, 3
      %p246 = pnand %p244, %p245
      %p247 = pneg %p246
      // Predicated region
      $region9: #{fcnn_forward.1} parent=5 // pred_check
        _
      $region10: #{fcnn_forward.1} parent=5 // pred_check_branch
        %249 = sbr.rel (%p246) target = $region12
      $region11: #{fcnn_forward.1} parent=5 // pred_region
        %s250 = ssub.s32 %s16, 1
        // Predicated region
        $region13: #{fcnn_forward.1} parent=11 // pred_check
          %p251 = pneg %p63
        $region14: #{fcnn_forward.1} parent=11 // pred_check_branch
          %253 = sbr.rel (%p251) target = $region16
        $region15: #{fcnn_forward.1} parent=11 // pred_region
          _
        $region16: #{fcnn_forward.1} parent=11 // pred_fallthru
          _
        // Predicated region
        $region17: #{fcnn_forward.1} parent=11 // pred_check
          %p254 = pneg %p84
        $region18: #{fcnn_forward.1} parent=11 // pred_check_branch
          %256 = sbr.rel (%p254) target = $region20
        $region19: #{fcnn_forward.1} parent=11 // pred_region
          _
        $region20: #{fcnn_forward.1} parent=11 // pred_fallthru
          _
        // Predicated region
        $region21: #{fcnn_forward.1} parent=11 // pred_check
          %p257 = pneg %p105
        $region22: #{fcnn_forward.1} parent=11 // pred_check_branch
          %259 = sbr.rel (%p257) target = $region24
        $region23: #{fcnn_forward.1} parent=11 // pred_region
          _
        $region24: #{fcnn_forward.1} parent=11 // pred_fallthru
          _
        // Predicated region
        $region25: #{fcnn_forward.1} parent=11 // pred_check
          %p260 = pneg %p126
        $region26: #{fcnn_forward.1} parent=11 // pred_check_branch
          %262 = sbr.rel (%p260) target = $region28
        $region27: #{fcnn_forward.1} parent=11 // pred_region
          _
        $region28: #{fcnn_forward.1} parent=11 // pred_fallthru
          _
        // Predicated region
        $region29: #{fcnn_forward.1} parent=11 // pred_check
          %p263 = pneg %p147
        $region30: #{fcnn_forward.1} parent=11 // pred_check_branch
          %265 = sbr.rel (%p263) target = $region32
        $region31: #{fcnn_forward.1} parent=11 // pred_region
          _
        $region32: #{fcnn_forward.1} parent=11 // pred_fallthru
          _
        // Predicated region
        $region33: #{fcnn_forward.1} parent=11 // pred_check
          %p266 = pneg %p168
        $region34: #{fcnn_forward.1} parent=11 // pred_check_branch
          %268 = sbr.rel (%p266) target = $region36
        $region35: #{fcnn_forward.1} parent=11 // pred_region
          _
        $region36: #{fcnn_forward.1} parent=11 // pred_fallthru
          _
        // Predicated region
        $region37: #{fcnn_forward.1} parent=11 // pred_check
          %p269 = pneg %p189
        $region38: #{fcnn_forward.1} parent=11 // pred_check_branch
          %271 = sbr.rel (%p269) target = $region40
        $region39: #{fcnn_forward.1} parent=11 // pred_region
          %273 = vsyncadd [#allocation3], 0
          %s274 = sshll.u32 %s7, 4
          %s275 = int_to_ptr.hbm [resolvable:$true] %s274
          %s276 = sshll.u32 [#allocation2], 4
          %s277 = int_to_ptr.vmem [resolvable:$true] %s276
          %282 = dma.hbm_to_vmem [thread:$0]  %s275, 6272, %s277, [#allocation3], 64, 64, 4
        $region40: #{fcnn_forward.1} parent=11 // pred_fallthru
          _
        // Predicated region
        $region41: #{fcnn_forward.1} parent=11 // pred_check
          %p283 = pneg %p210
        $region42: #{fcnn_forward.1} parent=11 // pred_check_branch
          %285 = sbr.rel (%p283) target = $region44
        $region43: #{fcnn_forward.1} parent=11 // pred_region
          _
        $region44: #{fcnn_forward.1} parent=11 // pred_fallthru
          _
      $region12: #{fcnn_forward.1} parent=5 // pred_fallthru
        _
      %p286 = scmp.lt.s32.totalorder %s16, 2
      // Predicated region
      $region45: #{fcnn_forward.1} parent=5 // pred_check
        %p287 = pneg %p286
      $region46: #{fcnn_forward.1} parent=5 // pred_check_branch
        %289 = sbr.rel (%p287) target = $region48
      $region47: #{fcnn_forward.1} parent=5 // pred_region
        // Predicated region
        $region49: #{fcnn_forward.1} parent=47 // pred_check
          %p290 = pneg %p36
        $region50: #{fcnn_forward.1} parent=47 // pred_check_branch
          %292 = sbr.rel (%p290) target = $region52
        $region51: #{fcnn_forward.1} parent=47 // pred_region
          %s293 = smul.u32 3, %s16
          %p294 = scmp.lt.s32.totalorder %s293, 5
          %s295 = scalar_select %p294, %s293, 5
          %s296 = smul.addr %s295, 7
          %s297 = smul.addr %s296, 8
          %s298 = scalar_lea.vmem %s0, %s297
          %s299 = smul.u32 3, %s16
        $region52: #{fcnn_forward.1} parent=47 // pred_fallthru
          _
      $region48: #{fcnn_forward.1} parent=5 // pred_fallthru
        _
      %p300 = scmp.le.s32.totalorder 1, %s16
      %p301 = scmp.lt.s32.totalorder %s16, 3
      %p302 = pnand %p300, %p301
      %p303 = pneg %p302
      // Predicated region
      $region53: #{fcnn_forward.1} parent=5 // pred_check
        _
      $region54: #{fcnn_forward.1} parent=5 // pred_check_branch
        %305 = sbr.rel (%p302) target = $region56
      $region55: #{fcnn_forward.1} parent=5 // pred_region
        %s306 = ssub.s32 %s16, 1
        // Predicated region
        $region57: #{fcnn_forward.1} parent=55 // pred_check
          %p307 = pneg %p189
        $region58: #{fcnn_forward.1} parent=55 // pred_check_branch
          %309 = sbr.rel (%p307) target = $region60
        $region59: #{fcnn_forward.1} parent=55 // pred_region
          %311 = dma.done [#allocation3], 6272
        $region60: #{fcnn_forward.1} parent=55 // pred_fallthru
          _
        %s312 = smul.u32 3, %s21
        %p313 = scmp.lt.s32.totalorder %s312, 5
        %s314 = scalar_select %p313, %s312, 5
        %s315 = smul.addr %s314, 7
        %s316 = smul.addr %s315, 8
        %s317 = scalar_lea.vmem %s0, %s316
        %p318 = pneg %p42
        %p319 = pneg %p39
        %p320 = pneg %p63
        %p321 = pneg %p60
        %p322 = pneg %p84
        %p323 = pneg %p81
        %p324 = pneg %p105
        %p325 = pneg %p102
        %p326 = pneg %p126
        %p327 = pneg %p123
        %p328 = pneg %p147
        %p329 = pneg %p144
        %p330 = pneg %p168
        %p331 = pneg %p165
        %p332 = pneg %p189
        %p333 = pneg %p186
        %p334 = pneg %p210
        %p335 = pneg %p207
        %p336 = pneg %p236
        %p337 = pneg %p233
        %s338 = smul.u32 3, %s21
        %p339 = scmp.lt.s32.totalorder %s338, 5
        %s340 = scalar_select %p339, %s338, 5
        %s341 = smul.addr %s340, 8
        %s342 = scalar_lea.vmem %s9, %s341
        %s343 = smul.u32 3, %s21
        %p344 = scmp.lt.s32.totalorder %s343, 5
        %s345 = scalar_select %p344, %s343, 5
        %s346 = smul.addr %s345, 7
        %s347 = smul.addr %s346, 8
        %s348 = scalar_lea.vmem %s0, %s347
        %s349 = smul.u32 3, %s21
        %s350 = smul.u32 3, %s21
        %p351 = scmp.lt.s32.totalorder %s350, 5
        %s352 = scalar_select %p351, %s350, 5
        %s353 = smul.addr %s352, 8
        %s354 = scalar_lea.vmem %s9, %s353
        %s355 = smul.u32 3, %s21
        %v358 = vld [vmem:[%s348] sm:$0xff]
        %v359 = vld [vmem:[%s348 + $0x8] sm:$0xff]
        %v360 = vld [vmem:[%s348 + $0x10] sm:$0xff]
        %v361 = vld [vmem:[%s348 + $0x18] sm:$0xff]
        %v362 = vld [vmem:[%s348 + $0x20] sm:$0xff]
        %v363 = vld [vmem:[%s348 + $0x28] sm:$0xff]
        %v364 = vld [vmem:[%s348 + $0x30] sm:$0xff]
        %v365 = vld [vmem:[%s348 + $0x38] sm:$0xff]
        %v366 = vld [vmem:[%s348 + $0x40] sm:$0xff]
        %v367 = vld [vmem:[%s348 + $0x48] sm:$0xff]
        %v368 = vld [vmem:[%s348 + $0x50] sm:$0xff]
        %v369 = vld [vmem:[%s348 + $0x58] sm:$0xff]
        %v370 = vld [vmem:[%s348 + $0x60] sm:$0xff]
        %v371 = vld [vmem:[%s348 + $0x68] sm:$0xff]
        %v372 = vld [vmem:[%s348 + $0x70] sm:$0xff]
        %v373 = vld [vmem:[%s348 + $0x78] sm:$0xff]
        %v374 = vld [vmem:[%s348 + $0x80] sm:$0xff]
        %v375 = vld [vmem:[%s348 + $0x88] sm:$0xff]
        %v376 = vld [vmem:[%s348 + $0x90] sm:$0xff]
        %v377 = vld [vmem:[%s348 + $0x98] sm:$0xff]
        %v378 = vld [vmem:[%s348 + $0xa0] sm:$0xff]
        %v379 = vpack.c.bf16 %v365, %v358
        %v380 = vpack.c.bf16 %v366, %v359
        %v381 = vpack.c.bf16 %v367, %v360
        %v382 = vpack.c.bf16 %v368, %v361
        %v383 = vpack.c.bf16 %v369, %v362
        %v384 = vpack.c.bf16 %v370, %v363
        %v385 = vpack.c.bf16 %v371, %v364
        %v386 = vpack.c.bf16 %v372, %v372
        %v387 = vpack.c.bf16 %v373, %v373
        %v388 = vpack.c.bf16 %v374, %v374
        %v389 = vpack.c.bf16 %v375, %v375
        %v390 = vpack.c.bf16 %v376, %v376
        %v391 = vpack.c.bf16 %v377, %v377
        %v392 = vpack.c.bf16 %v378, %v378
        %v393 = vld [vmem:[%s1] sm:$0xff]
        %v394 = vld [vmem:[%s1 + $0x8] sm:$0xff]
        %v395 = vld [vmem:[%s1 + $0x10] sm:$0xff]
        %v396 = vld [vmem:[%s1 + $0x18] sm:$0xff]
        %v397 = vld [vmem:[%s1 + $0x20] sm:$0xff]
        %v398 = vld [vmem:[%s1 + $0x28] sm:$0xff]
        %v399 = vld [vmem:[%s1 + $0x30] sm:$0xff]
        %v400 = vld [vmem:[%s1 + $0x38] sm:$0xff]
        %v401 = vld [vmem:[%s1 + $0x40] sm:$0xff]
        %v402 = vld [vmem:[%s1 + $0x48] sm:$0xff]
        %v403 = vld [vmem:[%s1 + $0x50] sm:$0xff]
        %v404 = vld [vmem:[%s1 + $0x58] sm:$0xff]
        %v405 = vld [vmem:[%s1 + $0x60] sm:$0xff]
        %v406 = vld [vmem:[%s1 + $0x68] sm:$0xff]
        %v407 = vld [vmem:[%s1 + $0x70] sm:$0xff]
        %v408 = vld [vmem:[%s1 + $0x78] sm:$0xff]
        %v409 = vld [vmem:[%s1 + $0x80] sm:$0xff]
        %v410 = vld [vmem:[%s1 + $0x88] sm:$0xff]
        %v411 = vld [vmem:[%s1 + $0x90] sm:$0xff]
        %v412 = vld [vmem:[%s1 + $0x98] sm:$0xff]
        %v413 = vld [vmem:[%s1 + $0xa0] sm:$0xff]
        %v414 = vld [vmem:[%s1 + $0xa8] sm:$0xff]
        %v415 = vld [vmem:[%s1 + $0xb0] sm:$0xff]
        %v416 = vld [vmem:[%s1 + $0xb8] sm:$0xff]
        %v417 = vld [vmem:[%s1 + $0xc0] sm:$0xff]
        %v418 = vld [vmem:[%s1 + $0xc8] sm:$0xff]
        %v419 = vld [vmem:[%s1 + $0xd0] sm:$0xff]
        %v420 = vld [vmem:[%s1 + $0xd8] sm:$0xff]
        %v421 = vld [vmem:[%s1 + $0xe0] sm:$0xff]
        %v422 = vld [vmem:[%s1 + $0xe8] sm:$0xff]
        %v423 = vld [vmem:[%s1 + $0xf0] sm:$0xff]
        %v424 = vld [vmem:[%s1 + $0xf8] sm:$0xff]
        %v425 = vld [vmem:[%s1 + $0x100] sm:$0xff]
        %v426 = vld [vmem:[%s1 + $0x108] sm:$0xff]
        %v427 = vld [vmem:[%s1 + $0x110] sm:$0xff]
        %v428 = vld [vmem:[%s1 + $0x118] sm:$0xff]
        %v429 = vld [vmem:[%s1 + $0x120] sm:$0xff]
        %v430 = vld [vmem:[%s1 + $0x128] sm:$0xff]
        %v431 = vld [vmem:[%s1 + $0x130] sm:$0xff]
        %v432 = vld [vmem:[%s1 + $0x138] sm:$0xff]
        %v433 = vld [vmem:[%s1 + $0x140] sm:$0xff]
        %v434 = vld [vmem:[%s1 + $0x148] sm:$0xff]
        %v435 = vld [vmem:[%s1 + $0x150] sm:$0xff]
        %v436 = vld [vmem:[%s1 + $0x158] sm:$0xff]
        %v437 = vld [vmem:[%s1 + $0x160] sm:$0xff]
        %v438 = vld [vmem:[%s1 + $0x168] sm:$0xff]
        %v439 = vld [vmem:[%s1 + $0x170] sm:$0xff]
        %v440 = vld [vmem:[%s1 + $0x178] sm:$0xff]
        %v441 = vld [vmem:[%s1 + $0x180] sm:$0xff]
        %v442 = vld [vmem:[%s1 + $0x188] sm:$0xff]
        %v443 = vld [vmem:[%s1 + $0x190] sm:$0xff]
        %v444 = vld [vmem:[%s1 + $0x198] sm:$0xff]
        %v445 = vld [vmem:[%s1 + $0x1a0] sm:$0xff]
        %v446 = vld [vmem:[%s1 + $0x1a8] sm:$0xff]
        %v447 = vld [vmem:[%s1 + $0x1b0] sm:$0xff]
        %v448 = vld [vmem:[%s1 + $0x1b8] sm:$0xff]
        %v449 = vld [vmem:[%s1 + $0x1c0] sm:$0xff]
        %v450 = vld [vmem:[%s1 + $0x1c8] sm:$0xff]
        %v451 = vld [vmem:[%s1 + $0x1d0] sm:$0xff]
        %v452 = vld [vmem:[%s1 + $0x1d8] sm:$0xff]
        %v453 = vld [vmem:[%s1 + $0x1e0] sm:$0xff]
        %v454 = vld [vmem:[%s1 + $0x1e8] sm:$0xff]
        %v455 = vld [vmem:[%s1 + $0x1f0] sm:$0xff]
        %v456 = vld [vmem:[%s1 + $0x1f8] sm:$0xff]
        %v457 = vld [vmem:[%s1 + $0x200] sm:$0xff]
        %v458 = vld [vmem:[%s1 + $0x208] sm:$0xff]
        %v459 = vld [vmem:[%s1 + $0x210] sm:$0xff]
        %v460 = vld [vmem:[%s1 + $0x218] sm:$0xff]
        %v461 = vld [vmem:[%s1 + $0x220] sm:$0xff]
        %v462 = vld [vmem:[%s1 + $0x228] sm:$0xff]
        %v463 = vld [vmem:[%s1 + $0x230] sm:$0xff]
        %v464 = vld [vmem:[%s1 + $0x238] sm:$0xff]
        %v465 = vld [vmem:[%s1 + $0x240] sm:$0xff]
        %v466 = vld [vmem:[%s1 + $0x248] sm:$0xff]
        %v467 = vld [vmem:[%s1 + $0x250] sm:$0xff]
        %v468 = vld [vmem:[%s1 + $0x258] sm:$0xff]
        %v469 = vld [vmem:[%s1 + $0x260] sm:$0xff]
        %v470 = vld [vmem:[%s1 + $0x268] sm:$0xff]
        %v471 = vld [vmem:[%s1 + $0x270] sm:$0xff]
        %v472 = vld [vmem:[%s1 + $0x278] sm:$0xff]
        %v473 = vld [vmem:[%s1 + $0x280] sm:$0xff]
        %v474 = vld [vmem:[%s1 + $0x288] sm:$0xff]
        %v475 = vld [vmem:[%s1 + $0x290] sm:$0xff]
        %v476 = vld [vmem:[%s1 + $0x298] sm:$0xff]
        %v477 = vld [vmem:[%s1 + $0x2a0] sm:$0xff]
        %v478 = vld [vmem:[%s1 + $0x2a8] sm:$0xff]
        %v479 = vld [vmem:[%s1 + $0x2b0] sm:$0xff]
        %v480 = vld [vmem:[%s1 + $0x2b8] sm:$0xff]
        %v481 = vld [vmem:[%s1 + $0x2c0] sm:$0xff]
        %v482 = vld [vmem:[%s1 + $0x2c8] sm:$0xff]
        %v483 = vld [vmem:[%s1 + $0x2d0] sm:$0xff]
        %v484 = vld [vmem:[%s1 + $0x2d8] sm:$0xff]
        %v485 = vld [vmem:[%s1 + $0x2e0] sm:$0xff]
        %v486 = vld [vmem:[%s1 + $0x2e8] sm:$0xff]
        %v487 = vld [vmem:[%s1 + $0x2f0] sm:$0xff]
        %v488 = vld [vmem:[%s1 + $0x2f8] sm:$0xff]
        %v489 = vld [vmem:[%s1 + $0x300] sm:$0xff]
        %v490 = vld [vmem:[%s1 + $0x308] sm:$0xff]
        %v491 = vld [vmem:[%s1 + $0x310] sm:$0xff]
        %v492 = vld [vmem:[%s1 + $0x318] sm:$0xff]
        %v493 = vld [vmem:[%s1 + $0x320] sm:$0xff]
        %v494 = vld [vmem:[%s1 + $0x328] sm:$0xff]
        %v495 = vld [vmem:[%s1 + $0x330] sm:$0xff]
        %v496 = vld [vmem:[%s1 + $0x338] sm:$0xff]
        %v497 = vld [vmem:[%s1 + $0x340] sm:$0xff]
        %v498 = vld [vmem:[%s1 + $0x348] sm:$0xff]
        %v499 = vld [vmem:[%s1 + $0x350] sm:$0xff]
        %v500 = vld [vmem:[%s1 + $0x358] sm:$0xff]
        %v501 = vld [vmem:[%s1 + $0x360] sm:$0xff]
        %v502 = vld [vmem:[%s1 + $0x368] sm:$0xff]
        %v503 = vld [vmem:[%s1 + $0x370] sm:$0xff]
        %v504 = vld [vmem:[%s1 + $0x378] sm:$0xff]
        %v505 = vld [vmem:[%s1 + $0x380] sm:$0xff]
        %v506 = vld [vmem:[%s1 + $0x388] sm:$0xff]
        %v507 = vld [vmem:[%s1 + $0x390] sm:$0xff]
        %v508 = vld [vmem:[%s1 + $0x398] sm:$0xff]
        %v509 = vld [vmem:[%s1 + $0x3a0] sm:$0xff]
        %v510 = vld [vmem:[%s1 + $0x3a8] sm:$0xff]
        %v511 = vld [vmem:[%s1 + $0x3b0] sm:$0xff]
        %v512 = vld [vmem:[%s1 + $0x3b8] sm:$0xff]
        %v513 = vld [vmem:[%s1 + $0x3c0] sm:$0xff]
        %v514 = vld [vmem:[%s1 + $0x3c8] sm:$0xff]
        %v515 = vld [vmem:[%s1 + $0x3d0] sm:$0xff]
        %v516 = vld [vmem:[%s1 + $0x3d8] sm:$0xff]
        %v517 = vld [vmem:[%s1 + $0x3e0] sm:$0xff]
        %v518 = vld [vmem:[%s1 + $0x3e8] sm:$0xff]
        %v519 = vld [vmem:[%s1 + $0x3f0] sm:$0xff]
        %v520 = vld [vmem:[%s1 + $0x3f8] sm:$0xff]
        %v521 = vld [vmem:[%s1 + $0x400] sm:$0xff]
        %v522 = vld [vmem:[%s1 + $0x408] sm:$0xff]
        %v523 = vld [vmem:[%s1 + $0x410] sm:$0xff]
        %v524 = vld [vmem:[%s1 + $0x418] sm:$0xff]
        %v525 = vld [vmem:[%s1 + $0x420] sm:$0xff]
        %v526 = vld [vmem:[%s1 + $0x428] sm:$0xff]
        %v527 = vld [vmem:[%s1 + $0x430] sm:$0xff]
        %v528 = vld [vmem:[%s1 + $0x438] sm:$0xff]
        %v529 = vld [vmem:[%s1 + $0x440] sm:$0xff]
        %v530 = vld [vmem:[%s1 + $0x448] sm:$0xff]
        %v531 = vld [vmem:[%s1 + $0x450] sm:$0xff]
        %v532 = vld [vmem:[%s1 + $0x458] sm:$0xff]
        %v533 = vld [vmem:[%s1 + $0x460] sm:$0xff]
        %v534 = vld [vmem:[%s1 + $0x468] sm:$0xff]
        %v535 = vld [vmem:[%s1 + $0x470] sm:$0xff]
        %v536 = vld [vmem:[%s1 + $0x478] sm:$0xff]
        %v537 = vld [vmem:[%s1 + $0x480] sm:$0xff]
        %v538 = vld [vmem:[%s1 + $0x488] sm:$0xff]
        %v539 = vld [vmem:[%s1 + $0x490] sm:$0xff]
        %v540 = vld [vmem:[%s1 + $0x498] sm:$0xff]
        %v541 = vld [vmem:[%s1 + $0x4a0] sm:$0xff]
        %v542 = vld [vmem:[%s1 + $0x4a8] sm:$0xff]
        %v543 = vld [vmem:[%s1 + $0x4b0] sm:$0xff]
        %v544 = vld [vmem:[%s1 + $0x4b8] sm:$0xff]
        %v545 = vld [vmem:[%s1 + $0x4c0] sm:$0xff]
        %v546 = vld [vmem:[%s1 + $0x4c8] sm:$0xff]
        %v547 = vld [vmem:[%s1 + $0x4d0] sm:$0xff]
        %v548 = vld [vmem:[%s1 + $0x4d8] sm:$0xff]
        %v549 = vld [vmem:[%s1 + $0x4e0] sm:$0xff]
        %v550 = vld [vmem:[%s1 + $0x4e8] sm:$0xff]
        %v551 = vld [vmem:[%s1 + $0x4f0] sm:$0xff]
        %v552 = vld [vmem:[%s1 + $0x4f8] sm:$0xff]
        %v553 = vld [vmem:[%s1 + $0x500] sm:$0xff]
        %v554 = vld [vmem:[%s1 + $0x508] sm:$0xff]
        %v555 = vld [vmem:[%s1 + $0x510] sm:$0xff]
        %v556 = vld [vmem:[%s1 + $0x518] sm:$0xff]
        %v557 = vld [vmem:[%s1 + $0x520] sm:$0xff]
        %v558 = vld [vmem:[%s1 + $0x528] sm:$0xff]
        %v559 = vld [vmem:[%s1 + $0x530] sm:$0xff]
        %v560 = vld [vmem:[%s1 + $0x538] sm:$0xff]
        %v561 = vld [vmem:[%s1 + $0x540] sm:$0xff]
        %v562 = vld [vmem:[%s1 + $0x548] sm:$0xff]
        %v563 = vld [vmem:[%s1 + $0x550] sm:$0xff]
        %v564 = vld [vmem:[%s1 + $0x558] sm:$0xff]
        %v565 = vld [vmem:[%s1 + $0x560] sm:$0xff]
        %v566 = vld [vmem:[%s1 + $0x568] sm:$0xff]
        %v567 = vld [vmem:[%s1 + $0x570] sm:$0xff]
        %v568 = vld [vmem:[%s1 + $0x578] sm:$0xff]
        %v569 = vld [vmem:[%s1 + $0x580] sm:$0xff]
        %v570 = vld [vmem:[%s1 + $0x588] sm:$0xff]
        %v571 = vld [vmem:[%s1 + $0x590] sm:$0xff]
        %v572 = vld [vmem:[%s1 + $0x598] sm:$0xff]
        %v573 = vld [vmem:[%s1 + $0x5a0] sm:$0xff]
        %v574 = vld [vmem:[%s1 + $0x5a8] sm:$0xff]
        %v575 = vld [vmem:[%s1 + $0x5b0] sm:$0xff]
        %v576 = vld [vmem:[%s1 + $0x5b8] sm:$0xff]
        %v577 = vld [vmem:[%s1 + $0x5c0] sm:$0xff]
        %v578 = vld [vmem:[%s1 + $0x5c8] sm:$0xff]
        %v579 = vld [vmem:[%s1 + $0x5d0] sm:$0xff]
        %v580 = vld [vmem:[%s1 + $0x5d8] sm:$0xff]
        %v581 = vld [vmem:[%s1 + $0x5e0] sm:$0xff]
        %v582 = vld [vmem:[%s1 + $0x5e8] sm:$0xff]
        %v583 = vld [vmem:[%s1 + $0x5f0] sm:$0xff]
        %v584 = vld [vmem:[%s1 + $0x5f8] sm:$0xff]
        %v585 = vld [vmem:[%s1 + $0x600] sm:$0xff]
        %v586 = vld [vmem:[%s1 + $0x608] sm:$0xff]
        %v587 = vld [vmem:[%s1 + $0x610] sm:$0xff]
        %v588 = vld [vmem:[%s1 + $0x618] sm:$0xff]
        %v589 = vld [vmem:[%s1 + $0x620] sm:$0xff]
        %v590 = vld [vmem:[%s1 + $0x628] sm:$0xff]
        %v591 = vld [vmem:[%s1 + $0x630] sm:$0xff]
        %v592 = vld [vmem:[%s1 + $0x638] sm:$0xff]
        %v593 = vld [vmem:[%s1 + $0x640] sm:$0xff]
        %v594 = vld [vmem:[%s1 + $0x648] sm:$0xff]
        %v595 = vld [vmem:[%s1 + $0x650] sm:$0xff]
        %v596 = vld [vmem:[%s1 + $0x658] sm:$0xff]
        %v597 = vld [vmem:[%s1 + $0x660] sm:$0xff]
        %v598 = vld [vmem:[%s1 + $0x668] sm:$0xff]
        %v599 = vld [vmem:[%s1 + $0x670] sm:$0xff]
        %v600 = vld [vmem:[%s1 + $0x678] sm:$0xff]
        %v601 = vld [vmem:[%s1 + $0x680] sm:$0xff]
        %v602 = vld [vmem:[%s1 + $0x688] sm:$0xff]
        %v603 = vld [vmem:[%s1 + $0x690] sm:$0xff]
        %v604 = vld [vmem:[%s1 + $0x698] sm:$0xff]
        %v605 = vld [vmem:[%s1 + $0x6a0] sm:$0xff]
        %v606 = vld [vmem:[%s1 + $0x6a8] sm:$0xff]
        %v607 = vld [vmem:[%s1 + $0x6b0] sm:$0xff]
        %v608 = vld [vmem:[%s1 + $0x6b8] sm:$0xff]
        %v609 = vld [vmem:[%s1 + $0x6c0] sm:$0xff]
        %v610 = vld [vmem:[%s1 + $0x6c8] sm:$0xff]
        %v611 = vld [vmem:[%s1 + $0x6d0] sm:$0xff]
        %v612 = vld [vmem:[%s1 + $0x6d8] sm:$0xff]
        %v613 = vld [vmem:[%s1 + $0x6e0] sm:$0xff]
        %v614 = vld [vmem:[%s1 + $0x6e8] sm:$0xff]
        %v615 = vld [vmem:[%s1 + $0x6f0] sm:$0xff]
        %v616 = vld [vmem:[%s1 + $0x6f8] sm:$0xff]
        %v617 = vld [vmem:[%s1 + $0x700] sm:$0xff]
        %v618 = vld [vmem:[%s1 + $0x708] sm:$0xff]
        %v619 = vld [vmem:[%s1 + $0x710] sm:$0xff]
        %v620 = vld [vmem:[%s1 + $0x718] sm:$0xff]
        %v621 = vld [vmem:[%s1 + $0x720] sm:$0xff]
        %v622 = vld [vmem:[%s1 + $0x728] sm:$0xff]
        %v623 = vld [vmem:[%s1 + $0x730] sm:$0xff]
        %v624 = vld [vmem:[%s1 + $0x738] sm:$0xff]
        %v625 = vld [vmem:[%s1 + $0x740] sm:$0xff]
        %v626 = vld [vmem:[%s1 + $0x748] sm:$0xff]
        %v627 = vld [vmem:[%s1 + $0x750] sm:$0xff]
        %v628 = vld [vmem:[%s1 + $0x758] sm:$0xff]
        %v629 = vld [vmem:[%s1 + $0x760] sm:$0xff]
        %v630 = vld [vmem:[%s1 + $0x768] sm:$0xff]
        %v631 = vld [vmem:[%s1 + $0x770] sm:$0xff]
        %v632 = vld [vmem:[%s1 + $0x778] sm:$0xff]
        %v633 = vld [vmem:[%s1 + $0x780] sm:$0xff]
        %v634 = vld [vmem:[%s1 + $0x788] sm:$0xff]
        %v635 = vld [vmem:[%s1 + $0x790] sm:$0xff]
        %v636 = vld [vmem:[%s1 + $0x798] sm:$0xff]
        %v637 = vld [vmem:[%s1 + $0x7a0] sm:$0xff]
        %v638 = vld [vmem:[%s1 + $0x7a8] sm:$0xff]
        %v639 = vld [vmem:[%s1 + $0x7b0] sm:$0xff]
        %v640 = vld [vmem:[%s1 + $0x7b8] sm:$0xff]
        %v641 = vld [vmem:[%s1 + $0x7c0] sm:$0xff]
        %v642 = vld [vmem:[%s1 + $0x7c8] sm:$0xff]
        %v643 = vld [vmem:[%s1 + $0x7d0] sm:$0xff]
        %v644 = vld [vmem:[%s1 + $0x7d8] sm:$0xff]
        %v645 = vld [vmem:[%s1 + $0x7e0] sm:$0xff]
        %v646 = vld [vmem:[%s1 + $0x7e8] sm:$0xff]
        %v647 = vld [vmem:[%s1 + $0x7f0] sm:$0xff]
        %v648 = vld [vmem:[%s1 + $0x7f8] sm:$0xff]
        %v649 = vld [vmem:[%s1 + $0x800] sm:$0xff]
        %v650 = vld [vmem:[%s1 + $0x808] sm:$0xff]
        %v651 = vld [vmem:[%s1 + $0x810] sm:$0xff]
        %v652 = vld [vmem:[%s1 + $0x818] sm:$0xff]
        %v653 = vld [vmem:[%s1 + $0x820] sm:$0xff]
        %v654 = vld [vmem:[%s1 + $0x828] sm:$0xff]
        %v655 = vld [vmem:[%s1 + $0x830] sm:$0xff]
        %v656 = vld [vmem:[%s1 + $0x838] sm:$0xff]
        %v657 = vld [vmem:[%s1 + $0x840] sm:$0xff]
        %v658 = vld [vmem:[%s1 + $0x848] sm:$0xff]
        %v659 = vld [vmem:[%s1 + $0x850] sm:$0xff]
        %v660 = vld [vmem:[%s1 + $0x858] sm:$0xff]
        %v661 = vld [vmem:[%s1 + $0x860] sm:$0xff]
        %v662 = vld [vmem:[%s1 + $0x868] sm:$0xff]
        %v663 = vld [vmem:[%s1 + $0x870] sm:$0xff]
        %v664 = vld [vmem:[%s1 + $0x878] sm:$0xff]
        %v665 = vld [vmem:[%s1 + $0x880] sm:$0xff]
        %v666 = vld [vmem:[%s1 + $0x888] sm:$0xff]
        %v667 = vld [vmem:[%s1 + $0x890] sm:$0xff]
        %v668 = vld [vmem:[%s1 + $0x898] sm:$0xff]
        %v669 = vld [vmem:[%s1 + $0x8a0] sm:$0xff]
        %v670 = vld [vmem:[%s1 + $0x8a8] sm:$0xff]
        %v671 = vld [vmem:[%s1 + $0x8b0] sm:$0xff]
        %v672 = vld [vmem:[%s1 + $0x8b8] sm:$0xff]
        %v673 = vld [vmem:[%s1 + $0x8c0] sm:$0xff]
        %v674 = vld [vmem:[%s1 + $0x8c8] sm:$0xff]
        %v675 = vld [vmem:[%s1 + $0x8d0] sm:$0xff]
        %v676 = vld [vmem:[%s1 + $0x8d8] sm:$0xff]
        %v677 = vld [vmem:[%s1 + $0x8e0] sm:$0xff]
        %v678 = vld [vmem:[%s1 + $0x8e8] sm:$0xff]
        %v679 = vld [vmem:[%s1 + $0x8f0] sm:$0xff]
        %v680 = vld [vmem:[%s1 + $0x8f8] sm:$0xff]
        %v681 = vld [vmem:[%s1 + $0x900] sm:$0xff]
        %v682 = vld [vmem:[%s1 + $0x908] sm:$0xff]
        %v683 = vld [vmem:[%s1 + $0x910] sm:$0xff]
        %v684 = vld [vmem:[%s1 + $0x918] sm:$0xff]
        %v685 = vld [vmem:[%s1 + $0x920] sm:$0xff]
        %v686 = vld [vmem:[%s1 + $0x928] sm:$0xff]
        %v687 = vld [vmem:[%s1 + $0x930] sm:$0xff]
        %v688 = vld [vmem:[%s1 + $0x938] sm:$0xff]
        %v689 = vld [vmem:[%s1 + $0x940] sm:$0xff]
        %v690 = vld [vmem:[%s1 + $0x948] sm:$0xff]
        %v691 = vld [vmem:[%s1 + $0x950] sm:$0xff]
        %v692 = vld [vmem:[%s1 + $0x958] sm:$0xff]
        %v693 = vld [vmem:[%s1 + $0x960] sm:$0xff]
        %v694 = vld [vmem:[%s1 + $0x968] sm:$0xff]
        %v695 = vld [vmem:[%s1 + $0x970] sm:$0xff]
        %v696 = vld [vmem:[%s1 + $0x978] sm:$0xff]
        %v697 = vld [vmem:[%s1 + $0x980] sm:$0xff]
        %v698 = vld [vmem:[%s1 + $0x988] sm:$0xff]
        %v699 = vld [vmem:[%s1 + $0x990] sm:$0xff]
        %v700 = vld [vmem:[%s1 + $0x998] sm:$0xff]
        %v701 = vld [vmem:[%s1 + $0x9a0] sm:$0xff]
        %v702 = vld [vmem:[%s1 + $0x9a8] sm:$0xff]
        %v703 = vld [vmem:[%s1 + $0x9b0] sm:$0xff]
        %v704 = vld [vmem:[%s1 + $0x9b8] sm:$0xff]
        %v705 = vld [vmem:[%s1 + $0x9c0] sm:$0xff]
        %v706 = vld [vmem:[%s1 + $0x9c8] sm:$0xff]
        %v707 = vld [vmem:[%s1 + $0x9d0] sm:$0xff]
        %v708 = vld [vmem:[%s1 + $0x9d8] sm:$0xff]
        %v709 = vld [vmem:[%s1 + $0x9e0] sm:$0xff]
        %v710 = vld [vmem:[%s1 + $0x9e8] sm:$0xff]
        %v711 = vld [vmem:[%s1 + $0x9f0] sm:$0xff]
        %v712 = vld [vmem:[%s1 + $0x9f8] sm:$0xff]
        %v713 = vld [vmem:[%s1 + $0xa00] sm:$0xff]
        %v714 = vld [vmem:[%s1 + $0xa08] sm:$0xff]
        %v715 = vld [vmem:[%s1 + $0xa10] sm:$0xff]
        %v716 = vld [vmem:[%s1 + $0xa18] sm:$0xff]
        %v717 = vld [vmem:[%s1 + $0xa20] sm:$0xff]
        %v718 = vld [vmem:[%s1 + $0xa28] sm:$0xff]
        %v719 = vld [vmem:[%s1 + $0xa30] sm:$0xff]
        %v720 = vld [vmem:[%s1 + $0xa38] sm:$0xff]
        %v721 = vld [vmem:[%s1 + $0xa40] sm:$0xff]
        %v722 = vld [vmem:[%s1 + $0xa48] sm:$0xff]
        %v723 = vld [vmem:[%s1 + $0xa50] sm:$0xff]
        %v724 = vld [vmem:[%s1 + $0xa58] sm:$0xff]
        %v725 = vld [vmem:[%s1 + $0xa60] sm:$0xff]
        %v726 = vld [vmem:[%s1 + $0xa68] sm:$0xff]
        %v727 = vld [vmem:[%s1 + $0xa70] sm:$0xff]
        %v728 = vld [vmem:[%s1 + $0xa78] sm:$0xff]
        %v729 = vld [vmem:[%s1 + $0xa80] sm:$0xff]
        %v730 = vld [vmem:[%s1 + $0xa88] sm:$0xff]
        %v731 = vld [vmem:[%s1 + $0xa90] sm:$0xff]
        %v732 = vld [vmem:[%s1 + $0xa98] sm:$0xff]
        %v733 = vld [vmem:[%s1 + $0xaa0] sm:$0xff]
        %v734 = vld [vmem:[%s1 + $0xaa8] sm:$0xff]
        %v735 = vld [vmem:[%s1 + $0xab0] sm:$0xff]
        %v736 = vld [vmem:[%s1 + $0xab8] sm:$0xff]
        %v737 = vld [vmem:[%s1 + $0xac0] sm:$0xff]
        %v738 = vld [vmem:[%s1 + $0xac8] sm:$0xff]
        %v739 = vld [vmem:[%s1 + $0xad0] sm:$0xff]
        %v740 = vld [vmem:[%s1 + $0xad8] sm:$0xff]
        %v741 = vld [vmem:[%s1 + $0xae0] sm:$0xff]
        %v742 = vld [vmem:[%s1 + $0xae8] sm:$0xff]
        %v743 = vld [vmem:[%s1 + $0xaf0] sm:$0xff]
        %v744 = vld [vmem:[%s1 + $0xaf8] sm:$0xff]
        %v745 = vld [vmem:[%s1 + $0xb00] sm:$0xff]
        %v746 = vld [vmem:[%s1 + $0xb08] sm:$0xff]
        %v747 = vld [vmem:[%s1 + $0xb10] sm:$0xff]
        %v748 = vld [vmem:[%s1 + $0xb18] sm:$0xff]
        %v749 = vld [vmem:[%s1 + $0xb20] sm:$0xff]
        %v750 = vld [vmem:[%s1 + $0xb28] sm:$0xff]
        %v751 = vld [vmem:[%s1 + $0xb30] sm:$0xff]
        %v752 = vld [vmem:[%s1 + $0xb38] sm:$0xff]
        %v753 = vld [vmem:[%s1 + $0xb40] sm:$0xff]
        %v754 = vld [vmem:[%s1 + $0xb48] sm:$0xff]
        %v755 = vld [vmem:[%s1 + $0xb50] sm:$0xff]
        %v756 = vld [vmem:[%s1 + $0xb58] sm:$0xff]
        %v757 = vld [vmem:[%s1 + $0xb60] sm:$0xff]
        %v758 = vld [vmem:[%s1 + $0xb68] sm:$0xff]
        %v759 = vld [vmem:[%s1 + $0xb70] sm:$0xff]
        %v760 = vld [vmem:[%s1 + $0xb78] sm:$0xff]
        %v761 = vld [vmem:[%s1 + $0xb80] sm:$0xff]
        %v762 = vld [vmem:[%s1 + $0xb88] sm:$0xff]
        %v763 = vld [vmem:[%s1 + $0xb90] sm:$0xff]
        %v764 = vld [vmem:[%s1 + $0xb98] sm:$0xff]
        %v765 = vld [vmem:[%s1 + $0xba0] sm:$0xff]
        %v766 = vld [vmem:[%s1 + $0xba8] sm:$0xff]
        %v767 = vld [vmem:[%s1 + $0xbb0] sm:$0xff]
        %v768 = vld [vmem:[%s1 + $0xbb8] sm:$0xff]
        %v769 = vld [vmem:[%s1 + $0xbc0] sm:$0xff]
        %v770 = vld [vmem:[%s1 + $0xbc8] sm:$0xff]
        %v771 = vld [vmem:[%s1 + $0xbd0] sm:$0xff]
        %v772 = vld [vmem:[%s1 + $0xbd8] sm:$0xff]
        %v773 = vld [vmem:[%s1 + $0xbe0] sm:$0xff]
        %v774 = vld [vmem:[%s1 + $0xbe8] sm:$0xff]
        %v775 = vld [vmem:[%s1 + $0xbf0] sm:$0xff]
        %v776 = vld [vmem:[%s1 + $0xbf8] sm:$0xff]
        %v777 = vld [vmem:[%s1 + $0xc00] sm:$0xff]
        %v778 = vld [vmem:[%s1 + $0xc08] sm:$0xff]
        %v779 = vld [vmem:[%s1 + $0xc10] sm:$0xff]
        %v780 = vld [vmem:[%s1 + $0xc18] sm:$0xff]
        %v781 = vld [vmem:[%s1 + $0xc20] sm:$0xff]
        %v782 = vld [vmem:[%s1 + $0xc28] sm:$0xff]
        %v783 = vld [vmem:[%s1 + $0xc30] sm:$0xff]
        %v784 = vld [vmem:[%s1 + $0xc38] sm:$0xff]
        %v785 = vld [vmem:[%s2] sm:$0xff]
        %v787 = vperm.slane %v785, 0
        %v788 = vperm.slane %v785, 1
        %v789 = vperm.slane %v785, 2
        %v790 = vperm.slane %v785, 3
        %v791 = vperm.slane %v785, 4
        %v792 = vperm.slane %v785, 5
        %v793 = vperm.slane %v785, 6
        %v794 = vperm.slane %v785, 7
        %v1195 = vunpack.c.l.b16 %v393
        %v1196 = vunpack.c.h.b16 %v393
        %v1197 = vunpack.c.l.b16 %v394
        %v1198 = vunpack.c.h.b16 %v394
        %v1199 = vunpack.c.l.b16 %v395
        %v1200 = vunpack.c.h.b16 %v395
        %v1201 = vunpack.c.l.b16 %v396
        %v1202 = vunpack.c.h.b16 %v396
        %v1203 = vunpack.c.l.b16 %v397
        %v1204 = vunpack.c.h.b16 %v397
        %v1205 = vunpack.c.l.b16 %v398
        %v1206 = vunpack.c.h.b16 %v398
        %v1207 = vunpack.c.l.b16 %v399
        %v1208 = vunpack.c.h.b16 %v399
        %v1209 = vunpack.c.l.b16 %v400
        %v1210 = vunpack.c.h.b16 %v400
        %v1211 = vunpack.c.l.b16 %v401
        %v1212 = vunpack.c.h.b16 %v401
        %v1213 = vunpack.c.l.b16 %v402
        %v1214 = vunpack.c.h.b16 %v402
        %v1215 = vunpack.c.l.b16 %v403
        %v1216 = vunpack.c.h.b16 %v403
        %v1217 = vunpack.c.l.b16 %v404
        %v1218 = vunpack.c.h.b16 %v404
        %v1219 = vunpack.c.l.b16 %v405
        %v1220 = vunpack.c.h.b16 %v405
        %v1221 = vunpack.c.l.b16 %v406
        %v1222 = vunpack.c.h.b16 %v406
        %v1223 = vunpack.c.l.b16 %v407
        %v1224 = vunpack.c.h.b16 %v407
        %v1225 = vunpack.c.l.b16 %v408
        %v1226 = vunpack.c.h.b16 %v408
        %v1227 = vunpack.c.l.b16 %v409
        %v1228 = vunpack.c.h.b16 %v409
        %v1229 = vunpack.c.l.b16 %v410
        %v1230 = vunpack.c.h.b16 %v410
        %v1231 = vunpack.c.l.b16 %v411
        %v1232 = vunpack.c.h.b16 %v411
        %v1233 = vunpack.c.l.b16 %v412
        %v1234 = vunpack.c.h.b16 %v412
        %v1235 = vunpack.c.l.b16 %v413
        %v1236 = vunpack.c.h.b16 %v413
        %v1237 = vunpack.c.l.b16 %v414
        %v1238 = vunpack.c.h.b16 %v414
        %v1239 = vunpack.c.l.b16 %v415
        %v1240 = vunpack.c.h.b16 %v415
        %v1241 = vunpack.c.l.b16 %v416
        %v1242 = vunpack.c.h.b16 %v416
        %v1243 = vunpack.c.l.b16 %v417
        %v1244 = vunpack.c.h.b16 %v417
        %v1245 = vunpack.c.l.b16 %v418
        %v1246 = vunpack.c.h.b16 %v418
        %v1247 = vunpack.c.l.b16 %v419
        %v1248 = vunpack.c.h.b16 %v419
        %v1249 = vunpack.c.l.b16 %v420
        %v1250 = vunpack.c.h.b16 %v420
        %v1251 = vunpack.c.l.b16 %v421
        %v1252 = vunpack.c.h.b16 %v421
        %v1253 = vunpack.c.l.b16 %v422
        %v1254 = vunpack.c.h.b16 %v422
        %v1255 = vunpack.c.l.b16 %v423
        %v1256 = vunpack.c.h.b16 %v423
        %v1257 = vunpack.c.l.b16 %v424
        %v1258 = vunpack.c.h.b16 %v424
        %v1259 = vunpack.c.l.b16 %v425
        %v1260 = vunpack.c.h.b16 %v425
        %v1261 = vunpack.c.l.b16 %v426
        %v1262 = vunpack.c.h.b16 %v426
        %v1263 = vunpack.c.l.b16 %v427
        %v1264 = vunpack.c.h.b16 %v427
        %v1265 = vunpack.c.l.b16 %v428
        %v1266 = vunpack.c.h.b16 %v428
        %v1267 = vunpack.c.l.b16 %v429
        %v1268 = vunpack.c.h.b16 %v429
        %v1269 = vunpack.c.l.b16 %v430
        %v1270 = vunpack.c.h.b16 %v430
        %v1271 = vunpack.c.l.b16 %v431
        %v1272 = vunpack.c.h.b16 %v431
        %v1273 = vunpack.c.l.b16 %v432
        %v1274 = vunpack.c.h.b16 %v432
        %v1275 = vunpack.c.l.b16 %v433
        %v1276 = vunpack.c.h.b16 %v433
        %v1277 = vunpack.c.l.b16 %v434
        %v1278 = vunpack.c.h.b16 %v434
        %v1279 = vunpack.c.l.b16 %v435
        %v1280 = vunpack.c.h.b16 %v435
        %v1281 = vunpack.c.l.b16 %v436
        %v1282 = vunpack.c.h.b16 %v436
        %v1283 = vunpack.c.l.b16 %v437
        %v1284 = vunpack.c.h.b16 %v437
        %v1285 = vunpack.c.l.b16 %v438
        %v1286 = vunpack.c.h.b16 %v438
        %v1287 = vunpack.c.l.b16 %v439
        %v1288 = vunpack.c.h.b16 %v439
        %v1289 = vunpack.c.l.b16 %v440
        %v1290 = vunpack.c.h.b16 %v440
        %v1291 = vunpack.c.l.b16 %v441
        %v1292 = vunpack.c.h.b16 %v441
        %v1293 = vunpack.c.l.b16 %v442
        %v1294 = vunpack.c.h.b16 %v442
        %v1295 = vunpack.c.l.b16 %v443
        %v1296 = vunpack.c.h.b16 %v443
        %v1297 = vunpack.c.l.b16 %v444
        %v1298 = vunpack.c.h.b16 %v444
        %v1299 = vunpack.c.l.b16 %v445
        %v1300 = vunpack.c.h.b16 %v445
        %v1301 = vunpack.c.l.b16 %v446
        %v1302 = vunpack.c.h.b16 %v446
        %v1303 = vunpack.c.l.b16 %v447
        %v1304 = vunpack.c.h.b16 %v447
        %v1305 = vunpack.c.l.b16 %v448
        %v1306 = vunpack.c.h.b16 %v448
        %v1307 = vunpack.c.l.b16 %v449
        %v1308 = vunpack.c.h.b16 %v449
        %v1309 = vunpack.c.l.b16 %v450
        %v1310 = vunpack.c.h.b16 %v450
        %v1311 = vunpack.c.l.b16 %v451
        %v1312 = vunpack.c.h.b16 %v451
        %v1313 = vunpack.c.l.b16 %v452
        %v1314 = vunpack.c.h.b16 %v452
        %v1315 = vunpack.c.l.b16 %v453
        %v1316 = vunpack.c.h.b16 %v453
        %v1317 = vunpack.c.l.b16 %v454
        %v1318 = vunpack.c.h.b16 %v454
        %v1319 = vunpack.c.l.b16 %v455
        %v1320 = vunpack.c.h.b16 %v455
        %v1321 = vunpack.c.l.b16 %v456
        %v1322 = vunpack.c.h.b16 %v456
        %v1323 = vunpack.c.l.b16 %v457
        %v1324 = vunpack.c.h.b16 %v457
        %v1325 = vunpack.c.l.b16 %v458
        %v1326 = vunpack.c.h.b16 %v458
        %v1327 = vunpack.c.l.b16 %v459
        %v1328 = vunpack.c.h.b16 %v459
        %v1329 = vunpack.c.l.b16 %v460
        %v1330 = vunpack.c.h.b16 %v460
        %v1331 = vunpack.c.l.b16 %v461
        %v1332 = vunpack.c.h.b16 %v461
        %v1333 = vunpack.c.l.b16 %v462
        %v1334 = vunpack.c.h.b16 %v462
        %v1335 = vunpack.c.l.b16 %v463
        %v1336 = vunpack.c.h.b16 %v463
        %v1337 = vunpack.c.l.b16 %v464
        %v1338 = vunpack.c.h.b16 %v464
        %v1339 = vunpack.c.l.b16 %v465
        %v1340 = vunpack.c.h.b16 %v465
        %v1341 = vunpack.c.l.b16 %v466
        %v1342 = vunpack.c.h.b16 %v466
        %v1343 = vunpack.c.l.b16 %v467
        %v1344 = vunpack.c.h.b16 %v467
        %v1345 = vunpack.c.l.b16 %v468
        %v1346 = vunpack.c.h.b16 %v468
        %v1347 = vunpack.c.l.b16 %v469
        %v1348 = vunpack.c.h.b16 %v469
        %v1349 = vunpack.c.l.b16 %v470
        %v1350 = vunpack.c.h.b16 %v470
        %v1351 = vunpack.c.l.b16 %v471
        %v1352 = vunpack.c.h.b16 %v471
        %v1353 = vunpack.c.l.b16 %v472
        %v1354 = vunpack.c.h.b16 %v472
        %v1355 = vunpack.c.l.b16 %v473
        %v1356 = vunpack.c.h.b16 %v473
        %v1357 = vunpack.c.l.b16 %v474
        %v1358 = vunpack.c.h.b16 %v474
        %v1359 = vunpack.c.l.b16 %v475
        %v1360 = vunpack.c.h.b16 %v475
        %v1361 = vunpack.c.l.b16 %v476
        %v1362 = vunpack.c.h.b16 %v476
        %v1363 = vunpack.c.l.b16 %v477
        %v1364 = vunpack.c.h.b16 %v477
        %v1365 = vunpack.c.l.b16 %v478
        %v1366 = vunpack.c.h.b16 %v478
        %v1367 = vunpack.c.l.b16 %v479
        %v1368 = vunpack.c.h.b16 %v479
        %v1369 = vunpack.c.l.b16 %v480
        %v1370 = vunpack.c.h.b16 %v480
        %v1371 = vunpack.c.l.b16 %v481
        %v1372 = vunpack.c.h.b16 %v481
        %v1373 = vunpack.c.l.b16 %v482
        %v1374 = vunpack.c.h.b16 %v482
        %v1375 = vunpack.c.l.b16 %v483
        %v1376 = vunpack.c.h.b16 %v483
        %v1377 = vunpack.c.l.b16 %v484
        %v1378 = vunpack.c.h.b16 %v484
        %v1379 = vunpack.c.l.b16 %v485
        %v1380 = vunpack.c.h.b16 %v485
        %v1381 = vunpack.c.l.b16 %v486
        %v1382 = vunpack.c.h.b16 %v486
        %v1383 = vunpack.c.l.b16 %v487
        %v1384 = vunpack.c.h.b16 %v487
        %v1385 = vunpack.c.l.b16 %v488
        %v1386 = vunpack.c.h.b16 %v488
        %v1387 = vunpack.c.l.b16 %v489
        %v1388 = vunpack.c.h.b16 %v489
        %v1389 = vunpack.c.l.b16 %v490
        %v1390 = vunpack.c.h.b16 %v490
        %v1391 = vunpack.c.l.b16 %v491
        %v1392 = vunpack.c.h.b16 %v491
        %v1393 = vunpack.c.l.b16 %v492
        %v1394 = vunpack.c.h.b16 %v492
        %v1395 = vunpack.c.l.b16 %v493
        %v1396 = vunpack.c.h.b16 %v493
        %v1397 = vunpack.c.l.b16 %v494
        %v1398 = vunpack.c.h.b16 %v494
        %v1399 = vunpack.c.l.b16 %v495
        %v1400 = vunpack.c.h.b16 %v495
        %v1401 = vunpack.c.l.b16 %v496
        %v1402 = vunpack.c.h.b16 %v496
        %v1403 = vunpack.c.l.b16 %v497
        %v1404 = vunpack.c.h.b16 %v497
        %v1405 = vunpack.c.l.b16 %v498
        %v1406 = vunpack.c.h.b16 %v498
        %v1407 = vunpack.c.l.b16 %v499
        %v1408 = vunpack.c.h.b16 %v499
        %v1409 = vunpack.c.l.b16 %v500
        %v1410 = vunpack.c.h.b16 %v500
        %v1411 = vunpack.c.l.b16 %v501
        %v1412 = vunpack.c.h.b16 %v501
        %v1413 = vunpack.c.l.b16 %v502
        %v1414 = vunpack.c.h.b16 %v502
        %v1415 = vunpack.c.l.b16 %v503
        %v1416 = vunpack.c.h.b16 %v503
        %v1417 = vunpack.c.l.b16 %v504
        %v1418 = vunpack.c.h.b16 %v504
        %v1419 = vunpack.c.l.b16 %v505
        %v1420 = vunpack.c.h.b16 %v505
        %v1421 = vunpack.c.l.b16 %v506
        %v1422 = vunpack.c.h.b16 %v506
        %v1423 = vunpack.c.l.b16 %v507
        %v1424 = vunpack.c.h.b16 %v507
        %v1425 = vunpack.c.l.b16 %v508
        %v1426 = vunpack.c.h.b16 %v508
        %v1427 = vunpack.c.l.b16 %v509
        %v1428 = vunpack.c.h.b16 %v509
        %v1429 = vunpack.c.l.b16 %v510
        %v1430 = vunpack.c.h.b16 %v510
        %v1431 = vunpack.c.l.b16 %v511
        %v1432 = vunpack.c.h.b16 %v511
        %v1433 = vunpack.c.l.b16 %v512
        %v1434 = vunpack.c.h.b16 %v512
        %v1435 = vunpack.c.l.b16 %v513
        %v1436 = vunpack.c.h.b16 %v513
        %v1437 = vunpack.c.l.b16 %v514
        %v1438 = vunpack.c.h.b16 %v514
        %v1439 = vunpack.c.l.b16 %v515
        %v1440 = vunpack.c.h.b16 %v515
        %v1441 = vunpack.c.l.b16 %v516
        %v1442 = vunpack.c.h.b16 %v516
        %v1443 = vunpack.c.l.b16 %v517
        %v1444 = vunpack.c.h.b16 %v517
        %v1445 = vunpack.c.l.b16 %v518
        %v1446 = vunpack.c.h.b16 %v518
        %v1447 = vunpack.c.l.b16 %v519
        %v1448 = vunpack.c.h.b16 %v519
        %v1449 = vunpack.c.l.b16 %v520
        %v1450 = vunpack.c.h.b16 %v520
        %v1451 = vunpack.c.l.b16 %v521
        %v1452 = vunpack.c.h.b16 %v521
        %v1453 = vunpack.c.l.b16 %v522
        %v1454 = vunpack.c.h.b16 %v522
        %v1455 = vunpack.c.l.b16 %v523
        %v1456 = vunpack.c.h.b16 %v523
        %v1457 = vunpack.c.l.b16 %v524
        %v1458 = vunpack.c.h.b16 %v524
        %v1459 = vunpack.c.l.b16 %v525
        %v1460 = vunpack.c.h.b16 %v525
        %v1461 = vunpack.c.l.b16 %v526
        %v1462 = vunpack.c.h.b16 %v526
        %v1463 = vunpack.c.l.b16 %v527
        %v1464 = vunpack.c.h.b16 %v527
        %v1465 = vunpack.c.l.b16 %v528
        %v1466 = vunpack.c.h.b16 %v528
        %v1467 = vunpack.c.l.b16 %v529
        %v1468 = vunpack.c.h.b16 %v529
        %v1469 = vunpack.c.l.b16 %v530
        %v1470 = vunpack.c.h.b16 %v530
        %v1471 = vunpack.c.l.b16 %v531
        %v1472 = vunpack.c.h.b16 %v531
        %v1473 = vunpack.c.l.b16 %v532
        %v1474 = vunpack.c.h.b16 %v532
        %v1475 = vunpack.c.l.b16 %v533
        %v1476 = vunpack.c.h.b16 %v533
        %v1477 = vunpack.c.l.b16 %v534
        %v1478 = vunpack.c.h.b16 %v534
        %v1479 = vunpack.c.l.b16 %v535
        %v1480 = vunpack.c.h.b16 %v535
        %v1481 = vunpack.c.l.b16 %v536
        %v1482 = vunpack.c.h.b16 %v536
        %v1483 = vunpack.c.l.b16 %v537
        %v1484 = vunpack.c.h.b16 %v537
        %v1485 = vunpack.c.l.b16 %v538
        %v1486 = vunpack.c.h.b16 %v538
        %v1487 = vunpack.c.l.b16 %v539
        %v1488 = vunpack.c.h.b16 %v539
        %v1489 = vunpack.c.l.b16 %v540
        %v1490 = vunpack.c.h.b16 %v540
        %v1491 = vunpack.c.l.b16 %v541
        %v1492 = vunpack.c.h.b16 %v541
        %v1493 = vunpack.c.l.b16 %v542
        %v1494 = vunpack.c.h.b16 %v542
        %v1495 = vunpack.c.l.b16 %v543
        %v1496 = vunpack.c.h.b16 %v543
        %v1497 = vunpack.c.l.b16 %v544
        %v1498 = vunpack.c.h.b16 %v544
        %v1499 = vunpack.c.l.b16 %v545
        %v1500 = vunpack.c.h.b16 %v545
        %v1501 = vunpack.c.l.b16 %v546
        %v1502 = vunpack.c.h.b16 %v546
        %v1503 = vunpack.c.l.b16 %v547
        %v1504 = vunpack.c.h.b16 %v547
        %v1505 = vunpack.c.l.b16 %v548
        %v1506 = vunpack.c.h.b16 %v548
        %v1507 = vunpack.c.l.b16 %v549
        %v1508 = vunpack.c.h.b16 %v549
        %v1509 = vunpack.c.l.b16 %v550
        %v1510 = vunpack.c.h.b16 %v550
        %v1511 = vunpack.c.l.b16 %v551
        %v1512 = vunpack.c.h.b16 %v551
        %v1513 = vunpack.c.l.b16 %v552
        %v1514 = vunpack.c.h.b16 %v552
        %v1515 = vunpack.c.l.b16 %v553
        %v1516 = vunpack.c.h.b16 %v553
        %v1517 = vunpack.c.l.b16 %v554
        %v1518 = vunpack.c.h.b16 %v554
        %v1519 = vunpack.c.l.b16 %v555
        %v1520 = vunpack.c.h.b16 %v555
        %v1521 = vunpack.c.l.b16 %v556
        %v1522 = vunpack.c.h.b16 %v556
        %v1523 = vunpack.c.l.b16 %v557
        %v1524 = vunpack.c.h.b16 %v557
        %v1525 = vunpack.c.l.b16 %v558
        %v1526 = vunpack.c.h.b16 %v558
        %v1527 = vunpack.c.l.b16 %v559
        %v1528 = vunpack.c.h.b16 %v559
        %v1529 = vunpack.c.l.b16 %v560
        %v1530 = vunpack.c.h.b16 %v560
        %v1531 = vunpack.c.l.b16 %v561
        %v1532 = vunpack.c.h.b16 %v561
        %v1533 = vunpack.c.l.b16 %v562
        %v1534 = vunpack.c.h.b16 %v562
        %v1535 = vunpack.c.l.b16 %v563
        %v1536 = vunpack.c.h.b16 %v563
        %v1537 = vunpack.c.l.b16 %v564
        %v1538 = vunpack.c.h.b16 %v564
        %v1539 = vunpack.c.l.b16 %v565
        %v1540 = vunpack.c.h.b16 %v565
        %v1541 = vunpack.c.l.b16 %v566
        %v1542 = vunpack.c.h.b16 %v566
        %v1543 = vunpack.c.l.b16 %v567
        %v1544 = vunpack.c.h.b16 %v567
        %v1545 = vunpack.c.l.b16 %v568
        %v1546 = vunpack.c.h.b16 %v568
        %v1547 = vunpack.c.l.b16 %v569
        %v1548 = vunpack.c.h.b16 %v569
        %v1549 = vunpack.c.l.b16 %v570
        %v1550 = vunpack.c.h.b16 %v570
        %v1551 = vunpack.c.l.b16 %v571
        %v1552 = vunpack.c.h.b16 %v571
        %v1553 = vunpack.c.l.b16 %v572
        %v1554 = vunpack.c.h.b16 %v572
        %v1555 = vunpack.c.l.b16 %v573
        %v1556 = vunpack.c.h.b16 %v573
        %v1557 = vunpack.c.l.b16 %v574
        %v1558 = vunpack.c.h.b16 %v574
        %v1559 = vunpack.c.l.b16 %v575
        %v1560 = vunpack.c.h.b16 %v575
        %v1561 = vunpack.c.l.b16 %v576
        %v1562 = vunpack.c.h.b16 %v576
        %v1563 = vunpack.c.l.b16 %v577
        %v1564 = vunpack.c.h.b16 %v577
        %v1565 = vunpack.c.l.b16 %v578
        %v1566 = vunpack.c.h.b16 %v578
        %v1567 = vunpack.c.l.b16 %v579
        %v1568 = vunpack.c.h.b16 %v579
        %v1569 = vunpack.c.l.b16 %v580
        %v1570 = vunpack.c.h.b16 %v580
        %v1571 = vunpack.c.l.b16 %v581
        %v1572 = vunpack.c.h.b16 %v581
        %v1573 = vunpack.c.l.b16 %v582
        %v1574 = vunpack.c.h.b16 %v582
        %v1575 = vunpack.c.l.b16 %v583
        %v1576 = vunpack.c.h.b16 %v583
        %v1577 = vunpack.c.l.b16 %v584
        %v1578 = vunpack.c.h.b16 %v584
        %v1579 = vunpack.c.l.b16 %v585
        %v1580 = vunpack.c.h.b16 %v585
        %v1581 = vunpack.c.l.b16 %v586
        %v1582 = vunpack.c.h.b16 %v586
        %v1583 = vunpack.c.l.b16 %v587
        %v1584 = vunpack.c.h.b16 %v587
        %v1585 = vunpack.c.l.b16 %v588
        %v1586 = vunpack.c.h.b16 %v588
        %v1587 = vunpack.c.l.b16 %v589
        %v1588 = vunpack.c.h.b16 %v589
        %v1589 = vunpack.c.l.b16 %v590
        %v1590 = vunpack.c.h.b16 %v590
        %v1591 = vunpack.c.l.b16 %v591
        %v1592 = vunpack.c.h.b16 %v591
        %v1593 = vunpack.c.l.b16 %v592
        %v1594 = vunpack.c.h.b16 %v592
        %v1595 = vunpack.c.l.b16 %v593
        %v1596 = vunpack.c.h.b16 %v593
        %v1597 = vunpack.c.l.b16 %v594
        %v1598 = vunpack.c.h.b16 %v594
        %v1599 = vunpack.c.l.b16 %v595
        %v1600 = vunpack.c.h.b16 %v595
        %v1601 = vunpack.c.l.b16 %v596
        %v1602 = vunpack.c.h.b16 %v596
        %v1603 = vunpack.c.l.b16 %v597
        %v1604 = vunpack.c.h.b16 %v597
        %v1605 = vunpack.c.l.b16 %v598
        %v1606 = vunpack.c.h.b16 %v598
        %v1607 = vunpack.c.l.b16 %v599
        %v1608 = vunpack.c.h.b16 %v599
        %v1609 = vunpack.c.l.b16 %v600
        %v1610 = vunpack.c.h.b16 %v600
        %v1611 = vunpack.c.l.b16 %v601
        %v1612 = vunpack.c.h.b16 %v601
        %v1613 = vunpack.c.l.b16 %v602
        %v1614 = vunpack.c.h.b16 %v602
        %v1615 = vunpack.c.l.b16 %v603
        %v1616 = vunpack.c.h.b16 %v603
        %v1617 = vunpack.c.l.b16 %v604
        %v1618 = vunpack.c.h.b16 %v604
        %v1619 = vunpack.c.l.b16 %v605
        %v1620 = vunpack.c.h.b16 %v605
        %v1621 = vunpack.c.l.b16 %v606
        %v1622 = vunpack.c.h.b16 %v606
        %v1623 = vunpack.c.l.b16 %v607
        %v1624 = vunpack.c.h.b16 %v607
        %v1625 = vunpack.c.l.b16 %v608
        %v1626 = vunpack.c.h.b16 %v608
        %v1627 = vunpack.c.l.b16 %v609
        %v1628 = vunpack.c.h.b16 %v609
        %v1629 = vunpack.c.l.b16 %v610
        %v1630 = vunpack.c.h.b16 %v610
        %v1631 = vunpack.c.l.b16 %v611
        %v1632 = vunpack.c.h.b16 %v611
        %v1633 = vunpack.c.l.b16 %v612
        %v1634 = vunpack.c.h.b16 %v612
        %v1635 = vunpack.c.l.b16 %v613
        %v1636 = vunpack.c.h.b16 %v613
        %v1637 = vunpack.c.l.b16 %v614
        %v1638 = vunpack.c.h.b16 %v614
        %v1639 = vunpack.c.l.b16 %v615
        %v1640 = vunpack.c.h.b16 %v615
        %v1641 = vunpack.c.l.b16 %v616
        %v1642 = vunpack.c.h.b16 %v616
        %v1643 = vunpack.c.l.b16 %v617
        %v1644 = vunpack.c.h.b16 %v617
        %v1645 = vunpack.c.l.b16 %v618
        %v1646 = vunpack.c.h.b16 %v618
        %v1647 = vunpack.c.l.b16 %v619
        %v1648 = vunpack.c.h.b16 %v619
        %v1649 = vunpack.c.l.b16 %v620
        %v1650 = vunpack.c.h.b16 %v620
        %v1651 = vunpack.c.l.b16 %v621
        %v1652 = vunpack.c.h.b16 %v621
        %v1653 = vunpack.c.l.b16 %v622
        %v1654 = vunpack.c.h.b16 %v622
        %v1655 = vunpack.c.l.b16 %v623
        %v1656 = vunpack.c.h.b16 %v623
        %v1657 = vunpack.c.l.b16 %v624
        %v1658 = vunpack.c.h.b16 %v624
        %v1659 = vunpack.c.l.b16 %v625
        %v1660 = vunpack.c.h.b16 %v625
        %v1661 = vunpack.c.l.b16 %v626
        %v1662 = vunpack.c.h.b16 %v626
        %v1663 = vunpack.c.l.b16 %v627
        %v1664 = vunpack.c.h.b16 %v627
        %v1665 = vunpack.c.l.b16 %v628
        %v1666 = vunpack.c.h.b16 %v628
        %v1667 = vunpack.c.l.b16 %v629
        %v1668 = vunpack.c.h.b16 %v629
        %v1669 = vunpack.c.l.b16 %v630
        %v1670 = vunpack.c.h.b16 %v630
        %v1671 = vunpack.c.l.b16 %v631
        %v1672 = vunpack.c.h.b16 %v631
        %v1673 = vunpack.c.l.b16 %v632
        %v1674 = vunpack.c.h.b16 %v632
        %v1675 = vunpack.c.l.b16 %v633
        %v1676 = vunpack.c.h.b16 %v633
        %v1677 = vunpack.c.l.b16 %v634
        %v1678 = vunpack.c.h.b16 %v634
        %v1679 = vunpack.c.l.b16 %v635
        %v1680 = vunpack.c.h.b16 %v635
        %v1681 = vunpack.c.l.b16 %v636
        %v1682 = vunpack.c.h.b16 %v636
        %v1683 = vunpack.c.l.b16 %v637
        %v1684 = vunpack.c.h.b16 %v637
        %v1685 = vunpack.c.l.b16 %v638
        %v1686 = vunpack.c.h.b16 %v638
        %v1687 = vunpack.c.l.b16 %v639
        %v1688 = vunpack.c.h.b16 %v639
        %v1689 = vunpack.c.l.b16 %v640
        %v1690 = vunpack.c.h.b16 %v640
        %v1691 = vunpack.c.l.b16 %v641
        %v1692 = vunpack.c.h.b16 %v641
        %v1693 = vunpack.c.l.b16 %v642
        %v1694 = vunpack.c.h.b16 %v642
        %v1695 = vunpack.c.l.b16 %v643
        %v1696 = vunpack.c.h.b16 %v643
        %v1697 = vunpack.c.l.b16 %v644
        %v1698 = vunpack.c.h.b16 %v644
        %v1699 = vunpack.c.l.b16 %v645
        %v1700 = vunpack.c.h.b16 %v645
        %v1701 = vunpack.c.l.b16 %v646
        %v1702 = vunpack.c.h.b16 %v646
        %v1703 = vunpack.c.l.b16 %v647
        %v1704 = vunpack.c.h.b16 %v647
        %v1705 = vunpack.c.l.b16 %v648
        %v1706 = vunpack.c.h.b16 %v648
        %v1707 = vunpack.c.l.b16 %v649
        %v1708 = vunpack.c.h.b16 %v649
        %v1709 = vunpack.c.l.b16 %v650
        %v1710 = vunpack.c.h.b16 %v650
        %v1711 = vunpack.c.l.b16 %v651
        %v1712 = vunpack.c.h.b16 %v651
        %v1713 = vunpack.c.l.b16 %v652
        %v1714 = vunpack.c.h.b16 %v652
        %v1715 = vunpack.c.l.b16 %v653
        %v1716 = vunpack.c.h.b16 %v653
        %v1717 = vunpack.c.l.b16 %v654
        %v1718 = vunpack.c.h.b16 %v654
        %v1719 = vunpack.c.l.b16 %v655
        %v1720 = vunpack.c.h.b16 %v655
        %v1721 = vunpack.c.l.b16 %v656
        %v1722 = vunpack.c.h.b16 %v656
        %v1723 = vunpack.c.l.b16 %v657
        %v1724 = vunpack.c.h.b16 %v657
        %v1725 = vunpack.c.l.b16 %v658
        %v1726 = vunpack.c.h.b16 %v658
        %v1727 = vunpack.c.l.b16 %v659
        %v1728 = vunpack.c.h.b16 %v659
        %v1729 = vunpack.c.l.b16 %v660
        %v1730 = vunpack.c.h.b16 %v660
        %v1731 = vunpack.c.l.b16 %v661
        %v1732 = vunpack.c.h.b16 %v661
        %v1733 = vunpack.c.l.b16 %v662
        %v1734 = vunpack.c.h.b16 %v662
        %v1735 = vunpack.c.l.b16 %v663
        %v1736 = vunpack.c.h.b16 %v663
        %v1737 = vunpack.c.l.b16 %v664
        %v1738 = vunpack.c.h.b16 %v664
        %v1739 = vunpack.c.l.b16 %v665
        %v1740 = vunpack.c.h.b16 %v665
        %v1741 = vunpack.c.l.b16 %v666
        %v1742 = vunpack.c.h.b16 %v666
        %v1743 = vunpack.c.l.b16 %v667
        %v1744 = vunpack.c.h.b16 %v667
        %v1745 = vunpack.c.l.b16 %v668
        %v1746 = vunpack.c.h.b16 %v668
        %v1747 = vunpack.c.l.b16 %v669
        %v1748 = vunpack.c.h.b16 %v669
        %v1749 = vunpack.c.l.b16 %v670
        %v1750 = vunpack.c.h.b16 %v670
        %v1751 = vunpack.c.l.b16 %v671
        %v1752 = vunpack.c.h.b16 %v671
        %v1753 = vunpack.c.l.b16 %v672
        %v1754 = vunpack.c.h.b16 %v672
        %v1755 = vunpack.c.l.b16 %v673
        %v1756 = vunpack.c.h.b16 %v673
        %v1757 = vunpack.c.l.b16 %v674
        %v1758 = vunpack.c.h.b16 %v674
        %v1759 = vunpack.c.l.b16 %v675
        %v1760 = vunpack.c.h.b16 %v675
        %v1761 = vunpack.c.l.b16 %v676
        %v1762 = vunpack.c.h.b16 %v676
        %v1763 = vunpack.c.l.b16 %v677
        %v1764 = vunpack.c.h.b16 %v677
        %v1765 = vunpack.c.l.b16 %v678
        %v1766 = vunpack.c.h.b16 %v678
        %v1767 = vunpack.c.l.b16 %v679
        %v1768 = vunpack.c.h.b16 %v679
        %v1769 = vunpack.c.l.b16 %v680
        %v1770 = vunpack.c.h.b16 %v680
        %v1771 = vunpack.c.l.b16 %v681
        %v1772 = vunpack.c.h.b16 %v681
        %v1773 = vunpack.c.l.b16 %v682
        %v1774 = vunpack.c.h.b16 %v682
        %v1775 = vunpack.c.l.b16 %v683
        %v1776 = vunpack.c.h.b16 %v683
        %v1777 = vunpack.c.l.b16 %v684
        %v1778 = vunpack.c.h.b16 %v684
        %v1779 = vunpack.c.l.b16 %v685
        %v1780 = vunpack.c.h.b16 %v685
        %v1781 = vunpack.c.l.b16 %v686
        %v1782 = vunpack.c.h.b16 %v686
        %v1783 = vunpack.c.l.b16 %v687
        %v1784 = vunpack.c.h.b16 %v687
        %v1785 = vunpack.c.l.b16 %v688
        %v1786 = vunpack.c.h.b16 %v688
        %v1787 = vunpack.c.l.b16 %v689
        %v1788 = vunpack.c.h.b16 %v689
        %v1789 = vunpack.c.l.b16 %v690
        %v1790 = vunpack.c.h.b16 %v690
        %v1791 = vunpack.c.l.b16 %v691
        %v1792 = vunpack.c.h.b16 %v691
        %v1793 = vunpack.c.l.b16 %v692
        %v1794 = vunpack.c.h.b16 %v692
        %v1795 = vunpack.c.l.b16 %v693
        %v1796 = vunpack.c.h.b16 %v693
        %v1797 = vunpack.c.l.b16 %v694
        %v1798 = vunpack.c.h.b16 %v694
        %v1799 = vunpack.c.l.b16 %v695
        %v1800 = vunpack.c.h.b16 %v695
        %v1801 = vunpack.c.l.b16 %v696
        %v1802 = vunpack.c.h.b16 %v696
        %v1803 = vunpack.c.l.b16 %v697
        %v1804 = vunpack.c.h.b16 %v697
        %v1805 = vunpack.c.l.b16 %v698
        %v1806 = vunpack.c.h.b16 %v698
        %v1807 = vunpack.c.l.b16 %v699
        %v1808 = vunpack.c.h.b16 %v699
        %v1809 = vunpack.c.l.b16 %v700
        %v1810 = vunpack.c.h.b16 %v700
        %v1811 = vunpack.c.l.b16 %v701
        %v1812 = vunpack.c.h.b16 %v701
        %v1813 = vunpack.c.l.b16 %v702
        %v1814 = vunpack.c.h.b16 %v702
        %v1815 = vunpack.c.l.b16 %v703
        %v1816 = vunpack.c.h.b16 %v703
        %v1817 = vunpack.c.l.b16 %v704
        %v1818 = vunpack.c.h.b16 %v704
        %v1819 = vunpack.c.l.b16 %v705
        %v1820 = vunpack.c.h.b16 %v705
        %v1821 = vunpack.c.l.b16 %v706
        %v1822 = vunpack.c.h.b16 %v706
        %v1823 = vunpack.c.l.b16 %v707
        %v1824 = vunpack.c.h.b16 %v707
        %v1825 = vunpack.c.l.b16 %v708
        %v1826 = vunpack.c.h.b16 %v708
        %v1827 = vunpack.c.l.b16 %v709
        %v1828 = vunpack.c.h.b16 %v709
        %v1829 = vunpack.c.l.b16 %v710
        %v1830 = vunpack.c.h.b16 %v710
        %v1831 = vunpack.c.l.b16 %v711
        %v1832 = vunpack.c.h.b16 %v711
        %v1833 = vunpack.c.l.b16 %v712
        %v1834 = vunpack.c.h.b16 %v712
        %v1835 = vunpack.c.l.b16 %v713
        %v1836 = vunpack.c.h.b16 %v713
        %v1837 = vunpack.c.l.b16 %v714
        %v1838 = vunpack.c.h.b16 %v714
        %v1839 = vunpack.c.l.b16 %v715
        %v1840 = vunpack.c.h.b16 %v715
        %v1841 = vunpack.c.l.b16 %v716
        %v1842 = vunpack.c.h.b16 %v716
        %v1843 = vunpack.c.l.b16 %v717
        %v1844 = vunpack.c.h.b16 %v717
        %v1845 = vunpack.c.l.b16 %v718
        %v1846 = vunpack.c.h.b16 %v718
        %v1847 = vunpack.c.l.b16 %v719
        %v1848 = vunpack.c.h.b16 %v719
        %v1849 = vunpack.c.l.b16 %v720
        %v1850 = vunpack.c.h.b16 %v720
        %v1851 = vunpack.c.l.b16 %v721
        %v1852 = vunpack.c.h.b16 %v721
        %v1853 = vunpack.c.l.b16 %v722
        %v1854 = vunpack.c.h.b16 %v722
        %v1855 = vunpack.c.l.b16 %v723
        %v1856 = vunpack.c.h.b16 %v723
        %v1857 = vunpack.c.l.b16 %v724
        %v1858 = vunpack.c.h.b16 %v724
        %v1859 = vunpack.c.l.b16 %v725
        %v1860 = vunpack.c.h.b16 %v725
        %v1861 = vunpack.c.l.b16 %v726
        %v1862 = vunpack.c.h.b16 %v726
        %v1863 = vunpack.c.l.b16 %v727
        %v1864 = vunpack.c.h.b16 %v727
        %v1865 = vunpack.c.l.b16 %v728
        %v1866 = vunpack.c.h.b16 %v728
        %v1867 = vunpack.c.l.b16 %v729
        %v1868 = vunpack.c.h.b16 %v729
        %v1869 = vunpack.c.l.b16 %v730
        %v1870 = vunpack.c.h.b16 %v730
        %v1871 = vunpack.c.l.b16 %v731
        %v1872 = vunpack.c.h.b16 %v731
        %v1873 = vunpack.c.l.b16 %v732
        %v1874 = vunpack.c.h.b16 %v732
        %v1875 = vunpack.c.l.b16 %v733
        %v1876 = vunpack.c.h.b16 %v733
        %v1877 = vunpack.c.l.b16 %v734
        %v1878 = vunpack.c.h.b16 %v734
        %v1879 = vunpack.c.l.b16 %v735
        %v1880 = vunpack.c.h.b16 %v735
        %v1881 = vunpack.c.l.b16 %v736
        %v1882 = vunpack.c.h.b16 %v736
        %v1883 = vunpack.c.l.b16 %v737
        %v1884 = vunpack.c.h.b16 %v737
        %v1885 = vunpack.c.l.b16 %v738
        %v1886 = vunpack.c.h.b16 %v738
        %v1887 = vunpack.c.l.b16 %v739
        %v1888 = vunpack.c.h.b16 %v739
        %v1889 = vunpack.c.l.b16 %v740
        %v1890 = vunpack.c.h.b16 %v740
        %v1891 = vunpack.c.l.b16 %v741
        %v1892 = vunpack.c.h.b16 %v741
        %v1893 = vunpack.c.l.b16 %v742
        %v1894 = vunpack.c.h.b16 %v742
        %v1895 = vunpack.c.l.b16 %v743
        %v1896 = vunpack.c.h.b16 %v743
        %v1897 = vunpack.c.l.b16 %v744
        %v1898 = vunpack.c.h.b16 %v744
        %v1899 = vunpack.c.l.b16 %v745
        %v1900 = vunpack.c.h.b16 %v745
        %v1901 = vunpack.c.l.b16 %v746
        %v1902 = vunpack.c.h.b16 %v746
        %v1903 = vunpack.c.l.b16 %v747
        %v1904 = vunpack.c.h.b16 %v747
        %v1905 = vunpack.c.l.b16 %v748
        %v1906 = vunpack.c.h.b16 %v748
        %v1907 = vunpack.c.l.b16 %v749
        %v1908 = vunpack.c.h.b16 %v749
        %v1909 = vunpack.c.l.b16 %v750
        %v1910 = vunpack.c.h.b16 %v750
        %v1911 = vunpack.c.l.b16 %v751
        %v1912 = vunpack.c.h.b16 %v751
        %v1913 = vunpack.c.l.b16 %v752
        %v1914 = vunpack.c.h.b16 %v752
        %v1915 = vunpack.c.l.b16 %v753
        %v1916 = vunpack.c.h.b16 %v753
        %v1917 = vunpack.c.l.b16 %v754
        %v1918 = vunpack.c.h.b16 %v754
        %v1919 = vunpack.c.l.b16 %v755
        %v1920 = vunpack.c.h.b16 %v755
        %v1921 = vunpack.c.l.b16 %v756
        %v1922 = vunpack.c.h.b16 %v756
        %v1923 = vunpack.c.l.b16 %v757
        %v1924 = vunpack.c.h.b16 %v757
        %v1925 = vunpack.c.l.b16 %v758
        %v1926 = vunpack.c.h.b16 %v758
        %v1927 = vunpack.c.l.b16 %v759
        %v1928 = vunpack.c.h.b16 %v759
        %v1929 = vunpack.c.l.b16 %v760
        %v1930 = vunpack.c.h.b16 %v760
        %v1931 = vunpack.c.l.b16 %v761
        %v1932 = vunpack.c.h.b16 %v761
        %v1933 = vunpack.c.l.b16 %v762
        %v1934 = vunpack.c.h.b16 %v762
        %v1935 = vunpack.c.l.b16 %v763
        %v1936 = vunpack.c.h.b16 %v763
        %v1937 = vunpack.c.l.b16 %v764
        %v1938 = vunpack.c.h.b16 %v764
        %v1939 = vunpack.c.l.b16 %v765
        %v1940 = vunpack.c.h.b16 %v765
        %v1941 = vunpack.c.l.b16 %v766
        %v1942 = vunpack.c.h.b16 %v766
        %v1943 = vunpack.c.l.b16 %v767
        %v1944 = vunpack.c.h.b16 %v767
        %v1945 = vunpack.c.l.b16 %v768
        %v1946 = vunpack.c.h.b16 %v768
        %v1947 = vunpack.c.l.b16 %v769
        %v1948 = vunpack.c.h.b16 %v769
        %v1949 = vunpack.c.l.b16 %v770
        %v1950 = vunpack.c.h.b16 %v770
        %v1951 = vunpack.c.l.b16 %v771
        %v1952 = vunpack.c.h.b16 %v771
        %v1953 = vunpack.c.l.b16 %v772
        %v1954 = vunpack.c.h.b16 %v772
        %v1955 = vunpack.c.l.b16 %v773
        %v1956 = vunpack.c.h.b16 %v773
        %v1957 = vunpack.c.l.b16 %v774
        %v1958 = vunpack.c.h.b16 %v774
        %v1959 = vunpack.c.l.b16 %v775
        %v1960 = vunpack.c.h.b16 %v775
        %v1961 = vunpack.c.l.b16 %v776
        %v1962 = vunpack.c.h.b16 %v776
        %v1963 = vunpack.c.l.b16 %v777
        %v1964 = vunpack.c.h.b16 %v777
        %v1965 = vunpack.c.l.b16 %v778
        %v1966 = vunpack.c.h.b16 %v778
        %v1967 = vunpack.c.l.b16 %v779
        %v1968 = vunpack.c.h.b16 %v779
        %v1969 = vunpack.c.l.b16 %v780
        %v1970 = vunpack.c.h.b16 %v780
        %v1971 = vunpack.c.l.b16 %v781
        %v1972 = vunpack.c.h.b16 %v781
        %v1973 = vunpack.c.l.b16 %v782
        %v1974 = vunpack.c.h.b16 %v782
        %v1975 = vunpack.c.l.b16 %v783
        %v1976 = vunpack.c.h.b16 %v783
        %v1977 = vunpack.c.l.b16 %v784
        %v1978 = vunpack.c.h.b16 %v784
        %v1979 = vpack.c.b16 %v1203, %v1195
        %v1980 = vpack.c.b16 %v1204, %v1196
        %v1981 = vpack.c.b16 %v1205, %v1197
        %v1982 = vpack.c.b16 %v1206, %v1198
        %v1983 = vpack.c.b16 %v1207, %v1199
        %v1984 = vpack.c.b16 %v1208, %v1200
        %v1985 = vpack.c.b16 %v1209, %v1201
        %v1986 = vpack.c.b16 %v1210, %v1202
        %v1987 = vpack.c.b16 %v1219, %v1211
        %v1988 = vpack.c.b16 %v1220, %v1212
        %v1989 = vpack.c.b16 %v1221, %v1213
        %v1990 = vpack.c.b16 %v1222, %v1214
        %v1991 = vpack.c.b16 %v1223, %v1215
        %v1992 = vpack.c.b16 %v1224, %v1216
        %v1993 = vpack.c.b16 %v1225, %v1217
        %v1994 = vpack.c.b16 %v1226, %v1218
        %v1995 = vpack.c.b16 %v1235, %v1227
        %v1996 = vpack.c.b16 %v1236, %v1228
        %v1997 = vpack.c.b16 %v1237, %v1229
        %v1998 = vpack.c.b16 %v1238, %v1230
        %v1999 = vpack.c.b16 %v1239, %v1231
        %v2000 = vpack.c.b16 %v1240, %v1232
        %v2001 = vpack.c.b16 %v1241, %v1233
        %v2002 = vpack.c.b16 %v1242, %v1234
        %v2003 = vpack.c.b16 %v1251, %v1243
        %v2004 = vpack.c.b16 %v1252, %v1244
        %v2005 = vpack.c.b16 %v1253, %v1245
        %v2006 = vpack.c.b16 %v1254, %v1246
        %v2007 = vpack.c.b16 %v1255, %v1247
        %v2008 = vpack.c.b16 %v1256, %v1248
        %v2009 = vpack.c.b16 %v1257, %v1249
        %v2010 = vpack.c.b16 %v1258, %v1250
        %v2011 = vpack.c.b16 %v1267, %v1259
        %v2012 = vpack.c.b16 %v1268, %v1260
        %v2013 = vpack.c.b16 %v1269, %v1261
        %v2014 = vpack.c.b16 %v1270, %v1262
        %v2015 = vpack.c.b16 %v1271, %v1263
        %v2016 = vpack.c.b16 %v1272, %v1264
        %v2017 = vpack.c.b16 %v1273, %v1265
        %v2018 = vpack.c.b16 %v1274, %v1266
        %v2019 = vpack.c.b16 %v1283, %v1275
        %v2020 = vpack.c.b16 %v1284, %v1276
        %v2021 = vpack.c.b16 %v1285, %v1277
        %v2022 = vpack.c.b16 %v1286, %v1278
        %v2023 = vpack.c.b16 %v1287, %v1279
        %v2024 = vpack.c.b16 %v1288, %v1280
        %v2025 = vpack.c.b16 %v1289, %v1281
        %v2026 = vpack.c.b16 %v1290, %v1282
        %v2027 = vpack.c.b16 %v1299, %v1291
        %v2028 = vpack.c.b16 %v1300, %v1292
        %v2029 = vpack.c.b16 %v1301, %v1293
        %v2030 = vpack.c.b16 %v1302, %v1294
        %v2031 = vpack.c.b16 %v1303, %v1295
        %v2032 = vpack.c.b16 %v1304, %v1296
        %v2033 = vpack.c.b16 %v1305, %v1297
        %v2034 = vpack.c.b16 %v1306, %v1298
        %v2035 = vpack.c.b16 %v1315, %v1307
        %v2036 = vpack.c.b16 %v1316, %v1308
        %v2037 = vpack.c.b16 %v1317, %v1309
        %v2038 = vpack.c.b16 %v1318, %v1310
        %v2039 = vpack.c.b16 %v1319, %v1311
        %v2040 = vpack.c.b16 %v1320, %v1312
        %v2041 = vpack.c.b16 %v1321, %v1313
        %v2042 = vpack.c.b16 %v1322, %v1314
        %v2043 = vpack.c.b16 %v1331, %v1323
        %v2044 = vpack.c.b16 %v1332, %v1324
        %v2045 = vpack.c.b16 %v1333, %v1325
        %v2046 = vpack.c.b16 %v1334, %v1326
        %v2047 = vpack.c.b16 %v1335, %v1327
        %v2048 = vpack.c.b16 %v1336, %v1328
        %v2049 = vpack.c.b16 %v1337, %v1329
        %v2050 = vpack.c.b16 %v1338, %v1330
        %v2051 = vpack.c.b16 %v1347, %v1339
        %v2052 = vpack.c.b16 %v1348, %v1340
        %v2053 = vpack.c.b16 %v1349, %v1341
        %v2054 = vpack.c.b16 %v1350, %v1342
        %v2055 = vpack.c.b16 %v1351, %v1343
        %v2056 = vpack.c.b16 %v1352, %v1344
        %v2057 = vpack.c.b16 %v1353, %v1345
        %v2058 = vpack.c.b16 %v1354, %v1346
        %v2059 = vpack.c.b16 %v1363, %v1355
        %v2060 = vpack.c.b16 %v1364, %v1356
        %v2061 = vpack.c.b16 %v1365, %v1357
        %v2062 = vpack.c.b16 %v1366, %v1358
        %v2063 = vpack.c.b16 %v1367, %v1359
        %v2064 = vpack.c.b16 %v1368, %v1360
        %v2065 = vpack.c.b16 %v1369, %v1361
        %v2066 = vpack.c.b16 %v1370, %v1362
        %v2067 = vpack.c.b16 %v1379, %v1371
        %v2068 = vpack.c.b16 %v1380, %v1372
        %v2069 = vpack.c.b16 %v1381, %v1373
        %v2070 = vpack.c.b16 %v1382, %v1374
        %v2071 = vpack.c.b16 %v1383, %v1375
        %v2072 = vpack.c.b16 %v1384, %v1376
        %v2073 = vpack.c.b16 %v1385, %v1377
        %v2074 = vpack.c.b16 %v1386, %v1378
        %v2075 = vpack.c.b16 %v1395, %v1387
        %v2076 = vpack.c.b16 %v1396, %v1388
        %v2077 = vpack.c.b16 %v1397, %v1389
        %v2078 = vpack.c.b16 %v1398, %v1390
        %v2079 = vpack.c.b16 %v1399, %v1391
        %v2080 = vpack.c.b16 %v1400, %v1392
        %v2081 = vpack.c.b16 %v1401, %v1393
        %v2082 = vpack.c.b16 %v1402, %v1394
        %v2083 = vpack.c.b16 %v1411, %v1403
        %v2084 = vpack.c.b16 %v1412, %v1404
        %v2085 = vpack.c.b16 %v1413, %v1405
        %v2086 = vpack.c.b16 %v1414, %v1406
        %v2087 = vpack.c.b16 %v1415, %v1407
        %v2088 = vpack.c.b16 %v1416, %v1408
        %v2089 = vpack.c.b16 %v1417, %v1409
        %v2090 = vpack.c.b16 %v1418, %v1410
        %v2091 = vpack.c.b16 %v1427, %v1419
        %v2092 = vpack.c.b16 %v1428, %v1420
        %v2093 = vpack.c.b16 %v1429, %v1421
        %v2094 = vpack.c.b16 %v1430, %v1422
        %v2095 = vpack.c.b16 %v1431, %v1423
        %v2096 = vpack.c.b16 %v1432, %v1424
        %v2097 = vpack.c.b16 %v1433, %v1425
        %v2098 = vpack.c.b16 %v1434, %v1426
        %v2099 = vpack.c.b16 %v1443, %v1435
        %v2100 = vpack.c.b16 %v1444, %v1436
        %v2101 = vpack.c.b16 %v1445, %v1437
        %v2102 = vpack.c.b16 %v1446, %v1438
        %v2103 = vpack.c.b16 %v1447, %v1439
        %v2104 = vpack.c.b16 %v1448, %v1440
        %v2105 = vpack.c.b16 %v1449, %v1441
        %v2106 = vpack.c.b16 %v1450, %v1442
        %v2107 = vpack.c.b16 %v1459, %v1451
        %v2108 = vpack.c.b16 %v1460, %v1452
        %v2109 = vpack.c.b16 %v1461, %v1453
        %v2110 = vpack.c.b16 %v1462, %v1454
        %v2111 = vpack.c.b16 %v1463, %v1455
        %v2112 = vpack.c.b16 %v1464, %v1456
        %v2113 = vpack.c.b16 %v1465, %v1457
        %v2114 = vpack.c.b16 %v1466, %v1458
        %v2115 = vpack.c.b16 %v1475, %v1467
        %v2116 = vpack.c.b16 %v1476, %v1468
        %v2117 = vpack.c.b16 %v1477, %v1469
        %v2118 = vpack.c.b16 %v1478, %v1470
        %v2119 = vpack.c.b16 %v1479, %v1471
        %v2120 = vpack.c.b16 %v1480, %v1472
        %v2121 = vpack.c.b16 %v1481, %v1473
        %v2122 = vpack.c.b16 %v1482, %v1474
        %v2123 = vpack.c.b16 %v1491, %v1483
        %v2124 = vpack.c.b16 %v1492, %v1484
        %v2125 = vpack.c.b16 %v1493, %v1485
        %v2126 = vpack.c.b16 %v1494, %v1486
        %v2127 = vpack.c.b16 %v1495, %v1487
        %v2128 = vpack.c.b16 %v1496, %v1488
        %v2129 = vpack.c.b16 %v1497, %v1489
        %v2130 = vpack.c.b16 %v1498, %v1490
        %v2131 = vpack.c.b16 %v1507, %v1499
        %v2132 = vpack.c.b16 %v1508, %v1500
        %v2133 = vpack.c.b16 %v1509, %v1501
        %v2134 = vpack.c.b16 %v1510, %v1502
        %v2135 = vpack.c.b16 %v1511, %v1503
        %v2136 = vpack.c.b16 %v1512, %v1504
        %v2137 = vpack.c.b16 %v1513, %v1505
        %v2138 = vpack.c.b16 %v1514, %v1506
        %v2139 = vpack.c.b16 %v1523, %v1515
        %v2140 = vpack.c.b16 %v1524, %v1516
        %v2141 = vpack.c.b16 %v1525, %v1517
        %v2142 = vpack.c.b16 %v1526, %v1518
        %v2143 = vpack.c.b16 %v1527, %v1519
        %v2144 = vpack.c.b16 %v1528, %v1520
        %v2145 = vpack.c.b16 %v1529, %v1521
        %v2146 = vpack.c.b16 %v1530, %v1522
        %v2147 = vpack.c.b16 %v1539, %v1531
        %v2148 = vpack.c.b16 %v1540, %v1532
        %v2149 = vpack.c.b16 %v1541, %v1533
        %v2150 = vpack.c.b16 %v1542, %v1534
        %v2151 = vpack.c.b16 %v1543, %v1535
        %v2152 = vpack.c.b16 %v1544, %v1536
        %v2153 = vpack.c.b16 %v1545, %v1537
        %v2154 = vpack.c.b16 %v1546, %v1538
        %v2155 = vpack.c.b16 %v1555, %v1547
        %v2156 = vpack.c.b16 %v1556, %v1548
        %v2157 = vpack.c.b16 %v1557, %v1549
        %v2158 = vpack.c.b16 %v1558, %v1550
        %v2159 = vpack.c.b16 %v1559, %v1551
        %v2160 = vpack.c.b16 %v1560, %v1552
        %v2161 = vpack.c.b16 %v1561, %v1553
        %v2162 = vpack.c.b16 %v1562, %v1554
        %v2163 = vpack.c.b16 %v1571, %v1563
        %v2164 = vpack.c.b16 %v1572, %v1564
        %v2165 = vpack.c.b16 %v1573, %v1565
        %v2166 = vpack.c.b16 %v1574, %v1566
        %v2167 = vpack.c.b16 %v1575, %v1567
        %v2168 = vpack.c.b16 %v1576, %v1568
        %v2169 = vpack.c.b16 %v1577, %v1569
        %v2170 = vpack.c.b16 %v1578, %v1570
        %v2171 = vpack.c.b16 %v1587, %v1579
        %v2172 = vpack.c.b16 %v1588, %v1580
        %v2173 = vpack.c.b16 %v1589, %v1581
        %v2174 = vpack.c.b16 %v1590, %v1582
        %v2175 = vpack.c.b16 %v1591, %v1583
        %v2176 = vpack.c.b16 %v1592, %v1584
        %v2177 = vpack.c.b16 %v1593, %v1585
        %v2178 = vpack.c.b16 %v1594, %v1586
        %v2179 = vpack.c.b16 %v1603, %v1595
        %v2180 = vpack.c.b16 %v1604, %v1596
        %v2181 = vpack.c.b16 %v1605, %v1597
        %v2182 = vpack.c.b16 %v1606, %v1598
        %v2183 = vpack.c.b16 %v1607, %v1599
        %v2184 = vpack.c.b16 %v1608, %v1600
        %v2185 = vpack.c.b16 %v1609, %v1601
        %v2186 = vpack.c.b16 %v1610, %v1602
        %v2187 = vpack.c.b16 %v1619, %v1611
        %v2188 = vpack.c.b16 %v1620, %v1612
        %v2189 = vpack.c.b16 %v1621, %v1613
        %v2190 = vpack.c.b16 %v1622, %v1614
        %v2191 = vpack.c.b16 %v1623, %v1615
        %v2192 = vpack.c.b16 %v1624, %v1616
        %v2193 = vpack.c.b16 %v1625, %v1617
        %v2194 = vpack.c.b16 %v1626, %v1618
        %v2195 = vpack.c.b16 %v1635, %v1627
        %v2196 = vpack.c.b16 %v1636, %v1628
        %v2197 = vpack.c.b16 %v1637, %v1629
        %v2198 = vpack.c.b16 %v1638, %v1630
        %v2199 = vpack.c.b16 %v1639, %v1631
        %v2200 = vpack.c.b16 %v1640, %v1632
        %v2201 = vpack.c.b16 %v1641, %v1633
        %v2202 = vpack.c.b16 %v1642, %v1634
        %v2203 = vpack.c.b16 %v1651, %v1643
        %v2204 = vpack.c.b16 %v1652, %v1644
        %v2205 = vpack.c.b16 %v1653, %v1645
        %v2206 = vpack.c.b16 %v1654, %v1646
        %v2207 = vpack.c.b16 %v1655, %v1647
        %v2208 = vpack.c.b16 %v1656, %v1648
        %v2209 = vpack.c.b16 %v1657, %v1649
        %v2210 = vpack.c.b16 %v1658, %v1650
        %v2211 = vpack.c.b16 %v1667, %v1659
        %v2212 = vpack.c.b16 %v1668, %v1660
        %v2213 = vpack.c.b16 %v1669, %v1661
        %v2214 = vpack.c.b16 %v1670, %v1662
        %v2215 = vpack.c.b16 %v1671, %v1663
        %v2216 = vpack.c.b16 %v1672, %v1664
        %v2217 = vpack.c.b16 %v1673, %v1665
        %v2218 = vpack.c.b16 %v1674, %v1666
        %v2219 = vpack.c.b16 %v1683, %v1675
        %v2220 = vpack.c.b16 %v1684, %v1676
        %v2221 = vpack.c.b16 %v1685, %v1677
        %v2222 = vpack.c.b16 %v1686, %v1678
        %v2223 = vpack.c.b16 %v1687, %v1679
        %v2224 = vpack.c.b16 %v1688, %v1680
        %v2225 = vpack.c.b16 %v1689, %v1681
        %v2226 = vpack.c.b16 %v1690, %v1682
        %v2227 = vpack.c.b16 %v1699, %v1691
        %v2228 = vpack.c.b16 %v1700, %v1692
        %v2229 = vpack.c.b16 %v1701, %v1693
        %v2230 = vpack.c.b16 %v1702, %v1694
        %v2231 = vpack.c.b16 %v1703, %v1695
        %v2232 = vpack.c.b16 %v1704, %v1696
        %v2233 = vpack.c.b16 %v1705, %v1697
        %v2234 = vpack.c.b16 %v1706, %v1698
        %v2235 = vpack.c.b16 %v1715, %v1707
        %v2236 = vpack.c.b16 %v1716, %v1708
        %v2237 = vpack.c.b16 %v1717, %v1709
        %v2238 = vpack.c.b16 %v1718, %v1710
        %v2239 = vpack.c.b16 %v1719, %v1711
        %v2240 = vpack.c.b16 %v1720, %v1712
        %v2241 = vpack.c.b16 %v1721, %v1713
        %v2242 = vpack.c.b16 %v1722, %v1714
        %v2243 = vpack.c.b16 %v1731, %v1723
        %v2244 = vpack.c.b16 %v1732, %v1724
        %v2245 = vpack.c.b16 %v1733, %v1725
        %v2246 = vpack.c.b16 %v1734, %v1726
        %v2247 = vpack.c.b16 %v1735, %v1727
        %v2248 = vpack.c.b16 %v1736, %v1728
        %v2249 = vpack.c.b16 %v1737, %v1729
        %v2250 = vpack.c.b16 %v1738, %v1730
        %v2251 = vpack.c.b16 %v1747, %v1739
        %v2252 = vpack.c.b16 %v1748, %v1740
        %v2253 = vpack.c.b16 %v1749, %v1741
        %v2254 = vpack.c.b16 %v1750, %v1742
        %v2255 = vpack.c.b16 %v1751, %v1743
        %v2256 = vpack.c.b16 %v1752, %v1744
        %v2257 = vpack.c.b16 %v1753, %v1745
        %v2258 = vpack.c.b16 %v1754, %v1746
        %v2259 = vpack.c.b16 %v1763, %v1755
        %v2260 = vpack.c.b16 %v1764, %v1756
        %v2261 = vpack.c.b16 %v1765, %v1757
        %v2262 = vpack.c.b16 %v1766, %v1758
        %v2263 = vpack.c.b16 %v1767, %v1759
        %v2264 = vpack.c.b16 %v1768, %v1760
        %v2265 = vpack.c.b16 %v1769, %v1761
        %v2266 = vpack.c.b16 %v1770, %v1762
        %v2267 = vpack.c.b16 %v1779, %v1771
        %v2268 = vpack.c.b16 %v1780, %v1772
        %v2269 = vpack.c.b16 %v1781, %v1773
        %v2270 = vpack.c.b16 %v1782, %v1774
        %v2271 = vpack.c.b16 %v1783, %v1775
        %v2272 = vpack.c.b16 %v1784, %v1776
        %v2273 = vpack.c.b16 %v1785, %v1777
        %v2274 = vpack.c.b16 %v1786, %v1778
        %v2275 = vpack.c.b16 %v1795, %v1787
        %v2276 = vpack.c.b16 %v1796, %v1788
        %v2277 = vpack.c.b16 %v1797, %v1789
        %v2278 = vpack.c.b16 %v1798, %v1790
        %v2279 = vpack.c.b16 %v1799, %v1791
        %v2280 = vpack.c.b16 %v1800, %v1792
        %v2281 = vpack.c.b16 %v1801, %v1793
        %v2282 = vpack.c.b16 %v1802, %v1794
        %v2283 = vpack.c.b16 %v1811, %v1803
        %v2284 = vpack.c.b16 %v1812, %v1804
        %v2285 = vpack.c.b16 %v1813, %v1805
        %v2286 = vpack.c.b16 %v1814, %v1806
        %v2287 = vpack.c.b16 %v1815, %v1807
        %v2288 = vpack.c.b16 %v1816, %v1808
        %v2289 = vpack.c.b16 %v1817, %v1809
        %v2290 = vpack.c.b16 %v1818, %v1810
        %v2291 = vpack.c.b16 %v1827, %v1819
        %v2292 = vpack.c.b16 %v1828, %v1820
        %v2293 = vpack.c.b16 %v1829, %v1821
        %v2294 = vpack.c.b16 %v1830, %v1822
        %v2295 = vpack.c.b16 %v1831, %v1823
        %v2296 = vpack.c.b16 %v1832, %v1824
        %v2297 = vpack.c.b16 %v1833, %v1825
        %v2298 = vpack.c.b16 %v1834, %v1826
        %v2299 = vpack.c.b16 %v1843, %v1835
        %v2300 = vpack.c.b16 %v1844, %v1836
        %v2301 = vpack.c.b16 %v1845, %v1837
        %v2302 = vpack.c.b16 %v1846, %v1838
        %v2303 = vpack.c.b16 %v1847, %v1839
        %v2304 = vpack.c.b16 %v1848, %v1840
        %v2305 = vpack.c.b16 %v1849, %v1841
        %v2306 = vpack.c.b16 %v1850, %v1842
        %v2307 = vpack.c.b16 %v1859, %v1851
        %v2308 = vpack.c.b16 %v1860, %v1852
        %v2309 = vpack.c.b16 %v1861, %v1853
        %v2310 = vpack.c.b16 %v1862, %v1854
        %v2311 = vpack.c.b16 %v1863, %v1855
        %v2312 = vpack.c.b16 %v1864, %v1856
        %v2313 = vpack.c.b16 %v1865, %v1857
        %v2314 = vpack.c.b16 %v1866, %v1858
        %v2315 = vpack.c.b16 %v1875, %v1867
        %v2316 = vpack.c.b16 %v1876, %v1868
        %v2317 = vpack.c.b16 %v1877, %v1869
        %v2318 = vpack.c.b16 %v1878, %v1870
        %v2319 = vpack.c.b16 %v1879, %v1871
        %v2320 = vpack.c.b16 %v1880, %v1872
        %v2321 = vpack.c.b16 %v1881, %v1873
        %v2322 = vpack.c.b16 %v1882, %v1874
        %v2323 = vpack.c.b16 %v1891, %v1883
        %v2324 = vpack.c.b16 %v1892, %v1884
        %v2325 = vpack.c.b16 %v1893, %v1885
        %v2326 = vpack.c.b16 %v1894, %v1886
        %v2327 = vpack.c.b16 %v1895, %v1887
        %v2328 = vpack.c.b16 %v1896, %v1888
        %v2329 = vpack.c.b16 %v1897, %v1889
        %v2330 = vpack.c.b16 %v1898, %v1890
        %v2331 = vpack.c.b16 %v1907, %v1899
        %v2332 = vpack.c.b16 %v1908, %v1900
        %v2333 = vpack.c.b16 %v1909, %v1901
        %v2334 = vpack.c.b16 %v1910, %v1902
        %v2335 = vpack.c.b16 %v1911, %v1903
        %v2336 = vpack.c.b16 %v1912, %v1904
        %v2337 = vpack.c.b16 %v1913, %v1905
        %v2338 = vpack.c.b16 %v1914, %v1906
        %v2339 = vpack.c.b16 %v1923, %v1915
        %v2340 = vpack.c.b16 %v1924, %v1916
        %v2341 = vpack.c.b16 %v1925, %v1917
        %v2342 = vpack.c.b16 %v1926, %v1918
        %v2343 = vpack.c.b16 %v1927, %v1919
        %v2344 = vpack.c.b16 %v1928, %v1920
        %v2345 = vpack.c.b16 %v1929, %v1921
        %v2346 = vpack.c.b16 %v1930, %v1922
        %v2347 = vpack.c.b16 %v1939, %v1931
        %v2348 = vpack.c.b16 %v1940, %v1932
        %v2349 = vpack.c.b16 %v1941, %v1933
        %v2350 = vpack.c.b16 %v1942, %v1934
        %v2351 = vpack.c.b16 %v1943, %v1935
        %v2352 = vpack.c.b16 %v1944, %v1936
        %v2353 = vpack.c.b16 %v1945, %v1937
        %v2354 = vpack.c.b16 %v1946, %v1938
        %v2355 = vpack.c.b16 %v1955, %v1947
        %v2356 = vpack.c.b16 %v1956, %v1948
        %v2357 = vpack.c.b16 %v1957, %v1949
        %v2358 = vpack.c.b16 %v1958, %v1950
        %v2359 = vpack.c.b16 %v1959, %v1951
        %v2360 = vpack.c.b16 %v1960, %v1952
        %v2361 = vpack.c.b16 %v1961, %v1953
        %v2362 = vpack.c.b16 %v1962, %v1954
        %v2363 = vpack.c.b16 %v1971, %v1963
        %v2364 = vpack.c.b16 %v1972, %v1964
        %v2365 = vpack.c.b16 %v1973, %v1965
        %v2366 = vpack.c.b16 %v1974, %v1966
        %v2367 = vpack.c.b16 %v1975, %v1967
        %v2368 = vpack.c.b16 %v1976, %v1968
        %v2369 = vpack.c.b16 %v1977, %v1969
        %v2370 = vpack.c.b16 %v1978, %v1970
        %vm2763 = vcmask 130048
        %v2765 = vsel %vm2763, %v385, 0
        %v2768 = vsel %vm2763, %v392, 0
        %2770 = vmatpush.bf16.msra.mxu0 %v2035
        %2771 = vmatpush.bf16.msra.mxu0 %v2027
        %2772 = vmatpush.bf16.msra.mxu0 %v2019
        %2773 = vmatpush.bf16.msra.mxu0 %v2011
        %2774 = vmatpush.bf16.msra.mxu0 %v2003
        %2775 = vmatpush.bf16.msra.mxu0 %v1995
        %2776 = vmatpush.bf16.msra.mxu0 %v1987
        %2777 = vmatpush.bf16.msra.mxu0 %v1979
        %2778 = vmatmul.bf16.gmra.mxu0 %v379
        %v2779 = vpop.f32.mrf.mxu0
        %v2780 = vadd.f32 %v787, %v2779
        %v2781 = vpop.f32.mrf.mxu0
        %v2782 = vadd.f32 %v787, %v2781
        %2783 = vmatmul.bf16.gmra.mxu0 %v386
        %v2784 = vpop.f32.mrf.mxu0
        %v2785 = vadd.f32 %v787, %v2784
        %v2786 = vpop.f32.mrf.mxu0
        %2787 = vdwg.mxu0
        %2788 = vmatpush.bf16.msra.mxu0 %v2099
        %2789 = vmatpush.bf16.msra.mxu0 %v2091
        %2790 = vmatpush.bf16.msra.mxu0 %v2083
        %2791 = vmatpush.bf16.msra.mxu0 %v2075
        %2792 = vmatpush.bf16.msra.mxu0 %v2067
        %2793 = vmatpush.bf16.msra.mxu0 %v2059
        %2794 = vmatpush.bf16.msra.mxu0 %v2051
        %2795 = vmatpush.bf16.msra.mxu0 %v2043
        %2796 = vmatmul.bf16.gmra.mxu0 %v380
        %v2797 = vpop.f32.mrf.mxu0
        %v2798 = vadd.f32 %v2780, %v2797
        %v2799 = vpop.f32.mrf.mxu0
        %v2800 = vadd.f32 %v2782, %v2799
        %2801 = vmatmul.bf16.gmra.mxu0 %v387
        %v2802 = vpop.f32.mrf.mxu0
        %v2803 = vadd.f32 %v2785, %v2802
        %v2804 = vpop.f32.mrf.mxu0
        %2805 = vdwg.mxu0
        %2806 = vmatpush.bf16.msra.mxu0 %v2163
        %2807 = vmatpush.bf16.msra.mxu0 %v2155
        %2808 = vmatpush.bf16.msra.mxu0 %v2147
        %2809 = vmatpush.bf16.msra.mxu0 %v2139
        %2810 = vmatpush.bf16.msra.mxu0 %v2131
        %2811 = vmatpush.bf16.msra.mxu0 %v2123
        %2812 = vmatpush.bf16.msra.mxu0 %v2115
        %2813 = vmatpush.bf16.msra.mxu0 %v2107
        %2814 = vmatmul.bf16.gmra.mxu0 %v381
        %v2815 = vpop.f32.mrf.mxu0
        %v2816 = vadd.f32 %v2798, %v2815
        %v2817 = vpop.f32.mrf.mxu0
        %v2818 = vadd.f32 %v2800, %v2817
        %2819 = vmatmul.bf16.gmra.mxu0 %v388
        %v2820 = vpop.f32.mrf.mxu0
        %v2821 = vadd.f32 %v2803, %v2820
        %v2822 = vpop.f32.mrf.mxu0
        %2823 = vdwg.mxu0
        %2824 = vmatpush.bf16.msra.mxu0 %v2227
        %2825 = vmatpush.bf16.msra.mxu0 %v2219
        %2826 = vmatpush.bf16.msra.mxu0 %v2211
        %2827 = vmatpush.bf16.msra.mxu0 %v2203
        %2828 = vmatpush.bf16.msra.mxu0 %v2195
        %2829 = vmatpush.bf16.msra.mxu0 %v2187
        %2830 = vmatpush.bf16.msra.mxu0 %v2179
        %2831 = vmatpush.bf16.msra.mxu0 %v2171
        %2832 = vmatmul.bf16.gmra.mxu0 %v382
        %v2833 = vpop.f32.mrf.mxu0
        %v2834 = vadd.f32 %v2816, %v2833
        %v2835 = vpop.f32.mrf.mxu0
        %v2836 = vadd.f32 %v2818, %v2835
        %2837 = vmatmul.bf16.gmra.mxu0 %v389
        %v2838 = vpop.f32.mrf.mxu0
        %v2839 = vadd.f32 %v2821, %v2838
        %v2840 = vpop.f32.mrf.mxu0
        %2841 = vdwg.mxu0
        %2842 = vmatpush.bf16.msra.mxu0 %v2291
        %2843 = vmatpush.bf16.msra.mxu0 %v2283
        %2844 = vmatpush.bf16.msra.mxu0 %v2275
        %2845 = vmatpush.bf16.msra.mxu0 %v2267
        %2846 = vmatpush.bf16.msra.mxu0 %v2259
        %2847 = vmatpush.bf16.msra.mxu0 %v2251
        %2848 = vmatpush.bf16.msra.mxu0 %v2243
        %2849 = vmatpush.bf16.msra.mxu0 %v2235
        %2850 = vmatmul.bf16.gmra.mxu0 %v383
        %v2851 = vpop.f32.mrf.mxu0
        %v2852 = vadd.f32 %v2834, %v2851
        %v2853 = vpop.f32.mrf.mxu0
        %v2854 = vadd.f32 %v2836, %v2853
        %2855 = vmatmul.bf16.gmra.mxu0 %v390
        %v2856 = vpop.f32.mrf.mxu0
        %v2857 = vadd.f32 %v2839, %v2856
        %v2858 = vpop.f32.mrf.mxu0
        %2859 = vdwg.mxu0
        %2860 = vmatpush.bf16.msra.mxu0 %v2355
        %2861 = vmatpush.bf16.msra.mxu0 %v2347
        %2862 = vmatpush.bf16.msra.mxu0 %v2339
        %2863 = vmatpush.bf16.msra.mxu0 %v2331
        %2864 = vmatpush.bf16.msra.mxu0 %v2323
        %2865 = vmatpush.bf16.msra.mxu0 %v2315
        %2866 = vmatpush.bf16.msra.mxu0 %v2307
        %2867 = vmatpush.bf16.msra.mxu0 %v2299
        %2868 = vmatmul.bf16.gmra.mxu0 %v384
        %v2869 = vpop.f32.mrf.mxu0
        %v2870 = vadd.f32 %v2852, %v2869
        %v2871 = vpop.f32.mrf.mxu0
        %v2872 = vadd.f32 %v2854, %v2871
        %2873 = vmatmul.bf16.gmra.mxu0 %v391
        %v2874 = vpop.f32.mrf.mxu0
        %v2875 = vadd.f32 %v2857, %v2874
        %v2876 = vpop.f32.mrf.mxu0
        %2877 = vdwg.mxu0
        %2878 = vmatpush.bf16.msra.mxu0 0
        %2879 = vmatpush.bf16.msra.mxu0 0
        %2880 = vmatpush.bf16.msra.mxu0 0
        %2881 = vmatpush.bf16.msra.mxu0 0
        %2882 = vmatpush.bf16.msra.mxu0 0
        %2883 = vmatpush.bf16.msra.mxu0 0
        %2884 = vmatpush.bf16.msra.mxu0 0
        %2885 = vmatpush.bf16.msra.mxu0 %v2363
        %2886 = vmatmul.bf16.gmra.mxu0 %v2765
        %v2887 = vpop.f32.mrf.mxu0
        %v2888 = vadd.f32 %v2870, %v2887
        %v2889 = vpop.f32.mrf.mxu0
        %v2890 = vadd.f32 %v2872, %v2889
        %2891 = vmatmul.bf16.gmra.mxu0 %v2768
        %v2892 = vpop.f32.mrf.mxu0
        %v2893 = vadd.f32 %v2875, %v2892
        %v2894 = vpop.f32.mrf.mxu0
        %2895 = vdwg.mxu0
        %2896 = vmatpush.bf16.msra.mxu0 %v2036
        %2897 = vmatpush.bf16.msra.mxu0 %v2028
        %2898 = vmatpush.bf16.msra.mxu0 %v2020
        %2899 = vmatpush.bf16.msra.mxu0 %v2012
        %2900 = vmatpush.bf16.msra.mxu0 %v2004
        %2901 = vmatpush.bf16.msra.mxu0 %v1996
        %2902 = vmatpush.bf16.msra.mxu0 %v1988
        %2903 = vmatpush.bf16.msra.mxu0 %v1980
        %2904 = vmatmul.bf16.gmra.mxu0 %v379
        %v2905 = vpop.f32.mrf.mxu0
        %v2906 = vadd.f32 %v788, %v2905
        %v2907 = vpop.f32.mrf.mxu0
        %v2908 = vadd.f32 %v788, %v2907
        %2909 = vmatmul.bf16.gmra.mxu0 %v386
        %v2910 = vpop.f32.mrf.mxu0
        %v2911 = vadd.f32 %v788, %v2910
        %v2912 = vpop.f32.mrf.mxu0
        %2913 = vdwg.mxu0
        %2914 = vmatpush.bf16.msra.mxu0 %v2100
        %2915 = vmatpush.bf16.msra.mxu0 %v2092
        %2916 = vmatpush.bf16.msra.mxu0 %v2084
        %2917 = vmatpush.bf16.msra.mxu0 %v2076
        %2918 = vmatpush.bf16.msra.mxu0 %v2068
        %2919 = vmatpush.bf16.msra.mxu0 %v2060
        %2920 = vmatpush.bf16.msra.mxu0 %v2052
        %2921 = vmatpush.bf16.msra.mxu0 %v2044
        %2922 = vmatmul.bf16.gmra.mxu0 %v380
        %v2923 = vpop.f32.mrf.mxu0
        %v2924 = vadd.f32 %v2906, %v2923
        %v2925 = vpop.f32.mrf.mxu0
        %v2926 = vadd.f32 %v2908, %v2925
        %2927 = vmatmul.bf16.gmra.mxu0 %v387
        %v2928 = vpop.f32.mrf.mxu0
        %v2929 = vadd.f32 %v2911, %v2928
        %v2930 = vpop.f32.mrf.mxu0
        %2931 = vdwg.mxu0
        %2932 = vmatpush.bf16.msra.mxu0 %v2164
        %2933 = vmatpush.bf16.msra.mxu0 %v2156
        %2934 = vmatpush.bf16.msra.mxu0 %v2148
        %2935 = vmatpush.bf16.msra.mxu0 %v2140
        %2936 = vmatpush.bf16.msra.mxu0 %v2132
        %2937 = vmatpush.bf16.msra.mxu0 %v2124
        %2938 = vmatpush.bf16.msra.mxu0 %v2116
        %2939 = vmatpush.bf16.msra.mxu0 %v2108
        %2940 = vmatmul.bf16.gmra.mxu0 %v381
        %v2941 = vpop.f32.mrf.mxu0
        %v2942 = vadd.f32 %v2924, %v2941
        %v2943 = vpop.f32.mrf.mxu0
        %v2944 = vadd.f32 %v2926, %v2943
        %2945 = vmatmul.bf16.gmra.mxu0 %v388
        %v2946 = vpop.f32.mrf.mxu0
        %v2947 = vadd.f32 %v2929, %v2946
        %v2948 = vpop.f32.mrf.mxu0
        %2949 = vdwg.mxu0
        %2950 = vmatpush.bf16.msra.mxu0 %v2228
        %2951 = vmatpush.bf16.msra.mxu0 %v2220
        %2952 = vmatpush.bf16.msra.mxu0 %v2212
        %2953 = vmatpush.bf16.msra.mxu0 %v2204
        %2954 = vmatpush.bf16.msra.mxu0 %v2196
        %2955 = vmatpush.bf16.msra.mxu0 %v2188
        %2956 = vmatpush.bf16.msra.mxu0 %v2180
        %2957 = vmatpush.bf16.msra.mxu0 %v2172
        %2958 = vmatmul.bf16.gmra.mxu0 %v382
        %v2959 = vpop.f32.mrf.mxu0
        %v2960 = vadd.f32 %v2942, %v2959
        %v2961 = vpop.f32.mrf.mxu0
        %v2962 = vadd.f32 %v2944, %v2961
        %2963 = vmatmul.bf16.gmra.mxu0 %v389
        %v2964 = vpop.f32.mrf.mxu0
        %v2965 = vadd.f32 %v2947, %v2964
        %v2966 = vpop.f32.mrf.mxu0
        %2967 = vdwg.mxu0
        %2968 = vmatpush.bf16.msra.mxu0 %v2292
        %2969 = vmatpush.bf16.msra.mxu0 %v2284
        %2970 = vmatpush.bf16.msra.mxu0 %v2276
        %2971 = vmatpush.bf16.msra.mxu0 %v2268
        %2972 = vmatpush.bf16.msra.mxu0 %v2260
        %2973 = vmatpush.bf16.msra.mxu0 %v2252
        %2974 = vmatpush.bf16.msra.mxu0 %v2244
        %2975 = vmatpush.bf16.msra.mxu0 %v2236
        %2976 = vmatmul.bf16.gmra.mxu0 %v383
        %v2977 = vpop.f32.mrf.mxu0
        %v2978 = vadd.f32 %v2960, %v2977
        %v2979 = vpop.f32.mrf.mxu0
        %v2980 = vadd.f32 %v2962, %v2979
        %2981 = vmatmul.bf16.gmra.mxu0 %v390
        %v2982 = vpop.f32.mrf.mxu0
        %v2983 = vadd.f32 %v2965, %v2982
        %v2984 = vpop.f32.mrf.mxu0
        %2985 = vdwg.mxu0
        %2986 = vmatpush.bf16.msra.mxu0 %v2356
        %2987 = vmatpush.bf16.msra.mxu0 %v2348
        %2988 = vmatpush.bf16.msra.mxu0 %v2340
        %2989 = vmatpush.bf16.msra.mxu0 %v2332
        %2990 = vmatpush.bf16.msra.mxu0 %v2324
        %2991 = vmatpush.bf16.msra.mxu0 %v2316
        %2992 = vmatpush.bf16.msra.mxu0 %v2308
        %2993 = vmatpush.bf16.msra.mxu0 %v2300
        %2994 = vmatmul.bf16.gmra.mxu0 %v384
        %v2995 = vpop.f32.mrf.mxu0
        %v2996 = vadd.f32 %v2978, %v2995
        %v2997 = vpop.f32.mrf.mxu0
        %v2998 = vadd.f32 %v2980, %v2997
        %2999 = vmatmul.bf16.gmra.mxu0 %v391
        %v3000 = vpop.f32.mrf.mxu0
        %v3001 = vadd.f32 %v2983, %v3000
        %v3002 = vpop.f32.mrf.mxu0
        %3003 = vdwg.mxu0
        %3004 = vmatpush.bf16.msra.mxu0 0
        %3005 = vmatpush.bf16.msra.mxu0 0
        %3006 = vmatpush.bf16.msra.mxu0 0
        %3007 = vmatpush.bf16.msra.mxu0 0
        %3008 = vmatpush.bf16.msra.mxu0 0
        %3009 = vmatpush.bf16.msra.mxu0 0
        %3010 = vmatpush.bf16.msra.mxu0 0
        %3011 = vmatpush.bf16.msra.mxu0 %v2364
        %3012 = vmatmul.bf16.gmra.mxu0 %v2765
        %v3013 = vpop.f32.mrf.mxu0
        %v3014 = vadd.f32 %v2996, %v3013
        %v3015 = vpop.f32.mrf.mxu0
        %v3016 = vadd.f32 %v2998, %v3015
        %3017 = vmatmul.bf16.gmra.mxu0 %v2768
        %v3018 = vpop.f32.mrf.mxu0
        %v3019 = vadd.f32 %v3001, %v3018
        %v3020 = vpop.f32.mrf.mxu0
        %3021 = vdwg.mxu0
        %3022 = vmatpush.bf16.msra.mxu0 %v2037
        %3023 = vmatpush.bf16.msra.mxu0 %v2029
        %3024 = vmatpush.bf16.msra.mxu0 %v2021
        %3025 = vmatpush.bf16.msra.mxu0 %v2013
        %3026 = vmatpush.bf16.msra.mxu0 %v2005
        %3027 = vmatpush.bf16.msra.mxu0 %v1997
        %3028 = vmatpush.bf16.msra.mxu0 %v1989
        %3029 = vmatpush.bf16.msra.mxu0 %v1981
        %3030 = vmatmul.bf16.gmra.mxu0 %v379
        %v3031 = vpop.f32.mrf.mxu0
        %v3032 = vadd.f32 %v789, %v3031
        %v3033 = vpop.f32.mrf.mxu0
        %v3034 = vadd.f32 %v789, %v3033
        %3035 = vmatmul.bf16.gmra.mxu0 %v386
        %v3036 = vpop.f32.mrf.mxu0
        %v3037 = vadd.f32 %v789, %v3036
        %v3038 = vpop.f32.mrf.mxu0
        %3039 = vdwg.mxu0
        %3040 = vmatpush.bf16.msra.mxu0 %v2101
        %3041 = vmatpush.bf16.msra.mxu0 %v2093
        %3042 = vmatpush.bf16.msra.mxu0 %v2085
        %3043 = vmatpush.bf16.msra.mxu0 %v2077
        %3044 = vmatpush.bf16.msra.mxu0 %v2069
        %3045 = vmatpush.bf16.msra.mxu0 %v2061
        %3046 = vmatpush.bf16.msra.mxu0 %v2053
        %3047 = vmatpush.bf16.msra.mxu0 %v2045
        %3048 = vmatmul.bf16.gmra.mxu0 %v380
        %v3049 = vpop.f32.mrf.mxu0
        %v3050 = vadd.f32 %v3032, %v3049
        %v3051 = vpop.f32.mrf.mxu0
        %v3052 = vadd.f32 %v3034, %v3051
        %3053 = vmatmul.bf16.gmra.mxu0 %v387
        %v3054 = vpop.f32.mrf.mxu0
        %v3055 = vadd.f32 %v3037, %v3054
        %v3056 = vpop.f32.mrf.mxu0
        %3057 = vdwg.mxu0
        %3058 = vmatpush.bf16.msra.mxu0 %v2165
        %3059 = vmatpush.bf16.msra.mxu0 %v2157
        %3060 = vmatpush.bf16.msra.mxu0 %v2149
        %3061 = vmatpush.bf16.msra.mxu0 %v2141
        %3062 = vmatpush.bf16.msra.mxu0 %v2133
        %3063 = vmatpush.bf16.msra.mxu0 %v2125
        %3064 = vmatpush.bf16.msra.mxu0 %v2117
        %3065 = vmatpush.bf16.msra.mxu0 %v2109
        %3066 = vmatmul.bf16.gmra.mxu0 %v381
        %v3067 = vpop.f32.mrf.mxu0
        %v3068 = vadd.f32 %v3050, %v3067
        %v3069 = vpop.f32.mrf.mxu0
        %v3070 = vadd.f32 %v3052, %v3069
        %3071 = vmatmul.bf16.gmra.mxu0 %v388
        %v3072 = vpop.f32.mrf.mxu0
        %v3073 = vadd.f32 %v3055, %v3072
        %v3074 = vpop.f32.mrf.mxu0
        %3075 = vdwg.mxu0
        %3076 = vmatpush.bf16.msra.mxu0 %v2229
        %3077 = vmatpush.bf16.msra.mxu0 %v2221
        %3078 = vmatpush.bf16.msra.mxu0 %v2213
        %3079 = vmatpush.bf16.msra.mxu0 %v2205
        %3080 = vmatpush.bf16.msra.mxu0 %v2197
        %3081 = vmatpush.bf16.msra.mxu0 %v2189
        %3082 = vmatpush.bf16.msra.mxu0 %v2181
        %3083 = vmatpush.bf16.msra.mxu0 %v2173
        %3084 = vmatmul.bf16.gmra.mxu0 %v382
        %v3085 = vpop.f32.mrf.mxu0
        %v3086 = vadd.f32 %v3068, %v3085
        %v3087 = vpop.f32.mrf.mxu0
        %v3088 = vadd.f32 %v3070, %v3087
        %3089 = vmatmul.bf16.gmra.mxu0 %v389
        %v3090 = vpop.f32.mrf.mxu0
        %v3091 = vadd.f32 %v3073, %v3090
        %v3092 = vpop.f32.mrf.mxu0
        %3093 = vdwg.mxu0
        %3094 = vmatpush.bf16.msra.mxu0 %v2293
        %3095 = vmatpush.bf16.msra.mxu0 %v2285
        %3096 = vmatpush.bf16.msra.mxu0 %v2277
        %3097 = vmatpush.bf16.msra.mxu0 %v2269
        %3098 = vmatpush.bf16.msra.mxu0 %v2261
        %3099 = vmatpush.bf16.msra.mxu0 %v2253
        %3100 = vmatpush.bf16.msra.mxu0 %v2245
        %3101 = vmatpush.bf16.msra.mxu0 %v2237
        %3102 = vmatmul.bf16.gmra.mxu0 %v383
        %v3103 = vpop.f32.mrf.mxu0
        %v3104 = vadd.f32 %v3086, %v3103
        %v3105 = vpop.f32.mrf.mxu0
        %v3106 = vadd.f32 %v3088, %v3105
        %3107 = vmatmul.bf16.gmra.mxu0 %v390
        %v3108 = vpop.f32.mrf.mxu0
        %v3109 = vadd.f32 %v3091, %v3108
        %v3110 = vpop.f32.mrf.mxu0
        %3111 = vdwg.mxu0
        %3112 = vmatpush.bf16.msra.mxu0 %v2357
        %3113 = vmatpush.bf16.msra.mxu0 %v2349
        %3114 = vmatpush.bf16.msra.mxu0 %v2341
        %3115 = vmatpush.bf16.msra.mxu0 %v2333
        %3116 = vmatpush.bf16.msra.mxu0 %v2325
        %3117 = vmatpush.bf16.msra.mxu0 %v2317
        %3118 = vmatpush.bf16.msra.mxu0 %v2309
        %3119 = vmatpush.bf16.msra.mxu0 %v2301
        %3120 = vmatmul.bf16.gmra.mxu0 %v384
        %v3121 = vpop.f32.mrf.mxu0
        %v3122 = vadd.f32 %v3104, %v3121
        %v3123 = vpop.f32.mrf.mxu0
        %v3124 = vadd.f32 %v3106, %v3123
        %3125 = vmatmul.bf16.gmra.mxu0 %v391
        %v3126 = vpop.f32.mrf.mxu0
        %v3127 = vadd.f32 %v3109, %v3126
        %v3128 = vpop.f32.mrf.mxu0
        %3129 = vdwg.mxu0
        %3130 = vmatpush.bf16.msra.mxu0 0
        %3131 = vmatpush.bf16.msra.mxu0 0
        %3132 = vmatpush.bf16.msra.mxu0 0
        %3133 = vmatpush.bf16.msra.mxu0 0
        %3134 = vmatpush.bf16.msra.mxu0 0
        %3135 = vmatpush.bf16.msra.mxu0 0
        %3136 = vmatpush.bf16.msra.mxu0 0
        %3137 = vmatpush.bf16.msra.mxu0 %v2365
        %3138 = vmatmul.bf16.gmra.mxu0 %v2765
        %v3139 = vpop.f32.mrf.mxu0
        %v3140 = vadd.f32 %v3122, %v3139
        %v3141 = vpop.f32.mrf.mxu0
        %v3142 = vadd.f32 %v3124, %v3141
        %3143 = vmatmul.bf16.gmra.mxu0 %v2768
        %v3144 = vpop.f32.mrf.mxu0
        %v3145 = vadd.f32 %v3127, %v3144
        %v3146 = vpop.f32.mrf.mxu0
        %3147 = vdwg.mxu0
        %3148 = vmatpush.bf16.msra.mxu0 %v2038
        %3149 = vmatpush.bf16.msra.mxu0 %v2030
        %3150 = vmatpush.bf16.msra.mxu0 %v2022
        %3151 = vmatpush.bf16.msra.mxu0 %v2014
        %3152 = vmatpush.bf16.msra.mxu0 %v2006
        %3153 = vmatpush.bf16.msra.mxu0 %v1998
        %3154 = vmatpush.bf16.msra.mxu0 %v1990
        %3155 = vmatpush.bf16.msra.mxu0 %v1982
        %3156 = vmatmul.bf16.gmra.mxu0 %v379
        %v3157 = vpop.f32.mrf.mxu0
        %v3158 = vadd.f32 %v790, %v3157
        %v3159 = vpop.f32.mrf.mxu0
        %v3160 = vadd.f32 %v790, %v3159
        %3161 = vmatmul.bf16.gmra.mxu0 %v386
        %v3162 = vpop.f32.mrf.mxu0
        %v3163 = vadd.f32 %v790, %v3162
        %v3164 = vpop.f32.mrf.mxu0
        %3165 = vdwg.mxu0
        %3166 = vmatpush.bf16.msra.mxu0 %v2102
        %3167 = vmatpush.bf16.msra.mxu0 %v2094
        %3168 = vmatpush.bf16.msra.mxu0 %v2086
        %3169 = vmatpush.bf16.msra.mxu0 %v2078
        %3170 = vmatpush.bf16.msra.mxu0 %v2070
        %3171 = vmatpush.bf16.msra.mxu0 %v2062
        %3172 = vmatpush.bf16.msra.mxu0 %v2054
        %3173 = vmatpush.bf16.msra.mxu0 %v2046
        %3174 = vmatmul.bf16.gmra.mxu0 %v380
        %v3175 = vpop.f32.mrf.mxu0
        %v3176 = vadd.f32 %v3158, %v3175
        %v3177 = vpop.f32.mrf.mxu0
        %v3178 = vadd.f32 %v3160, %v3177
        %3179 = vmatmul.bf16.gmra.mxu0 %v387
        %v3180 = vpop.f32.mrf.mxu0
        %v3181 = vadd.f32 %v3163, %v3180
        %v3182 = vpop.f32.mrf.mxu0
        %3183 = vdwg.mxu0
        %3184 = vmatpush.bf16.msra.mxu0 %v2166
        %3185 = vmatpush.bf16.msra.mxu0 %v2158
        %3186 = vmatpush.bf16.msra.mxu0 %v2150
        %3187 = vmatpush.bf16.msra.mxu0 %v2142
        %3188 = vmatpush.bf16.msra.mxu0 %v2134
        %3189 = vmatpush.bf16.msra.mxu0 %v2126
        %3190 = vmatpush.bf16.msra.mxu0 %v2118
        %3191 = vmatpush.bf16.msra.mxu0 %v2110
        %3192 = vmatmul.bf16.gmra.mxu0 %v381
        %v3193 = vpop.f32.mrf.mxu0
        %v3194 = vadd.f32 %v3176, %v3193
        %v3195 = vpop.f32.mrf.mxu0
        %v3196 = vadd.f32 %v3178, %v3195
        %3197 = vmatmul.bf16.gmra.mxu0 %v388
        %v3198 = vpop.f32.mrf.mxu0
        %v3199 = vadd.f32 %v3181, %v3198
        %v3200 = vpop.f32.mrf.mxu0
        %3201 = vdwg.mxu0
        %3202 = vmatpush.bf16.msra.mxu0 %v2230
        %3203 = vmatpush.bf16.msra.mxu0 %v2222
        %3204 = vmatpush.bf16.msra.mxu0 %v2214
        %3205 = vmatpush.bf16.msra.mxu0 %v2206
        %3206 = vmatpush.bf16.msra.mxu0 %v2198
        %3207 = vmatpush.bf16.msra.mxu0 %v2190
        %3208 = vmatpush.bf16.msra.mxu0 %v2182
        %3209 = vmatpush.bf16.msra.mxu0 %v2174
        %3210 = vmatmul.bf16.gmra.mxu0 %v382
        %v3211 = vpop.f32.mrf.mxu0
        %v3212 = vadd.f32 %v3194, %v3211
        %v3213 = vpop.f32.mrf.mxu0
        %v3214 = vadd.f32 %v3196, %v3213
        %3215 = vmatmul.bf16.gmra.mxu0 %v389
        %v3216 = vpop.f32.mrf.mxu0
        %v3217 = vadd.f32 %v3199, %v3216
        %v3218 = vpop.f32.mrf.mxu0
        %3219 = vdwg.mxu0
        %3220 = vmatpush.bf16.msra.mxu0 %v2294
        %3221 = vmatpush.bf16.msra.mxu0 %v2286
        %3222 = vmatpush.bf16.msra.mxu0 %v2278
        %3223 = vmatpush.bf16.msra.mxu0 %v2270
        %3224 = vmatpush.bf16.msra.mxu0 %v2262
        %3225 = vmatpush.bf16.msra.mxu0 %v2254
        %3226 = vmatpush.bf16.msra.mxu0 %v2246
        %3227 = vmatpush.bf16.msra.mxu0 %v2238
        %3228 = vmatmul.bf16.gmra.mxu0 %v383
        %v3229 = vpop.f32.mrf.mxu0
        %v3230 = vadd.f32 %v3212, %v3229
        %v3231 = vpop.f32.mrf.mxu0
        %v3232 = vadd.f32 %v3214, %v3231
        %3233 = vmatmul.bf16.gmra.mxu0 %v390
        %v3234 = vpop.f32.mrf.mxu0
        %v3235 = vadd.f32 %v3217, %v3234
        %v3236 = vpop.f32.mrf.mxu0
        %3237 = vdwg.mxu0
        %3238 = vmatpush.bf16.msra.mxu0 %v2358
        %3239 = vmatpush.bf16.msra.mxu0 %v2350
        %3240 = vmatpush.bf16.msra.mxu0 %v2342
        %3241 = vmatpush.bf16.msra.mxu0 %v2334
        %3242 = vmatpush.bf16.msra.mxu0 %v2326
        %3243 = vmatpush.bf16.msra.mxu0 %v2318
        %3244 = vmatpush.bf16.msra.mxu0 %v2310
        %3245 = vmatpush.bf16.msra.mxu0 %v2302
        %3246 = vmatmul.bf16.gmra.mxu0 %v384
        %v3247 = vpop.f32.mrf.mxu0
        %v3248 = vadd.f32 %v3230, %v3247
        %v3249 = vpop.f32.mrf.mxu0
        %v3250 = vadd.f32 %v3232, %v3249
        %3251 = vmatmul.bf16.gmra.mxu0 %v391
        %v3252 = vpop.f32.mrf.mxu0
        %v3253 = vadd.f32 %v3235, %v3252
        %v3254 = vpop.f32.mrf.mxu0
        %3255 = vdwg.mxu0
        %3256 = vmatpush.bf16.msra.mxu0 0
        %3257 = vmatpush.bf16.msra.mxu0 0
        %3258 = vmatpush.bf16.msra.mxu0 0
        %3259 = vmatpush.bf16.msra.mxu0 0
        %3260 = vmatpush.bf16.msra.mxu0 0
        %3261 = vmatpush.bf16.msra.mxu0 0
        %3262 = vmatpush.bf16.msra.mxu0 0
        %3263 = vmatpush.bf16.msra.mxu0 %v2366
        %3264 = vmatmul.bf16.gmra.mxu0 %v2765
        %v3265 = vpop.f32.mrf.mxu0
        %v3266 = vadd.f32 %v3248, %v3265
        %v3267 = vpop.f32.mrf.mxu0
        %v3268 = vadd.f32 %v3250, %v3267
        %3269 = vmatmul.bf16.gmra.mxu0 %v2768
        %v3270 = vpop.f32.mrf.mxu0
        %v3271 = vadd.f32 %v3253, %v3270
        %v3272 = vpop.f32.mrf.mxu0
        %3273 = vdwg.mxu0
        %3274 = vmatpush.bf16.msra.mxu0 %v2039
        %3275 = vmatpush.bf16.msra.mxu0 %v2031
        %3276 = vmatpush.bf16.msra.mxu0 %v2023
        %3277 = vmatpush.bf16.msra.mxu0 %v2015
        %3278 = vmatpush.bf16.msra.mxu0 %v2007
        %3279 = vmatpush.bf16.msra.mxu0 %v1999
        %3280 = vmatpush.bf16.msra.mxu0 %v1991
        %3281 = vmatpush.bf16.msra.mxu0 %v1983
        %3282 = vmatmul.bf16.gmra.mxu0 %v379
        %v3283 = vpop.f32.mrf.mxu0
        %v3284 = vadd.f32 %v791, %v3283
        %v3285 = vpop.f32.mrf.mxu0
        %v3286 = vadd.f32 %v791, %v3285
        %3287 = vmatmul.bf16.gmra.mxu0 %v386
        %v3288 = vpop.f32.mrf.mxu0
        %v3289 = vadd.f32 %v791, %v3288
        %v3290 = vpop.f32.mrf.mxu0
        %3291 = vdwg.mxu0
        %3292 = vmatpush.bf16.msra.mxu0 %v2103
        %3293 = vmatpush.bf16.msra.mxu0 %v2095
        %3294 = vmatpush.bf16.msra.mxu0 %v2087
        %3295 = vmatpush.bf16.msra.mxu0 %v2079
        %3296 = vmatpush.bf16.msra.mxu0 %v2071
        %3297 = vmatpush.bf16.msra.mxu0 %v2063
        %3298 = vmatpush.bf16.msra.mxu0 %v2055
        %3299 = vmatpush.bf16.msra.mxu0 %v2047
        %3300 = vmatmul.bf16.gmra.mxu0 %v380
        %v3301 = vpop.f32.mrf.mxu0
        %v3302 = vadd.f32 %v3284, %v3301
        %v3303 = vpop.f32.mrf.mxu0
        %v3304 = vadd.f32 %v3286, %v3303
        %3305 = vmatmul.bf16.gmra.mxu0 %v387
        %v3306 = vpop.f32.mrf.mxu0
        %v3307 = vadd.f32 %v3289, %v3306
        %v3308 = vpop.f32.mrf.mxu0
        %3309 = vdwg.mxu0
        %3310 = vmatpush.bf16.msra.mxu0 %v2167
        %3311 = vmatpush.bf16.msra.mxu0 %v2159
        %3312 = vmatpush.bf16.msra.mxu0 %v2151
        %3313 = vmatpush.bf16.msra.mxu0 %v2143
        %3314 = vmatpush.bf16.msra.mxu0 %v2135
        %3315 = vmatpush.bf16.msra.mxu0 %v2127
        %3316 = vmatpush.bf16.msra.mxu0 %v2119
        %3317 = vmatpush.bf16.msra.mxu0 %v2111
        %3318 = vmatmul.bf16.gmra.mxu0 %v381
        %v3319 = vpop.f32.mrf.mxu0
        %v3320 = vadd.f32 %v3302, %v3319
        %v3321 = vpop.f32.mrf.mxu0
        %v3322 = vadd.f32 %v3304, %v3321
        %3323 = vmatmul.bf16.gmra.mxu0 %v388
        %v3324 = vpop.f32.mrf.mxu0
        %v3325 = vadd.f32 %v3307, %v3324
        %v3326 = vpop.f32.mrf.mxu0
        %3327 = vdwg.mxu0
        %3328 = vmatpush.bf16.msra.mxu0 %v2231
        %3329 = vmatpush.bf16.msra.mxu0 %v2223
        %3330 = vmatpush.bf16.msra.mxu0 %v2215
        %3331 = vmatpush.bf16.msra.mxu0 %v2207
        %3332 = vmatpush.bf16.msra.mxu0 %v2199
        %3333 = vmatpush.bf16.msra.mxu0 %v2191
        %3334 = vmatpush.bf16.msra.mxu0 %v2183
        %3335 = vmatpush.bf16.msra.mxu0 %v2175
        %3336 = vmatmul.bf16.gmra.mxu0 %v382
        %v3337 = vpop.f32.mrf.mxu0
        %v3338 = vadd.f32 %v3320, %v3337
        %v3339 = vpop.f32.mrf.mxu0
        %v3340 = vadd.f32 %v3322, %v3339
        %3341 = vmatmul.bf16.gmra.mxu0 %v389
        %v3342 = vpop.f32.mrf.mxu0
        %v3343 = vadd.f32 %v3325, %v3342
        %v3344 = vpop.f32.mrf.mxu0
        %3345 = vdwg.mxu0
        %3346 = vmatpush.bf16.msra.mxu0 %v2295
        %3347 = vmatpush.bf16.msra.mxu0 %v2287
        %3348 = vmatpush.bf16.msra.mxu0 %v2279
        %3349 = vmatpush.bf16.msra.mxu0 %v2271
        %3350 = vmatpush.bf16.msra.mxu0 %v2263
        %3351 = vmatpush.bf16.msra.mxu0 %v2255
        %3352 = vmatpush.bf16.msra.mxu0 %v2247
        %3353 = vmatpush.bf16.msra.mxu0 %v2239
        %3354 = vmatmul.bf16.gmra.mxu0 %v383
        %v3355 = vpop.f32.mrf.mxu0
        %v3356 = vadd.f32 %v3338, %v3355
        %v3357 = vpop.f32.mrf.mxu0
        %v3358 = vadd.f32 %v3340, %v3357
        %3359 = vmatmul.bf16.gmra.mxu0 %v390
        %v3360 = vpop.f32.mrf.mxu0
        %v3361 = vadd.f32 %v3343, %v3360
        %v3362 = vpop.f32.mrf.mxu0
        %3363 = vdwg.mxu0
        %3364 = vmatpush.bf16.msra.mxu0 %v2359
        %3365 = vmatpush.bf16.msra.mxu0 %v2351
        %3366 = vmatpush.bf16.msra.mxu0 %v2343
        %3367 = vmatpush.bf16.msra.mxu0 %v2335
        %3368 = vmatpush.bf16.msra.mxu0 %v2327
        %3369 = vmatpush.bf16.msra.mxu0 %v2319
        %3370 = vmatpush.bf16.msra.mxu0 %v2311
        %3371 = vmatpush.bf16.msra.mxu0 %v2303
        %3372 = vmatmul.bf16.gmra.mxu0 %v384
        %v3373 = vpop.f32.mrf.mxu0
        %v3374 = vadd.f32 %v3356, %v3373
        %v3375 = vpop.f32.mrf.mxu0
        %v3376 = vadd.f32 %v3358, %v3375
        %3377 = vmatmul.bf16.gmra.mxu0 %v391
        %v3378 = vpop.f32.mrf.mxu0
        %v3379 = vadd.f32 %v3361, %v3378
        %v3380 = vpop.f32.mrf.mxu0
        %3381 = vdwg.mxu0
        %3382 = vmatpush.bf16.msra.mxu0 0
        %3383 = vmatpush.bf16.msra.mxu0 0
        %3384 = vmatpush.bf16.msra.mxu0 0
        %3385 = vmatpush.bf16.msra.mxu0 0
        %3386 = vmatpush.bf16.msra.mxu0 0
        %3387 = vmatpush.bf16.msra.mxu0 0
        %3388 = vmatpush.bf16.msra.mxu0 0
        %3389 = vmatpush.bf16.msra.mxu0 %v2367
        %3390 = vmatmul.bf16.gmra.mxu0 %v2765
        %v3391 = vpop.f32.mrf.mxu0
        %v3392 = vadd.f32 %v3374, %v3391
        %v3393 = vpop.f32.mrf.mxu0
        %v3394 = vadd.f32 %v3376, %v3393
        %3395 = vmatmul.bf16.gmra.mxu0 %v2768
        %v3396 = vpop.f32.mrf.mxu0
        %v3397 = vadd.f32 %v3379, %v3396
        %v3398 = vpop.f32.mrf.mxu0
        %3399 = vdwg.mxu0
        %3400 = vmatpush.bf16.msra.mxu0 %v2040
        %3401 = vmatpush.bf16.msra.mxu0 %v2032
        %3402 = vmatpush.bf16.msra.mxu0 %v2024
        %3403 = vmatpush.bf16.msra.mxu0 %v2016
        %3404 = vmatpush.bf16.msra.mxu0 %v2008
        %3405 = vmatpush.bf16.msra.mxu0 %v2000
        %3406 = vmatpush.bf16.msra.mxu0 %v1992
        %3407 = vmatpush.bf16.msra.mxu0 %v1984
        %3408 = vmatmul.bf16.gmra.mxu0 %v379
        %v3409 = vpop.f32.mrf.mxu0
        %v3410 = vadd.f32 %v792, %v3409
        %v3411 = vpop.f32.mrf.mxu0
        %v3412 = vadd.f32 %v792, %v3411
        %3413 = vmatmul.bf16.gmra.mxu0 %v386
        %v3414 = vpop.f32.mrf.mxu0
        %v3415 = vadd.f32 %v792, %v3414
        %v3416 = vpop.f32.mrf.mxu0
        %3417 = vdwg.mxu0
        %3418 = vmatpush.bf16.msra.mxu0 %v2104
        %3419 = vmatpush.bf16.msra.mxu0 %v2096
        %3420 = vmatpush.bf16.msra.mxu0 %v2088
        %3421 = vmatpush.bf16.msra.mxu0 %v2080
        %3422 = vmatpush.bf16.msra.mxu0 %v2072
        %3423 = vmatpush.bf16.msra.mxu0 %v2064
        %3424 = vmatpush.bf16.msra.mxu0 %v2056
        %3425 = vmatpush.bf16.msra.mxu0 %v2048
        %3426 = vmatmul.bf16.gmra.mxu0 %v380
        %v3427 = vpop.f32.mrf.mxu0
        %v3428 = vadd.f32 %v3410, %v3427
        %v3429 = vpop.f32.mrf.mxu0
        %v3430 = vadd.f32 %v3412, %v3429
        %3431 = vmatmul.bf16.gmra.mxu0 %v387
        %v3432 = vpop.f32.mrf.mxu0
        %v3433 = vadd.f32 %v3415, %v3432
        %v3434 = vpop.f32.mrf.mxu0
        %3435 = vdwg.mxu0
        %3436 = vmatpush.bf16.msra.mxu0 %v2168
        %3437 = vmatpush.bf16.msra.mxu0 %v2160
        %3438 = vmatpush.bf16.msra.mxu0 %v2152
        %3439 = vmatpush.bf16.msra.mxu0 %v2144
        %3440 = vmatpush.bf16.msra.mxu0 %v2136
        %3441 = vmatpush.bf16.msra.mxu0 %v2128
        %3442 = vmatpush.bf16.msra.mxu0 %v2120
        %3443 = vmatpush.bf16.msra.mxu0 %v2112
        %3444 = vmatmul.bf16.gmra.mxu0 %v381
        %v3445 = vpop.f32.mrf.mxu0
        %v3446 = vadd.f32 %v3428, %v3445
        %v3447 = vpop.f32.mrf.mxu0
        %v3448 = vadd.f32 %v3430, %v3447
        %3449 = vmatmul.bf16.gmra.mxu0 %v388
        %v3450 = vpop.f32.mrf.mxu0
        %v3451 = vadd.f32 %v3433, %v3450
        %v3452 = vpop.f32.mrf.mxu0
        %3453 = vdwg.mxu0
        %3454 = vmatpush.bf16.msra.mxu0 %v2232
        %3455 = vmatpush.bf16.msra.mxu0 %v2224
        %3456 = vmatpush.bf16.msra.mxu0 %v2216
        %3457 = vmatpush.bf16.msra.mxu0 %v2208
        %3458 = vmatpush.bf16.msra.mxu0 %v2200
        %3459 = vmatpush.bf16.msra.mxu0 %v2192
        %3460 = vmatpush.bf16.msra.mxu0 %v2184
        %3461 = vmatpush.bf16.msra.mxu0 %v2176
        %3462 = vmatmul.bf16.gmra.mxu0 %v382
        %v3463 = vpop.f32.mrf.mxu0
        %v3464 = vadd.f32 %v3446, %v3463
        %v3465 = vpop.f32.mrf.mxu0
        %v3466 = vadd.f32 %v3448, %v3465
        %3467 = vmatmul.bf16.gmra.mxu0 %v389
        %v3468 = vpop.f32.mrf.mxu0
        %v3469 = vadd.f32 %v3451, %v3468
        %v3470 = vpop.f32.mrf.mxu0
        %3471 = vdwg.mxu0
        %3472 = vmatpush.bf16.msra.mxu0 %v2296
        %3473 = vmatpush.bf16.msra.mxu0 %v2288
        %3474 = vmatpush.bf16.msra.mxu0 %v2280
        %3475 = vmatpush.bf16.msra.mxu0 %v2272
        %3476 = vmatpush.bf16.msra.mxu0 %v2264
        %3477 = vmatpush.bf16.msra.mxu0 %v2256
        %3478 = vmatpush.bf16.msra.mxu0 %v2248
        %3479 = vmatpush.bf16.msra.mxu0 %v2240
        %3480 = vmatmul.bf16.gmra.mxu0 %v383
        %v3481 = vpop.f32.mrf.mxu0
        %v3482 = vadd.f32 %v3464, %v3481
        %v3483 = vpop.f32.mrf.mxu0
        %v3484 = vadd.f32 %v3466, %v3483
        %3485 = vmatmul.bf16.gmra.mxu0 %v390
        %v3486 = vpop.f32.mrf.mxu0
        %v3487 = vadd.f32 %v3469, %v3486
        %v3488 = vpop.f32.mrf.mxu0
        %3489 = vdwg.mxu0
        %3490 = vmatpush.bf16.msra.mxu0 %v2360
        %3491 = vmatpush.bf16.msra.mxu0 %v2352
        %3492 = vmatpush.bf16.msra.mxu0 %v2344
        %3493 = vmatpush.bf16.msra.mxu0 %v2336
        %3494 = vmatpush.bf16.msra.mxu0 %v2328
        %3495 = vmatpush.bf16.msra.mxu0 %v2320
        %3496 = vmatpush.bf16.msra.mxu0 %v2312
        %3497 = vmatpush.bf16.msra.mxu0 %v2304
        %3498 = vmatmul.bf16.gmra.mxu0 %v384
        %v3499 = vpop.f32.mrf.mxu0
        %v3500 = vadd.f32 %v3482, %v3499
        %v3501 = vpop.f32.mrf.mxu0
        %v3502 = vadd.f32 %v3484, %v3501
        %3503 = vmatmul.bf16.gmra.mxu0 %v391
        %v3504 = vpop.f32.mrf.mxu0
        %v3505 = vadd.f32 %v3487, %v3504
        %v3506 = vpop.f32.mrf.mxu0
        %3507 = vdwg.mxu0
        %3508 = vmatpush.bf16.msra.mxu0 0
        %3509 = vmatpush.bf16.msra.mxu0 0
        %3510 = vmatpush.bf16.msra.mxu0 0
        %3511 = vmatpush.bf16.msra.mxu0 0
        %3512 = vmatpush.bf16.msra.mxu0 0
        %3513 = vmatpush.bf16.msra.mxu0 0
        %3514 = vmatpush.bf16.msra.mxu0 0
        %3515 = vmatpush.bf16.msra.mxu0 %v2368
        %3516 = vmatmul.bf16.gmra.mxu0 %v2765
        %v3517 = vpop.f32.mrf.mxu0
        %v3518 = vadd.f32 %v3500, %v3517
        %v3519 = vpop.f32.mrf.mxu0
        %v3520 = vadd.f32 %v3502, %v3519
        %3521 = vmatmul.bf16.gmra.mxu0 %v2768
        %v3522 = vpop.f32.mrf.mxu0
        %v3523 = vadd.f32 %v3505, %v3522
        %v3524 = vpop.f32.mrf.mxu0
        %3525 = vdwg.mxu0
        %3526 = vmatpush.bf16.msra.mxu0 %v2041
        %3527 = vmatpush.bf16.msra.mxu0 %v2033
        %3528 = vmatpush.bf16.msra.mxu0 %v2025
        %3529 = vmatpush.bf16.msra.mxu0 %v2017
        %3530 = vmatpush.bf16.msra.mxu0 %v2009
        %3531 = vmatpush.bf16.msra.mxu0 %v2001
        %3532 = vmatpush.bf16.msra.mxu0 %v1993
        %3533 = vmatpush.bf16.msra.mxu0 %v1985
        %3534 = vmatmul.bf16.gmra.mxu0 %v379
        %v3535 = vpop.f32.mrf.mxu0
        %v3536 = vadd.f32 %v793, %v3535
        %v3537 = vpop.f32.mrf.mxu0
        %v3538 = vadd.f32 %v793, %v3537
        %3539 = vmatmul.bf16.gmra.mxu0 %v386
        %v3540 = vpop.f32.mrf.mxu0
        %v3541 = vadd.f32 %v793, %v3540
        %v3542 = vpop.f32.mrf.mxu0
        %3543 = vdwg.mxu0
        %3544 = vmatpush.bf16.msra.mxu0 %v2105
        %3545 = vmatpush.bf16.msra.mxu0 %v2097
        %3546 = vmatpush.bf16.msra.mxu0 %v2089
        %3547 = vmatpush.bf16.msra.mxu0 %v2081
        %3548 = vmatpush.bf16.msra.mxu0 %v2073
        %3549 = vmatpush.bf16.msra.mxu0 %v2065
        %3550 = vmatpush.bf16.msra.mxu0 %v2057
        %3551 = vmatpush.bf16.msra.mxu0 %v2049
        %3552 = vmatmul.bf16.gmra.mxu0 %v380
        %v3553 = vpop.f32.mrf.mxu0
        %v3554 = vadd.f32 %v3536, %v3553
        %v3555 = vpop.f32.mrf.mxu0
        %v3556 = vadd.f32 %v3538, %v3555
        %3557 = vmatmul.bf16.gmra.mxu0 %v387
        %v3558 = vpop.f32.mrf.mxu0
        %v3559 = vadd.f32 %v3541, %v3558
        %v3560 = vpop.f32.mrf.mxu0
        %3561 = vdwg.mxu0
        %3562 = vmatpush.bf16.msra.mxu0 %v2169
        %3563 = vmatpush.bf16.msra.mxu0 %v2161
        %3564 = vmatpush.bf16.msra.mxu0 %v2153
        %3565 = vmatpush.bf16.msra.mxu0 %v2145
        %3566 = vmatpush.bf16.msra.mxu0 %v2137
        %3567 = vmatpush.bf16.msra.mxu0 %v2129
        %3568 = vmatpush.bf16.msra.mxu0 %v2121
        %3569 = vmatpush.bf16.msra.mxu0 %v2113
        %3570 = vmatmul.bf16.gmra.mxu0 %v381
        %v3571 = vpop.f32.mrf.mxu0
        %v3572 = vadd.f32 %v3554, %v3571
        %v3573 = vpop.f32.mrf.mxu0
        %v3574 = vadd.f32 %v3556, %v3573
        %3575 = vmatmul.bf16.gmra.mxu0 %v388
        %v3576 = vpop.f32.mrf.mxu0
        %v3577 = vadd.f32 %v3559, %v3576
        %v3578 = vpop.f32.mrf.mxu0
        %3579 = vdwg.mxu0
        %3580 = vmatpush.bf16.msra.mxu0 %v2233
        %3581 = vmatpush.bf16.msra.mxu0 %v2225
        %3582 = vmatpush.bf16.msra.mxu0 %v2217
        %3583 = vmatpush.bf16.msra.mxu0 %v2209
        %3584 = vmatpush.bf16.msra.mxu0 %v2201
        %3585 = vmatpush.bf16.msra.mxu0 %v2193
        %3586 = vmatpush.bf16.msra.mxu0 %v2185
        %3587 = vmatpush.bf16.msra.mxu0 %v2177
        %3588 = vmatmul.bf16.gmra.mxu0 %v382
        %v3589 = vpop.f32.mrf.mxu0
        %v3590 = vadd.f32 %v3572, %v3589
        %v3591 = vpop.f32.mrf.mxu0
        %v3592 = vadd.f32 %v3574, %v3591
        %3593 = vmatmul.bf16.gmra.mxu0 %v389
        %v3594 = vpop.f32.mrf.mxu0
        %v3595 = vadd.f32 %v3577, %v3594
        %v3596 = vpop.f32.mrf.mxu0
        %3597 = vdwg.mxu0
        %3598 = vmatpush.bf16.msra.mxu0 %v2297
        %3599 = vmatpush.bf16.msra.mxu0 %v2289
        %3600 = vmatpush.bf16.msra.mxu0 %v2281
        %3601 = vmatpush.bf16.msra.mxu0 %v2273
        %3602 = vmatpush.bf16.msra.mxu0 %v2265
        %3603 = vmatpush.bf16.msra.mxu0 %v2257
        %3604 = vmatpush.bf16.msra.mxu0 %v2249
        %3605 = vmatpush.bf16.msra.mxu0 %v2241
        %3606 = vmatmul.bf16.gmra.mxu0 %v383
        %v3607 = vpop.f32.mrf.mxu0
        %v3608 = vadd.f32 %v3590, %v3607
        %v3609 = vpop.f32.mrf.mxu0
        %v3610 = vadd.f32 %v3592, %v3609
        %3611 = vmatmul.bf16.gmra.mxu0 %v390
        %v3612 = vpop.f32.mrf.mxu0
        %v3613 = vadd.f32 %v3595, %v3612
        %v3614 = vpop.f32.mrf.mxu0
        %3615 = vdwg.mxu0
        %3616 = vmatpush.bf16.msra.mxu0 %v2361
        %3617 = vmatpush.bf16.msra.mxu0 %v2353
        %3618 = vmatpush.bf16.msra.mxu0 %v2345
        %3619 = vmatpush.bf16.msra.mxu0 %v2337
        %3620 = vmatpush.bf16.msra.mxu0 %v2329
        %3621 = vmatpush.bf16.msra.mxu0 %v2321
        %3622 = vmatpush.bf16.msra.mxu0 %v2313
        %3623 = vmatpush.bf16.msra.mxu0 %v2305
        %3624 = vmatmul.bf16.gmra.mxu0 %v384
        %v3625 = vpop.f32.mrf.mxu0
        %v3626 = vadd.f32 %v3608, %v3625
        %v3627 = vpop.f32.mrf.mxu0
        %v3628 = vadd.f32 %v3610, %v3627
        %3629 = vmatmul.bf16.gmra.mxu0 %v391
        %v3630 = vpop.f32.mrf.mxu0
        %v3631 = vadd.f32 %v3613, %v3630
        %v3632 = vpop.f32.mrf.mxu0
        %3633 = vdwg.mxu0
        %3634 = vmatpush.bf16.msra.mxu0 0
        %3635 = vmatpush.bf16.msra.mxu0 0
        %3636 = vmatpush.bf16.msra.mxu0 0
        %3637 = vmatpush.bf16.msra.mxu0 0
        %3638 = vmatpush.bf16.msra.mxu0 0
        %3639 = vmatpush.bf16.msra.mxu0 0
        %3640 = vmatpush.bf16.msra.mxu0 0
        %3641 = vmatpush.bf16.msra.mxu0 %v2369
        %3642 = vmatmul.bf16.gmra.mxu0 %v2765
        %v3643 = vpop.f32.mrf.mxu0
        %v3644 = vadd.f32 %v3626, %v3643
        %v3645 = vpop.f32.mrf.mxu0
        %v3646 = vadd.f32 %v3628, %v3645
        %3647 = vmatmul.bf16.gmra.mxu0 %v2768
        %v3648 = vpop.f32.mrf.mxu0
        %v3649 = vadd.f32 %v3631, %v3648
        %v3650 = vpop.f32.mrf.mxu0
        %3651 = vdwg.mxu0
        %3652 = vmatpush.bf16.msra.mxu0 %v2042
        %3653 = vmatpush.bf16.msra.mxu0 %v2034
        %3654 = vmatpush.bf16.msra.mxu0 %v2026
        %3655 = vmatpush.bf16.msra.mxu0 %v2018
        %3656 = vmatpush.bf16.msra.mxu0 %v2010
        %3657 = vmatpush.bf16.msra.mxu0 %v2002
        %3658 = vmatpush.bf16.msra.mxu0 %v1994
        %3659 = vmatpush.bf16.msra.mxu0 %v1986
        %3660 = vmatmul.bf16.gmra.mxu0 %v379
        %v3661 = vpop.f32.mrf.mxu0
        %v3662 = vadd.f32 %v794, %v3661
        %v3663 = vpop.f32.mrf.mxu0
        %v3664 = vadd.f32 %v794, %v3663
        %3665 = vmatmul.bf16.gmra.mxu0 %v386
        %v3666 = vpop.f32.mrf.mxu0
        %v3667 = vadd.f32 %v794, %v3666
        %v3668 = vpop.f32.mrf.mxu0
        %3669 = vdwg.mxu0
        %3670 = vmatpush.bf16.msra.mxu0 %v2106
        %3671 = vmatpush.bf16.msra.mxu0 %v2098
        %3672 = vmatpush.bf16.msra.mxu0 %v2090
        %3673 = vmatpush.bf16.msra.mxu0 %v2082
        %3674 = vmatpush.bf16.msra.mxu0 %v2074
        %3675 = vmatpush.bf16.msra.mxu0 %v2066
        %3676 = vmatpush.bf16.msra.mxu0 %v2058
        %3677 = vmatpush.bf16.msra.mxu0 %v2050
        %3678 = vmatmul.bf16.gmra.mxu0 %v380
        %v3679 = vpop.f32.mrf.mxu0
        %v3680 = vadd.f32 %v3662, %v3679
        %v3681 = vpop.f32.mrf.mxu0
        %v3682 = vadd.f32 %v3664, %v3681
        %3683 = vmatmul.bf16.gmra.mxu0 %v387
        %v3684 = vpop.f32.mrf.mxu0
        %v3685 = vadd.f32 %v3667, %v3684
        %v3686 = vpop.f32.mrf.mxu0
        %3687 = vdwg.mxu0
        %3688 = vmatpush.bf16.msra.mxu0 %v2170
        %3689 = vmatpush.bf16.msra.mxu0 %v2162
        %3690 = vmatpush.bf16.msra.mxu0 %v2154
        %3691 = vmatpush.bf16.msra.mxu0 %v2146
        %3692 = vmatpush.bf16.msra.mxu0 %v2138
        %3693 = vmatpush.bf16.msra.mxu0 %v2130
        %3694 = vmatpush.bf16.msra.mxu0 %v2122
        %3695 = vmatpush.bf16.msra.mxu0 %v2114
        %3696 = vmatmul.bf16.gmra.mxu0 %v381
        %v3697 = vpop.f32.mrf.mxu0
        %v3698 = vadd.f32 %v3680, %v3697
        %v3699 = vpop.f32.mrf.mxu0
        %v3700 = vadd.f32 %v3682, %v3699
        %3701 = vmatmul.bf16.gmra.mxu0 %v388
        %v3702 = vpop.f32.mrf.mxu0
        %v3703 = vadd.f32 %v3685, %v3702
        %v3704 = vpop.f32.mrf.mxu0
        %3705 = vdwg.mxu0
        %3706 = vmatpush.bf16.msra.mxu0 %v2234
        %3707 = vmatpush.bf16.msra.mxu0 %v2226
        %3708 = vmatpush.bf16.msra.mxu0 %v2218
        %3709 = vmatpush.bf16.msra.mxu0 %v2210
        %3710 = vmatpush.bf16.msra.mxu0 %v2202
        %3711 = vmatpush.bf16.msra.mxu0 %v2194
        %3712 = vmatpush.bf16.msra.mxu0 %v2186
        %3713 = vmatpush.bf16.msra.mxu0 %v2178
        %3714 = vmatmul.bf16.gmra.mxu0 %v382
        %v3715 = vpop.f32.mrf.mxu0
        %v3716 = vadd.f32 %v3698, %v3715
        %v3717 = vpop.f32.mrf.mxu0
        %v3718 = vadd.f32 %v3700, %v3717
        %3719 = vmatmul.bf16.gmra.mxu0 %v389
        %v3720 = vpop.f32.mrf.mxu0
        %v3721 = vadd.f32 %v3703, %v3720
        %v3722 = vpop.f32.mrf.mxu0
        %3723 = vdwg.mxu0
        %3724 = vmatpush.bf16.msra.mxu0 %v2298
        %3725 = vmatpush.bf16.msra.mxu0 %v2290
        %3726 = vmatpush.bf16.msra.mxu0 %v2282
        %3727 = vmatpush.bf16.msra.mxu0 %v2274
        %3728 = vmatpush.bf16.msra.mxu0 %v2266
        %3729 = vmatpush.bf16.msra.mxu0 %v2258
        %3730 = vmatpush.bf16.msra.mxu0 %v2250
        %3731 = vmatpush.bf16.msra.mxu0 %v2242
        %3732 = vmatmul.bf16.gmra.mxu0 %v383
        %v3733 = vpop.f32.mrf.mxu0
        %v3734 = vadd.f32 %v3716, %v3733
        %v3735 = vpop.f32.mrf.mxu0
        %v3736 = vadd.f32 %v3718, %v3735
        %3737 = vmatmul.bf16.gmra.mxu0 %v390
        %v3738 = vpop.f32.mrf.mxu0
        %v3739 = vadd.f32 %v3721, %v3738
        %v3740 = vpop.f32.mrf.mxu0
        %3741 = vdwg.mxu0
        %3742 = vmatpush.bf16.msra.mxu0 %v2362
        %3743 = vmatpush.bf16.msra.mxu0 %v2354
        %3744 = vmatpush.bf16.msra.mxu0 %v2346
        %3745 = vmatpush.bf16.msra.mxu0 %v2338
        %3746 = vmatpush.bf16.msra.mxu0 %v2330
        %3747 = vmatpush.bf16.msra.mxu0 %v2322
        %3748 = vmatpush.bf16.msra.mxu0 %v2314
        %3749 = vmatpush.bf16.msra.mxu0 %v2306
        %3750 = vmatmul.bf16.gmra.mxu0 %v384
        %v3751 = vpop.f32.mrf.mxu0
        %v3752 = vadd.f32 %v3734, %v3751
        %v3753 = vpop.f32.mrf.mxu0
        %v3754 = vadd.f32 %v3736, %v3753
        %3755 = vmatmul.bf16.gmra.mxu0 %v391
        %v3756 = vpop.f32.mrf.mxu0
        %v3757 = vadd.f32 %v3739, %v3756
        %v3758 = vpop.f32.mrf.mxu0
        %3759 = vdwg.mxu0
        %3760 = vmatpush.bf16.msra.mxu0 0
        %3761 = vmatpush.bf16.msra.mxu0 0
        %3762 = vmatpush.bf16.msra.mxu0 0
        %3763 = vmatpush.bf16.msra.mxu0 0
        %3764 = vmatpush.bf16.msra.mxu0 0
        %3765 = vmatpush.bf16.msra.mxu0 0
        %3766 = vmatpush.bf16.msra.mxu0 0
        %3767 = vmatpush.bf16.msra.mxu0 %v2370
        %3768 = vmatmul.bf16.gmra.mxu0 %v2765
        %v3769 = vpop.f32.mrf.mxu0
        %v3770 = vadd.f32 %v3752, %v3769
        %v3771 = vpop.f32.mrf.mxu0
        %v3772 = vadd.f32 %v3754, %v3771
        %3773 = vmatmul.bf16.gmra.mxu0 %v2768
        %v3774 = vpop.f32.mrf.mxu0
        %v3775 = vadd.f32 %v3757, %v3774
        %v3776 = vpop.f32.mrf.mxu0
        %3777 = vdwg.mxu0
        %v3778 = vpack.c.bf16 %v3014, %v2888
        %v3779 = vpack.c.bf16 %v3266, %v3140
        %v3780 = vpack.c.bf16 %v3518, %v3392
        %v3781 = vpack.c.bf16 %v3770, %v3644
        %v3782 = vpack.c.bf16 %v3016, %v2890
        %v3783 = vpack.c.bf16 %v3268, %v3142
        %v3784 = vpack.c.bf16 %v3520, %v3394
        %v3785 = vpack.c.bf16 %v3772, %v3646
        %v3786 = vpack.c.bf16 %v3019, %v2893
        %v3787 = vpack.c.bf16 %v3271, %v3145
        %v3788 = vpack.c.bf16 %v3523, %v3397
        %v3789 = vpack.c.bf16 %v3775, %v3649
        %v3790 = vxor.u32 %v3778, 2147516416
        %v3791 = vxor.u32 %v3779, 2147516416
        %v3792 = vxor.u32 %v3780, 2147516416
        %v3793 = vxor.u32 %v3781, 2147516416
        %v3794 = vxor.u32 %v3782, 2147516416
        %v3795 = vxor.u32 %v3783, 2147516416
        %v3796 = vxor.u32 %v3784, 2147516416
        %v3797 = vxor.u32 %v3785, 2147516416
        %v3798 = vxor.u32 %v3786, 2147516416
        %v3799 = vxor.u32 %v3787, 2147516416
        %v3800 = vxor.u32 %v3788, 2147516416
        %v3801 = vxor.u32 %v3789, 2147516416
        %v3802 = vunpack.c.l.bf16 %v3790
        %v3803 = vunpack.c.h.bf16 %v3790
        %v3804 = vunpack.c.l.bf16 %v3791
        %v3805 = vunpack.c.h.bf16 %v3791
        %v3806 = vunpack.c.l.bf16 %v3792
        %v3807 = vunpack.c.h.bf16 %v3792
        %v3808 = vunpack.c.l.bf16 %v3793
        %v3809 = vunpack.c.h.bf16 %v3793
        %v3810 = vunpack.c.l.bf16 %v3794
        %v3811 = vunpack.c.h.bf16 %v3794
        %v3812 = vunpack.c.l.bf16 %v3795
        %v3813 = vunpack.c.h.bf16 %v3795
        %v3814 = vunpack.c.l.bf16 %v3796
        %v3815 = vunpack.c.h.bf16 %v3796
        %v3816 = vunpack.c.l.bf16 %v3797
        %v3817 = vunpack.c.h.bf16 %v3797
        %v3818 = vunpack.c.l.bf16 %v3798
        %v3819 = vunpack.c.h.bf16 %v3798
        %v3820 = vunpack.c.l.bf16 %v3799
        %v3821 = vunpack.c.h.bf16 %v3799
        %v3822 = vunpack.c.l.bf16 %v3800
        %v3823 = vunpack.c.h.bf16 %v3800
        %v3824 = vunpack.c.l.bf16 %v3801
        %v3825 = vunpack.c.h.bf16 %v3801
        %v3826 = vmul.f32 %v3802, 1.442695
        %v3827 = vpow.pop %v3826
        %v3828 = vmul.f32 %v3803, 1.442695
        %v3829 = vpow.pop %v3828
        %v3830 = vmul.f32 %v3804, 1.442695
        %v3831 = vpow.pop %v3830
        %v3832 = vmul.f32 %v3805, 1.442695
        %v3833 = vpow.pop %v3832
        %v3834 = vmul.f32 %v3806, 1.442695
        %v3835 = vpow.pop %v3834
        %v3836 = vmul.f32 %v3807, 1.442695
        %v3837 = vpow.pop %v3836
        %v3838 = vmul.f32 %v3808, 1.442695
        %v3839 = vpow.pop %v3838
        %v3840 = vmul.f32 %v3809, 1.442695
        %v3841 = vpow.pop %v3840
        %v3842 = vmul.f32 %v3810, 1.442695
        %v3843 = vpow.pop %v3842
        %v3844 = vmul.f32 %v3811, 1.442695
        %v3845 = vpow.pop %v3844
        %v3846 = vmul.f32 %v3812, 1.442695
        %v3847 = vpow.pop %v3846
        %v3848 = vmul.f32 %v3813, 1.442695
        %v3849 = vpow.pop %v3848
        %v3850 = vmul.f32 %v3814, 1.442695
        %v3851 = vpow.pop %v3850
        %v3852 = vmul.f32 %v3815, 1.442695
        %v3853 = vpow.pop %v3852
        %v3854 = vmul.f32 %v3816, 1.442695
        %v3855 = vpow.pop %v3854
        %v3856 = vmul.f32 %v3817, 1.442695
        %v3857 = vpow.pop %v3856
        %v3858 = vmul.f32 %v3818, 1.442695
        %v3859 = vpow.pop %v3858
        %v3860 = vmul.f32 %v3819, 1.442695
        %v3861 = vpow.pop %v3860
        %v3862 = vmul.f32 %v3820, 1.442695
        %v3863 = vpow.pop %v3862
        %v3864 = vmul.f32 %v3821, 1.442695
        %v3865 = vpow.pop %v3864
        %v3866 = vmul.f32 %v3822, 1.442695
        %v3867 = vpow.pop %v3866
        %v3868 = vmul.f32 %v3823, 1.442695
        %v3869 = vpow.pop %v3868
        %v3870 = vmul.f32 %v3824, 1.442695
        %v3871 = vpow.pop %v3870
        %v3872 = vmul.f32 %v3825, 1.442695
        %v3873 = vpow.pop %v3872
        %v3874 = vpack.c.bf16 %v3829, %v3827
        %v3875 = vpack.c.bf16 %v3833, %v3831
        %v3876 = vpack.c.bf16 %v3837, %v3835
        %v3877 = vpack.c.bf16 %v3841, %v3839
        %v3878 = vpack.c.bf16 %v3845, %v3843
        %v3879 = vpack.c.bf16 %v3849, %v3847
        %v3880 = vpack.c.bf16 %v3853, %v3851
        %v3881 = vpack.c.bf16 %v3857, %v3855
        %v3882 = vpack.c.bf16 %v3861, %v3859
        %v3883 = vpack.c.bf16 %v3865, %v3863
        %v3884 = vpack.c.bf16 %v3869, %v3867
        %v3885 = vpack.c.bf16 %v3873, %v3871
        %v3886 = vunpack.c.l.bf16 %v3874
        %v3887 = vunpack.c.h.bf16 %v3874
        %v3888 = vunpack.c.l.bf16 %v3875
        %v3889 = vunpack.c.h.bf16 %v3875
        %v3890 = vunpack.c.l.bf16 %v3876
        %v3891 = vunpack.c.h.bf16 %v3876
        %v3892 = vunpack.c.l.bf16 %v3877
        %v3893 = vunpack.c.h.bf16 %v3877
        %v3894 = vunpack.c.l.bf16 %v3878
        %v3895 = vunpack.c.h.bf16 %v3878
        %v3896 = vunpack.c.l.bf16 %v3879
        %v3897 = vunpack.c.h.bf16 %v3879
        %v3898 = vunpack.c.l.bf16 %v3880
        %v3899 = vunpack.c.h.bf16 %v3880
        %v3900 = vunpack.c.l.bf16 %v3881
        %v3901 = vunpack.c.h.bf16 %v3881
        %v3902 = vunpack.c.l.bf16 %v3882
        %v3903 = vunpack.c.h.bf16 %v3882
        %v3904 = vunpack.c.l.bf16 %v3883
        %v3905 = vunpack.c.h.bf16 %v3883
        %v3906 = vunpack.c.l.bf16 %v3884
        %v3907 = vunpack.c.h.bf16 %v3884
        %v3908 = vunpack.c.l.bf16 %v3885
        %v3909 = vunpack.c.h.bf16 %v3885
        %v3910 = vadd.f32 %v3886, 1.0
        %v3911 = vadd.f32 %v3887, 1.0
        %v3912 = vadd.f32 %v3888, 1.0
        %v3913 = vadd.f32 %v3889, 1.0
        %v3914 = vadd.f32 %v3890, 1.0
        %v3915 = vadd.f32 %v3891, 1.0
        %v3916 = vadd.f32 %v3892, 1.0
        %v3917 = vadd.f32 %v3893, 1.0
        %v3918 = vadd.f32 %v3894, 1.0
        %v3919 = vadd.f32 %v3895, 1.0
        %v3920 = vadd.f32 %v3896, 1.0
        %v3921 = vadd.f32 %v3897, 1.0
        %v3922 = vadd.f32 %v3898, 1.0
        %v3923 = vadd.f32 %v3899, 1.0
        %v3924 = vadd.f32 %v3900, 1.0
        %v3925 = vadd.f32 %v3901, 1.0
        %v3926 = vadd.f32 %v3902, 1.0
        %v3927 = vadd.f32 %v3903, 1.0
        %v3928 = vadd.f32 %v3904, 1.0
        %v3929 = vadd.f32 %v3905, 1.0
        %v3930 = vadd.f32 %v3906, 1.0
        %v3931 = vadd.f32 %v3907, 1.0
        %v3932 = vadd.f32 %v3908, 1.0
        %v3933 = vadd.f32 %v3909, 1.0
        %v3934 = vpack.c.bf16 %v3911, %v3910
        %v3935 = vpack.c.bf16 %v3913, %v3912
        %v3936 = vpack.c.bf16 %v3915, %v3914
        %v3937 = vpack.c.bf16 %v3917, %v3916
        %v3938 = vpack.c.bf16 %v3919, %v3918
        %v3939 = vpack.c.bf16 %v3921, %v3920
        %v3940 = vpack.c.bf16 %v3923, %v3922
        %v3941 = vpack.c.bf16 %v3925, %v3924
        %v3942 = vpack.c.bf16 %v3927, %v3926
        %v3943 = vpack.c.bf16 %v3929, %v3928
        %v3944 = vpack.c.bf16 %v3931, %v3930
        %v3945 = vpack.c.bf16 %v3933, %v3932
        %v3946 = vunpack.c.h.bf16 1065369472
        %v3947 = vunpack.c.l.bf16 1065369472
        %v3948 = vunpack.c.h.bf16 %v3934
        %v3949 = vunpack.c.l.bf16 %v3934
        %v3950 = vrcp.pop %v3948
        %v3951 = vmul.f32 %v3946, %v3950
        %v3952 = vrcp.pop %v3949
        %v3953 = vmul.f32 %v3947, %v3952
        %v3954 = vpack.c.bf16 %v3951, %v3953
        %v3955 = vunpack.c.h.bf16 %v3935
        %v3956 = vunpack.c.l.bf16 %v3935
        %v3957 = vrcp.pop %v3955
        %v3958 = vmul.f32 %v3946, %v3957
        %v3959 = vrcp.pop %v3956
        %v3960 = vmul.f32 %v3947, %v3959
        %v3961 = vpack.c.bf16 %v3958, %v3960
        %v3962 = vunpack.c.h.bf16 %v3936
        %v3963 = vunpack.c.l.bf16 %v3936
        %v3964 = vrcp.pop %v3962
        %v3965 = vmul.f32 %v3946, %v3964
        %v3966 = vrcp.pop %v3963
        %v3967 = vmul.f32 %v3947, %v3966
        %v3968 = vpack.c.bf16 %v3965, %v3967
        %v3969 = vunpack.c.h.bf16 %v3937
        %v3970 = vunpack.c.l.bf16 %v3937
        %v3971 = vrcp.pop %v3969
        %v3972 = vmul.f32 %v3946, %v3971
        %v3973 = vrcp.pop %v3970
        %v3974 = vmul.f32 %v3947, %v3973
        %v3975 = vpack.c.bf16 %v3972, %v3974
        %v3976 = vunpack.c.h.bf16 %v3938
        %v3977 = vunpack.c.l.bf16 %v3938
        %v3978 = vrcp.pop %v3976
        %v3979 = vmul.f32 %v3946, %v3978
        %v3980 = vrcp.pop %v3977
        %v3981 = vmul.f32 %v3947, %v3980
        %v3982 = vpack.c.bf16 %v3979, %v3981
        %v3983 = vunpack.c.h.bf16 %v3939
        %v3984 = vunpack.c.l.bf16 %v3939
        %v3985 = vrcp.pop %v3983
        %v3986 = vmul.f32 %v3946, %v3985
        %v3987 = vrcp.pop %v3984
        %v3988 = vmul.f32 %v3947, %v3987
        %v3989 = vpack.c.bf16 %v3986, %v3988
        %v3990 = vunpack.c.h.bf16 %v3940
        %v3991 = vunpack.c.l.bf16 %v3940
        %v3992 = vrcp.pop %v3990
        %v3993 = vmul.f32 %v3946, %v3992
        %v3994 = vrcp.pop %v3991
        %v3995 = vmul.f32 %v3947, %v3994
        %v3996 = vpack.c.bf16 %v3993, %v3995
        %v3997 = vunpack.c.h.bf16 %v3941
        %v3998 = vunpack.c.l.bf16 %v3941
        %v3999 = vrcp.pop %v3997
        %v4000 = vmul.f32 %v3946, %v3999
        %v4001 = vrcp.pop %v3998
        %v4002 = vmul.f32 %v3947, %v4001
        %v4003 = vpack.c.bf16 %v4000, %v4002
        %v4004 = vunpack.c.h.bf16 %v3942
        %v4005 = vunpack.c.l.bf16 %v3942
        %v4006 = vrcp.pop %v4004
        %v4007 = vmul.f32 %v3946, %v4006
        %v4008 = vrcp.pop %v4005
        %v4009 = vmul.f32 %v3947, %v4008
        %v4010 = vpack.c.bf16 %v4007, %v4009
        %v4011 = vunpack.c.h.bf16 %v3943
        %v4012 = vunpack.c.l.bf16 %v3943
        %v4013 = vrcp.pop %v4011
        %v4014 = vmul.f32 %v3946, %v4013
        %v4015 = vrcp.pop %v4012
        %v4016 = vmul.f32 %v3947, %v4015
        %v4017 = vpack.c.bf16 %v4014, %v4016
        %v4018 = vunpack.c.h.bf16 %v3944
        %v4019 = vunpack.c.l.bf16 %v3944
        %v4020 = vrcp.pop %v4018
        %v4021 = vmul.f32 %v3946, %v4020
        %v4022 = vrcp.pop %v4019
        %v4023 = vmul.f32 %v3947, %v4022
        %v4024 = vpack.c.bf16 %v4021, %v4023
        %v4025 = vunpack.c.h.bf16 %v3945
        %v4026 = vunpack.c.l.bf16 %v3945
        %v4027 = vrcp.pop %v4025
        %v4028 = vmul.f32 %v3946, %v4027
        %v4029 = vrcp.pop %v4026
        %v4030 = vmul.f32 %v3947, %v4029
        %v4031 = vpack.c.bf16 %v4028, %v4030
        %v4032 = vunpack.c.l.bf16 %v3778
        %v4033 = vunpack.c.h.bf16 %v3778
        %v4034 = vunpack.c.l.bf16 %v3779
        %v4035 = vunpack.c.h.bf16 %v3779
        %v4036 = vunpack.c.l.bf16 %v3780
        %v4037 = vunpack.c.h.bf16 %v3780
        %v4038 = vunpack.c.l.bf16 %v3781
        %v4039 = vunpack.c.h.bf16 %v3781
        %v4040 = vunpack.c.l.bf16 %v3782
        %v4041 = vunpack.c.h.bf16 %v3782
        %v4042 = vunpack.c.l.bf16 %v3783
        %v4043 = vunpack.c.h.bf16 %v3783
        %v4044 = vunpack.c.l.bf16 %v3784
        %v4045 = vunpack.c.h.bf16 %v3784
        %v4046 = vunpack.c.l.bf16 %v3785
        %v4047 = vunpack.c.h.bf16 %v3785
        %v4048 = vunpack.c.l.bf16 %v3786
        %v4049 = vunpack.c.h.bf16 %v3786
        %v4050 = vunpack.c.l.bf16 %v3787
        %v4051 = vunpack.c.h.bf16 %v3787
        %v4052 = vunpack.c.l.bf16 %v3788
        %v4053 = vunpack.c.h.bf16 %v3788
        %v4054 = vunpack.c.l.bf16 %v3789
        %v4055 = vunpack.c.h.bf16 %v3789
        %v4056 = vunpack.c.l.bf16 %v3954
        %v4057 = vunpack.c.h.bf16 %v3954
        %v4058 = vunpack.c.l.bf16 %v3961
        %v4059 = vunpack.c.h.bf16 %v3961
        %v4060 = vunpack.c.l.bf16 %v3968
        %v4061 = vunpack.c.h.bf16 %v3968
        %v4062 = vunpack.c.l.bf16 %v3975
        %v4063 = vunpack.c.h.bf16 %v3975
        %v4064 = vunpack.c.l.bf16 %v3982
        %v4065 = vunpack.c.h.bf16 %v3982
        %v4066 = vunpack.c.l.bf16 %v3989
        %v4067 = vunpack.c.h.bf16 %v3989
        %v4068 = vunpack.c.l.bf16 %v3996
        %v4069 = vunpack.c.h.bf16 %v3996
        %v4070 = vunpack.c.l.bf16 %v4003
        %v4071 = vunpack.c.h.bf16 %v4003
        %v4072 = vunpack.c.l.bf16 %v4010
        %v4073 = vunpack.c.h.bf16 %v4010
        %v4074 = vunpack.c.l.bf16 %v4017
        %v4075 = vunpack.c.h.bf16 %v4017
        %v4076 = vunpack.c.l.bf16 %v4024
        %v4077 = vunpack.c.h.bf16 %v4024
        %v4078 = vunpack.c.l.bf16 %v4031
        %v4079 = vunpack.c.h.bf16 %v4031
        %v4080 = vmul.f32 %v4032, %v4056
        %v4081 = vmul.f32 %v4033, %v4057
        %v4082 = vmul.f32 %v4034, %v4058
        %v4083 = vmul.f32 %v4035, %v4059
        %v4084 = vmul.f32 %v4036, %v4060
        %v4085 = vmul.f32 %v4037, %v4061
        %v4086 = vmul.f32 %v4038, %v4062
        %v4087 = vmul.f32 %v4039, %v4063
        %v4088 = vmul.f32 %v4040, %v4064
        %v4089 = vmul.f32 %v4041, %v4065
        %v4090 = vmul.f32 %v4042, %v4066
        %v4091 = vmul.f32 %v4043, %v4067
        %v4092 = vmul.f32 %v4044, %v4068
        %v4093 = vmul.f32 %v4045, %v4069
        %v4094 = vmul.f32 %v4046, %v4070
        %v4095 = vmul.f32 %v4047, %v4071
        %v4096 = vmul.f32 %v4048, %v4072
        %v4097 = vmul.f32 %v4049, %v4073
        %v4098 = vmul.f32 %v4050, %v4074
        %v4099 = vmul.f32 %v4051, %v4075
        %v4100 = vmul.f32 %v4052, %v4076
        %v4101 = vmul.f32 %v4053, %v4077
        %v4102 = vmul.f32 %v4054, %v4078
        %v4103 = vmul.f32 %v4055, %v4079
        %v4104 = vpack.c.bf16 %v4088, %v4080
        %v4105 = vpack.c.bf16 %v4089, %v4081
        %v4106 = vpack.c.bf16 %v4090, %v4082
        %v4107 = vpack.c.bf16 %v4091, %v4083
        %v4108 = vpack.c.bf16 %v4092, %v4084
        %v4109 = vpack.c.bf16 %v4093, %v4085
        %v4110 = vpack.c.bf16 %v4094, %v4086
        %v4111 = vpack.c.bf16 %v4095, %v4087
        %v4112 = vpack.c.bf16 %v4096, %v4096
        %v4113 = vpack.c.bf16 %v4097, %v4097
        %v4114 = vpack.c.bf16 %v4098, %v4098
        %v4115 = vpack.c.bf16 %v4099, %v4099
        %v4116 = vpack.c.bf16 %v4100, %v4100
        %v4117 = vpack.c.bf16 %v4101, %v4101
        %v4118 = vpack.c.bf16 %v4102, %v4102
        %v4119 = vpack.c.bf16 %v4103, %v4103
        %v4120 = vld [vmem:[%s3] sm:$0xff]
        %v4121 = vld [vmem:[%s3 + $0x8] sm:$0xff]
        %v4122 = vld [vmem:[%s3 + $0x10] sm:$0xff]
        %v4123 = vld [vmem:[%s3 + $0x18] sm:$0xff]
        %v4124 = vld [vmem:[%s3 + $0x20] sm:$0xff]
        %v4125 = vld [vmem:[%s3 + $0x28] sm:$0xff]
        %v4126 = vld [vmem:[%s3 + $0x30] sm:$0xff]
        %v4127 = vld [vmem:[%s3 + $0x38] sm:$0xff]
        %v4128 = vld [vmem:[%s3 + $0x40] sm:$0xff]
        %v4129 = vld [vmem:[%s3 + $0x48] sm:$0xff]
        %v4130 = vld [vmem:[%s3 + $0x50] sm:$0xff]
        %v4131 = vld [vmem:[%s3 + $0x58] sm:$0xff]
        %v4132 = vld [vmem:[%s3 + $0x60] sm:$0xff]
        %v4133 = vld [vmem:[%s3 + $0x68] sm:$0xff]
        %v4134 = vld [vmem:[%s3 + $0x70] sm:$0xff]
        %v4135 = vld [vmem:[%s3 + $0x78] sm:$0xff]
        %v4136 = vld [vmem:[%s3 + $0x80] sm:$0xff]
        %v4137 = vld [vmem:[%s3 + $0x88] sm:$0xff]
        %v4138 = vld [vmem:[%s3 + $0x90] sm:$0xff]
        %v4139 = vld [vmem:[%s3 + $0x98] sm:$0xff]
        %v4140 = vld [vmem:[%s3 + $0xa0] sm:$0xff]
        %v4141 = vld [vmem:[%s3 + $0xa8] sm:$0xff]
        %v4142 = vld [vmem:[%s3 + $0xb0] sm:$0xff]
        %v4143 = vld [vmem:[%s3 + $0xb8] sm:$0xff]
        %v4144 = vld [vmem:[%s3 + $0xc0] sm:$0xff]
        %v4145 = vld [vmem:[%s3 + $0xc8] sm:$0xff]
        %v4146 = vld [vmem:[%s3 + $0xd0] sm:$0xff]
        %v4147 = vld [vmem:[%s3 + $0xd8] sm:$0xff]
        %v4148 = vld [vmem:[%s3 + $0xe0] sm:$0xff]
        %v4149 = vld [vmem:[%s3 + $0xe8] sm:$0xff]
        %v4150 = vld [vmem:[%s3 + $0xf0] sm:$0xff]
        %v4151 = vld [vmem:[%s3 + $0xf8] sm:$0xff]
        %v4152 = vld [vmem:[%s3 + $0x100] sm:$0xff]
        %v4153 = vld [vmem:[%s3 + $0x108] sm:$0xff]
        %v4154 = vld [vmem:[%s3 + $0x110] sm:$0xff]
        %v4155 = vld [vmem:[%s3 + $0x118] sm:$0xff]
        %v4156 = vld [vmem:[%s3 + $0x120] sm:$0xff]
        %v4157 = vld [vmem:[%s3 + $0x128] sm:$0xff]
        %v4158 = vld [vmem:[%s3 + $0x130] sm:$0xff]
        %v4159 = vld [vmem:[%s3 + $0x138] sm:$0xff]
        %v4160 = vld [vmem:[%s3 + $0x140] sm:$0xff]
        %v4161 = vld [vmem:[%s3 + $0x148] sm:$0xff]
        %v4162 = vld [vmem:[%s3 + $0x150] sm:$0xff]
        %v4163 = vld [vmem:[%s3 + $0x158] sm:$0xff]
        %v4164 = vld [vmem:[%s3 + $0x160] sm:$0xff]
        %v4165 = vld [vmem:[%s3 + $0x168] sm:$0xff]
        %v4166 = vld [vmem:[%s3 + $0x170] sm:$0xff]
        %v4167 = vld [vmem:[%s3 + $0x178] sm:$0xff]
        %v4168 = vld [vmem:[%s3 + $0x180] sm:$0xff]
        %v4169 = vld [vmem:[%s3 + $0x188] sm:$0xff]
        %v4170 = vld [vmem:[%s3 + $0x190] sm:$0xff]
        %v4171 = vld [vmem:[%s3 + $0x198] sm:$0xff]
        %v4172 = vld [vmem:[%s3 + $0x1a0] sm:$0xff]
        %v4173 = vld [vmem:[%s3 + $0x1a8] sm:$0xff]
        %v4174 = vld [vmem:[%s3 + $0x1b0] sm:$0xff]
        %v4175 = vld [vmem:[%s3 + $0x1b8] sm:$0xff]
        %v4176 = vld [vmem:[%s3 + $0x1c0] sm:$0xff]
        %v4177 = vld [vmem:[%s3 + $0x1c8] sm:$0xff]
        %v4178 = vld [vmem:[%s3 + $0x1d0] sm:$0xff]
        %v4179 = vld [vmem:[%s3 + $0x1d8] sm:$0xff]
        %v4180 = vld [vmem:[%s3 + $0x1e0] sm:$0xff]
        %v4181 = vld [vmem:[%s3 + $0x1e8] sm:$0xff]
        %v4182 = vld [vmem:[%s3 + $0x1f0] sm:$0xff]
        %v4183 = vld [vmem:[%s3 + $0x1f8] sm:$0xff]
        %v4184 = vld [vmem:[%s3 + $0x200] sm:$0xff]
        %v4185 = vld [vmem:[%s3 + $0x208] sm:$0xff]
        %v4186 = vld [vmem:[%s3 + $0x210] sm:$0xff]
        %v4187 = vld [vmem:[%s3 + $0x218] sm:$0xff]
        %v4188 = vld [vmem:[%s3 + $0x220] sm:$0xff]
        %v4189 = vld [vmem:[%s3 + $0x228] sm:$0xff]
        %v4190 = vld [vmem:[%s3 + $0x230] sm:$0xff]
        %v4191 = vld [vmem:[%s3 + $0x238] sm:$0xff]
        %v4192 = vld [vmem:[%s3 + $0x240] sm:$0xff]
        %v4193 = vld [vmem:[%s3 + $0x248] sm:$0xff]
        %v4194 = vld [vmem:[%s3 + $0x250] sm:$0xff]
        %v4195 = vld [vmem:[%s3 + $0x258] sm:$0xff]
        %v4196 = vld [vmem:[%s3 + $0x260] sm:$0xff]
        %v4197 = vld [vmem:[%s3 + $0x268] sm:$0xff]
        %v4198 = vld [vmem:[%s3 + $0x270] sm:$0xff]
        %v4199 = vld [vmem:[%s3 + $0x278] sm:$0xff]
        %v4200 = vld [vmem:[%s3 + $0x280] sm:$0xff]
        %v4201 = vld [vmem:[%s3 + $0x288] sm:$0xff]
        %v4202 = vld [vmem:[%s3 + $0x290] sm:$0xff]
        %v4203 = vld [vmem:[%s3 + $0x298] sm:$0xff]
        %v4204 = vld [vmem:[%s3 + $0x2a0] sm:$0xff]
        %v4205 = vld [vmem:[%s3 + $0x2a8] sm:$0xff]
        %v4206 = vld [vmem:[%s3 + $0x2b0] sm:$0xff]
        %v4207 = vld [vmem:[%s3 + $0x2b8] sm:$0xff]
        %v4208 = vld [vmem:[%s3 + $0x2c0] sm:$0xff]
        %v4209 = vld [vmem:[%s3 + $0x2c8] sm:$0xff]
        %v4210 = vld [vmem:[%s3 + $0x2d0] sm:$0xff]
        %v4211 = vld [vmem:[%s3 + $0x2d8] sm:$0xff]
        %v4212 = vld [vmem:[%s3 + $0x2e0] sm:$0xff]
        %v4213 = vld [vmem:[%s3 + $0x2e8] sm:$0xff]
        %v4214 = vld [vmem:[%s3 + $0x2f0] sm:$0xff]
        %v4215 = vld [vmem:[%s3 + $0x2f8] sm:$0xff]
        %v4216 = vld [vmem:[%s3 + $0x300] sm:$0xff]
        %v4217 = vld [vmem:[%s3 + $0x308] sm:$0xff]
        %v4218 = vld [vmem:[%s3 + $0x310] sm:$0xff]
        %v4219 = vld [vmem:[%s3 + $0x318] sm:$0xff]
        %v4220 = vld [vmem:[%s3 + $0x320] sm:$0xff]
        %v4221 = vld [vmem:[%s3 + $0x328] sm:$0xff]
        %v4222 = vld [vmem:[%s3 + $0x330] sm:$0xff]
        %v4223 = vld [vmem:[%s3 + $0x338] sm:$0xff]
        %v4224 = vld [vmem:[%s3 + $0x340] sm:$0xff]
        %v4225 = vld [vmem:[%s3 + $0x348] sm:$0xff]
        %v4226 = vld [vmem:[%s3 + $0x350] sm:$0xff]
        %v4227 = vld [vmem:[%s3 + $0x358] sm:$0xff]
        %v4228 = vld [vmem:[%s3 + $0x360] sm:$0xff]
        %v4229 = vld [vmem:[%s3 + $0x368] sm:$0xff]
        %v4230 = vld [vmem:[%s3 + $0x370] sm:$0xff]
        %v4231 = vld [vmem:[%s3 + $0x378] sm:$0xff]
        %v4232 = vld [vmem:[%s3 + $0x380] sm:$0xff]
        %v4233 = vld [vmem:[%s3 + $0x388] sm:$0xff]
        %v4234 = vld [vmem:[%s3 + $0x390] sm:$0xff]
        %v4235 = vld [vmem:[%s3 + $0x398] sm:$0xff]
        %v4236 = vld [vmem:[%s3 + $0x3a0] sm:$0xff]
        %v4237 = vld [vmem:[%s3 + $0x3a8] sm:$0xff]
        %v4238 = vld [vmem:[%s3 + $0x3b0] sm:$0xff]
        %v4239 = vld [vmem:[%s3 + $0x3b8] sm:$0xff]
        %v4240 = vld [vmem:[%s3 + $0x3c0] sm:$0xff]
        %v4241 = vld [vmem:[%s3 + $0x3c8] sm:$0xff]
        %v4242 = vld [vmem:[%s3 + $0x3d0] sm:$0xff]
        %v4243 = vld [vmem:[%s3 + $0x3d8] sm:$0xff]
        %v4244 = vld [vmem:[%s3 + $0x3e0] sm:$0xff]
        %v4245 = vld [vmem:[%s3 + $0x3e8] sm:$0xff]
        %v4246 = vld [vmem:[%s3 + $0x3f0] sm:$0xff]
        %v4247 = vld [vmem:[%s3 + $0x3f8] sm:$0xff]
        %v4248 = vld [vmem:[%s3 + $0x400] sm:$0xff]
        %v4249 = vld [vmem:[%s3 + $0x408] sm:$0xff]
        %v4250 = vld [vmem:[%s3 + $0x410] sm:$0xff]
        %v4251 = vld [vmem:[%s3 + $0x418] sm:$0xff]
        %v4252 = vld [vmem:[%s3 + $0x420] sm:$0xff]
        %v4253 = vld [vmem:[%s3 + $0x428] sm:$0xff]
        %v4254 = vld [vmem:[%s3 + $0x430] sm:$0xff]
        %v4255 = vld [vmem:[%s3 + $0x438] sm:$0xff]
        %v4256 = vld [vmem:[%s3 + $0x440] sm:$0xff]
        %v4257 = vld [vmem:[%s3 + $0x448] sm:$0xff]
        %v4258 = vld [vmem:[%s3 + $0x450] sm:$0xff]
        %v4259 = vld [vmem:[%s3 + $0x458] sm:$0xff]
        %v4260 = vld [vmem:[%s3 + $0x460] sm:$0xff]
        %v4261 = vld [vmem:[%s3 + $0x468] sm:$0xff]
        %v4262 = vld [vmem:[%s3 + $0x470] sm:$0xff]
        %v4263 = vld [vmem:[%s3 + $0x478] sm:$0xff]
        %v4264 = vld [vmem:[%s3 + $0x480] sm:$0xff]
        %v4265 = vld [vmem:[%s3 + $0x488] sm:$0xff]
        %v4266 = vld [vmem:[%s3 + $0x490] sm:$0xff]
        %v4267 = vld [vmem:[%s3 + $0x498] sm:$0xff]
        %v4268 = vld [vmem:[%s3 + $0x4a0] sm:$0xff]
        %v4269 = vld [vmem:[%s3 + $0x4a8] sm:$0xff]
        %v4270 = vld [vmem:[%s3 + $0x4b0] sm:$0xff]
        %v4271 = vld [vmem:[%s3 + $0x4b8] sm:$0xff]
        %v4272 = vld [vmem:[%s3 + $0x4c0] sm:$0xff]
        %v4273 = vld [vmem:[%s3 + $0x4c8] sm:$0xff]
        %v4274 = vld [vmem:[%s3 + $0x4d0] sm:$0xff]
        %v4275 = vld [vmem:[%s3 + $0x4d8] sm:$0xff]
        %v4276 = vld [vmem:[%s3 + $0x4e0] sm:$0xff]
        %v4277 = vld [vmem:[%s3 + $0x4e8] sm:$0xff]
        %v4278 = vld [vmem:[%s3 + $0x4f0] sm:$0xff]
        %v4279 = vld [vmem:[%s3 + $0x4f8] sm:$0xff]
        %v4280 = vld [vmem:[%s3 + $0x500] sm:$0xff]
        %v4281 = vld [vmem:[%s3 + $0x508] sm:$0xff]
        %v4282 = vld [vmem:[%s3 + $0x510] sm:$0xff]
        %v4283 = vld [vmem:[%s3 + $0x518] sm:$0xff]
        %v4284 = vld [vmem:[%s3 + $0x520] sm:$0xff]
        %v4285 = vld [vmem:[%s3 + $0x528] sm:$0xff]
        %v4286 = vld [vmem:[%s3 + $0x530] sm:$0xff]
        %v4287 = vld [vmem:[%s3 + $0x538] sm:$0xff]
        %v4288 = vld [vmem:[%s3 + $0x540] sm:$0xff]
        %v4289 = vld [vmem:[%s3 + $0x548] sm:$0xff]
        %v4290 = vld [vmem:[%s3 + $0x550] sm:$0xff]
        %v4291 = vld [vmem:[%s3 + $0x558] sm:$0xff]
        %v4292 = vld [vmem:[%s3 + $0x560] sm:$0xff]
        %v4293 = vld [vmem:[%s3 + $0x568] sm:$0xff]
        %v4294 = vld [vmem:[%s3 + $0x570] sm:$0xff]
        %v4295 = vld [vmem:[%s3 + $0x578] sm:$0xff]
        %v4296 = vld [vmem:[%s3 + $0x580] sm:$0xff]
        %v4297 = vld [vmem:[%s3 + $0x588] sm:$0xff]
        %v4298 = vld [vmem:[%s3 + $0x590] sm:$0xff]
        %v4299 = vld [vmem:[%s3 + $0x598] sm:$0xff]
        %v4300 = vld [vmem:[%s3 + $0x5a0] sm:$0xff]
        %v4301 = vld [vmem:[%s3 + $0x5a8] sm:$0xff]
        %v4302 = vld [vmem:[%s3 + $0x5b0] sm:$0xff]
        %v4303 = vld [vmem:[%s3 + $0x5b8] sm:$0xff]
        %v4304 = vld [vmem:[%s3 + $0x5c0] sm:$0xff]
        %v4305 = vld [vmem:[%s3 + $0x5c8] sm:$0xff]
        %v4306 = vld [vmem:[%s3 + $0x5d0] sm:$0xff]
        %v4307 = vld [vmem:[%s3 + $0x5d8] sm:$0xff]
        %v4308 = vld [vmem:[%s3 + $0x5e0] sm:$0xff]
        %v4309 = vld [vmem:[%s3 + $0x5e8] sm:$0xff]
        %v4310 = vld [vmem:[%s3 + $0x5f0] sm:$0xff]
        %v4311 = vld [vmem:[%s3 + $0x5f8] sm:$0xff]
        %v4312 = vld [vmem:[%s3 + $0x600] sm:$0xff]
        %v4313 = vld [vmem:[%s3 + $0x608] sm:$0xff]
        %v4314 = vld [vmem:[%s3 + $0x610] sm:$0xff]
        %v4315 = vld [vmem:[%s3 + $0x618] sm:$0xff]
        %v4316 = vld [vmem:[%s3 + $0x620] sm:$0xff]
        %v4317 = vld [vmem:[%s3 + $0x628] sm:$0xff]
        %v4318 = vld [vmem:[%s3 + $0x630] sm:$0xff]
        %v4319 = vld [vmem:[%s3 + $0x638] sm:$0xff]
        %v4320 = vld [vmem:[%s3 + $0x640] sm:$0xff]
        %v4321 = vld [vmem:[%s3 + $0x648] sm:$0xff]
        %v4322 = vld [vmem:[%s3 + $0x650] sm:$0xff]
        %v4323 = vld [vmem:[%s3 + $0x658] sm:$0xff]
        %v4324 = vld [vmem:[%s3 + $0x660] sm:$0xff]
        %v4325 = vld [vmem:[%s3 + $0x668] sm:$0xff]
        %v4326 = vld [vmem:[%s3 + $0x670] sm:$0xff]
        %v4327 = vld [vmem:[%s3 + $0x678] sm:$0xff]
        %v4328 = vld [vmem:[%s3 + $0x680] sm:$0xff]
        %v4329 = vld [vmem:[%s3 + $0x688] sm:$0xff]
        %v4330 = vld [vmem:[%s3 + $0x690] sm:$0xff]
        %v4331 = vld [vmem:[%s3 + $0x698] sm:$0xff]
        %v4332 = vld [vmem:[%s3 + $0x6a0] sm:$0xff]
        %v4333 = vld [vmem:[%s3 + $0x6a8] sm:$0xff]
        %v4334 = vld [vmem:[%s3 + $0x6b0] sm:$0xff]
        %v4335 = vld [vmem:[%s3 + $0x6b8] sm:$0xff]
        %v4336 = vld [vmem:[%s3 + $0x6c0] sm:$0xff]
        %v4337 = vld [vmem:[%s3 + $0x6c8] sm:$0xff]
        %v4338 = vld [vmem:[%s3 + $0x6d0] sm:$0xff]
        %v4339 = vld [vmem:[%s3 + $0x6d8] sm:$0xff]
        %v4340 = vld [vmem:[%s3 + $0x6e0] sm:$0xff]
        %v4341 = vld [vmem:[%s3 + $0x6e8] sm:$0xff]
        %v4342 = vld [vmem:[%s3 + $0x6f0] sm:$0xff]
        %v4343 = vld [vmem:[%s3 + $0x6f8] sm:$0xff]
        %v4344 = vld [vmem:[%s3 + $0x700] sm:$0xff]
        %v4345 = vld [vmem:[%s3 + $0x708] sm:$0xff]
        %v4346 = vld [vmem:[%s3 + $0x710] sm:$0xff]
        %v4347 = vld [vmem:[%s3 + $0x718] sm:$0xff]
        %v4348 = vld [vmem:[%s3 + $0x720] sm:$0xff]
        %v4349 = vld [vmem:[%s3 + $0x728] sm:$0xff]
        %v4350 = vld [vmem:[%s3 + $0x730] sm:$0xff]
        %v4351 = vld [vmem:[%s3 + $0x738] sm:$0xff]
        %v4352 = vld [vmem:[%s3 + $0x740] sm:$0xff]
        %v4353 = vld [vmem:[%s3 + $0x748] sm:$0xff]
        %v4354 = vld [vmem:[%s3 + $0x750] sm:$0xff]
        %v4355 = vld [vmem:[%s3 + $0x758] sm:$0xff]
        %v4356 = vld [vmem:[%s3 + $0x760] sm:$0xff]
        %v4357 = vld [vmem:[%s3 + $0x768] sm:$0xff]
        %v4358 = vld [vmem:[%s3 + $0x770] sm:$0xff]
        %v4359 = vld [vmem:[%s3 + $0x778] sm:$0xff]
        %v4360 = vld [vmem:[%s3 + $0x780] sm:$0xff]
        %v4361 = vld [vmem:[%s3 + $0x788] sm:$0xff]
        %v4362 = vld [vmem:[%s3 + $0x790] sm:$0xff]
        %v4363 = vld [vmem:[%s3 + $0x798] sm:$0xff]
        %v4364 = vld [vmem:[%s3 + $0x7a0] sm:$0xff]
        %v4365 = vld [vmem:[%s3 + $0x7a8] sm:$0xff]
        %v4366 = vld [vmem:[%s3 + $0x7b0] sm:$0xff]
        %v4367 = vld [vmem:[%s3 + $0x7b8] sm:$0xff]
        %v4368 = vld [vmem:[%s3 + $0x7c0] sm:$0xff]
        %v4369 = vld [vmem:[%s3 + $0x7c8] sm:$0xff]
        %v4370 = vld [vmem:[%s3 + $0x7d0] sm:$0xff]
        %v4371 = vld [vmem:[%s3 + $0x7d8] sm:$0xff]
        %v4372 = vld [vmem:[%s3 + $0x7e0] sm:$0xff]
        %v4373 = vld [vmem:[%s3 + $0x7e8] sm:$0xff]
        %v4374 = vld [vmem:[%s3 + $0x7f0] sm:$0xff]
        %v4375 = vld [vmem:[%s3 + $0x7f8] sm:$0xff]
        %v4376 = vld [vmem:[%s3 + $0x800] sm:$0xff]
        %v4377 = vld [vmem:[%s3 + $0x808] sm:$0xff]
        %v4378 = vld [vmem:[%s3 + $0x810] sm:$0xff]
        %v4379 = vld [vmem:[%s3 + $0x818] sm:$0xff]
        %v4380 = vld [vmem:[%s3 + $0x820] sm:$0xff]
        %v4381 = vld [vmem:[%s3 + $0x828] sm:$0xff]
        %v4382 = vld [vmem:[%s3 + $0x830] sm:$0xff]
        %v4383 = vld [vmem:[%s3 + $0x838] sm:$0xff]
        %v4384 = vld [vmem:[%s3 + $0x840] sm:$0xff]
        %v4385 = vld [vmem:[%s3 + $0x848] sm:$0xff]
        %v4386 = vld [vmem:[%s3 + $0x850] sm:$0xff]
        %v4387 = vld [vmem:[%s3 + $0x858] sm:$0xff]
        %v4388 = vld [vmem:[%s3 + $0x860] sm:$0xff]
        %v4389 = vld [vmem:[%s3 + $0x868] sm:$0xff]
        %v4390 = vld [vmem:[%s3 + $0x870] sm:$0xff]
        %v4391 = vld [vmem:[%s3 + $0x878] sm:$0xff]
        %v4392 = vld [vmem:[%s3 + $0x880] sm:$0xff]
        %v4393 = vld [vmem:[%s3 + $0x888] sm:$0xff]
        %v4394 = vld [vmem:[%s3 + $0x890] sm:$0xff]
        %v4395 = vld [vmem:[%s3 + $0x898] sm:$0xff]
        %v4396 = vld [vmem:[%s3 + $0x8a0] sm:$0xff]
        %v4397 = vld [vmem:[%s3 + $0x8a8] sm:$0xff]
        %v4398 = vld [vmem:[%s3 + $0x8b0] sm:$0xff]
        %v4399 = vld [vmem:[%s3 + $0x8b8] sm:$0xff]
        %v4400 = vld [vmem:[%s3 + $0x8c0] sm:$0xff]
        %v4401 = vld [vmem:[%s3 + $0x8c8] sm:$0xff]
        %v4402 = vld [vmem:[%s3 + $0x8d0] sm:$0xff]
        %v4403 = vld [vmem:[%s3 + $0x8d8] sm:$0xff]
        %v4404 = vld [vmem:[%s3 + $0x8e0] sm:$0xff]
        %v4405 = vld [vmem:[%s3 + $0x8e8] sm:$0xff]
        %v4406 = vld [vmem:[%s3 + $0x8f0] sm:$0xff]
        %v4407 = vld [vmem:[%s3 + $0x8f8] sm:$0xff]
        %v4408 = vld [vmem:[%s3 + $0x900] sm:$0xff]
        %v4409 = vld [vmem:[%s3 + $0x908] sm:$0xff]
        %v4410 = vld [vmem:[%s3 + $0x910] sm:$0xff]
        %v4411 = vld [vmem:[%s3 + $0x918] sm:$0xff]
        %v4412 = vld [vmem:[%s3 + $0x920] sm:$0xff]
        %v4413 = vld [vmem:[%s3 + $0x928] sm:$0xff]
        %v4414 = vld [vmem:[%s3 + $0x930] sm:$0xff]
        %v4415 = vld [vmem:[%s3 + $0x938] sm:$0xff]
        %v4416 = vld [vmem:[%s3 + $0x940] sm:$0xff]
        %v4417 = vld [vmem:[%s3 + $0x948] sm:$0xff]
        %v4418 = vld [vmem:[%s3 + $0x950] sm:$0xff]
        %v4419 = vld [vmem:[%s3 + $0x958] sm:$0xff]
        %v4420 = vld [vmem:[%s3 + $0x960] sm:$0xff]
        %v4421 = vld [vmem:[%s3 + $0x968] sm:$0xff]
        %v4422 = vld [vmem:[%s3 + $0x970] sm:$0xff]
        %v4423 = vld [vmem:[%s3 + $0x978] sm:$0xff]
        %v4424 = vld [vmem:[%s3 + $0x980] sm:$0xff]
        %v4425 = vld [vmem:[%s3 + $0x988] sm:$0xff]
        %v4426 = vld [vmem:[%s3 + $0x990] sm:$0xff]
        %v4427 = vld [vmem:[%s3 + $0x998] sm:$0xff]
        %v4428 = vld [vmem:[%s3 + $0x9a0] sm:$0xff]
        %v4429 = vld [vmem:[%s3 + $0x9a8] sm:$0xff]
        %v4430 = vld [vmem:[%s3 + $0x9b0] sm:$0xff]
        %v4431 = vld [vmem:[%s3 + $0x9b8] sm:$0xff]
        %v4432 = vld [vmem:[%s3 + $0x9c0] sm:$0xff]
        %v4433 = vld [vmem:[%s3 + $0x9c8] sm:$0xff]
        %v4434 = vld [vmem:[%s3 + $0x9d0] sm:$0xff]
        %v4435 = vld [vmem:[%s3 + $0x9d8] sm:$0xff]
        %v4436 = vld [vmem:[%s3 + $0x9e0] sm:$0xff]
        %v4437 = vld [vmem:[%s3 + $0x9e8] sm:$0xff]
        %v4438 = vld [vmem:[%s3 + $0x9f0] sm:$0xff]
        %v4439 = vld [vmem:[%s3 + $0x9f8] sm:$0xff]
        %v4440 = vld [vmem:[%s3 + $0xa00] sm:$0xff]
        %v4441 = vld [vmem:[%s3 + $0xa08] sm:$0xff]
        %v4442 = vld [vmem:[%s3 + $0xa10] sm:$0xff]
        %v4443 = vld [vmem:[%s3 + $0xa18] sm:$0xff]
        %v4444 = vld [vmem:[%s3 + $0xa20] sm:$0xff]
        %v4445 = vld [vmem:[%s3 + $0xa28] sm:$0xff]
        %v4446 = vld [vmem:[%s3 + $0xa30] sm:$0xff]
        %v4447 = vld [vmem:[%s3 + $0xa38] sm:$0xff]
        %v4448 = vld [vmem:[%s3 + $0xa40] sm:$0xff]
        %v4449 = vld [vmem:[%s3 + $0xa48] sm:$0xff]
        %v4450 = vld [vmem:[%s3 + $0xa50] sm:$0xff]
        %v4451 = vld [vmem:[%s3 + $0xa58] sm:$0xff]
        %v4452 = vld [vmem:[%s3 + $0xa60] sm:$0xff]
        %v4453 = vld [vmem:[%s3 + $0xa68] sm:$0xff]
        %v4454 = vld [vmem:[%s3 + $0xa70] sm:$0xff]
        %v4455 = vld [vmem:[%s3 + $0xa78] sm:$0xff]
        %v4456 = vld [vmem:[%s3 + $0xa80] sm:$0xff]
        %v4457 = vld [vmem:[%s3 + $0xa88] sm:$0xff]
        %v4458 = vld [vmem:[%s3 + $0xa90] sm:$0xff]
        %v4459 = vld [vmem:[%s3 + $0xa98] sm:$0xff]
        %v4460 = vld [vmem:[%s3 + $0xaa0] sm:$0xff]
        %v4461 = vld [vmem:[%s3 + $0xaa8] sm:$0xff]
        %v4462 = vld [vmem:[%s3 + $0xab0] sm:$0xff]
        %v4463 = vld [vmem:[%s3 + $0xab8] sm:$0xff]
        %v4464 = vld [vmem:[%s3 + $0xac0] sm:$0xff]
        %v4465 = vld [vmem:[%s3 + $0xac8] sm:$0xff]
        %v4466 = vld [vmem:[%s3 + $0xad0] sm:$0xff]
        %v4467 = vld [vmem:[%s3 + $0xad8] sm:$0xff]
        %v4468 = vld [vmem:[%s3 + $0xae0] sm:$0xff]
        %v4469 = vld [vmem:[%s3 + $0xae8] sm:$0xff]
        %v4470 = vld [vmem:[%s3 + $0xaf0] sm:$0xff]
        %v4471 = vld [vmem:[%s3 + $0xaf8] sm:$0xff]
        %v4472 = vld [vmem:[%s3 + $0xb00] sm:$0xff]
        %v4473 = vld [vmem:[%s3 + $0xb08] sm:$0xff]
        %v4474 = vld [vmem:[%s3 + $0xb10] sm:$0xff]
        %v4475 = vld [vmem:[%s3 + $0xb18] sm:$0xff]
        %v4476 = vld [vmem:[%s3 + $0xb20] sm:$0xff]
        %v4477 = vld [vmem:[%s3 + $0xb28] sm:$0xff]
        %v4478 = vld [vmem:[%s3 + $0xb30] sm:$0xff]
        %v4479 = vld [vmem:[%s3 + $0xb38] sm:$0xff]
        %v4480 = vld [vmem:[%s3 + $0xb40] sm:$0xff]
        %v4481 = vld [vmem:[%s3 + $0xb48] sm:$0xff]
        %v4482 = vld [vmem:[%s3 + $0xb50] sm:$0xff]
        %v4483 = vld [vmem:[%s3 + $0xb58] sm:$0xff]
        %v4484 = vld [vmem:[%s3 + $0xb60] sm:$0xff]
        %v4485 = vld [vmem:[%s3 + $0xb68] sm:$0xff]
        %v4486 = vld [vmem:[%s3 + $0xb70] sm:$0xff]
        %v4487 = vld [vmem:[%s3 + $0xb78] sm:$0xff]
        %v4488 = vld [vmem:[%s3 + $0xb80] sm:$0xff]
        %v4489 = vld [vmem:[%s3 + $0xb88] sm:$0xff]
        %v4490 = vld [vmem:[%s3 + $0xb90] sm:$0xff]
        %v4491 = vld [vmem:[%s3 + $0xb98] sm:$0xff]
        %v4492 = vld [vmem:[%s3 + $0xba0] sm:$0xff]
        %v4493 = vld [vmem:[%s3 + $0xba8] sm:$0xff]
        %v4494 = vld [vmem:[%s3 + $0xbb0] sm:$0xff]
        %v4495 = vld [vmem:[%s3 + $0xbb8] sm:$0xff]
        %v4496 = vld [vmem:[%s3 + $0xbc0] sm:$0xff]
        %v4497 = vld [vmem:[%s3 + $0xbc8] sm:$0xff]
        %v4498 = vld [vmem:[%s3 + $0xbd0] sm:$0xff]
        %v4499 = vld [vmem:[%s3 + $0xbd8] sm:$0xff]
        %v4500 = vld [vmem:[%s3 + $0xbe0] sm:$0xff]
        %v4501 = vld [vmem:[%s3 + $0xbe8] sm:$0xff]
        %v4502 = vld [vmem:[%s3 + $0xbf0] sm:$0xff]
        %v4503 = vld [vmem:[%s3 + $0xbf8] sm:$0xff]
        %v4504 = vld [vmem:[%s3 + $0xc00] sm:$0xff]
        %v4505 = vld [vmem:[%s3 + $0xc08] sm:$0xff]
        %v4506 = vld [vmem:[%s3 + $0xc10] sm:$0xff]
        %v4507 = vld [vmem:[%s3 + $0xc18] sm:$0xff]
        %v4508 = vld [vmem:[%s3 + $0xc20] sm:$0xff]
        %v4509 = vld [vmem:[%s3 + $0xc28] sm:$0xff]
        %v4510 = vld [vmem:[%s3 + $0xc30] sm:$0xff]
        %v4511 = vld [vmem:[%s3 + $0xc38] sm:$0xff]
        %v4512 = vld [vmem:[%s3 + $0xc40] sm:$0xff]
        %v4513 = vld [vmem:[%s3 + $0xc48] sm:$0xff]
        %v4514 = vld [vmem:[%s3 + $0xc50] sm:$0xff]
        %v4515 = vld [vmem:[%s3 + $0xc58] sm:$0xff]
        %v4516 = vld [vmem:[%s3 + $0xc60] sm:$0xff]
        %v4517 = vld [vmem:[%s3 + $0xc68] sm:$0xff]
        %v4518 = vld [vmem:[%s3 + $0xc70] sm:$0xff]
        %v4519 = vld [vmem:[%s3 + $0xc78] sm:$0xff]
        %v4520 = vld [vmem:[%s3 + $0xc80] sm:$0xff]
        %v4521 = vld [vmem:[%s3 + $0xc88] sm:$0xff]
        %v4522 = vld [vmem:[%s3 + $0xc90] sm:$0xff]
        %v4523 = vld [vmem:[%s3 + $0xc98] sm:$0xff]
        %v4524 = vld [vmem:[%s3 + $0xca0] sm:$0xff]
        %v4525 = vld [vmem:[%s3 + $0xca8] sm:$0xff]
        %v4526 = vld [vmem:[%s3 + $0xcb0] sm:$0xff]
        %v4527 = vld [vmem:[%s3 + $0xcb8] sm:$0xff]
        %v4528 = vld [vmem:[%s3 + $0xcc0] sm:$0xff]
        %v4529 = vld [vmem:[%s3 + $0xcc8] sm:$0xff]
        %v4530 = vld [vmem:[%s3 + $0xcd0] sm:$0xff]
        %v4531 = vld [vmem:[%s3 + $0xcd8] sm:$0xff]
        %v4532 = vld [vmem:[%s3 + $0xce0] sm:$0xff]
        %v4533 = vld [vmem:[%s3 + $0xce8] sm:$0xff]
        %v4534 = vld [vmem:[%s3 + $0xcf0] sm:$0xff]
        %v4535 = vld [vmem:[%s3 + $0xcf8] sm:$0xff]
        %v4536 = vld [vmem:[%s3 + $0xd00] sm:$0xff]
        %v4537 = vld [vmem:[%s3 + $0xd08] sm:$0xff]
        %v4538 = vld [vmem:[%s3 + $0xd10] sm:$0xff]
        %v4539 = vld [vmem:[%s3 + $0xd18] sm:$0xff]
        %v4540 = vld [vmem:[%s3 + $0xd20] sm:$0xff]
        %v4541 = vld [vmem:[%s3 + $0xd28] sm:$0xff]
        %v4542 = vld [vmem:[%s3 + $0xd30] sm:$0xff]
        %v4543 = vld [vmem:[%s3 + $0xd38] sm:$0xff]
        %v4544 = vld [vmem:[%s3 + $0xd40] sm:$0xff]
        %v4545 = vld [vmem:[%s3 + $0xd48] sm:$0xff]
        %v4546 = vld [vmem:[%s3 + $0xd50] sm:$0xff]
        %v4547 = vld [vmem:[%s3 + $0xd58] sm:$0xff]
        %v4548 = vld [vmem:[%s3 + $0xd60] sm:$0xff]
        %v4549 = vld [vmem:[%s3 + $0xd68] sm:$0xff]
        %v4550 = vld [vmem:[%s3 + $0xd70] sm:$0xff]
        %v4551 = vld [vmem:[%s3 + $0xd78] sm:$0xff]
        %v4552 = vld [vmem:[%s3 + $0xd80] sm:$0xff]
        %v4553 = vld [vmem:[%s3 + $0xd88] sm:$0xff]
        %v4554 = vld [vmem:[%s3 + $0xd90] sm:$0xff]
        %v4555 = vld [vmem:[%s3 + $0xd98] sm:$0xff]
        %v4556 = vld [vmem:[%s3 + $0xda0] sm:$0xff]
        %v4557 = vld [vmem:[%s3 + $0xda8] sm:$0xff]
        %v4558 = vld [vmem:[%s3 + $0xdb0] sm:$0xff]
        %v4559 = vld [vmem:[%s3 + $0xdb8] sm:$0xff]
        %v4560 = vld [vmem:[%s3 + $0xdc0] sm:$0xff]
        %v4561 = vld [vmem:[%s3 + $0xdc8] sm:$0xff]
        %v4562 = vld [vmem:[%s3 + $0xdd0] sm:$0xff]
        %v4563 = vld [vmem:[%s3 + $0xdd8] sm:$0xff]
        %v4564 = vld [vmem:[%s3 + $0xde0] sm:$0xff]
        %v4565 = vld [vmem:[%s3 + $0xde8] sm:$0xff]
        %v4566 = vld [vmem:[%s3 + $0xdf0] sm:$0xff]
        %v4567 = vld [vmem:[%s3 + $0xdf8] sm:$0xff]
        %v4568 = vld [vmem:[%s3 + $0xe00] sm:$0xff]
        %v4569 = vld [vmem:[%s3 + $0xe08] sm:$0xff]
        %v4570 = vld [vmem:[%s3 + $0xe10] sm:$0xff]
        %v4571 = vld [vmem:[%s3 + $0xe18] sm:$0xff]
        %v4572 = vld [vmem:[%s3 + $0xe20] sm:$0xff]
        %v4573 = vld [vmem:[%s3 + $0xe28] sm:$0xff]
        %v4574 = vld [vmem:[%s3 + $0xe30] sm:$0xff]
        %v4575 = vld [vmem:[%s3 + $0xe38] sm:$0xff]
        %v4576 = vld [vmem:[%s3 + $0xe40] sm:$0xff]
        %v4577 = vld [vmem:[%s3 + $0xe48] sm:$0xff]
        %v4578 = vld [vmem:[%s3 + $0xe50] sm:$0xff]
        %v4579 = vld [vmem:[%s3 + $0xe58] sm:$0xff]
        %v4580 = vld [vmem:[%s3 + $0xe60] sm:$0xff]
        %v4581 = vld [vmem:[%s3 + $0xe68] sm:$0xff]
        %v4582 = vld [vmem:[%s3 + $0xe70] sm:$0xff]
        %v4583 = vld [vmem:[%s3 + $0xe78] sm:$0xff]
        %v4584 = vld [vmem:[%s3 + $0xe80] sm:$0xff]
        %v4585 = vld [vmem:[%s3 + $0xe88] sm:$0xff]
        %v4586 = vld [vmem:[%s3 + $0xe90] sm:$0xff]
        %v4587 = vld [vmem:[%s3 + $0xe98] sm:$0xff]
        %v4588 = vld [vmem:[%s3 + $0xea0] sm:$0xff]
        %v4589 = vld [vmem:[%s3 + $0xea8] sm:$0xff]
        %v4590 = vld [vmem:[%s3 + $0xeb0] sm:$0xff]
        %v4591 = vld [vmem:[%s3 + $0xeb8] sm:$0xff]
        %v4592 = vld [vmem:[%s3 + $0xec0] sm:$0xff]
        %v4593 = vld [vmem:[%s3 + $0xec8] sm:$0xff]
        %v4594 = vld [vmem:[%s3 + $0xed0] sm:$0xff]
        %v4595 = vld [vmem:[%s3 + $0xed8] sm:$0xff]
        %v4596 = vld [vmem:[%s3 + $0xee0] sm:$0xff]
        %v4597 = vld [vmem:[%s3 + $0xee8] sm:$0xff]
        %v4598 = vld [vmem:[%s3 + $0xef0] sm:$0xff]
        %v4599 = vld [vmem:[%s3 + $0xef8] sm:$0xff]
        %v4600 = vld [vmem:[%s3 + $0xf00] sm:$0xff]
        %v4601 = vld [vmem:[%s3 + $0xf08] sm:$0xff]
        %v4602 = vld [vmem:[%s3 + $0xf10] sm:$0xff]
        %v4603 = vld [vmem:[%s3 + $0xf18] sm:$0xff]
        %v4604 = vld [vmem:[%s3 + $0xf20] sm:$0xff]
        %v4605 = vld [vmem:[%s3 + $0xf28] sm:$0xff]
        %v4606 = vld [vmem:[%s3 + $0xf30] sm:$0xff]
        %v4607 = vld [vmem:[%s3 + $0xf38] sm:$0xff]
        %v4608 = vld [vmem:[%s3 + $0xf40] sm:$0xff]
        %v4609 = vld [vmem:[%s3 + $0xf48] sm:$0xff]
        %v4610 = vld [vmem:[%s3 + $0xf50] sm:$0xff]
        %v4611 = vld [vmem:[%s3 + $0xf58] sm:$0xff]
        %v4612 = vld [vmem:[%s3 + $0xf60] sm:$0xff]
        %v4613 = vld [vmem:[%s3 + $0xf68] sm:$0xff]
        %v4614 = vld [vmem:[%s3 + $0xf70] sm:$0xff]
        %v4615 = vld [vmem:[%s3 + $0xf78] sm:$0xff]
        %v4616 = vld [vmem:[%s3 + $0xf80] sm:$0xff]
        %v4617 = vld [vmem:[%s3 + $0xf88] sm:$0xff]
        %v4618 = vld [vmem:[%s3 + $0xf90] sm:$0xff]
        %v4619 = vld [vmem:[%s3 + $0xf98] sm:$0xff]
        %v4620 = vld [vmem:[%s3 + $0xfa0] sm:$0xff]
        %v4621 = vld [vmem:[%s3 + $0xfa8] sm:$0xff]
        %v4622 = vld [vmem:[%s3 + $0xfb0] sm:$0xff]
        %v4623 = vld [vmem:[%s3 + $0xfb8] sm:$0xff]
        %v4624 = vld [vmem:[%s3 + $0xfc0] sm:$0xff]
        %v4625 = vld [vmem:[%s3 + $0xfc8] sm:$0xff]
        %v4626 = vld [vmem:[%s3 + $0xfd0] sm:$0xff]
        %v4627 = vld [vmem:[%s3 + $0xfd8] sm:$0xff]
        %v4628 = vld [vmem:[%s3 + $0xfe0] sm:$0xff]
        %v4629 = vld [vmem:[%s3 + $0xfe8] sm:$0xff]
        %v4630 = vld [vmem:[%s3 + $0xff0] sm:$0xff]
        %v4631 = vld [vmem:[%s3 + $0xff8] sm:$0xff]
        %v4632 = vld [vmem:[%s4] sm:$0xff]
        %v4634 = vperm.slane %v4632, 0
        %v4635 = vperm.slane %v4632, 1
        %v4636 = vperm.slane %v4632, 2
        %v4637 = vperm.slane %v4632, 3
        %v4638 = vperm.slane %v4632, 4
        %v4639 = vperm.slane %v4632, 5
        %v4640 = vperm.slane %v4632, 6
        %v4641 = vperm.slane %v4632, 7
        %v5162 = vunpack.c.l.b16 %v4120
        %v5163 = vunpack.c.h.b16 %v4120
        %v5164 = vunpack.c.l.b16 %v4121
        %v5165 = vunpack.c.h.b16 %v4121
        %v5166 = vunpack.c.l.b16 %v4122
        %v5167 = vunpack.c.h.b16 %v4122
        %v5168 = vunpack.c.l.b16 %v4123
        %v5169 = vunpack.c.h.b16 %v4123
        %v5170 = vunpack.c.l.b16 %v4124
        %v5171 = vunpack.c.h.b16 %v4124
        %v5172 = vunpack.c.l.b16 %v4125
        %v5173 = vunpack.c.h.b16 %v4125
        %v5174 = vunpack.c.l.b16 %v4126
        %v5175 = vunpack.c.h.b16 %v4126
        %v5176 = vunpack.c.l.b16 %v4127
        %v5177 = vunpack.c.h.b16 %v4127
        %v5178 = vunpack.c.l.b16 %v4128
        %v5179 = vunpack.c.h.b16 %v4128
        %v5180 = vunpack.c.l.b16 %v4129
        %v5181 = vunpack.c.h.b16 %v4129
        %v5182 = vunpack.c.l.b16 %v4130
        %v5183 = vunpack.c.h.b16 %v4130
        %v5184 = vunpack.c.l.b16 %v4131
        %v5185 = vunpack.c.h.b16 %v4131
        %v5186 = vunpack.c.l.b16 %v4132
        %v5187 = vunpack.c.h.b16 %v4132
        %v5188 = vunpack.c.l.b16 %v4133
        %v5189 = vunpack.c.h.b16 %v4133
        %v5190 = vunpack.c.l.b16 %v4134
        %v5191 = vunpack.c.h.b16 %v4134
        %v5192 = vunpack.c.l.b16 %v4135
        %v5193 = vunpack.c.h.b16 %v4135
        %v5194 = vunpack.c.l.b16 %v4136
        %v5195 = vunpack.c.h.b16 %v4136
        %v5196 = vunpack.c.l.b16 %v4137
        %v5197 = vunpack.c.h.b16 %v4137
        %v5198 = vunpack.c.l.b16 %v4138
        %v5199 = vunpack.c.h.b16 %v4138
        %v5200 = vunpack.c.l.b16 %v4139
        %v5201 = vunpack.c.h.b16 %v4139
        %v5202 = vunpack.c.l.b16 %v4140
        %v5203 = vunpack.c.h.b16 %v4140
        %v5204 = vunpack.c.l.b16 %v4141
        %v5205 = vunpack.c.h.b16 %v4141
        %v5206 = vunpack.c.l.b16 %v4142
        %v5207 = vunpack.c.h.b16 %v4142
        %v5208 = vunpack.c.l.b16 %v4143
        %v5209 = vunpack.c.h.b16 %v4143
        %v5210 = vunpack.c.l.b16 %v4144
        %v5211 = vunpack.c.h.b16 %v4144
        %v5212 = vunpack.c.l.b16 %v4145
        %v5213 = vunpack.c.h.b16 %v4145
        %v5214 = vunpack.c.l.b16 %v4146
        %v5215 = vunpack.c.h.b16 %v4146
        %v5216 = vunpack.c.l.b16 %v4147
        %v5217 = vunpack.c.h.b16 %v4147
        %v5218 = vunpack.c.l.b16 %v4148
        %v5219 = vunpack.c.h.b16 %v4148
        %v5220 = vunpack.c.l.b16 %v4149
        %v5221 = vunpack.c.h.b16 %v4149
        %v5222 = vunpack.c.l.b16 %v4150
        %v5223 = vunpack.c.h.b16 %v4150
        %v5224 = vunpack.c.l.b16 %v4151
        %v5225 = vunpack.c.h.b16 %v4151
        %v5226 = vunpack.c.l.b16 %v4152
        %v5227 = vunpack.c.h.b16 %v4152
        %v5228 = vunpack.c.l.b16 %v4153
        %v5229 = vunpack.c.h.b16 %v4153
        %v5230 = vunpack.c.l.b16 %v4154
        %v5231 = vunpack.c.h.b16 %v4154
        %v5232 = vunpack.c.l.b16 %v4155
        %v5233 = vunpack.c.h.b16 %v4155
        %v5234 = vunpack.c.l.b16 %v4156
        %v5235 = vunpack.c.h.b16 %v4156
        %v5236 = vunpack.c.l.b16 %v4157
        %v5237 = vunpack.c.h.b16 %v4157
        %v5238 = vunpack.c.l.b16 %v4158
        %v5239 = vunpack.c.h.b16 %v4158
        %v5240 = vunpack.c.l.b16 %v4159
        %v5241 = vunpack.c.h.b16 %v4159
        %v5242 = vunpack.c.l.b16 %v4160
        %v5243 = vunpack.c.h.b16 %v4160
        %v5244 = vunpack.c.l.b16 %v4161
        %v5245 = vunpack.c.h.b16 %v4161
        %v5246 = vunpack.c.l.b16 %v4162
        %v5247 = vunpack.c.h.b16 %v4162
        %v5248 = vunpack.c.l.b16 %v4163
        %v5249 = vunpack.c.h.b16 %v4163
        %v5250 = vunpack.c.l.b16 %v4164
        %v5251 = vunpack.c.h.b16 %v4164
        %v5252 = vunpack.c.l.b16 %v4165
        %v5253 = vunpack.c.h.b16 %v4165
        %v5254 = vunpack.c.l.b16 %v4166
        %v5255 = vunpack.c.h.b16 %v4166
        %v5256 = vunpack.c.l.b16 %v4167
        %v5257 = vunpack.c.h.b16 %v4167
        %v5258 = vunpack.c.l.b16 %v4168
        %v5259 = vunpack.c.h.b16 %v4168
        %v5260 = vunpack.c.l.b16 %v4169
        %v5261 = vunpack.c.h.b16 %v4169
        %v5262 = vunpack.c.l.b16 %v4170
        %v5263 = vunpack.c.h.b16 %v4170
        %v5264 = vunpack.c.l.b16 %v4171
        %v5265 = vunpack.c.h.b16 %v4171
        %v5266 = vunpack.c.l.b16 %v4172
        %v5267 = vunpack.c.h.b16 %v4172
        %v5268 = vunpack.c.l.b16 %v4173
        %v5269 = vunpack.c.h.b16 %v4173
        %v5270 = vunpack.c.l.b16 %v4174
        %v5271 = vunpack.c.h.b16 %v4174
        %v5272 = vunpack.c.l.b16 %v4175
        %v5273 = vunpack.c.h.b16 %v4175
        %v5274 = vunpack.c.l.b16 %v4176
        %v5275 = vunpack.c.h.b16 %v4176
        %v5276 = vunpack.c.l.b16 %v4177
        %v5277 = vunpack.c.h.b16 %v4177
        %v5278 = vunpack.c.l.b16 %v4178
        %v5279 = vunpack.c.h.b16 %v4178
        %v5280 = vunpack.c.l.b16 %v4179
        %v5281 = vunpack.c.h.b16 %v4179
        %v5282 = vunpack.c.l.b16 %v4180
        %v5283 = vunpack.c.h.b16 %v4180
        %v5284 = vunpack.c.l.b16 %v4181
        %v5285 = vunpack.c.h.b16 %v4181
        %v5286 = vunpack.c.l.b16 %v4182
        %v5287 = vunpack.c.h.b16 %v4182
        %v5288 = vunpack.c.l.b16 %v4183
        %v5289 = vunpack.c.h.b16 %v4183
        %v5290 = vunpack.c.l.b16 %v4184
        %v5291 = vunpack.c.h.b16 %v4184
        %v5292 = vunpack.c.l.b16 %v4185
        %v5293 = vunpack.c.h.b16 %v4185
        %v5294 = vunpack.c.l.b16 %v4186
        %v5295 = vunpack.c.h.b16 %v4186
        %v5296 = vunpack.c.l.b16 %v4187
        %v5297 = vunpack.c.h.b16 %v4187
        %v5298 = vunpack.c.l.b16 %v4188
        %v5299 = vunpack.c.h.b16 %v4188
        %v5300 = vunpack.c.l.b16 %v4189
        %v5301 = vunpack.c.h.b16 %v4189
        %v5302 = vunpack.c.l.b16 %v4190
        %v5303 = vunpack.c.h.b16 %v4190
        %v5304 = vunpack.c.l.b16 %v4191
        %v5305 = vunpack.c.h.b16 %v4191
        %v5306 = vunpack.c.l.b16 %v4192
        %v5307 = vunpack.c.h.b16 %v4192
        %v5308 = vunpack.c.l.b16 %v4193
        %v5309 = vunpack.c.h.b16 %v4193
        %v5310 = vunpack.c.l.b16 %v4194
        %v5311 = vunpack.c.h.b16 %v4194
        %v5312 = vunpack.c.l.b16 %v4195
        %v5313 = vunpack.c.h.b16 %v4195
        %v5314 = vunpack.c.l.b16 %v4196
        %v5315 = vunpack.c.h.b16 %v4196
        %v5316 = vunpack.c.l.b16 %v4197
        %v5317 = vunpack.c.h.b16 %v4197
        %v5318 = vunpack.c.l.b16 %v4198
        %v5319 = vunpack.c.h.b16 %v4198
        %v5320 = vunpack.c.l.b16 %v4199
        %v5321 = vunpack.c.h.b16 %v4199
        %v5322 = vunpack.c.l.b16 %v4200
        %v5323 = vunpack.c.h.b16 %v4200
        %v5324 = vunpack.c.l.b16 %v4201
        %v5325 = vunpack.c.h.b16 %v4201
        %v5326 = vunpack.c.l.b16 %v4202
        %v5327 = vunpack.c.h.b16 %v4202
        %v5328 = vunpack.c.l.b16 %v4203
        %v5329 = vunpack.c.h.b16 %v4203
        %v5330 = vunpack.c.l.b16 %v4204
        %v5331 = vunpack.c.h.b16 %v4204
        %v5332 = vunpack.c.l.b16 %v4205
        %v5333 = vunpack.c.h.b16 %v4205
        %v5334 = vunpack.c.l.b16 %v4206
        %v5335 = vunpack.c.h.b16 %v4206
        %v5336 = vunpack.c.l.b16 %v4207
        %v5337 = vunpack.c.h.b16 %v4207
        %v5338 = vunpack.c.l.b16 %v4208
        %v5339 = vunpack.c.h.b16 %v4208
        %v5340 = vunpack.c.l.b16 %v4209
        %v5341 = vunpack.c.h.b16 %v4209
        %v5342 = vunpack.c.l.b16 %v4210
        %v5343 = vunpack.c.h.b16 %v4210
        %v5344 = vunpack.c.l.b16 %v4211
        %v5345 = vunpack.c.h.b16 %v4211
        %v5346 = vunpack.c.l.b16 %v4212
        %v5347 = vunpack.c.h.b16 %v4212
        %v5348 = vunpack.c.l.b16 %v4213
        %v5349 = vunpack.c.h.b16 %v4213
        %v5350 = vunpack.c.l.b16 %v4214
        %v5351 = vunpack.c.h.b16 %v4214
        %v5352 = vunpack.c.l.b16 %v4215
        %v5353 = vunpack.c.h.b16 %v4215
        %v5354 = vunpack.c.l.b16 %v4216
        %v5355 = vunpack.c.h.b16 %v4216
        %v5356 = vunpack.c.l.b16 %v4217
        %v5357 = vunpack.c.h.b16 %v4217
        %v5358 = vunpack.c.l.b16 %v4218
        %v5359 = vunpack.c.h.b16 %v4218
        %v5360 = vunpack.c.l.b16 %v4219
        %v5361 = vunpack.c.h.b16 %v4219
        %v5362 = vunpack.c.l.b16 %v4220
        %v5363 = vunpack.c.h.b16 %v4220
        %v5364 = vunpack.c.l.b16 %v4221
        %v5365 = vunpack.c.h.b16 %v4221
        %v5366 = vunpack.c.l.b16 %v4222
        %v5367 = vunpack.c.h.b16 %v4222
        %v5368 = vunpack.c.l.b16 %v4223
        %v5369 = vunpack.c.h.b16 %v4223
        %v5370 = vunpack.c.l.b16 %v4224
        %v5371 = vunpack.c.h.b16 %v4224
        %v5372 = vunpack.c.l.b16 %v4225
        %v5373 = vunpack.c.h.b16 %v4225
        %v5374 = vunpack.c.l.b16 %v4226
        %v5375 = vunpack.c.h.b16 %v4226
        %v5376 = vunpack.c.l.b16 %v4227
        %v5377 = vunpack.c.h.b16 %v4227
        %v5378 = vunpack.c.l.b16 %v4228
        %v5379 = vunpack.c.h.b16 %v4228
        %v5380 = vunpack.c.l.b16 %v4229
        %v5381 = vunpack.c.h.b16 %v4229
        %v5382 = vunpack.c.l.b16 %v4230
        %v5383 = vunpack.c.h.b16 %v4230
        %v5384 = vunpack.c.l.b16 %v4231
        %v5385 = vunpack.c.h.b16 %v4231
        %v5386 = vunpack.c.l.b16 %v4232
        %v5387 = vunpack.c.h.b16 %v4232
        %v5388 = vunpack.c.l.b16 %v4233
        %v5389 = vunpack.c.h.b16 %v4233
        %v5390 = vunpack.c.l.b16 %v4234
        %v5391 = vunpack.c.h.b16 %v4234
        %v5392 = vunpack.c.l.b16 %v4235
        %v5393 = vunpack.c.h.b16 %v4235
        %v5394 = vunpack.c.l.b16 %v4236
        %v5395 = vunpack.c.h.b16 %v4236
        %v5396 = vunpack.c.l.b16 %v4237
        %v5397 = vunpack.c.h.b16 %v4237
        %v5398 = vunpack.c.l.b16 %v4238
        %v5399 = vunpack.c.h.b16 %v4238
        %v5400 = vunpack.c.l.b16 %v4239
        %v5401 = vunpack.c.h.b16 %v4239
        %v5402 = vunpack.c.l.b16 %v4240
        %v5403 = vunpack.c.h.b16 %v4240
        %v5404 = vunpack.c.l.b16 %v4241
        %v5405 = vunpack.c.h.b16 %v4241
        %v5406 = vunpack.c.l.b16 %v4242
        %v5407 = vunpack.c.h.b16 %v4242
        %v5408 = vunpack.c.l.b16 %v4243
        %v5409 = vunpack.c.h.b16 %v4243
        %v5410 = vunpack.c.l.b16 %v4244
        %v5411 = vunpack.c.h.b16 %v4244
        %v5412 = vunpack.c.l.b16 %v4245
        %v5413 = vunpack.c.h.b16 %v4245
        %v5414 = vunpack.c.l.b16 %v4246
        %v5415 = vunpack.c.h.b16 %v4246
        %v5416 = vunpack.c.l.b16 %v4247
        %v5417 = vunpack.c.h.b16 %v4247
        %v5418 = vunpack.c.l.b16 %v4248
        %v5419 = vunpack.c.h.b16 %v4248
        %v5420 = vunpack.c.l.b16 %v4249
        %v5421 = vunpack.c.h.b16 %v4249
        %v5422 = vunpack.c.l.b16 %v4250
        %v5423 = vunpack.c.h.b16 %v4250
        %v5424 = vunpack.c.l.b16 %v4251
        %v5425 = vunpack.c.h.b16 %v4251
        %v5426 = vunpack.c.l.b16 %v4252
        %v5427 = vunpack.c.h.b16 %v4252
        %v5428 = vunpack.c.l.b16 %v4253
        %v5429 = vunpack.c.h.b16 %v4253
        %v5430 = vunpack.c.l.b16 %v4254
        %v5431 = vunpack.c.h.b16 %v4254
        %v5432 = vunpack.c.l.b16 %v4255
        %v5433 = vunpack.c.h.b16 %v4255
        %v5434 = vunpack.c.l.b16 %v4256
        %v5435 = vunpack.c.h.b16 %v4256
        %v5436 = vunpack.c.l.b16 %v4257
        %v5437 = vunpack.c.h.b16 %v4257
        %v5438 = vunpack.c.l.b16 %v4258
        %v5439 = vunpack.c.h.b16 %v4258
        %v5440 = vunpack.c.l.b16 %v4259
        %v5441 = vunpack.c.h.b16 %v4259
        %v5442 = vunpack.c.l.b16 %v4260
        %v5443 = vunpack.c.h.b16 %v4260
        %v5444 = vunpack.c.l.b16 %v4261
        %v5445 = vunpack.c.h.b16 %v4261
        %v5446 = vunpack.c.l.b16 %v4262
        %v5447 = vunpack.c.h.b16 %v4262
        %v5448 = vunpack.c.l.b16 %v4263
        %v5449 = vunpack.c.h.b16 %v4263
        %v5450 = vunpack.c.l.b16 %v4264
        %v5451 = vunpack.c.h.b16 %v4264
        %v5452 = vunpack.c.l.b16 %v4265
        %v5453 = vunpack.c.h.b16 %v4265
        %v5454 = vunpack.c.l.b16 %v4266
        %v5455 = vunpack.c.h.b16 %v4266
        %v5456 = vunpack.c.l.b16 %v4267
        %v5457 = vunpack.c.h.b16 %v4267
        %v5458 = vunpack.c.l.b16 %v4268
        %v5459 = vunpack.c.h.b16 %v4268
        %v5460 = vunpack.c.l.b16 %v4269
        %v5461 = vunpack.c.h.b16 %v4269
        %v5462 = vunpack.c.l.b16 %v4270
        %v5463 = vunpack.c.h.b16 %v4270
        %v5464 = vunpack.c.l.b16 %v4271
        %v5465 = vunpack.c.h.b16 %v4271
        %v5466 = vunpack.c.l.b16 %v4272
        %v5467 = vunpack.c.h.b16 %v4272
        %v5468 = vunpack.c.l.b16 %v4273
        %v5469 = vunpack.c.h.b16 %v4273
        %v5470 = vunpack.c.l.b16 %v4274
        %v5471 = vunpack.c.h.b16 %v4274
        %v5472 = vunpack.c.l.b16 %v4275
        %v5473 = vunpack.c.h.b16 %v4275
        %v5474 = vunpack.c.l.b16 %v4276
        %v5475 = vunpack.c.h.b16 %v4276
        %v5476 = vunpack.c.l.b16 %v4277
        %v5477 = vunpack.c.h.b16 %v4277
        %v5478 = vunpack.c.l.b16 %v4278
        %v5479 = vunpack.c.h.b16 %v4278
        %v5480 = vunpack.c.l.b16 %v4279
        %v5481 = vunpack.c.h.b16 %v4279
        %v5482 = vunpack.c.l.b16 %v4280
        %v5483 = vunpack.c.h.b16 %v4280
        %v5484 = vunpack.c.l.b16 %v4281
        %v5485 = vunpack.c.h.b16 %v4281
        %v5486 = vunpack.c.l.b16 %v4282
        %v5487 = vunpack.c.h.b16 %v4282
        %v5488 = vunpack.c.l.b16 %v4283
        %v5489 = vunpack.c.h.b16 %v4283
        %v5490 = vunpack.c.l.b16 %v4284
        %v5491 = vunpack.c.h.b16 %v4284
        %v5492 = vunpack.c.l.b16 %v4285
        %v5493 = vunpack.c.h.b16 %v4285
        %v5494 = vunpack.c.l.b16 %v4286
        %v5495 = vunpack.c.h.b16 %v4286
        %v5496 = vunpack.c.l.b16 %v4287
        %v5497 = vunpack.c.h.b16 %v4287
        %v5498 = vunpack.c.l.b16 %v4288
        %v5499 = vunpack.c.h.b16 %v4288
        %v5500 = vunpack.c.l.b16 %v4289
        %v5501 = vunpack.c.h.b16 %v4289
        %v5502 = vunpack.c.l.b16 %v4290
        %v5503 = vunpack.c.h.b16 %v4290
        %v5504 = vunpack.c.l.b16 %v4291
        %v5505 = vunpack.c.h.b16 %v4291
        %v5506 = vunpack.c.l.b16 %v4292
        %v5507 = vunpack.c.h.b16 %v4292
        %v5508 = vunpack.c.l.b16 %v4293
        %v5509 = vunpack.c.h.b16 %v4293
        %v5510 = vunpack.c.l.b16 %v4294
        %v5511 = vunpack.c.h.b16 %v4294
        %v5512 = vunpack.c.l.b16 %v4295
        %v5513 = vunpack.c.h.b16 %v4295
        %v5514 = vunpack.c.l.b16 %v4296
        %v5515 = vunpack.c.h.b16 %v4296
        %v5516 = vunpack.c.l.b16 %v4297
        %v5517 = vunpack.c.h.b16 %v4297
        %v5518 = vunpack.c.l.b16 %v4298
        %v5519 = vunpack.c.h.b16 %v4298
        %v5520 = vunpack.c.l.b16 %v4299
        %v5521 = vunpack.c.h.b16 %v4299
        %v5522 = vunpack.c.l.b16 %v4300
        %v5523 = vunpack.c.h.b16 %v4300
        %v5524 = vunpack.c.l.b16 %v4301
        %v5525 = vunpack.c.h.b16 %v4301
        %v5526 = vunpack.c.l.b16 %v4302
        %v5527 = vunpack.c.h.b16 %v4302
        %v5528 = vunpack.c.l.b16 %v4303
        %v5529 = vunpack.c.h.b16 %v4303
        %v5530 = vunpack.c.l.b16 %v4304
        %v5531 = vunpack.c.h.b16 %v4304
        %v5532 = vunpack.c.l.b16 %v4305
        %v5533 = vunpack.c.h.b16 %v4305
        %v5534 = vunpack.c.l.b16 %v4306
        %v5535 = vunpack.c.h.b16 %v4306
        %v5536 = vunpack.c.l.b16 %v4307
        %v5537 = vunpack.c.h.b16 %v4307
        %v5538 = vunpack.c.l.b16 %v4308
        %v5539 = vunpack.c.h.b16 %v4308
        %v5540 = vunpack.c.l.b16 %v4309
        %v5541 = vunpack.c.h.b16 %v4309
        %v5542 = vunpack.c.l.b16 %v4310
        %v5543 = vunpack.c.h.b16 %v4310
        %v5544 = vunpack.c.l.b16 %v4311
        %v5545 = vunpack.c.h.b16 %v4311
        %v5546 = vunpack.c.l.b16 %v4312
        %v5547 = vunpack.c.h.b16 %v4312
        %v5548 = vunpack.c.l.b16 %v4313
        %v5549 = vunpack.c.h.b16 %v4313
        %v5550 = vunpack.c.l.b16 %v4314
        %v5551 = vunpack.c.h.b16 %v4314
        %v5552 = vunpack.c.l.b16 %v4315
        %v5553 = vunpack.c.h.b16 %v4315
        %v5554 = vunpack.c.l.b16 %v4316
        %v5555 = vunpack.c.h.b16 %v4316
        %v5556 = vunpack.c.l.b16 %v4317
        %v5557 = vunpack.c.h.b16 %v4317
        %v5558 = vunpack.c.l.b16 %v4318
        %v5559 = vunpack.c.h.b16 %v4318
        %v5560 = vunpack.c.l.b16 %v4319
        %v5561 = vunpack.c.h.b16 %v4319
        %v5562 = vunpack.c.l.b16 %v4320
        %v5563 = vunpack.c.h.b16 %v4320
        %v5564 = vunpack.c.l.b16 %v4321
        %v5565 = vunpack.c.h.b16 %v4321
        %v5566 = vunpack.c.l.b16 %v4322
        %v5567 = vunpack.c.h.b16 %v4322
        %v5568 = vunpack.c.l.b16 %v4323
        %v5569 = vunpack.c.h.b16 %v4323
        %v5570 = vunpack.c.l.b16 %v4324
        %v5571 = vunpack.c.h.b16 %v4324
        %v5572 = vunpack.c.l.b16 %v4325
        %v5573 = vunpack.c.h.b16 %v4325
        %v5574 = vunpack.c.l.b16 %v4326
        %v5575 = vunpack.c.h.b16 %v4326
        %v5576 = vunpack.c.l.b16 %v4327
        %v5577 = vunpack.c.h.b16 %v4327
        %v5578 = vunpack.c.l.b16 %v4328
        %v5579 = vunpack.c.h.b16 %v4328
        %v5580 = vunpack.c.l.b16 %v4329
        %v5581 = vunpack.c.h.b16 %v4329
        %v5582 = vunpack.c.l.b16 %v4330
        %v5583 = vunpack.c.h.b16 %v4330
        %v5584 = vunpack.c.l.b16 %v4331
        %v5585 = vunpack.c.h.b16 %v4331
        %v5586 = vunpack.c.l.b16 %v4332
        %v5587 = vunpack.c.h.b16 %v4332
        %v5588 = vunpack.c.l.b16 %v4333
        %v5589 = vunpack.c.h.b16 %v4333
        %v5590 = vunpack.c.l.b16 %v4334
        %v5591 = vunpack.c.h.b16 %v4334
        %v5592 = vunpack.c.l.b16 %v4335
        %v5593 = vunpack.c.h.b16 %v4335
        %v5594 = vunpack.c.l.b16 %v4336
        %v5595 = vunpack.c.h.b16 %v4336
        %v5596 = vunpack.c.l.b16 %v4337
        %v5597 = vunpack.c.h.b16 %v4337
        %v5598 = vunpack.c.l.b16 %v4338
        %v5599 = vunpack.c.h.b16 %v4338
        %v5600 = vunpack.c.l.b16 %v4339
        %v5601 = vunpack.c.h.b16 %v4339
        %v5602 = vunpack.c.l.b16 %v4340
        %v5603 = vunpack.c.h.b16 %v4340
        %v5604 = vunpack.c.l.b16 %v4341
        %v5605 = vunpack.c.h.b16 %v4341
        %v5606 = vunpack.c.l.b16 %v4342
        %v5607 = vunpack.c.h.b16 %v4342
        %v5608 = vunpack.c.l.b16 %v4343
        %v5609 = vunpack.c.h.b16 %v4343
        %v5610 = vunpack.c.l.b16 %v4344
        %v5611 = vunpack.c.h.b16 %v4344
        %v5612 = vunpack.c.l.b16 %v4345
        %v5613 = vunpack.c.h.b16 %v4345
        %v5614 = vunpack.c.l.b16 %v4346
        %v5615 = vunpack.c.h.b16 %v4346
        %v5616 = vunpack.c.l.b16 %v4347
        %v5617 = vunpack.c.h.b16 %v4347
        %v5618 = vunpack.c.l.b16 %v4348
        %v5619 = vunpack.c.h.b16 %v4348
        %v5620 = vunpack.c.l.b16 %v4349
        %v5621 = vunpack.c.h.b16 %v4349
        %v5622 = vunpack.c.l.b16 %v4350
        %v5623 = vunpack.c.h.b16 %v4350
        %v5624 = vunpack.c.l.b16 %v4351
        %v5625 = vunpack.c.h.b16 %v4351
        %v5626 = vunpack.c.l.b16 %v4352
        %v5627 = vunpack.c.h.b16 %v4352
        %v5628 = vunpack.c.l.b16 %v4353
        %v5629 = vunpack.c.h.b16 %v4353
        %v5630 = vunpack.c.l.b16 %v4354
        %v5631 = vunpack.c.h.b16 %v4354
        %v5632 = vunpack.c.l.b16 %v4355
        %v5633 = vunpack.c.h.b16 %v4355
        %v5634 = vunpack.c.l.b16 %v4356
        %v5635 = vunpack.c.h.b16 %v4356
        %v5636 = vunpack.c.l.b16 %v4357
        %v5637 = vunpack.c.h.b16 %v4357
        %v5638 = vunpack.c.l.b16 %v4358
        %v5639 = vunpack.c.h.b16 %v4358
        %v5640 = vunpack.c.l.b16 %v4359
        %v5641 = vunpack.c.h.b16 %v4359
        %v5642 = vunpack.c.l.b16 %v4360
        %v5643 = vunpack.c.h.b16 %v4360
        %v5644 = vunpack.c.l.b16 %v4361
        %v5645 = vunpack.c.h.b16 %v4361
        %v5646 = vunpack.c.l.b16 %v4362
        %v5647 = vunpack.c.h.b16 %v4362
        %v5648 = vunpack.c.l.b16 %v4363
        %v5649 = vunpack.c.h.b16 %v4363
        %v5650 = vunpack.c.l.b16 %v4364
        %v5651 = vunpack.c.h.b16 %v4364
        %v5652 = vunpack.c.l.b16 %v4365
        %v5653 = vunpack.c.h.b16 %v4365
        %v5654 = vunpack.c.l.b16 %v4366
        %v5655 = vunpack.c.h.b16 %v4366
        %v5656 = vunpack.c.l.b16 %v4367
        %v5657 = vunpack.c.h.b16 %v4367
        %v5658 = vunpack.c.l.b16 %v4368
        %v5659 = vunpack.c.h.b16 %v4368
        %v5660 = vunpack.c.l.b16 %v4369
        %v5661 = vunpack.c.h.b16 %v4369
        %v5662 = vunpack.c.l.b16 %v4370
        %v5663 = vunpack.c.h.b16 %v4370
        %v5664 = vunpack.c.l.b16 %v4371
        %v5665 = vunpack.c.h.b16 %v4371
        %v5666 = vunpack.c.l.b16 %v4372
        %v5667 = vunpack.c.h.b16 %v4372
        %v5668 = vunpack.c.l.b16 %v4373
        %v5669 = vunpack.c.h.b16 %v4373
        %v5670 = vunpack.c.l.b16 %v4374
        %v5671 = vunpack.c.h.b16 %v4374
        %v5672 = vunpack.c.l.b16 %v4375
        %v5673 = vunpack.c.h.b16 %v4375
        %v5674 = vunpack.c.l.b16 %v4376
        %v5675 = vunpack.c.h.b16 %v4376
        %v5676 = vunpack.c.l.b16 %v4377
        %v5677 = vunpack.c.h.b16 %v4377
        %v5678 = vunpack.c.l.b16 %v4378
        %v5679 = vunpack.c.h.b16 %v4378
        %v5680 = vunpack.c.l.b16 %v4379
        %v5681 = vunpack.c.h.b16 %v4379
        %v5682 = vunpack.c.l.b16 %v4380
        %v5683 = vunpack.c.h.b16 %v4380
        %v5684 = vunpack.c.l.b16 %v4381
        %v5685 = vunpack.c.h.b16 %v4381
        %v5686 = vunpack.c.l.b16 %v4382
        %v5687 = vunpack.c.h.b16 %v4382
        %v5688 = vunpack.c.l.b16 %v4383
        %v5689 = vunpack.c.h.b16 %v4383
        %v5690 = vunpack.c.l.b16 %v4384
        %v5691 = vunpack.c.h.b16 %v4384
        %v5692 = vunpack.c.l.b16 %v4385
        %v5693 = vunpack.c.h.b16 %v4385
        %v5694 = vunpack.c.l.b16 %v4386
        %v5695 = vunpack.c.h.b16 %v4386
        %v5696 = vunpack.c.l.b16 %v4387
        %v5697 = vunpack.c.h.b16 %v4387
        %v5698 = vunpack.c.l.b16 %v4388
        %v5699 = vunpack.c.h.b16 %v4388
        %v5700 = vunpack.c.l.b16 %v4389
        %v5701 = vunpack.c.h.b16 %v4389
        %v5702 = vunpack.c.l.b16 %v4390
        %v5703 = vunpack.c.h.b16 %v4390
        %v5704 = vunpack.c.l.b16 %v4391
        %v5705 = vunpack.c.h.b16 %v4391
        %v5706 = vunpack.c.l.b16 %v4392
        %v5707 = vunpack.c.h.b16 %v4392
        %v5708 = vunpack.c.l.b16 %v4393
        %v5709 = vunpack.c.h.b16 %v4393
        %v5710 = vunpack.c.l.b16 %v4394
        %v5711 = vunpack.c.h.b16 %v4394
        %v5712 = vunpack.c.l.b16 %v4395
        %v5713 = vunpack.c.h.b16 %v4395
        %v5714 = vunpack.c.l.b16 %v4396
        %v5715 = vunpack.c.h.b16 %v4396
        %v5716 = vunpack.c.l.b16 %v4397
        %v5717 = vunpack.c.h.b16 %v4397
        %v5718 = vunpack.c.l.b16 %v4398
        %v5719 = vunpack.c.h.b16 %v4398
        %v5720 = vunpack.c.l.b16 %v4399
        %v5721 = vunpack.c.h.b16 %v4399
        %v5722 = vunpack.c.l.b16 %v4400
        %v5723 = vunpack.c.h.b16 %v4400
        %v5724 = vunpack.c.l.b16 %v4401
        %v5725 = vunpack.c.h.b16 %v4401
        %v5726 = vunpack.c.l.b16 %v4402
        %v5727 = vunpack.c.h.b16 %v4402
        %v5728 = vunpack.c.l.b16 %v4403
        %v5729 = vunpack.c.h.b16 %v4403
        %v5730 = vunpack.c.l.b16 %v4404
        %v5731 = vunpack.c.h.b16 %v4404
        %v5732 = vunpack.c.l.b16 %v4405
        %v5733 = vunpack.c.h.b16 %v4405
        %v5734 = vunpack.c.l.b16 %v4406
        %v5735 = vunpack.c.h.b16 %v4406
        %v5736 = vunpack.c.l.b16 %v4407
        %v5737 = vunpack.c.h.b16 %v4407
        %v5738 = vunpack.c.l.b16 %v4408
        %v5739 = vunpack.c.h.b16 %v4408
        %v5740 = vunpack.c.l.b16 %v4409
        %v5741 = vunpack.c.h.b16 %v4409
        %v5742 = vunpack.c.l.b16 %v4410
        %v5743 = vunpack.c.h.b16 %v4410
        %v5744 = vunpack.c.l.b16 %v4411
        %v5745 = vunpack.c.h.b16 %v4411
        %v5746 = vunpack.c.l.b16 %v4412
        %v5747 = vunpack.c.h.b16 %v4412
        %v5748 = vunpack.c.l.b16 %v4413
        %v5749 = vunpack.c.h.b16 %v4413
        %v5750 = vunpack.c.l.b16 %v4414
        %v5751 = vunpack.c.h.b16 %v4414
        %v5752 = vunpack.c.l.b16 %v4415
        %v5753 = vunpack.c.h.b16 %v4415
        %v5754 = vunpack.c.l.b16 %v4416
        %v5755 = vunpack.c.h.b16 %v4416
        %v5756 = vunpack.c.l.b16 %v4417
        %v5757 = vunpack.c.h.b16 %v4417
        %v5758 = vunpack.c.l.b16 %v4418
        %v5759 = vunpack.c.h.b16 %v4418
        %v5760 = vunpack.c.l.b16 %v4419
        %v5761 = vunpack.c.h.b16 %v4419
        %v5762 = vunpack.c.l.b16 %v4420
        %v5763 = vunpack.c.h.b16 %v4420
        %v5764 = vunpack.c.l.b16 %v4421
        %v5765 = vunpack.c.h.b16 %v4421
        %v5766 = vunpack.c.l.b16 %v4422
        %v5767 = vunpack.c.h.b16 %v4422
        %v5768 = vunpack.c.l.b16 %v4423
        %v5769 = vunpack.c.h.b16 %v4423
        %v5770 = vunpack.c.l.b16 %v4424
        %v5771 = vunpack.c.h.b16 %v4424
        %v5772 = vunpack.c.l.b16 %v4425
        %v5773 = vunpack.c.h.b16 %v4425
        %v5774 = vunpack.c.l.b16 %v4426
        %v5775 = vunpack.c.h.b16 %v4426
        %v5776 = vunpack.c.l.b16 %v4427
        %v5777 = vunpack.c.h.b16 %v4427
        %v5778 = vunpack.c.l.b16 %v4428
        %v5779 = vunpack.c.h.b16 %v4428
        %v5780 = vunpack.c.l.b16 %v4429
        %v5781 = vunpack.c.h.b16 %v4429
        %v5782 = vunpack.c.l.b16 %v4430
        %v5783 = vunpack.c.h.b16 %v4430
        %v5784 = vunpack.c.l.b16 %v4431
        %v5785 = vunpack.c.h.b16 %v4431
        %v5786 = vunpack.c.l.b16 %v4432
        %v5787 = vunpack.c.h.b16 %v4432
        %v5788 = vunpack.c.l.b16 %v4433
        %v5789 = vunpack.c.h.b16 %v4433
        %v5790 = vunpack.c.l.b16 %v4434
        %v5791 = vunpack.c.h.b16 %v4434
        %v5792 = vunpack.c.l.b16 %v4435
        %v5793 = vunpack.c.h.b16 %v4435
        %v5794 = vunpack.c.l.b16 %v4436
        %v5795 = vunpack.c.h.b16 %v4436
        %v5796 = vunpack.c.l.b16 %v4437
        %v5797 = vunpack.c.h.b16 %v4437
        %v5798 = vunpack.c.l.b16 %v4438
        %v5799 = vunpack.c.h.b16 %v4438
        %v5800 = vunpack.c.l.b16 %v4439
        %v5801 = vunpack.c.h.b16 %v4439
        %v5802 = vunpack.c.l.b16 %v4440
        %v5803 = vunpack.c.h.b16 %v4440
        %v5804 = vunpack.c.l.b16 %v4441
        %v5805 = vunpack.c.h.b16 %v4441
        %v5806 = vunpack.c.l.b16 %v4442
        %v5807 = vunpack.c.h.b16 %v4442
        %v5808 = vunpack.c.l.b16 %v4443
        %v5809 = vunpack.c.h.b16 %v4443
        %v5810 = vunpack.c.l.b16 %v4444
        %v5811 = vunpack.c.h.b16 %v4444
        %v5812 = vunpack.c.l.b16 %v4445
        %v5813 = vunpack.c.h.b16 %v4445
        %v5814 = vunpack.c.l.b16 %v4446
        %v5815 = vunpack.c.h.b16 %v4446
        %v5816 = vunpack.c.l.b16 %v4447
        %v5817 = vunpack.c.h.b16 %v4447
        %v5818 = vunpack.c.l.b16 %v4448
        %v5819 = vunpack.c.h.b16 %v4448
        %v5820 = vunpack.c.l.b16 %v4449
        %v5821 = vunpack.c.h.b16 %v4449
        %v5822 = vunpack.c.l.b16 %v4450
        %v5823 = vunpack.c.h.b16 %v4450
        %v5824 = vunpack.c.l.b16 %v4451
        %v5825 = vunpack.c.h.b16 %v4451
        %v5826 = vunpack.c.l.b16 %v4452
        %v5827 = vunpack.c.h.b16 %v4452
        %v5828 = vunpack.c.l.b16 %v4453
        %v5829 = vunpack.c.h.b16 %v4453
        %v5830 = vunpack.c.l.b16 %v4454
        %v5831 = vunpack.c.h.b16 %v4454
        %v5832 = vunpack.c.l.b16 %v4455
        %v5833 = vunpack.c.h.b16 %v4455
        %v5834 = vunpack.c.l.b16 %v4456
        %v5835 = vunpack.c.h.b16 %v4456
        %v5836 = vunpack.c.l.b16 %v4457
        %v5837 = vunpack.c.h.b16 %v4457
        %v5838 = vunpack.c.l.b16 %v4458
        %v5839 = vunpack.c.h.b16 %v4458
        %v5840 = vunpack.c.l.b16 %v4459
        %v5841 = vunpack.c.h.b16 %v4459
        %v5842 = vunpack.c.l.b16 %v4460
        %v5843 = vunpack.c.h.b16 %v4460
        %v5844 = vunpack.c.l.b16 %v4461
        %v5845 = vunpack.c.h.b16 %v4461
        %v5846 = vunpack.c.l.b16 %v4462
        %v5847 = vunpack.c.h.b16 %v4462
        %v5848 = vunpack.c.l.b16 %v4463
        %v5849 = vunpack.c.h.b16 %v4463
        %v5850 = vunpack.c.l.b16 %v4464
        %v5851 = vunpack.c.h.b16 %v4464
        %v5852 = vunpack.c.l.b16 %v4465
        %v5853 = vunpack.c.h.b16 %v4465
        %v5854 = vunpack.c.l.b16 %v4466
        %v5855 = vunpack.c.h.b16 %v4466
        %v5856 = vunpack.c.l.b16 %v4467
        %v5857 = vunpack.c.h.b16 %v4467
        %v5858 = vunpack.c.l.b16 %v4468
        %v5859 = vunpack.c.h.b16 %v4468
        %v5860 = vunpack.c.l.b16 %v4469
        %v5861 = vunpack.c.h.b16 %v4469
        %v5862 = vunpack.c.l.b16 %v4470
        %v5863 = vunpack.c.h.b16 %v4470
        %v5864 = vunpack.c.l.b16 %v4471
        %v5865 = vunpack.c.h.b16 %v4471
        %v5866 = vunpack.c.l.b16 %v4472
        %v5867 = vunpack.c.h.b16 %v4472
        %v5868 = vunpack.c.l.b16 %v4473
        %v5869 = vunpack.c.h.b16 %v4473
        %v5870 = vunpack.c.l.b16 %v4474
        %v5871 = vunpack.c.h.b16 %v4474
        %v5872 = vunpack.c.l.b16 %v4475
        %v5873 = vunpack.c.h.b16 %v4475
        %v5874 = vunpack.c.l.b16 %v4476
        %v5875 = vunpack.c.h.b16 %v4476
        %v5876 = vunpack.c.l.b16 %v4477
        %v5877 = vunpack.c.h.b16 %v4477
        %v5878 = vunpack.c.l.b16 %v4478
        %v5879 = vunpack.c.h.b16 %v4478
        %v5880 = vunpack.c.l.b16 %v4479
        %v5881 = vunpack.c.h.b16 %v4479
        %v5882 = vunpack.c.l.b16 %v4480
        %v5883 = vunpack.c.h.b16 %v4480
        %v5884 = vunpack.c.l.b16 %v4481
        %v5885 = vunpack.c.h.b16 %v4481
        %v5886 = vunpack.c.l.b16 %v4482
        %v5887 = vunpack.c.h.b16 %v4482
        %v5888 = vunpack.c.l.b16 %v4483
        %v5889 = vunpack.c.h.b16 %v4483
        %v5890 = vunpack.c.l.b16 %v4484
        %v5891 = vunpack.c.h.b16 %v4484
        %v5892 = vunpack.c.l.b16 %v4485
        %v5893 = vunpack.c.h.b16 %v4485
        %v5894 = vunpack.c.l.b16 %v4486
        %v5895 = vunpack.c.h.b16 %v4486
        %v5896 = vunpack.c.l.b16 %v4487
        %v5897 = vunpack.c.h.b16 %v4487
        %v5898 = vunpack.c.l.b16 %v4488
        %v5899 = vunpack.c.h.b16 %v4488
        %v5900 = vunpack.c.l.b16 %v4489
        %v5901 = vunpack.c.h.b16 %v4489
        %v5902 = vunpack.c.l.b16 %v4490
        %v5903 = vunpack.c.h.b16 %v4490
        %v5904 = vunpack.c.l.b16 %v4491
        %v5905 = vunpack.c.h.b16 %v4491
        %v5906 = vunpack.c.l.b16 %v4492
        %v5907 = vunpack.c.h.b16 %v4492
        %v5908 = vunpack.c.l.b16 %v4493
        %v5909 = vunpack.c.h.b16 %v4493
        %v5910 = vunpack.c.l.b16 %v4494
        %v5911 = vunpack.c.h.b16 %v4494
        %v5912 = vunpack.c.l.b16 %v4495
        %v5913 = vunpack.c.h.b16 %v4495
        %v5914 = vunpack.c.l.b16 %v4496
        %v5915 = vunpack.c.h.b16 %v4496
        %v5916 = vunpack.c.l.b16 %v4497
        %v5917 = vunpack.c.h.b16 %v4497
        %v5918 = vunpack.c.l.b16 %v4498
        %v5919 = vunpack.c.h.b16 %v4498
        %v5920 = vunpack.c.l.b16 %v4499
        %v5921 = vunpack.c.h.b16 %v4499
        %v5922 = vunpack.c.l.b16 %v4500
        %v5923 = vunpack.c.h.b16 %v4500
        %v5924 = vunpack.c.l.b16 %v4501
        %v5925 = vunpack.c.h.b16 %v4501
        %v5926 = vunpack.c.l.b16 %v4502
        %v5927 = vunpack.c.h.b16 %v4502
        %v5928 = vunpack.c.l.b16 %v4503
        %v5929 = vunpack.c.h.b16 %v4503
        %v5930 = vunpack.c.l.b16 %v4504
        %v5931 = vunpack.c.h.b16 %v4504
        %v5932 = vunpack.c.l.b16 %v4505
        %v5933 = vunpack.c.h.b16 %v4505
        %v5934 = vunpack.c.l.b16 %v4506
        %v5935 = vunpack.c.h.b16 %v4506
        %v5936 = vunpack.c.l.b16 %v4507
        %v5937 = vunpack.c.h.b16 %v4507
        %v5938 = vunpack.c.l.b16 %v4508
        %v5939 = vunpack.c.h.b16 %v4508
        %v5940 = vunpack.c.l.b16 %v4509
        %v5941 = vunpack.c.h.b16 %v4509
        %v5942 = vunpack.c.l.b16 %v4510
        %v5943 = vunpack.c.h.b16 %v4510
        %v5944 = vunpack.c.l.b16 %v4511
        %v5945 = vunpack.c.h.b16 %v4511
        %v5946 = vunpack.c.l.b16 %v4512
        %v5947 = vunpack.c.h.b16 %v4512
        %v5948 = vunpack.c.l.b16 %v4513
        %v5949 = vunpack.c.h.b16 %v4513
        %v5950 = vunpack.c.l.b16 %v4514
        %v5951 = vunpack.c.h.b16 %v4514
        %v5952 = vunpack.c.l.b16 %v4515
        %v5953 = vunpack.c.h.b16 %v4515
        %v5954 = vunpack.c.l.b16 %v4516
        %v5955 = vunpack.c.h.b16 %v4516
        %v5956 = vunpack.c.l.b16 %v4517
        %v5957 = vunpack.c.h.b16 %v4517
        %v5958 = vunpack.c.l.b16 %v4518
        %v5959 = vunpack.c.h.b16 %v4518
        %v5960 = vunpack.c.l.b16 %v4519
        %v5961 = vunpack.c.h.b16 %v4519
        %v5962 = vunpack.c.l.b16 %v4520
        %v5963 = vunpack.c.h.b16 %v4520
        %v5964 = vunpack.c.l.b16 %v4521
        %v5965 = vunpack.c.h.b16 %v4521
        %v5966 = vunpack.c.l.b16 %v4522
        %v5967 = vunpack.c.h.b16 %v4522
        %v5968 = vunpack.c.l.b16 %v4523
        %v5969 = vunpack.c.h.b16 %v4523
        %v5970 = vunpack.c.l.b16 %v4524
        %v5971 = vunpack.c.h.b16 %v4524
        %v5972 = vunpack.c.l.b16 %v4525
        %v5973 = vunpack.c.h.b16 %v4525
        %v5974 = vunpack.c.l.b16 %v4526
        %v5975 = vunpack.c.h.b16 %v4526
        %v5976 = vunpack.c.l.b16 %v4527
        %v5977 = vunpack.c.h.b16 %v4527
        %v5978 = vunpack.c.l.b16 %v4528
        %v5979 = vunpack.c.h.b16 %v4528
        %v5980 = vunpack.c.l.b16 %v4529
        %v5981 = vunpack.c.h.b16 %v4529
        %v5982 = vunpack.c.l.b16 %v4530
        %v5983 = vunpack.c.h.b16 %v4530
        %v5984 = vunpack.c.l.b16 %v4531
        %v5985 = vunpack.c.h.b16 %v4531
        %v5986 = vunpack.c.l.b16 %v4532
        %v5987 = vunpack.c.h.b16 %v4532
        %v5988 = vunpack.c.l.b16 %v4533
        %v5989 = vunpack.c.h.b16 %v4533
        %v5990 = vunpack.c.l.b16 %v4534
        %v5991 = vunpack.c.h.b16 %v4534
        %v5992 = vunpack.c.l.b16 %v4535
        %v5993 = vunpack.c.h.b16 %v4535
        %v5994 = vunpack.c.l.b16 %v4536
        %v5995 = vunpack.c.h.b16 %v4536
        %v5996 = vunpack.c.l.b16 %v4537
        %v5997 = vunpack.c.h.b16 %v4537
        %v5998 = vunpack.c.l.b16 %v4538
        %v5999 = vunpack.c.h.b16 %v4538
        %v6000 = vunpack.c.l.b16 %v4539
        %v6001 = vunpack.c.h.b16 %v4539
        %v6002 = vunpack.c.l.b16 %v4540
        %v6003 = vunpack.c.h.b16 %v4540
        %v6004 = vunpack.c.l.b16 %v4541
        %v6005 = vunpack.c.h.b16 %v4541
        %v6006 = vunpack.c.l.b16 %v4542
        %v6007 = vunpack.c.h.b16 %v4542
        %v6008 = vunpack.c.l.b16 %v4543
        %v6009 = vunpack.c.h.b16 %v4543
        %v6010 = vunpack.c.l.b16 %v4544
        %v6011 = vunpack.c.h.b16 %v4544
        %v6012 = vunpack.c.l.b16 %v4545
        %v6013 = vunpack.c.h.b16 %v4545
        %v6014 = vunpack.c.l.b16 %v4546
        %v6015 = vunpack.c.h.b16 %v4546
        %v6016 = vunpack.c.l.b16 %v4547
        %v6017 = vunpack.c.h.b16 %v4547
        %v6018 = vunpack.c.l.b16 %v4548
        %v6019 = vunpack.c.h.b16 %v4548
        %v6020 = vunpack.c.l.b16 %v4549
        %v6021 = vunpack.c.h.b16 %v4549
        %v6022 = vunpack.c.l.b16 %v4550
        %v6023 = vunpack.c.h.b16 %v4550
        %v6024 = vunpack.c.l.b16 %v4551
        %v6025 = vunpack.c.h.b16 %v4551
        %v6026 = vunpack.c.l.b16 %v4552
        %v6027 = vunpack.c.h.b16 %v4552
        %v6028 = vunpack.c.l.b16 %v4553
        %v6029 = vunpack.c.h.b16 %v4553
        %v6030 = vunpack.c.l.b16 %v4554
        %v6031 = vunpack.c.h.b16 %v4554
        %v6032 = vunpack.c.l.b16 %v4555
        %v6033 = vunpack.c.h.b16 %v4555
        %v6034 = vunpack.c.l.b16 %v4556
        %v6035 = vunpack.c.h.b16 %v4556
        %v6036 = vunpack.c.l.b16 %v4557
        %v6037 = vunpack.c.h.b16 %v4557
        %v6038 = vunpack.c.l.b16 %v4558
        %v6039 = vunpack.c.h.b16 %v4558
        %v6040 = vunpack.c.l.b16 %v4559
        %v6041 = vunpack.c.h.b16 %v4559
        %v6042 = vunpack.c.l.b16 %v4560
        %v6043 = vunpack.c.h.b16 %v4560
        %v6044 = vunpack.c.l.b16 %v4561
        %v6045 = vunpack.c.h.b16 %v4561
        %v6046 = vunpack.c.l.b16 %v4562
        %v6047 = vunpack.c.h.b16 %v4562
        %v6048 = vunpack.c.l.b16 %v4563
        %v6049 = vunpack.c.h.b16 %v4563
        %v6050 = vunpack.c.l.b16 %v4564
        %v6051 = vunpack.c.h.b16 %v4564
        %v6052 = vunpack.c.l.b16 %v4565
        %v6053 = vunpack.c.h.b16 %v4565
        %v6054 = vunpack.c.l.b16 %v4566
        %v6055 = vunpack.c.h.b16 %v4566
        %v6056 = vunpack.c.l.b16 %v4567
        %v6057 = vunpack.c.h.b16 %v4567
        %v6058 = vunpack.c.l.b16 %v4568
        %v6059 = vunpack.c.h.b16 %v4568
        %v6060 = vunpack.c.l.b16 %v4569
        %v6061 = vunpack.c.h.b16 %v4569
        %v6062 = vunpack.c.l.b16 %v4570
        %v6063 = vunpack.c.h.b16 %v4570
        %v6064 = vunpack.c.l.b16 %v4571
        %v6065 = vunpack.c.h.b16 %v4571
        %v6066 = vunpack.c.l.b16 %v4572
        %v6067 = vunpack.c.h.b16 %v4572
        %v6068 = vunpack.c.l.b16 %v4573
        %v6069 = vunpack.c.h.b16 %v4573
        %v6070 = vunpack.c.l.b16 %v4574
        %v6071 = vunpack.c.h.b16 %v4574
        %v6072 = vunpack.c.l.b16 %v4575
        %v6073 = vunpack.c.h.b16 %v4575
        %v6074 = vunpack.c.l.b16 %v4576
        %v6075 = vunpack.c.h.b16 %v4576
        %v6076 = vunpack.c.l.b16 %v4577
        %v6077 = vunpack.c.h.b16 %v4577
        %v6078 = vunpack.c.l.b16 %v4578
        %v6079 = vunpack.c.h.b16 %v4578
        %v6080 = vunpack.c.l.b16 %v4579
        %v6081 = vunpack.c.h.b16 %v4579
        %v6082 = vunpack.c.l.b16 %v4580
        %v6083 = vunpack.c.h.b16 %v4580
        %v6084 = vunpack.c.l.b16 %v4581
        %v6085 = vunpack.c.h.b16 %v4581
        %v6086 = vunpack.c.l.b16 %v4582
        %v6087 = vunpack.c.h.b16 %v4582
        %v6088 = vunpack.c.l.b16 %v4583
        %v6089 = vunpack.c.h.b16 %v4583
        %v6090 = vunpack.c.l.b16 %v4584
        %v6091 = vunpack.c.h.b16 %v4584
        %v6092 = vunpack.c.l.b16 %v4585
        %v6093 = vunpack.c.h.b16 %v4585
        %v6094 = vunpack.c.l.b16 %v4586
        %v6095 = vunpack.c.h.b16 %v4586
        %v6096 = vunpack.c.l.b16 %v4587
        %v6097 = vunpack.c.h.b16 %v4587
        %v6098 = vunpack.c.l.b16 %v4588
        %v6099 = vunpack.c.h.b16 %v4588
        %v6100 = vunpack.c.l.b16 %v4589
        %v6101 = vunpack.c.h.b16 %v4589
        %v6102 = vunpack.c.l.b16 %v4590
        %v6103 = vunpack.c.h.b16 %v4590
        %v6104 = vunpack.c.l.b16 %v4591
        %v6105 = vunpack.c.h.b16 %v4591
        %v6106 = vunpack.c.l.b16 %v4592
        %v6107 = vunpack.c.h.b16 %v4592
        %v6108 = vunpack.c.l.b16 %v4593
        %v6109 = vunpack.c.h.b16 %v4593
        %v6110 = vunpack.c.l.b16 %v4594
        %v6111 = vunpack.c.h.b16 %v4594
        %v6112 = vunpack.c.l.b16 %v4595
        %v6113 = vunpack.c.h.b16 %v4595
        %v6114 = vunpack.c.l.b16 %v4596
        %v6115 = vunpack.c.h.b16 %v4596
        %v6116 = vunpack.c.l.b16 %v4597
        %v6117 = vunpack.c.h.b16 %v4597
        %v6118 = vunpack.c.l.b16 %v4598
        %v6119 = vunpack.c.h.b16 %v4598
        %v6120 = vunpack.c.l.b16 %v4599
        %v6121 = vunpack.c.h.b16 %v4599
        %v6122 = vunpack.c.l.b16 %v4600
        %v6123 = vunpack.c.h.b16 %v4600
        %v6124 = vunpack.c.l.b16 %v4601
        %v6125 = vunpack.c.h.b16 %v4601
        %v6126 = vunpack.c.l.b16 %v4602
        %v6127 = vunpack.c.h.b16 %v4602
        %v6128 = vunpack.c.l.b16 %v4603
        %v6129 = vunpack.c.h.b16 %v4603
        %v6130 = vunpack.c.l.b16 %v4604
        %v6131 = vunpack.c.h.b16 %v4604
        %v6132 = vunpack.c.l.b16 %v4605
        %v6133 = vunpack.c.h.b16 %v4605
        %v6134 = vunpack.c.l.b16 %v4606
        %v6135 = vunpack.c.h.b16 %v4606
        %v6136 = vunpack.c.l.b16 %v4607
        %v6137 = vunpack.c.h.b16 %v4607
        %v6138 = vunpack.c.l.b16 %v4608
        %v6139 = vunpack.c.h.b16 %v4608
        %v6140 = vunpack.c.l.b16 %v4609
        %v6141 = vunpack.c.h.b16 %v4609
        %v6142 = vunpack.c.l.b16 %v4610
        %v6143 = vunpack.c.h.b16 %v4610
        %v6144 = vunpack.c.l.b16 %v4611
        %v6145 = vunpack.c.h.b16 %v4611
        %v6146 = vunpack.c.l.b16 %v4612
        %v6147 = vunpack.c.h.b16 %v4612
        %v6148 = vunpack.c.l.b16 %v4613
        %v6149 = vunpack.c.h.b16 %v4613
        %v6150 = vunpack.c.l.b16 %v4614
        %v6151 = vunpack.c.h.b16 %v4614
        %v6152 = vunpack.c.l.b16 %v4615
        %v6153 = vunpack.c.h.b16 %v4615
        %v6154 = vunpack.c.l.b16 %v4616
        %v6155 = vunpack.c.h.b16 %v4616
        %v6156 = vunpack.c.l.b16 %v4617
        %v6157 = vunpack.c.h.b16 %v4617
        %v6158 = vunpack.c.l.b16 %v4618
        %v6159 = vunpack.c.h.b16 %v4618
        %v6160 = vunpack.c.l.b16 %v4619
        %v6161 = vunpack.c.h.b16 %v4619
        %v6162 = vunpack.c.l.b16 %v4620
        %v6163 = vunpack.c.h.b16 %v4620
        %v6164 = vunpack.c.l.b16 %v4621
        %v6165 = vunpack.c.h.b16 %v4621
        %v6166 = vunpack.c.l.b16 %v4622
        %v6167 = vunpack.c.h.b16 %v4622
        %v6168 = vunpack.c.l.b16 %v4623
        %v6169 = vunpack.c.h.b16 %v4623
        %v6170 = vunpack.c.l.b16 %v4624
        %v6171 = vunpack.c.h.b16 %v4624
        %v6172 = vunpack.c.l.b16 %v4625
        %v6173 = vunpack.c.h.b16 %v4625
        %v6174 = vunpack.c.l.b16 %v4626
        %v6175 = vunpack.c.h.b16 %v4626
        %v6176 = vunpack.c.l.b16 %v4627
        %v6177 = vunpack.c.h.b16 %v4627
        %v6178 = vunpack.c.l.b16 %v4628
        %v6179 = vunpack.c.h.b16 %v4628
        %v6180 = vunpack.c.l.b16 %v4629
        %v6181 = vunpack.c.h.b16 %v4629
        %v6182 = vunpack.c.l.b16 %v4630
        %v6183 = vunpack.c.h.b16 %v4630
        %v6184 = vunpack.c.l.b16 %v4631
        %v6185 = vunpack.c.h.b16 %v4631
        %v6186 = vpack.c.b16 %v5170, %v5162
        %v6187 = vpack.c.b16 %v5171, %v5163
        %v6188 = vpack.c.b16 %v5172, %v5164
        %v6189 = vpack.c.b16 %v5173, %v5165
        %v6190 = vpack.c.b16 %v5174, %v5166
        %v6191 = vpack.c.b16 %v5175, %v5167
        %v6192 = vpack.c.b16 %v5176, %v5168
        %v6193 = vpack.c.b16 %v5177, %v5169
        %v6194 = vpack.c.b16 %v5186, %v5178
        %v6195 = vpack.c.b16 %v5187, %v5179
        %v6196 = vpack.c.b16 %v5188, %v5180
        %v6197 = vpack.c.b16 %v5189, %v5181
        %v6198 = vpack.c.b16 %v5190, %v5182
        %v6199 = vpack.c.b16 %v5191, %v5183
        %v6200 = vpack.c.b16 %v5192, %v5184
        %v6201 = vpack.c.b16 %v5193, %v5185
        %v6202 = vpack.c.b16 %v5202, %v5194
        %v6203 = vpack.c.b16 %v5203, %v5195
        %v6204 = vpack.c.b16 %v5204, %v5196
        %v6205 = vpack.c.b16 %v5205, %v5197
        %v6206 = vpack.c.b16 %v5206, %v5198
        %v6207 = vpack.c.b16 %v5207, %v5199
        %v6208 = vpack.c.b16 %v5208, %v5200
        %v6209 = vpack.c.b16 %v5209, %v5201
        %v6210 = vpack.c.b16 %v5218, %v5210
        %v6211 = vpack.c.b16 %v5219, %v5211
        %v6212 = vpack.c.b16 %v5220, %v5212
        %v6213 = vpack.c.b16 %v5221, %v5213
        %v6214 = vpack.c.b16 %v5222, %v5214
        %v6215 = vpack.c.b16 %v5223, %v5215
        %v6216 = vpack.c.b16 %v5224, %v5216
        %v6217 = vpack.c.b16 %v5225, %v5217
        %v6218 = vpack.c.b16 %v5234, %v5226
        %v6219 = vpack.c.b16 %v5235, %v5227
        %v6220 = vpack.c.b16 %v5236, %v5228
        %v6221 = vpack.c.b16 %v5237, %v5229
        %v6222 = vpack.c.b16 %v5238, %v5230
        %v6223 = vpack.c.b16 %v5239, %v5231
        %v6224 = vpack.c.b16 %v5240, %v5232
        %v6225 = vpack.c.b16 %v5241, %v5233
        %v6226 = vpack.c.b16 %v5250, %v5242
        %v6227 = vpack.c.b16 %v5251, %v5243
        %v6228 = vpack.c.b16 %v5252, %v5244
        %v6229 = vpack.c.b16 %v5253, %v5245
        %v6230 = vpack.c.b16 %v5254, %v5246
        %v6231 = vpack.c.b16 %v5255, %v5247
        %v6232 = vpack.c.b16 %v5256, %v5248
        %v6233 = vpack.c.b16 %v5257, %v5249
        %v6234 = vpack.c.b16 %v5266, %v5258
        %v6235 = vpack.c.b16 %v5267, %v5259
        %v6236 = vpack.c.b16 %v5268, %v5260
        %v6237 = vpack.c.b16 %v5269, %v5261
        %v6238 = vpack.c.b16 %v5270, %v5262
        %v6239 = vpack.c.b16 %v5271, %v5263
        %v6240 = vpack.c.b16 %v5272, %v5264
        %v6241 = vpack.c.b16 %v5273, %v5265
        %v6242 = vpack.c.b16 %v5282, %v5274
        %v6243 = vpack.c.b16 %v5283, %v5275
        %v6244 = vpack.c.b16 %v5284, %v5276
        %v6245 = vpack.c.b16 %v5285, %v5277
        %v6246 = vpack.c.b16 %v5286, %v5278
        %v6247 = vpack.c.b16 %v5287, %v5279
        %v6248 = vpack.c.b16 %v5288, %v5280
        %v6249 = vpack.c.b16 %v5289, %v5281
        %v6250 = vpack.c.b16 %v5298, %v5290
        %v6251 = vpack.c.b16 %v5299, %v5291
        %v6252 = vpack.c.b16 %v5300, %v5292
        %v6253 = vpack.c.b16 %v5301, %v5293
        %v6254 = vpack.c.b16 %v5302, %v5294
        %v6255 = vpack.c.b16 %v5303, %v5295
        %v6256 = vpack.c.b16 %v5304, %v5296
        %v6257 = vpack.c.b16 %v5305, %v5297
        %v6258 = vpack.c.b16 %v5314, %v5306
        %v6259 = vpack.c.b16 %v5315, %v5307
        %v6260 = vpack.c.b16 %v5316, %v5308
        %v6261 = vpack.c.b16 %v5317, %v5309
        %v6262 = vpack.c.b16 %v5318, %v5310
        %v6263 = vpack.c.b16 %v5319, %v5311
        %v6264 = vpack.c.b16 %v5320, %v5312
        %v6265 = vpack.c.b16 %v5321, %v5313
        %v6266 = vpack.c.b16 %v5330, %v5322
        %v6267 = vpack.c.b16 %v5331, %v5323
        %v6268 = vpack.c.b16 %v5332, %v5324
        %v6269 = vpack.c.b16 %v5333, %v5325
        %v6270 = vpack.c.b16 %v5334, %v5326
        %v6271 = vpack.c.b16 %v5335, %v5327
        %v6272 = vpack.c.b16 %v5336, %v5328
        %v6273 = vpack.c.b16 %v5337, %v5329
        %v6274 = vpack.c.b16 %v5346, %v5338
        %v6275 = vpack.c.b16 %v5347, %v5339
        %v6276 = vpack.c.b16 %v5348, %v5340
        %v6277 = vpack.c.b16 %v5349, %v5341
        %v6278 = vpack.c.b16 %v5350, %v5342
        %v6279 = vpack.c.b16 %v5351, %v5343
        %v6280 = vpack.c.b16 %v5352, %v5344
        %v6281 = vpack.c.b16 %v5353, %v5345
        %v6282 = vpack.c.b16 %v5362, %v5354
        %v6283 = vpack.c.b16 %v5363, %v5355
        %v6284 = vpack.c.b16 %v5364, %v5356
        %v6285 = vpack.c.b16 %v5365, %v5357
        %v6286 = vpack.c.b16 %v5366, %v5358
        %v6287 = vpack.c.b16 %v5367, %v5359
        %v6288 = vpack.c.b16 %v5368, %v5360
        %v6289 = vpack.c.b16 %v5369, %v5361
        %v6290 = vpack.c.b16 %v5378, %v5370
        %v6291 = vpack.c.b16 %v5379, %v5371
        %v6292 = vpack.c.b16 %v5380, %v5372
        %v6293 = vpack.c.b16 %v5381, %v5373
        %v6294 = vpack.c.b16 %v5382, %v5374
        %v6295 = vpack.c.b16 %v5383, %v5375
        %v6296 = vpack.c.b16 %v5384, %v5376
        %v6297 = vpack.c.b16 %v5385, %v5377
        %v6298 = vpack.c.b16 %v5394, %v5386
        %v6299 = vpack.c.b16 %v5395, %v5387
        %v6300 = vpack.c.b16 %v5396, %v5388
        %v6301 = vpack.c.b16 %v5397, %v5389
        %v6302 = vpack.c.b16 %v5398, %v5390
        %v6303 = vpack.c.b16 %v5399, %v5391
        %v6304 = vpack.c.b16 %v5400, %v5392
        %v6305 = vpack.c.b16 %v5401, %v5393
        %v6306 = vpack.c.b16 %v5410, %v5402
        %v6307 = vpack.c.b16 %v5411, %v5403
        %v6308 = vpack.c.b16 %v5412, %v5404
        %v6309 = vpack.c.b16 %v5413, %v5405
        %v6310 = vpack.c.b16 %v5414, %v5406
        %v6311 = vpack.c.b16 %v5415, %v5407
        %v6312 = vpack.c.b16 %v5416, %v5408
        %v6313 = vpack.c.b16 %v5417, %v5409
        %v6314 = vpack.c.b16 %v5426, %v5418
        %v6315 = vpack.c.b16 %v5427, %v5419
        %v6316 = vpack.c.b16 %v5428, %v5420
        %v6317 = vpack.c.b16 %v5429, %v5421
        %v6318 = vpack.c.b16 %v5430, %v5422
        %v6319 = vpack.c.b16 %v5431, %v5423
        %v6320 = vpack.c.b16 %v5432, %v5424
        %v6321 = vpack.c.b16 %v5433, %v5425
        %v6322 = vpack.c.b16 %v5442, %v5434
        %v6323 = vpack.c.b16 %v5443, %v5435
        %v6324 = vpack.c.b16 %v5444, %v5436
        %v6325 = vpack.c.b16 %v5445, %v5437
        %v6326 = vpack.c.b16 %v5446, %v5438
        %v6327 = vpack.c.b16 %v5447, %v5439
        %v6328 = vpack.c.b16 %v5448, %v5440
        %v6329 = vpack.c.b16 %v5449, %v5441
        %v6330 = vpack.c.b16 %v5458, %v5450
        %v6331 = vpack.c.b16 %v5459, %v5451
        %v6332 = vpack.c.b16 %v5460, %v5452
        %v6333 = vpack.c.b16 %v5461, %v5453
        %v6334 = vpack.c.b16 %v5462, %v5454
        %v6335 = vpack.c.b16 %v5463, %v5455
        %v6336 = vpack.c.b16 %v5464, %v5456
        %v6337 = vpack.c.b16 %v5465, %v5457
        %v6338 = vpack.c.b16 %v5474, %v5466
        %v6339 = vpack.c.b16 %v5475, %v5467
        %v6340 = vpack.c.b16 %v5476, %v5468
        %v6341 = vpack.c.b16 %v5477, %v5469
        %v6342 = vpack.c.b16 %v5478, %v5470
        %v6343 = vpack.c.b16 %v5479, %v5471
        %v6344 = vpack.c.b16 %v5480, %v5472
        %v6345 = vpack.c.b16 %v5481, %v5473
        %v6346 = vpack.c.b16 %v5490, %v5482
        %v6347 = vpack.c.b16 %v5491, %v5483
        %v6348 = vpack.c.b16 %v5492, %v5484
        %v6349 = vpack.c.b16 %v5493, %v5485
        %v6350 = vpack.c.b16 %v5494, %v5486
        %v6351 = vpack.c.b16 %v5495, %v5487
        %v6352 = vpack.c.b16 %v5496, %v5488
        %v6353 = vpack.c.b16 %v5497, %v5489
        %v6354 = vpack.c.b16 %v5506, %v5498
        %v6355 = vpack.c.b16 %v5507, %v5499
        %v6356 = vpack.c.b16 %v5508, %v5500
        %v6357 = vpack.c.b16 %v5509, %v5501
        %v6358 = vpack.c.b16 %v5510, %v5502
        %v6359 = vpack.c.b16 %v5511, %v5503
        %v6360 = vpack.c.b16 %v5512, %v5504
        %v6361 = vpack.c.b16 %v5513, %v5505
        %v6362 = vpack.c.b16 %v5522, %v5514
        %v6363 = vpack.c.b16 %v5523, %v5515
        %v6364 = vpack.c.b16 %v5524, %v5516
        %v6365 = vpack.c.b16 %v5525, %v5517
        %v6366 = vpack.c.b16 %v5526, %v5518
        %v6367 = vpack.c.b16 %v5527, %v5519
        %v6368 = vpack.c.b16 %v5528, %v5520
        %v6369 = vpack.c.b16 %v5529, %v5521
        %v6370 = vpack.c.b16 %v5538, %v5530
        %v6371 = vpack.c.b16 %v5539, %v5531
        %v6372 = vpack.c.b16 %v5540, %v5532
        %v6373 = vpack.c.b16 %v5541, %v5533
        %v6374 = vpack.c.b16 %v5542, %v5534
        %v6375 = vpack.c.b16 %v5543, %v5535
        %v6376 = vpack.c.b16 %v5544, %v5536
        %v6377 = vpack.c.b16 %v5545, %v5537
        %v6378 = vpack.c.b16 %v5554, %v5546
        %v6379 = vpack.c.b16 %v5555, %v5547
        %v6380 = vpack.c.b16 %v5556, %v5548
        %v6381 = vpack.c.b16 %v5557, %v5549
        %v6382 = vpack.c.b16 %v5558, %v5550
        %v6383 = vpack.c.b16 %v5559, %v5551
        %v6384 = vpack.c.b16 %v5560, %v5552
        %v6385 = vpack.c.b16 %v5561, %v5553
        %v6386 = vpack.c.b16 %v5570, %v5562
        %v6387 = vpack.c.b16 %v5571, %v5563
        %v6388 = vpack.c.b16 %v5572, %v5564
        %v6389 = vpack.c.b16 %v5573, %v5565
        %v6390 = vpack.c.b16 %v5574, %v5566
        %v6391 = vpack.c.b16 %v5575, %v5567
        %v6392 = vpack.c.b16 %v5576, %v5568
        %v6393 = vpack.c.b16 %v5577, %v5569
        %v6394 = vpack.c.b16 %v5586, %v5578
        %v6395 = vpack.c.b16 %v5587, %v5579
        %v6396 = vpack.c.b16 %v5588, %v5580
        %v6397 = vpack.c.b16 %v5589, %v5581
        %v6398 = vpack.c.b16 %v5590, %v5582
        %v6399 = vpack.c.b16 %v5591, %v5583
        %v6400 = vpack.c.b16 %v5592, %v5584
        %v6401 = vpack.c.b16 %v5593, %v5585
        %v6402 = vpack.c.b16 %v5602, %v5594
        %v6403 = vpack.c.b16 %v5603, %v5595
        %v6404 = vpack.c.b16 %v5604, %v5596
        %v6405 = vpack.c.b16 %v5605, %v5597
        %v6406 = vpack.c.b16 %v5606, %v5598
        %v6407 = vpack.c.b16 %v5607, %v5599
        %v6408 = vpack.c.b16 %v5608, %v5600
        %v6409 = vpack.c.b16 %v5609, %v5601
        %v6410 = vpack.c.b16 %v5618, %v5610
        %v6411 = vpack.c.b16 %v5619, %v5611
        %v6412 = vpack.c.b16 %v5620, %v5612
        %v6413 = vpack.c.b16 %v5621, %v5613
        %v6414 = vpack.c.b16 %v5622, %v5614
        %v6415 = vpack.c.b16 %v5623, %v5615
        %v6416 = vpack.c.b16 %v5624, %v5616
        %v6417 = vpack.c.b16 %v5625, %v5617
        %v6418 = vpack.c.b16 %v5634, %v5626
        %v6419 = vpack.c.b16 %v5635, %v5627
        %v6420 = vpack.c.b16 %v5636, %v5628
        %v6421 = vpack.c.b16 %v5637, %v5629
        %v6422 = vpack.c.b16 %v5638, %v5630
        %v6423 = vpack.c.b16 %v5639, %v5631
        %v6424 = vpack.c.b16 %v5640, %v5632
        %v6425 = vpack.c.b16 %v5641, %v5633
        %v6426 = vpack.c.b16 %v5650, %v5642
        %v6427 = vpack.c.b16 %v5651, %v5643
        %v6428 = vpack.c.b16 %v5652, %v5644
        %v6429 = vpack.c.b16 %v5653, %v5645
        %v6430 = vpack.c.b16 %v5654, %v5646
        %v6431 = vpack.c.b16 %v5655, %v5647
        %v6432 = vpack.c.b16 %v5656, %v5648
        %v6433 = vpack.c.b16 %v5657, %v5649
        %v6434 = vpack.c.b16 %v5666, %v5658
        %v6435 = vpack.c.b16 %v5667, %v5659
        %v6436 = vpack.c.b16 %v5668, %v5660
        %v6437 = vpack.c.b16 %v5669, %v5661
        %v6438 = vpack.c.b16 %v5670, %v5662
        %v6439 = vpack.c.b16 %v5671, %v5663
        %v6440 = vpack.c.b16 %v5672, %v5664
        %v6441 = vpack.c.b16 %v5673, %v5665
        %v6442 = vpack.c.b16 %v5682, %v5674
        %v6443 = vpack.c.b16 %v5683, %v5675
        %v6444 = vpack.c.b16 %v5684, %v5676
        %v6445 = vpack.c.b16 %v5685, %v5677
        %v6446 = vpack.c.b16 %v5686, %v5678
        %v6447 = vpack.c.b16 %v5687, %v5679
        %v6448 = vpack.c.b16 %v5688, %v5680
        %v6449 = vpack.c.b16 %v5689, %v5681
        %v6450 = vpack.c.b16 %v5698, %v5690
        %v6451 = vpack.c.b16 %v5699, %v5691
        %v6452 = vpack.c.b16 %v5700, %v5692
        %v6453 = vpack.c.b16 %v5701, %v5693
        %v6454 = vpack.c.b16 %v5702, %v5694
        %v6455 = vpack.c.b16 %v5703, %v5695
        %v6456 = vpack.c.b16 %v5704, %v5696
        %v6457 = vpack.c.b16 %v5705, %v5697
        %v6458 = vpack.c.b16 %v5714, %v5706
        %v6459 = vpack.c.b16 %v5715, %v5707
        %v6460 = vpack.c.b16 %v5716, %v5708
        %v6461 = vpack.c.b16 %v5717, %v5709
        %v6462 = vpack.c.b16 %v5718, %v5710
        %v6463 = vpack.c.b16 %v5719, %v5711
        %v6464 = vpack.c.b16 %v5720, %v5712
        %v6465 = vpack.c.b16 %v5721, %v5713
        %v6466 = vpack.c.b16 %v5730, %v5722
        %v6467 = vpack.c.b16 %v5731, %v5723
        %v6468 = vpack.c.b16 %v5732, %v5724
        %v6469 = vpack.c.b16 %v5733, %v5725
        %v6470 = vpack.c.b16 %v5734, %v5726
        %v6471 = vpack.c.b16 %v5735, %v5727
        %v6472 = vpack.c.b16 %v5736, %v5728
        %v6473 = vpack.c.b16 %v5737, %v5729
        %v6474 = vpack.c.b16 %v5746, %v5738
        %v6475 = vpack.c.b16 %v5747, %v5739
        %v6476 = vpack.c.b16 %v5748, %v5740
        %v6477 = vpack.c.b16 %v5749, %v5741
        %v6478 = vpack.c.b16 %v5750, %v5742
        %v6479 = vpack.c.b16 %v5751, %v5743
        %v6480 = vpack.c.b16 %v5752, %v5744
        %v6481 = vpack.c.b16 %v5753, %v5745
        %v6482 = vpack.c.b16 %v5762, %v5754
        %v6483 = vpack.c.b16 %v5763, %v5755
        %v6484 = vpack.c.b16 %v5764, %v5756
        %v6485 = vpack.c.b16 %v5765, %v5757
        %v6486 = vpack.c.b16 %v5766, %v5758
        %v6487 = vpack.c.b16 %v5767, %v5759
        %v6488 = vpack.c.b16 %v5768, %v5760
        %v6489 = vpack.c.b16 %v5769, %v5761
        %v6490 = vpack.c.b16 %v5778, %v5770
        %v6491 = vpack.c.b16 %v5779, %v5771
        %v6492 = vpack.c.b16 %v5780, %v5772
        %v6493 = vpack.c.b16 %v5781, %v5773
        %v6494 = vpack.c.b16 %v5782, %v5774
        %v6495 = vpack.c.b16 %v5783, %v5775
        %v6496 = vpack.c.b16 %v5784, %v5776
        %v6497 = vpack.c.b16 %v5785, %v5777
        %v6498 = vpack.c.b16 %v5794, %v5786
        %v6499 = vpack.c.b16 %v5795, %v5787
        %v6500 = vpack.c.b16 %v5796, %v5788
        %v6501 = vpack.c.b16 %v5797, %v5789
        %v6502 = vpack.c.b16 %v5798, %v5790
        %v6503 = vpack.c.b16 %v5799, %v5791
        %v6504 = vpack.c.b16 %v5800, %v5792
        %v6505 = vpack.c.b16 %v5801, %v5793
        %v6506 = vpack.c.b16 %v5810, %v5802
        %v6507 = vpack.c.b16 %v5811, %v5803
        %v6508 = vpack.c.b16 %v5812, %v5804
        %v6509 = vpack.c.b16 %v5813, %v5805
        %v6510 = vpack.c.b16 %v5814, %v5806
        %v6511 = vpack.c.b16 %v5815, %v5807
        %v6512 = vpack.c.b16 %v5816, %v5808
        %v6513 = vpack.c.b16 %v5817, %v5809
        %v6514 = vpack.c.b16 %v5826, %v5818
        %v6515 = vpack.c.b16 %v5827, %v5819
        %v6516 = vpack.c.b16 %v5828, %v5820
        %v6517 = vpack.c.b16 %v5829, %v5821
        %v6518 = vpack.c.b16 %v5830, %v5822
        %v6519 = vpack.c.b16 %v5831, %v5823
        %v6520 = vpack.c.b16 %v5832, %v5824
        %v6521 = vpack.c.b16 %v5833, %v5825
        %v6522 = vpack.c.b16 %v5842, %v5834
        %v6523 = vpack.c.b16 %v5843, %v5835
        %v6524 = vpack.c.b16 %v5844, %v5836
        %v6525 = vpack.c.b16 %v5845, %v5837
        %v6526 = vpack.c.b16 %v5846, %v5838
        %v6527 = vpack.c.b16 %v5847, %v5839
        %v6528 = vpack.c.b16 %v5848, %v5840
        %v6529 = vpack.c.b16 %v5849, %v5841
        %v6530 = vpack.c.b16 %v5858, %v5850
        %v6531 = vpack.c.b16 %v5859, %v5851
        %v6532 = vpack.c.b16 %v5860, %v5852
        %v6533 = vpack.c.b16 %v5861, %v5853
        %v6534 = vpack.c.b16 %v5862, %v5854
        %v6535 = vpack.c.b16 %v5863, %v5855
        %v6536 = vpack.c.b16 %v5864, %v5856
        %v6537 = vpack.c.b16 %v5865, %v5857
        %v6538 = vpack.c.b16 %v5874, %v5866
        %v6539 = vpack.c.b16 %v5875, %v5867
        %v6540 = vpack.c.b16 %v5876, %v5868
        %v6541 = vpack.c.b16 %v5877, %v5869
        %v6542 = vpack.c.b16 %v5878, %v5870
        %v6543 = vpack.c.b16 %v5879, %v5871
        %v6544 = vpack.c.b16 %v5880, %v5872
        %v6545 = vpack.c.b16 %v5881, %v5873
        %v6546 = vpack.c.b16 %v5890, %v5882
        %v6547 = vpack.c.b16 %v5891, %v5883
        %v6548 = vpack.c.b16 %v5892, %v5884
        %v6549 = vpack.c.b16 %v5893, %v5885
        %v6550 = vpack.c.b16 %v5894, %v5886
        %v6551 = vpack.c.b16 %v5895, %v5887
        %v6552 = vpack.c.b16 %v5896, %v5888
        %v6553 = vpack.c.b16 %v5897, %v5889
        %v6554 = vpack.c.b16 %v5906, %v5898
        %v6555 = vpack.c.b16 %v5907, %v5899
        %v6556 = vpack.c.b16 %v5908, %v5900
        %v6557 = vpack.c.b16 %v5909, %v5901
        %v6558 = vpack.c.b16 %v5910, %v5902
        %v6559 = vpack.c.b16 %v5911, %v5903
        %v6560 = vpack.c.b16 %v5912, %v5904
        %v6561 = vpack.c.b16 %v5913, %v5905
        %v6562 = vpack.c.b16 %v5922, %v5914
        %v6563 = vpack.c.b16 %v5923, %v5915
        %v6564 = vpack.c.b16 %v5924, %v5916
        %v6565 = vpack.c.b16 %v5925, %v5917
        %v6566 = vpack.c.b16 %v5926, %v5918
        %v6567 = vpack.c.b16 %v5927, %v5919
        %v6568 = vpack.c.b16 %v5928, %v5920
        %v6569 = vpack.c.b16 %v5929, %v5921
        %v6570 = vpack.c.b16 %v5938, %v5930
        %v6571 = vpack.c.b16 %v5939, %v5931
        %v6572 = vpack.c.b16 %v5940, %v5932
        %v6573 = vpack.c.b16 %v5941, %v5933
        %v6574 = vpack.c.b16 %v5942, %v5934
        %v6575 = vpack.c.b16 %v5943, %v5935
        %v6576 = vpack.c.b16 %v5944, %v5936
        %v6577 = vpack.c.b16 %v5945, %v5937
        %v6578 = vpack.c.b16 %v5954, %v5946
        %v6579 = vpack.c.b16 %v5955, %v5947
        %v6580 = vpack.c.b16 %v5956, %v5948
        %v6581 = vpack.c.b16 %v5957, %v5949
        %v6582 = vpack.c.b16 %v5958, %v5950
        %v6583 = vpack.c.b16 %v5959, %v5951
        %v6584 = vpack.c.b16 %v5960, %v5952
        %v6585 = vpack.c.b16 %v5961, %v5953
        %v6586 = vpack.c.b16 %v5970, %v5962
        %v6587 = vpack.c.b16 %v5971, %v5963
        %v6588 = vpack.c.b16 %v5972, %v5964
        %v6589 = vpack.c.b16 %v5973, %v5965
        %v6590 = vpack.c.b16 %v5974, %v5966
        %v6591 = vpack.c.b16 %v5975, %v5967
        %v6592 = vpack.c.b16 %v5976, %v5968
        %v6593 = vpack.c.b16 %v5977, %v5969
        %v6594 = vpack.c.b16 %v5986, %v5978
        %v6595 = vpack.c.b16 %v5987, %v5979
        %v6596 = vpack.c.b16 %v5988, %v5980
        %v6597 = vpack.c.b16 %v5989, %v5981
        %v6598 = vpack.c.b16 %v5990, %v5982
        %v6599 = vpack.c.b16 %v5991, %v5983
        %v6600 = vpack.c.b16 %v5992, %v5984
        %v6601 = vpack.c.b16 %v5993, %v5985
        %v6602 = vpack.c.b16 %v6002, %v5994
        %v6603 = vpack.c.b16 %v6003, %v5995
        %v6604 = vpack.c.b16 %v6004, %v5996
        %v6605 = vpack.c.b16 %v6005, %v5997
        %v6606 = vpack.c.b16 %v6006, %v5998
        %v6607 = vpack.c.b16 %v6007, %v5999
        %v6608 = vpack.c.b16 %v6008, %v6000
        %v6609 = vpack.c.b16 %v6009, %v6001
        %v6610 = vpack.c.b16 %v6018, %v6010
        %v6611 = vpack.c.b16 %v6019, %v6011
        %v6612 = vpack.c.b16 %v6020, %v6012
        %v6613 = vpack.c.b16 %v6021, %v6013
        %v6614 = vpack.c.b16 %v6022, %v6014
        %v6615 = vpack.c.b16 %v6023, %v6015
        %v6616 = vpack.c.b16 %v6024, %v6016
        %v6617 = vpack.c.b16 %v6025, %v6017
        %v6618 = vpack.c.b16 %v6034, %v6026
        %v6619 = vpack.c.b16 %v6035, %v6027
        %v6620 = vpack.c.b16 %v6036, %v6028
        %v6621 = vpack.c.b16 %v6037, %v6029
        %v6622 = vpack.c.b16 %v6038, %v6030
        %v6623 = vpack.c.b16 %v6039, %v6031
        %v6624 = vpack.c.b16 %v6040, %v6032
        %v6625 = vpack.c.b16 %v6041, %v6033
        %v6626 = vpack.c.b16 %v6050, %v6042
        %v6627 = vpack.c.b16 %v6051, %v6043
        %v6628 = vpack.c.b16 %v6052, %v6044
        %v6629 = vpack.c.b16 %v6053, %v6045
        %v6630 = vpack.c.b16 %v6054, %v6046
        %v6631 = vpack.c.b16 %v6055, %v6047
        %v6632 = vpack.c.b16 %v6056, %v6048
        %v6633 = vpack.c.b16 %v6057, %v6049
        %v6634 = vpack.c.b16 %v6066, %v6058
        %v6635 = vpack.c.b16 %v6067, %v6059
        %v6636 = vpack.c.b16 %v6068, %v6060
        %v6637 = vpack.c.b16 %v6069, %v6061
        %v6638 = vpack.c.b16 %v6070, %v6062
        %v6639 = vpack.c.b16 %v6071, %v6063
        %v6640 = vpack.c.b16 %v6072, %v6064
        %v6641 = vpack.c.b16 %v6073, %v6065
        %v6642 = vpack.c.b16 %v6082, %v6074
        %v6643 = vpack.c.b16 %v6083, %v6075
        %v6644 = vpack.c.b16 %v6084, %v6076
        %v6645 = vpack.c.b16 %v6085, %v6077
        %v6646 = vpack.c.b16 %v6086, %v6078
        %v6647 = vpack.c.b16 %v6087, %v6079
        %v6648 = vpack.c.b16 %v6088, %v6080
        %v6649 = vpack.c.b16 %v6089, %v6081
        %v6650 = vpack.c.b16 %v6098, %v6090
        %v6651 = vpack.c.b16 %v6099, %v6091
        %v6652 = vpack.c.b16 %v6100, %v6092
        %v6653 = vpack.c.b16 %v6101, %v6093
        %v6654 = vpack.c.b16 %v6102, %v6094
        %v6655 = vpack.c.b16 %v6103, %v6095
        %v6656 = vpack.c.b16 %v6104, %v6096
        %v6657 = vpack.c.b16 %v6105, %v6097
        %v6658 = vpack.c.b16 %v6114, %v6106
        %v6659 = vpack.c.b16 %v6115, %v6107
        %v6660 = vpack.c.b16 %v6116, %v6108
        %v6661 = vpack.c.b16 %v6117, %v6109
        %v6662 = vpack.c.b16 %v6118, %v6110
        %v6663 = vpack.c.b16 %v6119, %v6111
        %v6664 = vpack.c.b16 %v6120, %v6112
        %v6665 = vpack.c.b16 %v6121, %v6113
        %v6666 = vpack.c.b16 %v6130, %v6122
        %v6667 = vpack.c.b16 %v6131, %v6123
        %v6668 = vpack.c.b16 %v6132, %v6124
        %v6669 = vpack.c.b16 %v6133, %v6125
        %v6670 = vpack.c.b16 %v6134, %v6126
        %v6671 = vpack.c.b16 %v6135, %v6127
        %v6672 = vpack.c.b16 %v6136, %v6128
        %v6673 = vpack.c.b16 %v6137, %v6129
        %v6674 = vpack.c.b16 %v6146, %v6138
        %v6675 = vpack.c.b16 %v6147, %v6139
        %v6676 = vpack.c.b16 %v6148, %v6140
        %v6677 = vpack.c.b16 %v6149, %v6141
        %v6678 = vpack.c.b16 %v6150, %v6142
        %v6679 = vpack.c.b16 %v6151, %v6143
        %v6680 = vpack.c.b16 %v6152, %v6144
        %v6681 = vpack.c.b16 %v6153, %v6145
        %v6682 = vpack.c.b16 %v6162, %v6154
        %v6683 = vpack.c.b16 %v6163, %v6155
        %v6684 = vpack.c.b16 %v6164, %v6156
        %v6685 = vpack.c.b16 %v6165, %v6157
        %v6686 = vpack.c.b16 %v6166, %v6158
        %v6687 = vpack.c.b16 %v6167, %v6159
        %v6688 = vpack.c.b16 %v6168, %v6160
        %v6689 = vpack.c.b16 %v6169, %v6161
        %v6690 = vpack.c.b16 %v6178, %v6170
        %v6691 = vpack.c.b16 %v6179, %v6171
        %v6692 = vpack.c.b16 %v6180, %v6172
        %v6693 = vpack.c.b16 %v6181, %v6173
        %v6694 = vpack.c.b16 %v6182, %v6174
        %v6695 = vpack.c.b16 %v6183, %v6175
        %v6696 = vpack.c.b16 %v6184, %v6176
        %v6697 = vpack.c.b16 %v6185, %v6177
        %7210 = vmatpush.bf16.msra.mxu0 %v6242
        %7211 = vmatpush.bf16.msra.mxu0 %v6234
        %7212 = vmatpush.bf16.msra.mxu0 %v6226
        %7213 = vmatpush.bf16.msra.mxu0 %v6218
        %7214 = vmatpush.bf16.msra.mxu0 %v6210
        %7215 = vmatpush.bf16.msra.mxu0 %v6202
        %7216 = vmatpush.bf16.msra.mxu0 %v6194
        %7217 = vmatpush.bf16.msra.mxu0 %v6186
        %7218 = vmatmul.bf16.gmra.mxu0 %v4104
        %v7219 = vpop.f32.mrf.mxu0
        %v7220 = vadd.f32 %v4634, %v7219
        %v7221 = vpop.f32.mrf.mxu0
        %v7222 = vadd.f32 %v4634, %v7221
        %7223 = vmatmul.bf16.gmra.mxu0 %v4112
        %v7224 = vpop.f32.mrf.mxu0
        %v7225 = vadd.f32 %v4634, %v7224
        %v7226 = vpop.f32.mrf.mxu0
        %7227 = vdwg.mxu0
        %7228 = vmatpush.bf16.msra.mxu0 %v6306
        %7229 = vmatpush.bf16.msra.mxu0 %v6298
        %7230 = vmatpush.bf16.msra.mxu0 %v6290
        %7231 = vmatpush.bf16.msra.mxu0 %v6282
        %7232 = vmatpush.bf16.msra.mxu0 %v6274
        %7233 = vmatpush.bf16.msra.mxu0 %v6266
        %7234 = vmatpush.bf16.msra.mxu0 %v6258
        %7235 = vmatpush.bf16.msra.mxu0 %v6250
        %7236 = vmatmul.bf16.gmra.mxu0 %v4105
        %v7237 = vpop.f32.mrf.mxu0
        %v7238 = vadd.f32 %v7220, %v7237
        %v7239 = vpop.f32.mrf.mxu0
        %v7240 = vadd.f32 %v7222, %v7239
        %7241 = vmatmul.bf16.gmra.mxu0 %v4113
        %v7242 = vpop.f32.mrf.mxu0
        %v7243 = vadd.f32 %v7225, %v7242
        %v7244 = vpop.f32.mrf.mxu0
        %7245 = vdwg.mxu0
        %7246 = vmatpush.bf16.msra.mxu0 %v6370
        %7247 = vmatpush.bf16.msra.mxu0 %v6362
        %7248 = vmatpush.bf16.msra.mxu0 %v6354
        %7249 = vmatpush.bf16.msra.mxu0 %v6346
        %7250 = vmatpush.bf16.msra.mxu0 %v6338
        %7251 = vmatpush.bf16.msra.mxu0 %v6330
        %7252 = vmatpush.bf16.msra.mxu0 %v6322
        %7253 = vmatpush.bf16.msra.mxu0 %v6314
        %7254 = vmatmul.bf16.gmra.mxu0 %v4106
        %v7255 = vpop.f32.mrf.mxu0
        %v7256 = vadd.f32 %v7238, %v7255
        %v7257 = vpop.f32.mrf.mxu0
        %v7258 = vadd.f32 %v7240, %v7257
        %7259 = vmatmul.bf16.gmra.mxu0 %v4114
        %v7260 = vpop.f32.mrf.mxu0
        %v7261 = vadd.f32 %v7243, %v7260
        %v7262 = vpop.f32.mrf.mxu0
        %7263 = vdwg.mxu0
        %7264 = vmatpush.bf16.msra.mxu0 %v6434
        %7265 = vmatpush.bf16.msra.mxu0 %v6426
        %7266 = vmatpush.bf16.msra.mxu0 %v6418
        %7267 = vmatpush.bf16.msra.mxu0 %v6410
        %7268 = vmatpush.bf16.msra.mxu0 %v6402
        %7269 = vmatpush.bf16.msra.mxu0 %v6394
        %7270 = vmatpush.bf16.msra.mxu0 %v6386
        %7271 = vmatpush.bf16.msra.mxu0 %v6378
        %7272 = vmatmul.bf16.gmra.mxu0 %v4107
        %v7273 = vpop.f32.mrf.mxu0
        %v7274 = vadd.f32 %v7256, %v7273
        %v7275 = vpop.f32.mrf.mxu0
        %v7276 = vadd.f32 %v7258, %v7275
        %7277 = vmatmul.bf16.gmra.mxu0 %v4115
        %v7278 = vpop.f32.mrf.mxu0
        %v7279 = vadd.f32 %v7261, %v7278
        %v7280 = vpop.f32.mrf.mxu0
        %7281 = vdwg.mxu0
        %7282 = vmatpush.bf16.msra.mxu0 %v6498
        %7283 = vmatpush.bf16.msra.mxu0 %v6490
        %7284 = vmatpush.bf16.msra.mxu0 %v6482
        %7285 = vmatpush.bf16.msra.mxu0 %v6474
        %7286 = vmatpush.bf16.msra.mxu0 %v6466
        %7287 = vmatpush.bf16.msra.mxu0 %v6458
        %7288 = vmatpush.bf16.msra.mxu0 %v6450
        %7289 = vmatpush.bf16.msra.mxu0 %v6442
        %7290 = vmatmul.bf16.gmra.mxu0 %v4108
        %v7291 = vpop.f32.mrf.mxu0
        %v7292 = vadd.f32 %v7274, %v7291
        %v7293 = vpop.f32.mrf.mxu0
        %v7294 = vadd.f32 %v7276, %v7293
        %7295 = vmatmul.bf16.gmra.mxu0 %v4116
        %v7296 = vpop.f32.mrf.mxu0
        %v7297 = vadd.f32 %v7279, %v7296
        %v7298 = vpop.f32.mrf.mxu0
        %7299 = vdwg.mxu0
        %7300 = vmatpush.bf16.msra.mxu0 %v6562
        %7301 = vmatpush.bf16.msra.mxu0 %v6554
        %7302 = vmatpush.bf16.msra.mxu0 %v6546
        %7303 = vmatpush.bf16.msra.mxu0 %v6538
        %7304 = vmatpush.bf16.msra.mxu0 %v6530
        %7305 = vmatpush.bf16.msra.mxu0 %v6522
        %7306 = vmatpush.bf16.msra.mxu0 %v6514
        %7307 = vmatpush.bf16.msra.mxu0 %v6506
        %7308 = vmatmul.bf16.gmra.mxu0 %v4109
        %v7309 = vpop.f32.mrf.mxu0
        %v7310 = vadd.f32 %v7292, %v7309
        %v7311 = vpop.f32.mrf.mxu0
        %v7312 = vadd.f32 %v7294, %v7311
        %7313 = vmatmul.bf16.gmra.mxu0 %v4117
        %v7314 = vpop.f32.mrf.mxu0
        %v7315 = vadd.f32 %v7297, %v7314
        %v7316 = vpop.f32.mrf.mxu0
        %7317 = vdwg.mxu0
        %7318 = vmatpush.bf16.msra.mxu0 %v6626
        %7319 = vmatpush.bf16.msra.mxu0 %v6618
        %7320 = vmatpush.bf16.msra.mxu0 %v6610
        %7321 = vmatpush.bf16.msra.mxu0 %v6602
        %7322 = vmatpush.bf16.msra.mxu0 %v6594
        %7323 = vmatpush.bf16.msra.mxu0 %v6586
        %7324 = vmatpush.bf16.msra.mxu0 %v6578
        %7325 = vmatpush.bf16.msra.mxu0 %v6570
        %7326 = vmatmul.bf16.gmra.mxu0 %v4110
        %v7327 = vpop.f32.mrf.mxu0
        %v7328 = vadd.f32 %v7310, %v7327
        %v7329 = vpop.f32.mrf.mxu0
        %v7330 = vadd.f32 %v7312, %v7329
        %7331 = vmatmul.bf16.gmra.mxu0 %v4118
        %v7332 = vpop.f32.mrf.mxu0
        %v7333 = vadd.f32 %v7315, %v7332
        %v7334 = vpop.f32.mrf.mxu0
        %7335 = vdwg.mxu0
        %7336 = vmatpush.bf16.msra.mxu0 %v6690
        %7337 = vmatpush.bf16.msra.mxu0 %v6682
        %7338 = vmatpush.bf16.msra.mxu0 %v6674
        %7339 = vmatpush.bf16.msra.mxu0 %v6666
        %7340 = vmatpush.bf16.msra.mxu0 %v6658
        %7341 = vmatpush.bf16.msra.mxu0 %v6650
        %7342 = vmatpush.bf16.msra.mxu0 %v6642
        %7343 = vmatpush.bf16.msra.mxu0 %v6634
        %7344 = vmatmul.bf16.gmra.mxu0 %v4111
        %v7345 = vpop.f32.mrf.mxu0
        %v7346 = vadd.f32 %v7328, %v7345
        %v7347 = vpop.f32.mrf.mxu0
        %v7348 = vadd.f32 %v7330, %v7347
        %7349 = vmatmul.bf16.gmra.mxu0 %v4119
        %v7350 = vpop.f32.mrf.mxu0
        %v7351 = vadd.f32 %v7333, %v7350
        %v7352 = vpop.f32.mrf.mxu0
        %7353 = vdwg.mxu0
        %7354 = vmatpush.bf16.msra.mxu0 %v6243
        %7355 = vmatpush.bf16.msra.mxu0 %v6235
        %7356 = vmatpush.bf16.msra.mxu0 %v6227
        %7357 = vmatpush.bf16.msra.mxu0 %v6219
        %7358 = vmatpush.bf16.msra.mxu0 %v6211
        %7359 = vmatpush.bf16.msra.mxu0 %v6203
        %7360 = vmatpush.bf16.msra.mxu0 %v6195
        %7361 = vmatpush.bf16.msra.mxu0 %v6187
        %7362 = vmatmul.bf16.gmra.mxu0 %v4104
        %v7363 = vpop.f32.mrf.mxu0
        %v7364 = vadd.f32 %v4635, %v7363
        %v7365 = vpop.f32.mrf.mxu0
        %v7366 = vadd.f32 %v4635, %v7365
        %7367 = vmatmul.bf16.gmra.mxu0 %v4112
        %v7368 = vpop.f32.mrf.mxu0
        %v7369 = vadd.f32 %v4635, %v7368
        %v7370 = vpop.f32.mrf.mxu0
        %7371 = vdwg.mxu0
        %7372 = vmatpush.bf16.msra.mxu0 %v6307
        %7373 = vmatpush.bf16.msra.mxu0 %v6299
        %7374 = vmatpush.bf16.msra.mxu0 %v6291
        %7375 = vmatpush.bf16.msra.mxu0 %v6283
        %7376 = vmatpush.bf16.msra.mxu0 %v6275
        %7377 = vmatpush.bf16.msra.mxu0 %v6267
        %7378 = vmatpush.bf16.msra.mxu0 %v6259
        %7379 = vmatpush.bf16.msra.mxu0 %v6251
        %7380 = vmatmul.bf16.gmra.mxu0 %v4105
        %v7381 = vpop.f32.mrf.mxu0
        %v7382 = vadd.f32 %v7364, %v7381
        %v7383 = vpop.f32.mrf.mxu0
        %v7384 = vadd.f32 %v7366, %v7383
        %7385 = vmatmul.bf16.gmra.mxu0 %v4113
        %v7386 = vpop.f32.mrf.mxu0
        %v7387 = vadd.f32 %v7369, %v7386
        %v7388 = vpop.f32.mrf.mxu0
        %7389 = vdwg.mxu0
        %7390 = vmatpush.bf16.msra.mxu0 %v6371
        %7391 = vmatpush.bf16.msra.mxu0 %v6363
        %7392 = vmatpush.bf16.msra.mxu0 %v6355
        %7393 = vmatpush.bf16.msra.mxu0 %v6347
        %7394 = vmatpush.bf16.msra.mxu0 %v6339
        %7395 = vmatpush.bf16.msra.mxu0 %v6331
        %7396 = vmatpush.bf16.msra.mxu0 %v6323
        %7397 = vmatpush.bf16.msra.mxu0 %v6315
        %7398 = vmatmul.bf16.gmra.mxu0 %v4106
        %v7399 = vpop.f32.mrf.mxu0
        %v7400 = vadd.f32 %v7382, %v7399
        %v7401 = vpop.f32.mrf.mxu0
        %v7402 = vadd.f32 %v7384, %v7401
        %7403 = vmatmul.bf16.gmra.mxu0 %v4114
        %v7404 = vpop.f32.mrf.mxu0
        %v7405 = vadd.f32 %v7387, %v7404
        %v7406 = vpop.f32.mrf.mxu0
        %7407 = vdwg.mxu0
        %7408 = vmatpush.bf16.msra.mxu0 %v6435
        %7409 = vmatpush.bf16.msra.mxu0 %v6427
        %7410 = vmatpush.bf16.msra.mxu0 %v6419
        %7411 = vmatpush.bf16.msra.mxu0 %v6411
        %7412 = vmatpush.bf16.msra.mxu0 %v6403
        %7413 = vmatpush.bf16.msra.mxu0 %v6395
        %7414 = vmatpush.bf16.msra.mxu0 %v6387
        %7415 = vmatpush.bf16.msra.mxu0 %v6379
        %7416 = vmatmul.bf16.gmra.mxu0 %v4107
        %v7417 = vpop.f32.mrf.mxu0
        %v7418 = vadd.f32 %v7400, %v7417
        %v7419 = vpop.f32.mrf.mxu0
        %v7420 = vadd.f32 %v7402, %v7419
        %7421 = vmatmul.bf16.gmra.mxu0 %v4115
        %v7422 = vpop.f32.mrf.mxu0
        %v7423 = vadd.f32 %v7405, %v7422
        %v7424 = vpop.f32.mrf.mxu0
        %7425 = vdwg.mxu0
        %7426 = vmatpush.bf16.msra.mxu0 %v6499
        %7427 = vmatpush.bf16.msra.mxu0 %v6491
        %7428 = vmatpush.bf16.msra.mxu0 %v6483
        %7429 = vmatpush.bf16.msra.mxu0 %v6475
        %7430 = vmatpush.bf16.msra.mxu0 %v6467
        %7431 = vmatpush.bf16.msra.mxu0 %v6459
        %7432 = vmatpush.bf16.msra.mxu0 %v6451
        %7433 = vmatpush.bf16.msra.mxu0 %v6443
        %7434 = vmatmul.bf16.gmra.mxu0 %v4108
        %v7435 = vpop.f32.mrf.mxu0
        %v7436 = vadd.f32 %v7418, %v7435
        %v7437 = vpop.f32.mrf.mxu0
        %v7438 = vadd.f32 %v7420, %v7437
        %7439 = vmatmul.bf16.gmra.mxu0 %v4116
        %v7440 = vpop.f32.mrf.mxu0
        %v7441 = vadd.f32 %v7423, %v7440
        %v7442 = vpop.f32.mrf.mxu0
        %7443 = vdwg.mxu0
        %7444 = vmatpush.bf16.msra.mxu0 %v6563
        %7445 = vmatpush.bf16.msra.mxu0 %v6555
        %7446 = vmatpush.bf16.msra.mxu0 %v6547
        %7447 = vmatpush.bf16.msra.mxu0 %v6539
        %7448 = vmatpush.bf16.msra.mxu0 %v6531
        %7449 = vmatpush.bf16.msra.mxu0 %v6523
        %7450 = vmatpush.bf16.msra.mxu0 %v6515
        %7451 = vmatpush.bf16.msra.mxu0 %v6507
        %7452 = vmatmul.bf16.gmra.mxu0 %v4109
        %v7453 = vpop.f32.mrf.mxu0
        %v7454 = vadd.f32 %v7436, %v7453
        %v7455 = vpop.f32.mrf.mxu0
        %v7456 = vadd.f32 %v7438, %v7455
        %7457 = vmatmul.bf16.gmra.mxu0 %v4117
        %v7458 = vpop.f32.mrf.mxu0
        %v7459 = vadd.f32 %v7441, %v7458
        %v7460 = vpop.f32.mrf.mxu0
        %7461 = vdwg.mxu0
        %7462 = vmatpush.bf16.msra.mxu0 %v6627
        %7463 = vmatpush.bf16.msra.mxu0 %v6619
        %7464 = vmatpush.bf16.msra.mxu0 %v6611
        %7465 = vmatpush.bf16.msra.mxu0 %v6603
        %7466 = vmatpush.bf16.msra.mxu0 %v6595
        %7467 = vmatpush.bf16.msra.mxu0 %v6587
        %7468 = vmatpush.bf16.msra.mxu0 %v6579
        %7469 = vmatpush.bf16.msra.mxu0 %v6571
        %7470 = vmatmul.bf16.gmra.mxu0 %v4110
        %v7471 = vpop.f32.mrf.mxu0
        %v7472 = vadd.f32 %v7454, %v7471
        %v7473 = vpop.f32.mrf.mxu0
        %v7474 = vadd.f32 %v7456, %v7473
        %7475 = vmatmul.bf16.gmra.mxu0 %v4118
        %v7476 = vpop.f32.mrf.mxu0
        %v7477 = vadd.f32 %v7459, %v7476
        %v7478 = vpop.f32.mrf.mxu0
        %7479 = vdwg.mxu0
        %7480 = vmatpush.bf16.msra.mxu0 %v6691
        %7481 = vmatpush.bf16.msra.mxu0 %v6683
        %7482 = vmatpush.bf16.msra.mxu0 %v6675
        %7483 = vmatpush.bf16.msra.mxu0 %v6667
        %7484 = vmatpush.bf16.msra.mxu0 %v6659
        %7485 = vmatpush.bf16.msra.mxu0 %v6651
        %7486 = vmatpush.bf16.msra.mxu0 %v6643
        %7487 = vmatpush.bf16.msra.mxu0 %v6635
        %7488 = vmatmul.bf16.gmra.mxu0 %v4111
        %v7489 = vpop.f32.mrf.mxu0
        %v7490 = vadd.f32 %v7472, %v7489
        %v7491 = vpop.f32.mrf.mxu0
        %v7492 = vadd.f32 %v7474, %v7491
        %7493 = vmatmul.bf16.gmra.mxu0 %v4119
        %v7494 = vpop.f32.mrf.mxu0
        %v7495 = vadd.f32 %v7477, %v7494
        %v7496 = vpop.f32.mrf.mxu0
        %7497 = vdwg.mxu0
        %7498 = vmatpush.bf16.msra.mxu0 %v6244
        %7499 = vmatpush.bf16.msra.mxu0 %v6236
        %7500 = vmatpush.bf16.msra.mxu0 %v6228
        %7501 = vmatpush.bf16.msra.mxu0 %v6220
        %7502 = vmatpush.bf16.msra.mxu0 %v6212
        %7503 = vmatpush.bf16.msra.mxu0 %v6204
        %7504 = vmatpush.bf16.msra.mxu0 %v6196
        %7505 = vmatpush.bf16.msra.mxu0 %v6188
        %7506 = vmatmul.bf16.gmra.mxu0 %v4104
        %v7507 = vpop.f32.mrf.mxu0
        %v7508 = vadd.f32 %v4636, %v7507
        %v7509 = vpop.f32.mrf.mxu0
        %v7510 = vadd.f32 %v4636, %v7509
        %7511 = vmatmul.bf16.gmra.mxu0 %v4112
        %v7512 = vpop.f32.mrf.mxu0
        %v7513 = vadd.f32 %v4636, %v7512
        %v7514 = vpop.f32.mrf.mxu0
        %7515 = vdwg.mxu0
        %7516 = vmatpush.bf16.msra.mxu0 %v6308
        %7517 = vmatpush.bf16.msra.mxu0 %v6300
        %7518 = vmatpush.bf16.msra.mxu0 %v6292
        %7519 = vmatpush.bf16.msra.mxu0 %v6284
        %7520 = vmatpush.bf16.msra.mxu0 %v6276
        %7521 = vmatpush.bf16.msra.mxu0 %v6268
        %7522 = vmatpush.bf16.msra.mxu0 %v6260
        %7523 = vmatpush.bf16.msra.mxu0 %v6252
        %7524 = vmatmul.bf16.gmra.mxu0 %v4105
        %v7525 = vpop.f32.mrf.mxu0
        %v7526 = vadd.f32 %v7508, %v7525
        %v7527 = vpop.f32.mrf.mxu0
        %v7528 = vadd.f32 %v7510, %v7527
        %7529 = vmatmul.bf16.gmra.mxu0 %v4113
        %v7530 = vpop.f32.mrf.mxu0
        %v7531 = vadd.f32 %v7513, %v7530
        %v7532 = vpop.f32.mrf.mxu0
        %7533 = vdwg.mxu0
        %7534 = vmatpush.bf16.msra.mxu0 %v6372
        %7535 = vmatpush.bf16.msra.mxu0 %v6364
        %7536 = vmatpush.bf16.msra.mxu0 %v6356
        %7537 = vmatpush.bf16.msra.mxu0 %v6348
        %7538 = vmatpush.bf16.msra.mxu0 %v6340
        %7539 = vmatpush.bf16.msra.mxu0 %v6332
        %7540 = vmatpush.bf16.msra.mxu0 %v6324
        %7541 = vmatpush.bf16.msra.mxu0 %v6316
        %7542 = vmatmul.bf16.gmra.mxu0 %v4106
        %v7543 = vpop.f32.mrf.mxu0
        %v7544 = vadd.f32 %v7526, %v7543
        %v7545 = vpop.f32.mrf.mxu0
        %v7546 = vadd.f32 %v7528, %v7545
        %7547 = vmatmul.bf16.gmra.mxu0 %v4114
        %v7548 = vpop.f32.mrf.mxu0
        %v7549 = vadd.f32 %v7531, %v7548
        %v7550 = vpop.f32.mrf.mxu0
        %7551 = vdwg.mxu0
        %7552 = vmatpush.bf16.msra.mxu0 %v6436
        %7553 = vmatpush.bf16.msra.mxu0 %v6428
        %7554 = vmatpush.bf16.msra.mxu0 %v6420
        %7555 = vmatpush.bf16.msra.mxu0 %v6412
        %7556 = vmatpush.bf16.msra.mxu0 %v6404
        %7557 = vmatpush.bf16.msra.mxu0 %v6396
        %7558 = vmatpush.bf16.msra.mxu0 %v6388
        %7559 = vmatpush.bf16.msra.mxu0 %v6380
        %7560 = vmatmul.bf16.gmra.mxu0 %v4107
        %v7561 = vpop.f32.mrf.mxu0
        %v7562 = vadd.f32 %v7544, %v7561
        %v7563 = vpop.f32.mrf.mxu0
        %v7564 = vadd.f32 %v7546, %v7563
        %7565 = vmatmul.bf16.gmra.mxu0 %v4115
        %v7566 = vpop.f32.mrf.mxu0
        %v7567 = vadd.f32 %v7549, %v7566
        %v7568 = vpop.f32.mrf.mxu0
        %7569 = vdwg.mxu0
        %7570 = vmatpush.bf16.msra.mxu0 %v6500
        %7571 = vmatpush.bf16.msra.mxu0 %v6492
        %7572 = vmatpush.bf16.msra.mxu0 %v6484
        %7573 = vmatpush.bf16.msra.mxu0 %v6476
        %7574 = vmatpush.bf16.msra.mxu0 %v6468
        %7575 = vmatpush.bf16.msra.mxu0 %v6460
        %7576 = vmatpush.bf16.msra.mxu0 %v6452
        %7577 = vmatpush.bf16.msra.mxu0 %v6444
        %7578 = vmatmul.bf16.gmra.mxu0 %v4108
        %v7579 = vpop.f32.mrf.mxu0
        %v7580 = vadd.f32 %v7562, %v7579
        %v7581 = vpop.f32.mrf.mxu0
        %v7582 = vadd.f32 %v7564, %v7581
        %7583 = vmatmul.bf16.gmra.mxu0 %v4116
        %v7584 = vpop.f32.mrf.mxu0
        %v7585 = vadd.f32 %v7567, %v7584
        %v7586 = vpop.f32.mrf.mxu0
        %7587 = vdwg.mxu0
        %7588 = vmatpush.bf16.msra.mxu0 %v6564
        %7589 = vmatpush.bf16.msra.mxu0 %v6556
        %7590 = vmatpush.bf16.msra.mxu0 %v6548
        %7591 = vmatpush.bf16.msra.mxu0 %v6540
        %7592 = vmatpush.bf16.msra.mxu0 %v6532
        %7593 = vmatpush.bf16.msra.mxu0 %v6524
        %7594 = vmatpush.bf16.msra.mxu0 %v6516
        %7595 = vmatpush.bf16.msra.mxu0 %v6508
        %7596 = vmatmul.bf16.gmra.mxu0 %v4109
        %v7597 = vpop.f32.mrf.mxu0
        %v7598 = vadd.f32 %v7580, %v7597
        %v7599 = vpop.f32.mrf.mxu0
        %v7600 = vadd.f32 %v7582, %v7599
        %7601 = vmatmul.bf16.gmra.mxu0 %v4117
        %v7602 = vpop.f32.mrf.mxu0
        %v7603 = vadd.f32 %v7585, %v7602
        %v7604 = vpop.f32.mrf.mxu0
        %7605 = vdwg.mxu0
        %7606 = vmatpush.bf16.msra.mxu0 %v6628
        %7607 = vmatpush.bf16.msra.mxu0 %v6620
        %7608 = vmatpush.bf16.msra.mxu0 %v6612
        %7609 = vmatpush.bf16.msra.mxu0 %v6604
        %7610 = vmatpush.bf16.msra.mxu0 %v6596
        %7611 = vmatpush.bf16.msra.mxu0 %v6588
        %7612 = vmatpush.bf16.msra.mxu0 %v6580
        %7613 = vmatpush.bf16.msra.mxu0 %v6572
        %7614 = vmatmul.bf16.gmra.mxu0 %v4110
        %v7615 = vpop.f32.mrf.mxu0
        %v7616 = vadd.f32 %v7598, %v7615
        %v7617 = vpop.f32.mrf.mxu0
        %v7618 = vadd.f32 %v7600, %v7617
        %7619 = vmatmul.bf16.gmra.mxu0 %v4118
        %v7620 = vpop.f32.mrf.mxu0
        %v7621 = vadd.f32 %v7603, %v7620
        %v7622 = vpop.f32.mrf.mxu0
        %7623 = vdwg.mxu0
        %7624 = vmatpush.bf16.msra.mxu0 %v6692
        %7625 = vmatpush.bf16.msra.mxu0 %v6684
        %7626 = vmatpush.bf16.msra.mxu0 %v6676
        %7627 = vmatpush.bf16.msra.mxu0 %v6668
        %7628 = vmatpush.bf16.msra.mxu0 %v6660
        %7629 = vmatpush.bf16.msra.mxu0 %v6652
        %7630 = vmatpush.bf16.msra.mxu0 %v6644
        %7631 = vmatpush.bf16.msra.mxu0 %v6636
        %7632 = vmatmul.bf16.gmra.mxu0 %v4111
        %v7633 = vpop.f32.mrf.mxu0
        %v7634 = vadd.f32 %v7616, %v7633
        %v7635 = vpop.f32.mrf.mxu0
        %v7636 = vadd.f32 %v7618, %v7635
        %7637 = vmatmul.bf16.gmra.mxu0 %v4119
        %v7638 = vpop.f32.mrf.mxu0
        %v7639 = vadd.f32 %v7621, %v7638
        %v7640 = vpop.f32.mrf.mxu0
        %7641 = vdwg.mxu0
        %7642 = vmatpush.bf16.msra.mxu0 %v6245
        %7643 = vmatpush.bf16.msra.mxu0 %v6237
        %7644 = vmatpush.bf16.msra.mxu0 %v6229
        %7645 = vmatpush.bf16.msra.mxu0 %v6221
        %7646 = vmatpush.bf16.msra.mxu0 %v6213
        %7647 = vmatpush.bf16.msra.mxu0 %v6205
        %7648 = vmatpush.bf16.msra.mxu0 %v6197
        %7649 = vmatpush.bf16.msra.mxu0 %v6189
        %7650 = vmatmul.bf16.gmra.mxu0 %v4104
        %v7651 = vpop.f32.mrf.mxu0
        %v7652 = vadd.f32 %v4637, %v7651
        %v7653 = vpop.f32.mrf.mxu0
        %v7654 = vadd.f32 %v4637, %v7653
        %7655 = vmatmul.bf16.gmra.mxu0 %v4112
        %v7656 = vpop.f32.mrf.mxu0
        %v7657 = vadd.f32 %v4637, %v7656
        %v7658 = vpop.f32.mrf.mxu0
        %7659 = vdwg.mxu0
        %7660 = vmatpush.bf16.msra.mxu0 %v6309
        %7661 = vmatpush.bf16.msra.mxu0 %v6301
        %7662 = vmatpush.bf16.msra.mxu0 %v6293
        %7663 = vmatpush.bf16.msra.mxu0 %v6285
        %7664 = vmatpush.bf16.msra.mxu0 %v6277
        %7665 = vmatpush.bf16.msra.mxu0 %v6269
        %7666 = vmatpush.bf16.msra.mxu0 %v6261
        %7667 = vmatpush.bf16.msra.mxu0 %v6253
        %7668 = vmatmul.bf16.gmra.mxu0 %v4105
        %v7669 = vpop.f32.mrf.mxu0
        %v7670 = vadd.f32 %v7652, %v7669
        %v7671 = vpop.f32.mrf.mxu0
        %v7672 = vadd.f32 %v7654, %v7671
        %7673 = vmatmul.bf16.gmra.mxu0 %v4113
        %v7674 = vpop.f32.mrf.mxu0
        %v7675 = vadd.f32 %v7657, %v7674
        %v7676 = vpop.f32.mrf.mxu0
        %7677 = vdwg.mxu0
        %7678 = vmatpush.bf16.msra.mxu0 %v6373
        %7679 = vmatpush.bf16.msra.mxu0 %v6365
        %7680 = vmatpush.bf16.msra.mxu0 %v6357
        %7681 = vmatpush.bf16.msra.mxu0 %v6349
        %7682 = vmatpush.bf16.msra.mxu0 %v6341
        %7683 = vmatpush.bf16.msra.mxu0 %v6333
        %7684 = vmatpush.bf16.msra.mxu0 %v6325
        %7685 = vmatpush.bf16.msra.mxu0 %v6317
        %7686 = vmatmul.bf16.gmra.mxu0 %v4106
        %v7687 = vpop.f32.mrf.mxu0
        %v7688 = vadd.f32 %v7670, %v7687
        %v7689 = vpop.f32.mrf.mxu0
        %v7690 = vadd.f32 %v7672, %v7689
        %7691 = vmatmul.bf16.gmra.mxu0 %v4114
        %v7692 = vpop.f32.mrf.mxu0
        %v7693 = vadd.f32 %v7675, %v7692
        %v7694 = vpop.f32.mrf.mxu0
        %7695 = vdwg.mxu0
        %7696 = vmatpush.bf16.msra.mxu0 %v6437
        %7697 = vmatpush.bf16.msra.mxu0 %v6429
        %7698 = vmatpush.bf16.msra.mxu0 %v6421
        %7699 = vmatpush.bf16.msra.mxu0 %v6413
        %7700 = vmatpush.bf16.msra.mxu0 %v6405
        %7701 = vmatpush.bf16.msra.mxu0 %v6397
        %7702 = vmatpush.bf16.msra.mxu0 %v6389
        %7703 = vmatpush.bf16.msra.mxu0 %v6381
        %7704 = vmatmul.bf16.gmra.mxu0 %v4107
        %v7705 = vpop.f32.mrf.mxu0
        %v7706 = vadd.f32 %v7688, %v7705
        %v7707 = vpop.f32.mrf.mxu0
        %v7708 = vadd.f32 %v7690, %v7707
        %7709 = vmatmul.bf16.gmra.mxu0 %v4115
        %v7710 = vpop.f32.mrf.mxu0
        %v7711 = vadd.f32 %v7693, %v7710
        %v7712 = vpop.f32.mrf.mxu0
        %7713 = vdwg.mxu0
        %7714 = vmatpush.bf16.msra.mxu0 %v6501
        %7715 = vmatpush.bf16.msra.mxu0 %v6493
        %7716 = vmatpush.bf16.msra.mxu0 %v6485
        %7717 = vmatpush.bf16.msra.mxu0 %v6477
        %7718 = vmatpush.bf16.msra.mxu0 %v6469
        %7719 = vmatpush.bf16.msra.mxu0 %v6461
        %7720 = vmatpush.bf16.msra.mxu0 %v6453
        %7721 = vmatpush.bf16.msra.mxu0 %v6445
        %7722 = vmatmul.bf16.gmra.mxu0 %v4108
        %v7723 = vpop.f32.mrf.mxu0
        %v7724 = vadd.f32 %v7706, %v7723
        %v7725 = vpop.f32.mrf.mxu0
        %v7726 = vadd.f32 %v7708, %v7725
        %7727 = vmatmul.bf16.gmra.mxu0 %v4116
        %v7728 = vpop.f32.mrf.mxu0
        %v7729 = vadd.f32 %v7711, %v7728
        %v7730 = vpop.f32.mrf.mxu0
        %7731 = vdwg.mxu0
        %7732 = vmatpush.bf16.msra.mxu0 %v6565
        %7733 = vmatpush.bf16.msra.mxu0 %v6557
        %7734 = vmatpush.bf16.msra.mxu0 %v6549
        %7735 = vmatpush.bf16.msra.mxu0 %v6541
        %7736 = vmatpush.bf16.msra.mxu0 %v6533
        %7737 = vmatpush.bf16.msra.mxu0 %v6525
        %7738 = vmatpush.bf16.msra.mxu0 %v6517
        %7739 = vmatpush.bf16.msra.mxu0 %v6509
        %7740 = vmatmul.bf16.gmra.mxu0 %v4109
        %v7741 = vpop.f32.mrf.mxu0
        %v7742 = vadd.f32 %v7724, %v7741
        %v7743 = vpop.f32.mrf.mxu0
        %v7744 = vadd.f32 %v7726, %v7743
        %7745 = vmatmul.bf16.gmra.mxu0 %v4117
        %v7746 = vpop.f32.mrf.mxu0
        %v7747 = vadd.f32 %v7729, %v7746
        %v7748 = vpop.f32.mrf.mxu0
        %7749 = vdwg.mxu0
        %7750 = vmatpush.bf16.msra.mxu0 %v6629
        %7751 = vmatpush.bf16.msra.mxu0 %v6621
        %7752 = vmatpush.bf16.msra.mxu0 %v6613
        %7753 = vmatpush.bf16.msra.mxu0 %v6605
        %7754 = vmatpush.bf16.msra.mxu0 %v6597
        %7755 = vmatpush.bf16.msra.mxu0 %v6589
        %7756 = vmatpush.bf16.msra.mxu0 %v6581
        %7757 = vmatpush.bf16.msra.mxu0 %v6573
        %7758 = vmatmul.bf16.gmra.mxu0 %v4110
        %v7759 = vpop.f32.mrf.mxu0
        %v7760 = vadd.f32 %v7742, %v7759
        %v7761 = vpop.f32.mrf.mxu0
        %v7762 = vadd.f32 %v7744, %v7761
        %7763 = vmatmul.bf16.gmra.mxu0 %v4118
        %v7764 = vpop.f32.mrf.mxu0
        %v7765 = vadd.f32 %v7747, %v7764
        %v7766 = vpop.f32.mrf.mxu0
        %7767 = vdwg.mxu0
        %7768 = vmatpush.bf16.msra.mxu0 %v6693
        %7769 = vmatpush.bf16.msra.mxu0 %v6685
        %7770 = vmatpush.bf16.msra.mxu0 %v6677
        %7771 = vmatpush.bf16.msra.mxu0 %v6669
        %7772 = vmatpush.bf16.msra.mxu0 %v6661
        %7773 = vmatpush.bf16.msra.mxu0 %v6653
        %7774 = vmatpush.bf16.msra.mxu0 %v6645
        %7775 = vmatpush.bf16.msra.mxu0 %v6637
        %7776 = vmatmul.bf16.gmra.mxu0 %v4111
        %v7777 = vpop.f32.mrf.mxu0
        %v7778 = vadd.f32 %v7760, %v7777
        %v7779 = vpop.f32.mrf.mxu0
        %v7780 = vadd.f32 %v7762, %v7779
        %7781 = vmatmul.bf16.gmra.mxu0 %v4119
        %v7782 = vpop.f32.mrf.mxu0
        %v7783 = vadd.f32 %v7765, %v7782
        %v7784 = vpop.f32.mrf.mxu0
        %7785 = vdwg.mxu0
        %7786 = vmatpush.bf16.msra.mxu0 %v6246
        %7787 = vmatpush.bf16.msra.mxu0 %v6238
        %7788 = vmatpush.bf16.msra.mxu0 %v6230
        %7789 = vmatpush.bf16.msra.mxu0 %v6222
        %7790 = vmatpush.bf16.msra.mxu0 %v6214
        %7791 = vmatpush.bf16.msra.mxu0 %v6206
        %7792 = vmatpush.bf16.msra.mxu0 %v6198
        %7793 = vmatpush.bf16.msra.mxu0 %v6190
        %7794 = vmatmul.bf16.gmra.mxu0 %v4104
        %v7795 = vpop.f32.mrf.mxu0
        %v7796 = vadd.f32 %v4638, %v7795
        %v7797 = vpop.f32.mrf.mxu0
        %v7798 = vadd.f32 %v4638, %v7797
        %7799 = vmatmul.bf16.gmra.mxu0 %v4112
        %v7800 = vpop.f32.mrf.mxu0
        %v7801 = vadd.f32 %v4638, %v7800
        %v7802 = vpop.f32.mrf.mxu0
        %7803 = vdwg.mxu0
        %7804 = vmatpush.bf16.msra.mxu0 %v6310
        %7805 = vmatpush.bf16.msra.mxu0 %v6302
        %7806 = vmatpush.bf16.msra.mxu0 %v6294
        %7807 = vmatpush.bf16.msra.mxu0 %v6286
        %7808 = vmatpush.bf16.msra.mxu0 %v6278
        %7809 = vmatpush.bf16.msra.mxu0 %v6270
        %7810 = vmatpush.bf16.msra.mxu0 %v6262
        %7811 = vmatpush.bf16.msra.mxu0 %v6254
        %7812 = vmatmul.bf16.gmra.mxu0 %v4105
        %v7813 = vpop.f32.mrf.mxu0
        %v7814 = vadd.f32 %v7796, %v7813
        %v7815 = vpop.f32.mrf.mxu0
        %v7816 = vadd.f32 %v7798, %v7815
        %7817 = vmatmul.bf16.gmra.mxu0 %v4113
        %v7818 = vpop.f32.mrf.mxu0
        %v7819 = vadd.f32 %v7801, %v7818
        %v7820 = vpop.f32.mrf.mxu0
        %7821 = vdwg.mxu0
        %7822 = vmatpush.bf16.msra.mxu0 %v6374
        %7823 = vmatpush.bf16.msra.mxu0 %v6366
        %7824 = vmatpush.bf16.msra.mxu0 %v6358
        %7825 = vmatpush.bf16.msra.mxu0 %v6350
        %7826 = vmatpush.bf16.msra.mxu0 %v6342
        %7827 = vmatpush.bf16.msra.mxu0 %v6334
        %7828 = vmatpush.bf16.msra.mxu0 %v6326
        %7829 = vmatpush.bf16.msra.mxu0 %v6318
        %7830 = vmatmul.bf16.gmra.mxu0 %v4106
        %v7831 = vpop.f32.mrf.mxu0
        %v7832 = vadd.f32 %v7814, %v7831
        %v7833 = vpop.f32.mrf.mxu0
        %v7834 = vadd.f32 %v7816, %v7833
        %7835 = vmatmul.bf16.gmra.mxu0 %v4114
        %v7836 = vpop.f32.mrf.mxu0
        %v7837 = vadd.f32 %v7819, %v7836
        %v7838 = vpop.f32.mrf.mxu0
        %7839 = vdwg.mxu0
        %7840 = vmatpush.bf16.msra.mxu0 %v6438
        %7841 = vmatpush.bf16.msra.mxu0 %v6430
        %7842 = vmatpush.bf16.msra.mxu0 %v6422
        %7843 = vmatpush.bf16.msra.mxu0 %v6414
        %7844 = vmatpush.bf16.msra.mxu0 %v6406
        %7845 = vmatpush.bf16.msra.mxu0 %v6398
        %7846 = vmatpush.bf16.msra.mxu0 %v6390
        %7847 = vmatpush.bf16.msra.mxu0 %v6382
        %7848 = vmatmul.bf16.gmra.mxu0 %v4107
        %v7849 = vpop.f32.mrf.mxu0
        %v7850 = vadd.f32 %v7832, %v7849
        %v7851 = vpop.f32.mrf.mxu0
        %v7852 = vadd.f32 %v7834, %v7851
        %7853 = vmatmul.bf16.gmra.mxu0 %v4115
        %v7854 = vpop.f32.mrf.mxu0
        %v7855 = vadd.f32 %v7837, %v7854
        %v7856 = vpop.f32.mrf.mxu0
        %7857 = vdwg.mxu0
        %7858 = vmatpush.bf16.msra.mxu0 %v6502
        %7859 = vmatpush.bf16.msra.mxu0 %v6494
        %7860 = vmatpush.bf16.msra.mxu0 %v6486
        %7861 = vmatpush.bf16.msra.mxu0 %v6478
        %7862 = vmatpush.bf16.msra.mxu0 %v6470
        %7863 = vmatpush.bf16.msra.mxu0 %v6462
        %7864 = vmatpush.bf16.msra.mxu0 %v6454
        %7865 = vmatpush.bf16.msra.mxu0 %v6446
        %7866 = vmatmul.bf16.gmra.mxu0 %v4108
        %v7867 = vpop.f32.mrf.mxu0
        %v7868 = vadd.f32 %v7850, %v7867
        %v7869 = vpop.f32.mrf.mxu0
        %v7870 = vadd.f32 %v7852, %v7869
        %7871 = vmatmul.bf16.gmra.mxu0 %v4116
        %v7872 = vpop.f32.mrf.mxu0
        %v7873 = vadd.f32 %v7855, %v7872
        %v7874 = vpop.f32.mrf.mxu0
        %7875 = vdwg.mxu0
        %7876 = vmatpush.bf16.msra.mxu0 %v6566
        %7877 = vmatpush.bf16.msra.mxu0 %v6558
        %7878 = vmatpush.bf16.msra.mxu0 %v6550
        %7879 = vmatpush.bf16.msra.mxu0 %v6542
        %7880 = vmatpush.bf16.msra.mxu0 %v6534
        %7881 = vmatpush.bf16.msra.mxu0 %v6526
        %7882 = vmatpush.bf16.msra.mxu0 %v6518
        %7883 = vmatpush.bf16.msra.mxu0 %v6510
        %7884 = vmatmul.bf16.gmra.mxu0 %v4109
        %v7885 = vpop.f32.mrf.mxu0
        %v7886 = vadd.f32 %v7868, %v7885
        %v7887 = vpop.f32.mrf.mxu0
        %v7888 = vadd.f32 %v7870, %v7887
        %7889 = vmatmul.bf16.gmra.mxu0 %v4117
        %v7890 = vpop.f32.mrf.mxu0
        %v7891 = vadd.f32 %v7873, %v7890
        %v7892 = vpop.f32.mrf.mxu0
        %7893 = vdwg.mxu0
        %7894 = vmatpush.bf16.msra.mxu0 %v6630
        %7895 = vmatpush.bf16.msra.mxu0 %v6622
        %7896 = vmatpush.bf16.msra.mxu0 %v6614
        %7897 = vmatpush.bf16.msra.mxu0 %v6606
        %7898 = vmatpush.bf16.msra.mxu0 %v6598
        %7899 = vmatpush.bf16.msra.mxu0 %v6590
        %7900 = vmatpush.bf16.msra.mxu0 %v6582
        %7901 = vmatpush.bf16.msra.mxu0 %v6574
        %7902 = vmatmul.bf16.gmra.mxu0 %v4110
        %v7903 = vpop.f32.mrf.mxu0
        %v7904 = vadd.f32 %v7886, %v7903
        %v7905 = vpop.f32.mrf.mxu0
        %v7906 = vadd.f32 %v7888, %v7905
        %7907 = vmatmul.bf16.gmra.mxu0 %v4118
        %v7908 = vpop.f32.mrf.mxu0
        %v7909 = vadd.f32 %v7891, %v7908
        %v7910 = vpop.f32.mrf.mxu0
        %7911 = vdwg.mxu0
        %7912 = vmatpush.bf16.msra.mxu0 %v6694
        %7913 = vmatpush.bf16.msra.mxu0 %v6686
        %7914 = vmatpush.bf16.msra.mxu0 %v6678
        %7915 = vmatpush.bf16.msra.mxu0 %v6670
        %7916 = vmatpush.bf16.msra.mxu0 %v6662
        %7917 = vmatpush.bf16.msra.mxu0 %v6654
        %7918 = vmatpush.bf16.msra.mxu0 %v6646
        %7919 = vmatpush.bf16.msra.mxu0 %v6638
        %7920 = vmatmul.bf16.gmra.mxu0 %v4111
        %v7921 = vpop.f32.mrf.mxu0
        %v7922 = vadd.f32 %v7904, %v7921
        %v7923 = vpop.f32.mrf.mxu0
        %v7924 = vadd.f32 %v7906, %v7923
        %7925 = vmatmul.bf16.gmra.mxu0 %v4119
        %v7926 = vpop.f32.mrf.mxu0
        %v7927 = vadd.f32 %v7909, %v7926
        %v7928 = vpop.f32.mrf.mxu0
        %7929 = vdwg.mxu0
        %7930 = vmatpush.bf16.msra.mxu0 %v6247
        %7931 = vmatpush.bf16.msra.mxu0 %v6239
        %7932 = vmatpush.bf16.msra.mxu0 %v6231
        %7933 = vmatpush.bf16.msra.mxu0 %v6223
        %7934 = vmatpush.bf16.msra.mxu0 %v6215
        %7935 = vmatpush.bf16.msra.mxu0 %v6207
        %7936 = vmatpush.bf16.msra.mxu0 %v6199
        %7937 = vmatpush.bf16.msra.mxu0 %v6191
        %7938 = vmatmul.bf16.gmra.mxu0 %v4104
        %v7939 = vpop.f32.mrf.mxu0
        %v7940 = vadd.f32 %v4639, %v7939
        %v7941 = vpop.f32.mrf.mxu0
        %v7942 = vadd.f32 %v4639, %v7941
        %7943 = vmatmul.bf16.gmra.mxu0 %v4112
        %v7944 = vpop.f32.mrf.mxu0
        %v7945 = vadd.f32 %v4639, %v7944
        %v7946 = vpop.f32.mrf.mxu0
        %7947 = vdwg.mxu0
        %7948 = vmatpush.bf16.msra.mxu0 %v6311
        %7949 = vmatpush.bf16.msra.mxu0 %v6303
        %7950 = vmatpush.bf16.msra.mxu0 %v6295
        %7951 = vmatpush.bf16.msra.mxu0 %v6287
        %7952 = vmatpush.bf16.msra.mxu0 %v6279
        %7953 = vmatpush.bf16.msra.mxu0 %v6271
        %7954 = vmatpush.bf16.msra.mxu0 %v6263
        %7955 = vmatpush.bf16.msra.mxu0 %v6255
        %7956 = vmatmul.bf16.gmra.mxu0 %v4105
        %v7957 = vpop.f32.mrf.mxu0
        %v7958 = vadd.f32 %v7940, %v7957
        %v7959 = vpop.f32.mrf.mxu0
        %v7960 = vadd.f32 %v7942, %v7959
        %7961 = vmatmul.bf16.gmra.mxu0 %v4113
        %v7962 = vpop.f32.mrf.mxu0
        %v7963 = vadd.f32 %v7945, %v7962
        %v7964 = vpop.f32.mrf.mxu0
        %7965 = vdwg.mxu0
        %7966 = vmatpush.bf16.msra.mxu0 %v6375
        %7967 = vmatpush.bf16.msra.mxu0 %v6367
        %7968 = vmatpush.bf16.msra.mxu0 %v6359
        %7969 = vmatpush.bf16.msra.mxu0 %v6351
        %7970 = vmatpush.bf16.msra.mxu0 %v6343
        %7971 = vmatpush.bf16.msra.mxu0 %v6335
        %7972 = vmatpush.bf16.msra.mxu0 %v6327
        %7973 = vmatpush.bf16.msra.mxu0 %v6319
        %7974 = vmatmul.bf16.gmra.mxu0 %v4106
        %v7975 = vpop.f32.mrf.mxu0
        %v7976 = vadd.f32 %v7958, %v7975
        %v7977 = vpop.f32.mrf.mxu0
        %v7978 = vadd.f32 %v7960, %v7977
        %7979 = vmatmul.bf16.gmra.mxu0 %v4114
        %v7980 = vpop.f32.mrf.mxu0
        %v7981 = vadd.f32 %v7963, %v7980
        %v7982 = vpop.f32.mrf.mxu0
        %7983 = vdwg.mxu0
        %7984 = vmatpush.bf16.msra.mxu0 %v6439
        %7985 = vmatpush.bf16.msra.mxu0 %v6431
        %7986 = vmatpush.bf16.msra.mxu0 %v6423
        %7987 = vmatpush.bf16.msra.mxu0 %v6415
        %7988 = vmatpush.bf16.msra.mxu0 %v6407
        %7989 = vmatpush.bf16.msra.mxu0 %v6399
        %7990 = vmatpush.bf16.msra.mxu0 %v6391
        %7991 = vmatpush.bf16.msra.mxu0 %v6383
        %7992 = vmatmul.bf16.gmra.mxu0 %v4107
        %v7993 = vpop.f32.mrf.mxu0
        %v7994 = vadd.f32 %v7976, %v7993
        %v7995 = vpop.f32.mrf.mxu0
        %v7996 = vadd.f32 %v7978, %v7995
        %7997 = vmatmul.bf16.gmra.mxu0 %v4115
        %v7998 = vpop.f32.mrf.mxu0
        %v7999 = vadd.f32 %v7981, %v7998
        %v8000 = vpop.f32.mrf.mxu0
        %8001 = vdwg.mxu0
        %8002 = vmatpush.bf16.msra.mxu0 %v6503
        %8003 = vmatpush.bf16.msra.mxu0 %v6495
        %8004 = vmatpush.bf16.msra.mxu0 %v6487
        %8005 = vmatpush.bf16.msra.mxu0 %v6479
        %8006 = vmatpush.bf16.msra.mxu0 %v6471
        %8007 = vmatpush.bf16.msra.mxu0 %v6463
        %8008 = vmatpush.bf16.msra.mxu0 %v6455
        %8009 = vmatpush.bf16.msra.mxu0 %v6447
        %8010 = vmatmul.bf16.gmra.mxu0 %v4108
        %v8011 = vpop.f32.mrf.mxu0
        %v8012 = vadd.f32 %v7994, %v8011
        %v8013 = vpop.f32.mrf.mxu0
        %v8014 = vadd.f32 %v7996, %v8013
        %8015 = vmatmul.bf16.gmra.mxu0 %v4116
        %v8016 = vpop.f32.mrf.mxu0
        %v8017 = vadd.f32 %v7999, %v8016
        %v8018 = vpop.f32.mrf.mxu0
        %8019 = vdwg.mxu0
        %8020 = vmatpush.bf16.msra.mxu0 %v6567
        %8021 = vmatpush.bf16.msra.mxu0 %v6559
        %8022 = vmatpush.bf16.msra.mxu0 %v6551
        %8023 = vmatpush.bf16.msra.mxu0 %v6543
        %8024 = vmatpush.bf16.msra.mxu0 %v6535
        %8025 = vmatpush.bf16.msra.mxu0 %v6527
        %8026 = vmatpush.bf16.msra.mxu0 %v6519
        %8027 = vmatpush.bf16.msra.mxu0 %v6511
        %8028 = vmatmul.bf16.gmra.mxu0 %v4109
        %v8029 = vpop.f32.mrf.mxu0
        %v8030 = vadd.f32 %v8012, %v8029
        %v8031 = vpop.f32.mrf.mxu0
        %v8032 = vadd.f32 %v8014, %v8031
        %8033 = vmatmul.bf16.gmra.mxu0 %v4117
        %v8034 = vpop.f32.mrf.mxu0
        %v8035 = vadd.f32 %v8017, %v8034
        %v8036 = vpop.f32.mrf.mxu0
        %8037 = vdwg.mxu0
        %8038 = vmatpush.bf16.msra.mxu0 %v6631
        %8039 = vmatpush.bf16.msra.mxu0 %v6623
        %8040 = vmatpush.bf16.msra.mxu0 %v6615
        %8041 = vmatpush.bf16.msra.mxu0 %v6607
        %8042 = vmatpush.bf16.msra.mxu0 %v6599
        %8043 = vmatpush.bf16.msra.mxu0 %v6591
        %8044 = vmatpush.bf16.msra.mxu0 %v6583
        %8045 = vmatpush.bf16.msra.mxu0 %v6575
        %8046 = vmatmul.bf16.gmra.mxu0 %v4110
        %v8047 = vpop.f32.mrf.mxu0
        %v8048 = vadd.f32 %v8030, %v8047
        %v8049 = vpop.f32.mrf.mxu0
        %v8050 = vadd.f32 %v8032, %v8049
        %8051 = vmatmul.bf16.gmra.mxu0 %v4118
        %v8052 = vpop.f32.mrf.mxu0
        %v8053 = vadd.f32 %v8035, %v8052
        %v8054 = vpop.f32.mrf.mxu0
        %8055 = vdwg.mxu0
        %8056 = vmatpush.bf16.msra.mxu0 %v6695
        %8057 = vmatpush.bf16.msra.mxu0 %v6687
        %8058 = vmatpush.bf16.msra.mxu0 %v6679
        %8059 = vmatpush.bf16.msra.mxu0 %v6671
        %8060 = vmatpush.bf16.msra.mxu0 %v6663
        %8061 = vmatpush.bf16.msra.mxu0 %v6655
        %8062 = vmatpush.bf16.msra.mxu0 %v6647
        %8063 = vmatpush.bf16.msra.mxu0 %v6639
        %8064 = vmatmul.bf16.gmra.mxu0 %v4111
        %v8065 = vpop.f32.mrf.mxu0
        %v8066 = vadd.f32 %v8048, %v8065
        %v8067 = vpop.f32.mrf.mxu0
        %v8068 = vadd.f32 %v8050, %v8067
        %8069 = vmatmul.bf16.gmra.mxu0 %v4119
        %v8070 = vpop.f32.mrf.mxu0
        %v8071 = vadd.f32 %v8053, %v8070
        %v8072 = vpop.f32.mrf.mxu0
        %8073 = vdwg.mxu0
        %8074 = vmatpush.bf16.msra.mxu0 %v6248
        %8075 = vmatpush.bf16.msra.mxu0 %v6240
        %8076 = vmatpush.bf16.msra.mxu0 %v6232
        %8077 = vmatpush.bf16.msra.mxu0 %v6224
        %8078 = vmatpush.bf16.msra.mxu0 %v6216
        %8079 = vmatpush.bf16.msra.mxu0 %v6208
        %8080 = vmatpush.bf16.msra.mxu0 %v6200
        %8081 = vmatpush.bf16.msra.mxu0 %v6192
        %8082 = vmatmul.bf16.gmra.mxu0 %v4104
        %v8083 = vpop.f32.mrf.mxu0
        %v8084 = vadd.f32 %v4640, %v8083
        %v8085 = vpop.f32.mrf.mxu0
        %v8086 = vadd.f32 %v4640, %v8085
        %8087 = vmatmul.bf16.gmra.mxu0 %v4112
        %v8088 = vpop.f32.mrf.mxu0
        %v8089 = vadd.f32 %v4640, %v8088
        %v8090 = vpop.f32.mrf.mxu0
        %8091 = vdwg.mxu0
        %8092 = vmatpush.bf16.msra.mxu0 %v6312
        %8093 = vmatpush.bf16.msra.mxu0 %v6304
        %8094 = vmatpush.bf16.msra.mxu0 %v6296
        %8095 = vmatpush.bf16.msra.mxu0 %v6288
        %8096 = vmatpush.bf16.msra.mxu0 %v6280
        %8097 = vmatpush.bf16.msra.mxu0 %v6272
        %8098 = vmatpush.bf16.msra.mxu0 %v6264
        %8099 = vmatpush.bf16.msra.mxu0 %v6256
        %8100 = vmatmul.bf16.gmra.mxu0 %v4105
        %v8101 = vpop.f32.mrf.mxu0
        %v8102 = vadd.f32 %v8084, %v8101
        %v8103 = vpop.f32.mrf.mxu0
        %v8104 = vadd.f32 %v8086, %v8103
        %8105 = vmatmul.bf16.gmra.mxu0 %v4113
        %v8106 = vpop.f32.mrf.mxu0
        %v8107 = vadd.f32 %v8089, %v8106
        %v8108 = vpop.f32.mrf.mxu0
        %8109 = vdwg.mxu0
        %8110 = vmatpush.bf16.msra.mxu0 %v6376
        %8111 = vmatpush.bf16.msra.mxu0 %v6368
        %8112 = vmatpush.bf16.msra.mxu0 %v6360
        %8113 = vmatpush.bf16.msra.mxu0 %v6352
        %8114 = vmatpush.bf16.msra.mxu0 %v6344
        %8115 = vmatpush.bf16.msra.mxu0 %v6336
        %8116 = vmatpush.bf16.msra.mxu0 %v6328
        %8117 = vmatpush.bf16.msra.mxu0 %v6320
        %8118 = vmatmul.bf16.gmra.mxu0 %v4106
        %v8119 = vpop.f32.mrf.mxu0
        %v8120 = vadd.f32 %v8102, %v8119
        %v8121 = vpop.f32.mrf.mxu0
        %v8122 = vadd.f32 %v8104, %v8121
        %8123 = vmatmul.bf16.gmra.mxu0 %v4114
        %v8124 = vpop.f32.mrf.mxu0
        %v8125 = vadd.f32 %v8107, %v8124
        %v8126 = vpop.f32.mrf.mxu0
        %8127 = vdwg.mxu0
        %8128 = vmatpush.bf16.msra.mxu0 %v6440
        %8129 = vmatpush.bf16.msra.mxu0 %v6432
        %8130 = vmatpush.bf16.msra.mxu0 %v6424
        %8131 = vmatpush.bf16.msra.mxu0 %v6416
        %8132 = vmatpush.bf16.msra.mxu0 %v6408
        %8133 = vmatpush.bf16.msra.mxu0 %v6400
        %8134 = vmatpush.bf16.msra.mxu0 %v6392
        %8135 = vmatpush.bf16.msra.mxu0 %v6384
        %8136 = vmatmul.bf16.gmra.mxu0 %v4107
        %v8137 = vpop.f32.mrf.mxu0
        %v8138 = vadd.f32 %v8120, %v8137
        %v8139 = vpop.f32.mrf.mxu0
        %v8140 = vadd.f32 %v8122, %v8139
        %8141 = vmatmul.bf16.gmra.mxu0 %v4115
        %v8142 = vpop.f32.mrf.mxu0
        %v8143 = vadd.f32 %v8125, %v8142
        %v8144 = vpop.f32.mrf.mxu0
        %8145 = vdwg.mxu0
        %8146 = vmatpush.bf16.msra.mxu0 %v6504
        %8147 = vmatpush.bf16.msra.mxu0 %v6496
        %8148 = vmatpush.bf16.msra.mxu0 %v6488
        %8149 = vmatpush.bf16.msra.mxu0 %v6480
        %8150 = vmatpush.bf16.msra.mxu0 %v6472
        %8151 = vmatpush.bf16.msra.mxu0 %v6464
        %8152 = vmatpush.bf16.msra.mxu0 %v6456
        %8153 = vmatpush.bf16.msra.mxu0 %v6448
        %8154 = vmatmul.bf16.gmra.mxu0 %v4108
        %v8155 = vpop.f32.mrf.mxu0
        %v8156 = vadd.f32 %v8138, %v8155
        %v8157 = vpop.f32.mrf.mxu0
        %v8158 = vadd.f32 %v8140, %v8157
        %8159 = vmatmul.bf16.gmra.mxu0 %v4116
        %v8160 = vpop.f32.mrf.mxu0
        %v8161 = vadd.f32 %v8143, %v8160
        %v8162 = vpop.f32.mrf.mxu0
        %8163 = vdwg.mxu0
        %8164 = vmatpush.bf16.msra.mxu0 %v6568
        %8165 = vmatpush.bf16.msra.mxu0 %v6560
        %8166 = vmatpush.bf16.msra.mxu0 %v6552
        %8167 = vmatpush.bf16.msra.mxu0 %v6544
        %8168 = vmatpush.bf16.msra.mxu0 %v6536
        %8169 = vmatpush.bf16.msra.mxu0 %v6528
        %8170 = vmatpush.bf16.msra.mxu0 %v6520
        %8171 = vmatpush.bf16.msra.mxu0 %v6512
        %8172 = vmatmul.bf16.gmra.mxu0 %v4109
        %v8173 = vpop.f32.mrf.mxu0
        %v8174 = vadd.f32 %v8156, %v8173
        %v8175 = vpop.f32.mrf.mxu0
        %v8176 = vadd.f32 %v8158, %v8175
        %8177 = vmatmul.bf16.gmra.mxu0 %v4117
        %v8178 = vpop.f32.mrf.mxu0
        %v8179 = vadd.f32 %v8161, %v8178
        %v8180 = vpop.f32.mrf.mxu0
        %8181 = vdwg.mxu0
        %8182 = vmatpush.bf16.msra.mxu0 %v6632
        %8183 = vmatpush.bf16.msra.mxu0 %v6624
        %8184 = vmatpush.bf16.msra.mxu0 %v6616
        %8185 = vmatpush.bf16.msra.mxu0 %v6608
        %8186 = vmatpush.bf16.msra.mxu0 %v6600
        %8187 = vmatpush.bf16.msra.mxu0 %v6592
        %8188 = vmatpush.bf16.msra.mxu0 %v6584
        %8189 = vmatpush.bf16.msra.mxu0 %v6576
        %8190 = vmatmul.bf16.gmra.mxu0 %v4110
        %v8191 = vpop.f32.mrf.mxu0
        %v8192 = vadd.f32 %v8174, %v8191
        %v8193 = vpop.f32.mrf.mxu0
        %v8194 = vadd.f32 %v8176, %v8193
        %8195 = vmatmul.bf16.gmra.mxu0 %v4118
        %v8196 = vpop.f32.mrf.mxu0
        %v8197 = vadd.f32 %v8179, %v8196
        %v8198 = vpop.f32.mrf.mxu0
        %8199 = vdwg.mxu0
        %8200 = vmatpush.bf16.msra.mxu0 %v6696
        %8201 = vmatpush.bf16.msra.mxu0 %v6688
        %8202 = vmatpush.bf16.msra.mxu0 %v6680
        %8203 = vmatpush.bf16.msra.mxu0 %v6672
        %8204 = vmatpush.bf16.msra.mxu0 %v6664
        %8205 = vmatpush.bf16.msra.mxu0 %v6656
        %8206 = vmatpush.bf16.msra.mxu0 %v6648
        %8207 = vmatpush.bf16.msra.mxu0 %v6640
        %8208 = vmatmul.bf16.gmra.mxu0 %v4111
        %v8209 = vpop.f32.mrf.mxu0
        %v8210 = vadd.f32 %v8192, %v8209
        %v8211 = vpop.f32.mrf.mxu0
        %v8212 = vadd.f32 %v8194, %v8211
        %8213 = vmatmul.bf16.gmra.mxu0 %v4119
        %v8214 = vpop.f32.mrf.mxu0
        %v8215 = vadd.f32 %v8197, %v8214
        %v8216 = vpop.f32.mrf.mxu0
        %8217 = vdwg.mxu0
        %8218 = vmatpush.bf16.msra.mxu0 %v6249
        %8219 = vmatpush.bf16.msra.mxu0 %v6241
        %8220 = vmatpush.bf16.msra.mxu0 %v6233
        %8221 = vmatpush.bf16.msra.mxu0 %v6225
        %8222 = vmatpush.bf16.msra.mxu0 %v6217
        %8223 = vmatpush.bf16.msra.mxu0 %v6209
        %8224 = vmatpush.bf16.msra.mxu0 %v6201
        %8225 = vmatpush.bf16.msra.mxu0 %v6193
        %8226 = vmatmul.bf16.gmra.mxu0 %v4104
        %v8227 = vpop.f32.mrf.mxu0
        %v8228 = vadd.f32 %v4641, %v8227
        %v8229 = vpop.f32.mrf.mxu0
        %v8230 = vadd.f32 %v4641, %v8229
        %8231 = vmatmul.bf16.gmra.mxu0 %v4112
        %v8232 = vpop.f32.mrf.mxu0
        %v8233 = vadd.f32 %v4641, %v8232
        %v8234 = vpop.f32.mrf.mxu0
        %8235 = vdwg.mxu0
        %8236 = vmatpush.bf16.msra.mxu0 %v6313
        %8237 = vmatpush.bf16.msra.mxu0 %v6305
        %8238 = vmatpush.bf16.msra.mxu0 %v6297
        %8239 = vmatpush.bf16.msra.mxu0 %v6289
        %8240 = vmatpush.bf16.msra.mxu0 %v6281
        %8241 = vmatpush.bf16.msra.mxu0 %v6273
        %8242 = vmatpush.bf16.msra.mxu0 %v6265
        %8243 = vmatpush.bf16.msra.mxu0 %v6257
        %8244 = vmatmul.bf16.gmra.mxu0 %v4105
        %v8245 = vpop.f32.mrf.mxu0
        %v8246 = vadd.f32 %v8228, %v8245
        %v8247 = vpop.f32.mrf.mxu0
        %v8248 = vadd.f32 %v8230, %v8247
        %8249 = vmatmul.bf16.gmra.mxu0 %v4113
        %v8250 = vpop.f32.mrf.mxu0
        %v8251 = vadd.f32 %v8233, %v8250
        %v8252 = vpop.f32.mrf.mxu0
        %8253 = vdwg.mxu0
        %8254 = vmatpush.bf16.msra.mxu0 %v6377
        %8255 = vmatpush.bf16.msra.mxu0 %v6369
        %8256 = vmatpush.bf16.msra.mxu0 %v6361
        %8257 = vmatpush.bf16.msra.mxu0 %v6353
        %8258 = vmatpush.bf16.msra.mxu0 %v6345
        %8259 = vmatpush.bf16.msra.mxu0 %v6337
        %8260 = vmatpush.bf16.msra.mxu0 %v6329
        %8261 = vmatpush.bf16.msra.mxu0 %v6321
        %8262 = vmatmul.bf16.gmra.mxu0 %v4106
        %v8263 = vpop.f32.mrf.mxu0
        %v8264 = vadd.f32 %v8246, %v8263
        %v8265 = vpop.f32.mrf.mxu0
        %v8266 = vadd.f32 %v8248, %v8265
        %8267 = vmatmul.bf16.gmra.mxu0 %v4114
        %v8268 = vpop.f32.mrf.mxu0
        %v8269 = vadd.f32 %v8251, %v8268
        %v8270 = vpop.f32.mrf.mxu0
        %8271 = vdwg.mxu0
        %8272 = vmatpush.bf16.msra.mxu0 %v6441
        %8273 = vmatpush.bf16.msra.mxu0 %v6433
        %8274 = vmatpush.bf16.msra.mxu0 %v6425
        %8275 = vmatpush.bf16.msra.mxu0 %v6417
        %8276 = vmatpush.bf16.msra.mxu0 %v6409
        %8277 = vmatpush.bf16.msra.mxu0 %v6401
        %8278 = vmatpush.bf16.msra.mxu0 %v6393
        %8279 = vmatpush.bf16.msra.mxu0 %v6385
        %8280 = vmatmul.bf16.gmra.mxu0 %v4107
        %v8281 = vpop.f32.mrf.mxu0
        %v8282 = vadd.f32 %v8264, %v8281
        %v8283 = vpop.f32.mrf.mxu0
        %v8284 = vadd.f32 %v8266, %v8283
        %8285 = vmatmul.bf16.gmra.mxu0 %v4115
        %v8286 = vpop.f32.mrf.mxu0
        %v8287 = vadd.f32 %v8269, %v8286
        %v8288 = vpop.f32.mrf.mxu0
        %8289 = vdwg.mxu0
        %8290 = vmatpush.bf16.msra.mxu0 %v6505
        %8291 = vmatpush.bf16.msra.mxu0 %v6497
        %8292 = vmatpush.bf16.msra.mxu0 %v6489
        %8293 = vmatpush.bf16.msra.mxu0 %v6481
        %8294 = vmatpush.bf16.msra.mxu0 %v6473
        %8295 = vmatpush.bf16.msra.mxu0 %v6465
        %8296 = vmatpush.bf16.msra.mxu0 %v6457
        %8297 = vmatpush.bf16.msra.mxu0 %v6449
        %8298 = vmatmul.bf16.gmra.mxu0 %v4108
        %v8299 = vpop.f32.mrf.mxu0
        %v8300 = vadd.f32 %v8282, %v8299
        %v8301 = vpop.f32.mrf.mxu0
        %v8302 = vadd.f32 %v8284, %v8301
        %8303 = vmatmul.bf16.gmra.mxu0 %v4116
        %v8304 = vpop.f32.mrf.mxu0
        %v8305 = vadd.f32 %v8287, %v8304
        %v8306 = vpop.f32.mrf.mxu0
        %8307 = vdwg.mxu0
        %8308 = vmatpush.bf16.msra.mxu0 %v6569
        %8309 = vmatpush.bf16.msra.mxu0 %v6561
        %8310 = vmatpush.bf16.msra.mxu0 %v6553
        %8311 = vmatpush.bf16.msra.mxu0 %v6545
        %8312 = vmatpush.bf16.msra.mxu0 %v6537
        %8313 = vmatpush.bf16.msra.mxu0 %v6529
        %8314 = vmatpush.bf16.msra.mxu0 %v6521
        %8315 = vmatpush.bf16.msra.mxu0 %v6513
        %8316 = vmatmul.bf16.gmra.mxu0 %v4109
        %v8317 = vpop.f32.mrf.mxu0
        %v8318 = vadd.f32 %v8300, %v8317
        %v8319 = vpop.f32.mrf.mxu0
        %v8320 = vadd.f32 %v8302, %v8319
        %8321 = vmatmul.bf16.gmra.mxu0 %v4117
        %v8322 = vpop.f32.mrf.mxu0
        %v8323 = vadd.f32 %v8305, %v8322
        %v8324 = vpop.f32.mrf.mxu0
        %8325 = vdwg.mxu0
        %8326 = vmatpush.bf16.msra.mxu0 %v6633
        %8327 = vmatpush.bf16.msra.mxu0 %v6625
        %8328 = vmatpush.bf16.msra.mxu0 %v6617
        %8329 = vmatpush.bf16.msra.mxu0 %v6609
        %8330 = vmatpush.bf16.msra.mxu0 %v6601
        %8331 = vmatpush.bf16.msra.mxu0 %v6593
        %8332 = vmatpush.bf16.msra.mxu0 %v6585
        %8333 = vmatpush.bf16.msra.mxu0 %v6577
        %8334 = vmatmul.bf16.gmra.mxu0 %v4110
        %v8335 = vpop.f32.mrf.mxu0
        %v8336 = vadd.f32 %v8318, %v8335
        %v8337 = vpop.f32.mrf.mxu0
        %v8338 = vadd.f32 %v8320, %v8337
        %8339 = vmatmul.bf16.gmra.mxu0 %v4118
        %v8340 = vpop.f32.mrf.mxu0
        %v8341 = vadd.f32 %v8323, %v8340
        %v8342 = vpop.f32.mrf.mxu0
        %8343 = vdwg.mxu0
        %8344 = vmatpush.bf16.msra.mxu0 %v6697
        %8345 = vmatpush.bf16.msra.mxu0 %v6689
        %8346 = vmatpush.bf16.msra.mxu0 %v6681
        %8347 = vmatpush.bf16.msra.mxu0 %v6673
        %8348 = vmatpush.bf16.msra.mxu0 %v6665
        %8349 = vmatpush.bf16.msra.mxu0 %v6657
        %8350 = vmatpush.bf16.msra.mxu0 %v6649
        %8351 = vmatpush.bf16.msra.mxu0 %v6641
        %8352 = vmatmul.bf16.gmra.mxu0 %v4111
        %v8353 = vpop.f32.mrf.mxu0
        %v8354 = vadd.f32 %v8336, %v8353
        %v8355 = vpop.f32.mrf.mxu0
        %v8356 = vadd.f32 %v8338, %v8355
        %8357 = vmatmul.bf16.gmra.mxu0 %v4119
        %v8358 = vpop.f32.mrf.mxu0
        %v8359 = vadd.f32 %v8341, %v8358
        %v8360 = vpop.f32.mrf.mxu0
        %8361 = vdwg.mxu0
        %v8362 = vpack.c.bf16 %v7490, %v7346
        %v8363 = vpack.c.bf16 %v7778, %v7634
        %v8364 = vpack.c.bf16 %v8066, %v7922
        %v8365 = vpack.c.bf16 %v8354, %v8210
        %v8366 = vpack.c.bf16 %v7492, %v7348
        %v8367 = vpack.c.bf16 %v7780, %v7636
        %v8368 = vpack.c.bf16 %v8068, %v7924
        %v8369 = vpack.c.bf16 %v8356, %v8212
        %v8370 = vpack.c.bf16 %v7495, %v7351
        %v8371 = vpack.c.bf16 %v7783, %v7639
        %v8372 = vpack.c.bf16 %v8071, %v7927
        %v8373 = vpack.c.bf16 %v8359, %v8215
        %v8374 = vxor.u32 %v8362, 2147516416
        %v8375 = vxor.u32 %v8363, 2147516416
        %v8376 = vxor.u32 %v8364, 2147516416
        %v8377 = vxor.u32 %v8365, 2147516416
        %v8378 = vxor.u32 %v8366, 2147516416
        %v8379 = vxor.u32 %v8367, 2147516416
        %v8380 = vxor.u32 %v8368, 2147516416
        %v8381 = vxor.u32 %v8369, 2147516416
        %v8382 = vxor.u32 %v8370, 2147516416
        %v8383 = vxor.u32 %v8371, 2147516416
        %v8384 = vxor.u32 %v8372, 2147516416
        %v8385 = vxor.u32 %v8373, 2147516416
        %v8386 = vunpack.c.l.bf16 %v8374
        %v8387 = vunpack.c.h.bf16 %v8374
        %v8388 = vunpack.c.l.bf16 %v8375
        %v8389 = vunpack.c.h.bf16 %v8375
        %v8390 = vunpack.c.l.bf16 %v8376
        %v8391 = vunpack.c.h.bf16 %v8376
        %v8392 = vunpack.c.l.bf16 %v8377
        %v8393 = vunpack.c.h.bf16 %v8377
        %v8394 = vunpack.c.l.bf16 %v8378
        %v8395 = vunpack.c.h.bf16 %v8378
        %v8396 = vunpack.c.l.bf16 %v8379
        %v8397 = vunpack.c.h.bf16 %v8379
        %v8398 = vunpack.c.l.bf16 %v8380
        %v8399 = vunpack.c.h.bf16 %v8380
        %v8400 = vunpack.c.l.bf16 %v8381
        %v8401 = vunpack.c.h.bf16 %v8381
        %v8402 = vunpack.c.l.bf16 %v8382
        %v8403 = vunpack.c.h.bf16 %v8382
        %v8404 = vunpack.c.l.bf16 %v8383
        %v8405 = vunpack.c.h.bf16 %v8383
        %v8406 = vunpack.c.l.bf16 %v8384
        %v8407 = vunpack.c.h.bf16 %v8384
        %v8408 = vunpack.c.l.bf16 %v8385
        %v8409 = vunpack.c.h.bf16 %v8385
        %v8410 = vmul.f32 %v8386, 1.442695
        %v8411 = vpow.pop %v8410
        %v8412 = vmul.f32 %v8387, 1.442695
        %v8413 = vpow.pop %v8412
        %v8414 = vmul.f32 %v8388, 1.442695
        %v8415 = vpow.pop %v8414
        %v8416 = vmul.f32 %v8389, 1.442695
        %v8417 = vpow.pop %v8416
        %v8418 = vmul.f32 %v8390, 1.442695
        %v8419 = vpow.pop %v8418
        %v8420 = vmul.f32 %v8391, 1.442695
        %v8421 = vpow.pop %v8420
        %v8422 = vmul.f32 %v8392, 1.442695
        %v8423 = vpow.pop %v8422
        %v8424 = vmul.f32 %v8393, 1.442695
        %v8425 = vpow.pop %v8424
        %v8426 = vmul.f32 %v8394, 1.442695
        %v8427 = vpow.pop %v8426
        %v8428 = vmul.f32 %v8395, 1.442695
        %v8429 = vpow.pop %v8428
        %v8430 = vmul.f32 %v8396, 1.442695
        %v8431 = vpow.pop %v8430
        %v8432 = vmul.f32 %v8397, 1.442695
        %v8433 = vpow.pop %v8432
        %v8434 = vmul.f32 %v8398, 1.442695
        %v8435 = vpow.pop %v8434
        %v8436 = vmul.f32 %v8399, 1.442695
        %v8437 = vpow.pop %v8436
        %v8438 = vmul.f32 %v8400, 1.442695
        %v8439 = vpow.pop %v8438
        %v8440 = vmul.f32 %v8401, 1.442695
        %v8441 = vpow.pop %v8440
        %v8442 = vmul.f32 %v8402, 1.442695
        %v8443 = vpow.pop %v8442
        %v8444 = vmul.f32 %v8403, 1.442695
        %v8445 = vpow.pop %v8444
        %v8446 = vmul.f32 %v8404, 1.442695
        %v8447 = vpow.pop %v8446
        %v8448 = vmul.f32 %v8405, 1.442695
        %v8449 = vpow.pop %v8448
        %v8450 = vmul.f32 %v8406, 1.442695
        %v8451 = vpow.pop %v8450
        %v8452 = vmul.f32 %v8407, 1.442695
        %v8453 = vpow.pop %v8452
        %v8454 = vmul.f32 %v8408, 1.442695
        %v8455 = vpow.pop %v8454
        %v8456 = vmul.f32 %v8409, 1.442695
        %v8457 = vpow.pop %v8456
        %v8458 = vpack.c.bf16 %v8413, %v8411
        %v8459 = vpack.c.bf16 %v8417, %v8415
        %v8460 = vpack.c.bf16 %v8421, %v8419
        %v8461 = vpack.c.bf16 %v8425, %v8423
        %v8462 = vpack.c.bf16 %v8429, %v8427
        %v8463 = vpack.c.bf16 %v8433, %v8431
        %v8464 = vpack.c.bf16 %v8437, %v8435
        %v8465 = vpack.c.bf16 %v8441, %v8439
        %v8466 = vpack.c.bf16 %v8445, %v8443
        %v8467 = vpack.c.bf16 %v8449, %v8447
        %v8468 = vpack.c.bf16 %v8453, %v8451
        %v8469 = vpack.c.bf16 %v8457, %v8455
        %v8470 = vunpack.c.l.bf16 %v8458
        %v8471 = vunpack.c.h.bf16 %v8458
        %v8472 = vunpack.c.l.bf16 %v8459
        %v8473 = vunpack.c.h.bf16 %v8459
        %v8474 = vunpack.c.l.bf16 %v8460
        %v8475 = vunpack.c.h.bf16 %v8460
        %v8476 = vunpack.c.l.bf16 %v8461
        %v8477 = vunpack.c.h.bf16 %v8461
        %v8478 = vunpack.c.l.bf16 %v8462
        %v8479 = vunpack.c.h.bf16 %v8462
        %v8480 = vunpack.c.l.bf16 %v8463
        %v8481 = vunpack.c.h.bf16 %v8463
        %v8482 = vunpack.c.l.bf16 %v8464
        %v8483 = vunpack.c.h.bf16 %v8464
        %v8484 = vunpack.c.l.bf16 %v8465
        %v8485 = vunpack.c.h.bf16 %v8465
        %v8486 = vunpack.c.l.bf16 %v8466
        %v8487 = vunpack.c.h.bf16 %v8466
        %v8488 = vunpack.c.l.bf16 %v8467
        %v8489 = vunpack.c.h.bf16 %v8467
        %v8490 = vunpack.c.l.bf16 %v8468
        %v8491 = vunpack.c.h.bf16 %v8468
        %v8492 = vunpack.c.l.bf16 %v8469
        %v8493 = vunpack.c.h.bf16 %v8469
        %v8494 = vadd.f32 %v8470, 1.0
        %v8495 = vadd.f32 %v8471, 1.0
        %v8496 = vadd.f32 %v8472, 1.0
        %v8497 = vadd.f32 %v8473, 1.0
        %v8498 = vadd.f32 %v8474, 1.0
        %v8499 = vadd.f32 %v8475, 1.0
        %v8500 = vadd.f32 %v8476, 1.0
        %v8501 = vadd.f32 %v8477, 1.0
        %v8502 = vadd.f32 %v8478, 1.0
        %v8503 = vadd.f32 %v8479, 1.0
        %v8504 = vadd.f32 %v8480, 1.0
        %v8505 = vadd.f32 %v8481, 1.0
        %v8506 = vadd.f32 %v8482, 1.0
        %v8507 = vadd.f32 %v8483, 1.0
        %v8508 = vadd.f32 %v8484, 1.0
        %v8509 = vadd.f32 %v8485, 1.0
        %v8510 = vadd.f32 %v8486, 1.0
        %v8511 = vadd.f32 %v8487, 1.0
        %v8512 = vadd.f32 %v8488, 1.0
        %v8513 = vadd.f32 %v8489, 1.0
        %v8514 = vadd.f32 %v8490, 1.0
        %v8515 = vadd.f32 %v8491, 1.0
        %v8516 = vadd.f32 %v8492, 1.0
        %v8517 = vadd.f32 %v8493, 1.0
        %v8518 = vpack.c.bf16 %v8495, %v8494
        %v8519 = vpack.c.bf16 %v8497, %v8496
        %v8520 = vpack.c.bf16 %v8499, %v8498
        %v8521 = vpack.c.bf16 %v8501, %v8500
        %v8522 = vpack.c.bf16 %v8503, %v8502
        %v8523 = vpack.c.bf16 %v8505, %v8504
        %v8524 = vpack.c.bf16 %v8507, %v8506
        %v8525 = vpack.c.bf16 %v8509, %v8508
        %v8526 = vpack.c.bf16 %v8511, %v8510
        %v8527 = vpack.c.bf16 %v8513, %v8512
        %v8528 = vpack.c.bf16 %v8515, %v8514
        %v8529 = vpack.c.bf16 %v8517, %v8516
        %v8530 = vunpack.c.h.bf16 %v8518
        %v8531 = vunpack.c.l.bf16 %v8518
        %v8532 = vrcp.pop %v8530
        %v8533 = vmul.f32 %v3946, %v8532
        %v8534 = vrcp.pop %v8531
        %v8535 = vmul.f32 %v3947, %v8534
        %v8536 = vpack.c.bf16 %v8533, %v8535
        %v8537 = vunpack.c.h.bf16 %v8519
        %v8538 = vunpack.c.l.bf16 %v8519
        %v8539 = vrcp.pop %v8537
        %v8540 = vmul.f32 %v3946, %v8539
        %v8541 = vrcp.pop %v8538
        %v8542 = vmul.f32 %v3947, %v8541
        %v8543 = vpack.c.bf16 %v8540, %v8542
        %v8544 = vunpack.c.h.bf16 %v8520
        %v8545 = vunpack.c.l.bf16 %v8520
        %v8546 = vrcp.pop %v8544
        %v8547 = vmul.f32 %v3946, %v8546
        %v8548 = vrcp.pop %v8545
        %v8549 = vmul.f32 %v3947, %v8548
        %v8550 = vpack.c.bf16 %v8547, %v8549
        %v8551 = vunpack.c.h.bf16 %v8521
        %v8552 = vunpack.c.l.bf16 %v8521
        %v8553 = vrcp.pop %v8551
        %v8554 = vmul.f32 %v3946, %v8553
        %v8555 = vrcp.pop %v8552
        %v8556 = vmul.f32 %v3947, %v8555
        %v8557 = vpack.c.bf16 %v8554, %v8556
        %v8558 = vunpack.c.h.bf16 %v8522
        %v8559 = vunpack.c.l.bf16 %v8522
        %v8560 = vrcp.pop %v8558
        %v8561 = vmul.f32 %v3946, %v8560
        %v8562 = vrcp.pop %v8559
        %v8563 = vmul.f32 %v3947, %v8562
        %v8564 = vpack.c.bf16 %v8561, %v8563
        %v8565 = vunpack.c.h.bf16 %v8523
        %v8566 = vunpack.c.l.bf16 %v8523
        %v8567 = vrcp.pop %v8565
        %v8568 = vmul.f32 %v3946, %v8567
        %v8569 = vrcp.pop %v8566
        %v8570 = vmul.f32 %v3947, %v8569
        %v8571 = vpack.c.bf16 %v8568, %v8570
        %v8572 = vunpack.c.h.bf16 %v8524
        %v8573 = vunpack.c.l.bf16 %v8524
        %v8574 = vrcp.pop %v8572
        %v8575 = vmul.f32 %v3946, %v8574
        %v8576 = vrcp.pop %v8573
        %v8577 = vmul.f32 %v3947, %v8576
        %v8578 = vpack.c.bf16 %v8575, %v8577
        %v8579 = vunpack.c.h.bf16 %v8525
        %v8580 = vunpack.c.l.bf16 %v8525
        %v8581 = vrcp.pop %v8579
        %v8582 = vmul.f32 %v3946, %v8581
        %v8583 = vrcp.pop %v8580
        %v8584 = vmul.f32 %v3947, %v8583
        %v8585 = vpack.c.bf16 %v8582, %v8584
        %v8586 = vunpack.c.h.bf16 %v8526
        %v8587 = vunpack.c.l.bf16 %v8526
        %v8588 = vrcp.pop %v8586
        %v8589 = vmul.f32 %v3946, %v8588
        %v8590 = vrcp.pop %v8587
        %v8591 = vmul.f32 %v3947, %v8590
        %v8592 = vpack.c.bf16 %v8589, %v8591
        %v8593 = vunpack.c.h.bf16 %v8527
        %v8594 = vunpack.c.l.bf16 %v8527
        %v8595 = vrcp.pop %v8593
        %v8596 = vmul.f32 %v3946, %v8595
        %v8597 = vrcp.pop %v8594
        %v8598 = vmul.f32 %v3947, %v8597
        %v8599 = vpack.c.bf16 %v8596, %v8598
        %v8600 = vunpack.c.h.bf16 %v8528
        %v8601 = vunpack.c.l.bf16 %v8528
        %v8602 = vrcp.pop %v8600
        %v8603 = vmul.f32 %v3946, %v8602
        %v8604 = vrcp.pop %v8601
        %v8605 = vmul.f32 %v3947, %v8604
        %v8606 = vpack.c.bf16 %v8603, %v8605
        %v8607 = vunpack.c.h.bf16 %v8529
        %v8608 = vunpack.c.l.bf16 %v8529
        %v8609 = vrcp.pop %v8607
        %v8610 = vmul.f32 %v3946, %v8609
        %v8611 = vrcp.pop %v8608
        %v8612 = vmul.f32 %v3947, %v8611
        %v8613 = vpack.c.bf16 %v8610, %v8612
        %v8614 = vunpack.c.l.bf16 %v8362
        %v8615 = vunpack.c.h.bf16 %v8362
        %v8616 = vunpack.c.l.bf16 %v8363
        %v8617 = vunpack.c.h.bf16 %v8363
        %v8618 = vunpack.c.l.bf16 %v8364
        %v8619 = vunpack.c.h.bf16 %v8364
        %v8620 = vunpack.c.l.bf16 %v8365
        %v8621 = vunpack.c.h.bf16 %v8365
        %v8622 = vunpack.c.l.bf16 %v8366
        %v8623 = vunpack.c.h.bf16 %v8366
        %v8624 = vunpack.c.l.bf16 %v8367
        %v8625 = vunpack.c.h.bf16 %v8367
        %v8626 = vunpack.c.l.bf16 %v8368
        %v8627 = vunpack.c.h.bf16 %v8368
        %v8628 = vunpack.c.l.bf16 %v8369
        %v8629 = vunpack.c.h.bf16 %v8369
        %v8630 = vunpack.c.l.bf16 %v8370
        %v8631 = vunpack.c.h.bf16 %v8370
        %v8632 = vunpack.c.l.bf16 %v8371
        %v8633 = vunpack.c.h.bf16 %v8371
        %v8634 = vunpack.c.l.bf16 %v8372
        %v8635 = vunpack.c.h.bf16 %v8372
        %v8636 = vunpack.c.l.bf16 %v8373
        %v8637 = vunpack.c.h.bf16 %v8373
        %v8638 = vunpack.c.l.bf16 %v8536
        %v8639 = vunpack.c.h.bf16 %v8536
        %v8640 = vunpack.c.l.bf16 %v8543
        %v8641 = vunpack.c.h.bf16 %v8543
        %v8642 = vunpack.c.l.bf16 %v8550
        %v8643 = vunpack.c.h.bf16 %v8550
        %v8644 = vunpack.c.l.bf16 %v8557
        %v8645 = vunpack.c.h.bf16 %v8557
        %v8646 = vunpack.c.l.bf16 %v8564
        %v8647 = vunpack.c.h.bf16 %v8564
        %v8648 = vunpack.c.l.bf16 %v8571
        %v8649 = vunpack.c.h.bf16 %v8571
        %v8650 = vunpack.c.l.bf16 %v8578
        %v8651 = vunpack.c.h.bf16 %v8578
        %v8652 = vunpack.c.l.bf16 %v8585
        %v8653 = vunpack.c.h.bf16 %v8585
        %v8654 = vunpack.c.l.bf16 %v8592
        %v8655 = vunpack.c.h.bf16 %v8592
        %v8656 = vunpack.c.l.bf16 %v8599
        %v8657 = vunpack.c.h.bf16 %v8599
        %v8658 = vunpack.c.l.bf16 %v8606
        %v8659 = vunpack.c.h.bf16 %v8606
        %v8660 = vunpack.c.l.bf16 %v8613
        %v8661 = vunpack.c.h.bf16 %v8613
        %v8662 = vmul.f32 %v8614, %v8638
        %v8663 = vmul.f32 %v8615, %v8639
        %v8664 = vmul.f32 %v8616, %v8640
        %v8665 = vmul.f32 %v8617, %v8641
        %v8666 = vmul.f32 %v8618, %v8642
        %v8667 = vmul.f32 %v8619, %v8643
        %v8668 = vmul.f32 %v8620, %v8644
        %v8669 = vmul.f32 %v8621, %v8645
        %v8670 = vmul.f32 %v8622, %v8646
        %v8671 = vmul.f32 %v8623, %v8647
        %v8672 = vmul.f32 %v8624, %v8648
        %v8673 = vmul.f32 %v8625, %v8649
        %v8674 = vmul.f32 %v8626, %v8650
        %v8675 = vmul.f32 %v8627, %v8651
        %v8676 = vmul.f32 %v8628, %v8652
        %v8677 = vmul.f32 %v8629, %v8653
        %v8678 = vmul.f32 %v8630, %v8654
        %v8679 = vmul.f32 %v8631, %v8655
        %v8680 = vmul.f32 %v8632, %v8656
        %v8681 = vmul.f32 %v8633, %v8657
        %v8682 = vmul.f32 %v8634, %v8658
        %v8683 = vmul.f32 %v8635, %v8659
        %v8684 = vmul.f32 %v8636, %v8660
        %v8685 = vmul.f32 %v8637, %v8661
        %v8686 = vpack.c.bf16 %v8670, %v8662
        %v8687 = vpack.c.bf16 %v8671, %v8663
        %v8688 = vpack.c.bf16 %v8672, %v8664
        %v8689 = vpack.c.bf16 %v8673, %v8665
        %v8690 = vpack.c.bf16 %v8674, %v8666
        %v8691 = vpack.c.bf16 %v8675, %v8667
        %v8692 = vpack.c.bf16 %v8676, %v8668
        %v8693 = vpack.c.bf16 %v8677, %v8669
        %v8694 = vpack.c.bf16 %v8678, %v8678
        %v8695 = vpack.c.bf16 %v8679, %v8679
        %v8696 = vpack.c.bf16 %v8680, %v8680
        %v8697 = vpack.c.bf16 %v8681, %v8681
        %v8698 = vpack.c.bf16 %v8682, %v8682
        %v8699 = vpack.c.bf16 %v8683, %v8683
        %v8700 = vpack.c.bf16 %v8684, %v8684
        %v8701 = vpack.c.bf16 %v8685, %v8685
        %v8702 = vld [vmem:[%s5] sm:$0xff]
        %v8703 = vld [vmem:[%s5 + $0x8] sm:$0xff]
        %v8704 = vld [vmem:[%s5 + $0x10] sm:$0xff]
        %v8705 = vld [vmem:[%s5 + $0x18] sm:$0xf]
        %v8706 = vld [vmem:[%s5 + $0x1c] sm:$0xff]
        %v8707 = vld [vmem:[%s5 + $0x24] sm:$0xff]
        %v8708 = vld [vmem:[%s5 + $0x2c] sm:$0xff]
        %v8709 = vld [vmem:[%s5 + $0x34] sm:$0xf]
        %v8710 = vld [vmem:[%s5 + $0x38] sm:$0xff]
        %v8711 = vld [vmem:[%s5 + $0x40] sm:$0xff]
        %v8712 = vld [vmem:[%s5 + $0x48] sm:$0xff]
        %v8713 = vld [vmem:[%s5 + $0x50] sm:$0xf]
        %v8714 = vld [vmem:[%s5 + $0x54] sm:$0xff]
        %v8715 = vld [vmem:[%s5 + $0x5c] sm:$0xff]
        %v8716 = vld [vmem:[%s5 + $0x64] sm:$0xff]
        %v8717 = vld [vmem:[%s5 + $0x6c] sm:$0xf]
        %v8718 = vld [vmem:[%s5 + $0x70] sm:$0xff]
        %v8719 = vld [vmem:[%s5 + $0x78] sm:$0xff]
        %v8720 = vld [vmem:[%s5 + $0x80] sm:$0xff]
        %v8721 = vld [vmem:[%s5 + $0x88] sm:$0xf]
        %v8722 = vld [vmem:[%s5 + $0x8c] sm:$0xff]
        %v8723 = vld [vmem:[%s5 + $0x94] sm:$0xff]
        %v8724 = vld [vmem:[%s5 + $0x9c] sm:$0xff]
        %v8725 = vld [vmem:[%s5 + $0xa4] sm:$0xf]
        %v8726 = vld [vmem:[%s5 + $0xa8] sm:$0xff]
        %v8727 = vld [vmem:[%s5 + $0xb0] sm:$0xff]
        %v8728 = vld [vmem:[%s5 + $0xb8] sm:$0xff]
        %v8729 = vld [vmem:[%s5 + $0xc0] sm:$0xf]
        %v8730 = vld [vmem:[%s5 + $0xc4] sm:$0xff]
        %v8731 = vld [vmem:[%s5 + $0xcc] sm:$0xff]
        %v8732 = vld [vmem:[%s5 + $0xd4] sm:$0xff]
        %v8733 = vld [vmem:[%s5 + $0xdc] sm:$0xf]
        %v8734 = vld [vmem:[%s5 + $0xe0] sm:$0xff]
        %v8735 = vld [vmem:[%s5 + $0xe8] sm:$0xff]
        %v8736 = vld [vmem:[%s5 + $0xf0] sm:$0xff]
        %v8737 = vld [vmem:[%s5 + $0xf8] sm:$0xf]
        %v8738 = vld [vmem:[%s5 + $0xfc] sm:$0xff]
        %v8739 = vld [vmem:[%s5 + $0x104] sm:$0xff]
        %v8740 = vld [vmem:[%s5 + $0x10c] sm:$0xff]
        %v8741 = vld [vmem:[%s5 + $0x114] sm:$0xf]
        %v8742 = vld [vmem:[%s5 + $0x118] sm:$0xff]
        %v8743 = vld [vmem:[%s5 + $0x120] sm:$0xff]
        %v8744 = vld [vmem:[%s5 + $0x128] sm:$0xff]
        %v8745 = vld [vmem:[%s5 + $0x130] sm:$0xf]
        %v8746 = vld [vmem:[%s5 + $0x134] sm:$0xff]
        %v8747 = vld [vmem:[%s5 + $0x13c] sm:$0xff]
        %v8748 = vld [vmem:[%s5 + $0x144] sm:$0xff]
        %v8749 = vld [vmem:[%s5 + $0x14c] sm:$0xf]
        %v8750 = vld [vmem:[%s5 + $0x150] sm:$0xff]
        %v8751 = vld [vmem:[%s5 + $0x158] sm:$0xff]
        %v8752 = vld [vmem:[%s5 + $0x160] sm:$0xff]
        %v8753 = vld [vmem:[%s5 + $0x168] sm:$0xf]
        %v8754 = vld [vmem:[%s5 + $0x16c] sm:$0xff]
        %v8755 = vld [vmem:[%s5 + $0x174] sm:$0xff]
        %v8756 = vld [vmem:[%s5 + $0x17c] sm:$0xff]
        %v8757 = vld [vmem:[%s5 + $0x184] sm:$0xf]
        %v8758 = vld [vmem:[%s5 + $0x188] sm:$0xff]
        %v8759 = vld [vmem:[%s5 + $0x190] sm:$0xff]
        %v8760 = vld [vmem:[%s5 + $0x198] sm:$0xff]
        %v8761 = vld [vmem:[%s5 + $0x1a0] sm:$0xf]
        %v8762 = vld [vmem:[%s5 + $0x1a4] sm:$0xff]
        %v8763 = vld [vmem:[%s5 + $0x1ac] sm:$0xff]
        %v8764 = vld [vmem:[%s5 + $0x1b4] sm:$0xff]
        %v8765 = vld [vmem:[%s5 + $0x1bc] sm:$0xf]
        %v8766 = vld [vmem:[%s5 + $0x1c0] sm:$0xff]
        %v8767 = vld [vmem:[%s5 + $0x1c8] sm:$0xff]
        %v8768 = vld [vmem:[%s5 + $0x1d0] sm:$0xff]
        %v8769 = vld [vmem:[%s5 + $0x1d8] sm:$0xf]
        %v8770 = vld [vmem:[%s5 + $0x1dc] sm:$0xff]
        %v8771 = vld [vmem:[%s5 + $0x1e4] sm:$0xff]
        %v8772 = vld [vmem:[%s5 + $0x1ec] sm:$0xff]
        %v8773 = vld [vmem:[%s5 + $0x1f4] sm:$0xf]
        %v8774 = vld [vmem:[%s5 + $0x1f8] sm:$0xff]
        %v8775 = vld [vmem:[%s5 + $0x200] sm:$0xff]
        %v8776 = vld [vmem:[%s5 + $0x208] sm:$0xff]
        %v8777 = vld [vmem:[%s5 + $0x210] sm:$0xf]
        %v8778 = vld [vmem:[%s5 + $0x214] sm:$0xff]
        %v8779 = vld [vmem:[%s5 + $0x21c] sm:$0xff]
        %v8780 = vld [vmem:[%s5 + $0x224] sm:$0xff]
        %v8781 = vld [vmem:[%s5 + $0x22c] sm:$0xf]
        %v8782 = vld [vmem:[%s5 + $0x230] sm:$0xff]
        %v8783 = vld [vmem:[%s5 + $0x238] sm:$0xff]
        %v8784 = vld [vmem:[%s5 + $0x240] sm:$0xff]
        %v8785 = vld [vmem:[%s5 + $0x248] sm:$0xf]
        %v8786 = vld [vmem:[%s5 + $0x24c] sm:$0xff]
        %v8787 = vld [vmem:[%s5 + $0x254] sm:$0xff]
        %v8788 = vld [vmem:[%s5 + $0x25c] sm:$0xff]
        %v8789 = vld [vmem:[%s5 + $0x264] sm:$0xf]
        %v8790 = vld [vmem:[%s5 + $0x268] sm:$0xff]
        %v8791 = vld [vmem:[%s5 + $0x270] sm:$0xff]
        %v8792 = vld [vmem:[%s5 + $0x278] sm:$0xff]
        %v8793 = vld [vmem:[%s5 + $0x280] sm:$0xf]
        %v8794 = vld [vmem:[%s5 + $0x284] sm:$0xff]
        %v8795 = vld [vmem:[%s5 + $0x28c] sm:$0xff]
        %v8796 = vld [vmem:[%s5 + $0x294] sm:$0xff]
        %v8797 = vld [vmem:[%s5 + $0x29c] sm:$0xf]
        %v8798 = vld [vmem:[%s5 + $0x2a0] sm:$0xff]
        %v8799 = vld [vmem:[%s5 + $0x2a8] sm:$0xff]
        %v8800 = vld [vmem:[%s5 + $0x2b0] sm:$0xff]
        %v8801 = vld [vmem:[%s5 + $0x2b8] sm:$0xf]
        %v8802 = vld [vmem:[%s5 + $0x2bc] sm:$0xff]
        %v8803 = vld [vmem:[%s5 + $0x2c4] sm:$0xff]
        %v8804 = vld [vmem:[%s5 + $0x2cc] sm:$0xff]
        %v8805 = vld [vmem:[%s5 + $0x2d4] sm:$0xf]
        %v8806 = vld [vmem:[%s5 + $0x2d8] sm:$0xff]
        %v8807 = vld [vmem:[%s5 + $0x2e0] sm:$0xff]
        %v8808 = vld [vmem:[%s5 + $0x2e8] sm:$0xff]
        %v8809 = vld [vmem:[%s5 + $0x2f0] sm:$0xf]
        %v8810 = vld [vmem:[%s5 + $0x2f4] sm:$0xff]
        %v8811 = vld [vmem:[%s5 + $0x2fc] sm:$0xff]
        %v8812 = vld [vmem:[%s5 + $0x304] sm:$0xff]
        %v8813 = vld [vmem:[%s5 + $0x30c] sm:$0xf]
        %v8814 = vld [vmem:[%s5 + $0x310] sm:$0xff]
        %v8815 = vld [vmem:[%s5 + $0x318] sm:$0xff]
        %v8816 = vld [vmem:[%s5 + $0x320] sm:$0xff]
        %v8817 = vld [vmem:[%s5 + $0x328] sm:$0xf]
        %v8818 = vld [vmem:[%s5 + $0x32c] sm:$0xff]
        %v8819 = vld [vmem:[%s5 + $0x334] sm:$0xff]
        %v8820 = vld [vmem:[%s5 + $0x33c] sm:$0xff]
        %v8821 = vld [vmem:[%s5 + $0x344] sm:$0xf]
        %v8822 = vld [vmem:[%s5 + $0x348] sm:$0xff]
        %v8823 = vld [vmem:[%s5 + $0x350] sm:$0xff]
        %v8824 = vld [vmem:[%s5 + $0x358] sm:$0xff]
        %v8825 = vld [vmem:[%s5 + $0x360] sm:$0xf]
        %v8826 = vld [vmem:[%s5 + $0x364] sm:$0xff]
        %v8827 = vld [vmem:[%s5 + $0x36c] sm:$0xff]
        %v8828 = vld [vmem:[%s5 + $0x374] sm:$0xff]
        %v8829 = vld [vmem:[%s5 + $0x37c] sm:$0xf]
        %v8830 = vld [vmem:[%s5 + $0x380] sm:$0xff]
        %v8831 = vld [vmem:[%s5 + $0x388] sm:$0xff]
        %v8832 = vld [vmem:[%s5 + $0x390] sm:$0xff]
        %v8833 = vld [vmem:[%s5 + $0x398] sm:$0xf]
        %v8834 = vld [vmem:[%s5 + $0x39c] sm:$0xff]
        %v8835 = vld [vmem:[%s5 + $0x3a4] sm:$0xff]
        %v8836 = vld [vmem:[%s5 + $0x3ac] sm:$0xff]
        %v8837 = vld [vmem:[%s5 + $0x3b4] sm:$0xf]
        %v8838 = vld [vmem:[%s5 + $0x3b8] sm:$0xff]
        %v8839 = vld [vmem:[%s5 + $0x3c0] sm:$0xff]
        %v8840 = vld [vmem:[%s5 + $0x3c8] sm:$0xff]
        %v8841 = vld [vmem:[%s5 + $0x3d0] sm:$0xf]
        %v8842 = vld [vmem:[%s5 + $0x3d4] sm:$0xff]
        %v8843 = vld [vmem:[%s5 + $0x3dc] sm:$0xff]
        %v8844 = vld [vmem:[%s5 + $0x3e4] sm:$0xff]
        %v8845 = vld [vmem:[%s5 + $0x3ec] sm:$0xf]
        %v8846 = vld [vmem:[%s5 + $0x3f0] sm:$0xff]
        %v8847 = vld [vmem:[%s5 + $0x3f8] sm:$0xff]
        %v8848 = vld [vmem:[%s5 + $0x400] sm:$0xff]
        %v8849 = vld [vmem:[%s5 + $0x408] sm:$0xf]
        %v8850 = vld [vmem:[%s5 + $0x40c] sm:$0xff]
        %v8851 = vld [vmem:[%s5 + $0x414] sm:$0xff]
        %v8852 = vld [vmem:[%s5 + $0x41c] sm:$0xff]
        %v8853 = vld [vmem:[%s5 + $0x424] sm:$0xf]
        %v8854 = vld [vmem:[%s5 + $0x428] sm:$0xff]
        %v8855 = vld [vmem:[%s5 + $0x430] sm:$0xff]
        %v8856 = vld [vmem:[%s5 + $0x438] sm:$0xff]
        %v8857 = vld [vmem:[%s5 + $0x440] sm:$0xf]
        %v8858 = vld [vmem:[%s5 + $0x444] sm:$0xff]
        %v8859 = vld [vmem:[%s5 + $0x44c] sm:$0xff]
        %v8860 = vld [vmem:[%s5 + $0x454] sm:$0xff]
        %v8861 = vld [vmem:[%s5 + $0x45c] sm:$0xf]
        %v8862 = vld [vmem:[%s5 + $0x460] sm:$0xff]
        %v8863 = vld [vmem:[%s5 + $0x468] sm:$0xff]
        %v8864 = vld [vmem:[%s5 + $0x470] sm:$0xff]
        %v8865 = vld [vmem:[%s5 + $0x478] sm:$0xf]
        %v8866 = vld [vmem:[%s5 + $0x47c] sm:$0xff]
        %v8867 = vld [vmem:[%s5 + $0x484] sm:$0xff]
        %v8868 = vld [vmem:[%s5 + $0x48c] sm:$0xff]
        %v8869 = vld [vmem:[%s5 + $0x494] sm:$0xf]
        %v8870 = vld [vmem:[%s5 + $0x498] sm:$0xff]
        %v8871 = vld [vmem:[%s5 + $0x4a0] sm:$0xff]
        %v8872 = vld [vmem:[%s5 + $0x4a8] sm:$0xff]
        %v8873 = vld [vmem:[%s5 + $0x4b0] sm:$0xf]
        %v8874 = vld [vmem:[%s5 + $0x4b4] sm:$0xff]
        %v8875 = vld [vmem:[%s5 + $0x4bc] sm:$0xff]
        %v8876 = vld [vmem:[%s5 + $0x4c4] sm:$0xff]
        %v8877 = vld [vmem:[%s5 + $0x4cc] sm:$0xf]
        %v8878 = vld [vmem:[%s5 + $0x4d0] sm:$0xff]
        %v8879 = vld [vmem:[%s5 + $0x4d8] sm:$0xff]
        %v8880 = vld [vmem:[%s5 + $0x4e0] sm:$0xff]
        %v8881 = vld [vmem:[%s5 + $0x4e8] sm:$0xf]
        %v8882 = vld [vmem:[%s5 + $0x4ec] sm:$0xff]
        %v8883 = vld [vmem:[%s5 + $0x4f4] sm:$0xff]
        %v8884 = vld [vmem:[%s5 + $0x4fc] sm:$0xff]
        %v8885 = vld [vmem:[%s5 + $0x504] sm:$0xf]
        %v8886 = vld [vmem:[%s5 + $0x508] sm:$0xff]
        %v8887 = vld [vmem:[%s5 + $0x510] sm:$0xff]
        %v8888 = vld [vmem:[%s5 + $0x518] sm:$0xff]
        %v8889 = vld [vmem:[%s5 + $0x520] sm:$0xf]
        %v8890 = vld [vmem:[%s5 + $0x524] sm:$0xff]
        %v8891 = vld [vmem:[%s5 + $0x52c] sm:$0xff]
        %v8892 = vld [vmem:[%s5 + $0x534] sm:$0xff]
        %v8893 = vld [vmem:[%s5 + $0x53c] sm:$0xf]
        %v8894 = vld [vmem:[%s5 + $0x540] sm:$0xff]
        %v8895 = vld [vmem:[%s5 + $0x548] sm:$0xff]
        %v8896 = vld [vmem:[%s5 + $0x550] sm:$0xff]
        %v8897 = vld [vmem:[%s5 + $0x558] sm:$0xf]
        %v8898 = vld [vmem:[%s5 + $0x55c] sm:$0xff]
        %v8899 = vld [vmem:[%s5 + $0x564] sm:$0xff]
        %v8900 = vld [vmem:[%s5 + $0x56c] sm:$0xff]
        %v8901 = vld [vmem:[%s5 + $0x574] sm:$0xf]
        %v8902 = vld [vmem:[%s5 + $0x578] sm:$0xff]
        %v8903 = vld [vmem:[%s5 + $0x580] sm:$0xff]
        %v8904 = vld [vmem:[%s5 + $0x588] sm:$0xff]
        %v8905 = vld [vmem:[%s5 + $0x590] sm:$0xf]
        %v8906 = vld [vmem:[%s5 + $0x594] sm:$0xff]
        %v8907 = vld [vmem:[%s5 + $0x59c] sm:$0xff]
        %v8908 = vld [vmem:[%s5 + $0x5a4] sm:$0xff]
        %v8909 = vld [vmem:[%s5 + $0x5ac] sm:$0xf]
        %v8910 = vld [vmem:[%s5 + $0x5b0] sm:$0xff]
        %v8911 = vld [vmem:[%s5 + $0x5b8] sm:$0xff]
        %v8912 = vld [vmem:[%s5 + $0x5c0] sm:$0xff]
        %v8913 = vld [vmem:[%s5 + $0x5c8] sm:$0xf]
        %v8914 = vld [vmem:[%s5 + $0x5cc] sm:$0xff]
        %v8915 = vld [vmem:[%s5 + $0x5d4] sm:$0xff]
        %v8916 = vld [vmem:[%s5 + $0x5dc] sm:$0xff]
        %v8917 = vld [vmem:[%s5 + $0x5e4] sm:$0xf]
        %v8918 = vld [vmem:[%s5 + $0x5e8] sm:$0xff]
        %v8919 = vld [vmem:[%s5 + $0x5f0] sm:$0xff]
        %v8920 = vld [vmem:[%s5 + $0x5f8] sm:$0xff]
        %v8921 = vld [vmem:[%s5 + $0x600] sm:$0xf]
        %v8922 = vld [vmem:[%s5 + $0x604] sm:$0xff]
        %v8923 = vld [vmem:[%s5 + $0x60c] sm:$0xff]
        %v8924 = vld [vmem:[%s5 + $0x614] sm:$0xff]
        %v8925 = vld [vmem:[%s5 + $0x61c] sm:$0xf]
        %v8926 = vld [vmem:[%s5 + $0x620] sm:$0xff]
        %v8927 = vld [vmem:[%s5 + $0x628] sm:$0xff]
        %v8928 = vld [vmem:[%s5 + $0x630] sm:$0xff]
        %v8929 = vld [vmem:[%s5 + $0x638] sm:$0xf]
        %v8930 = vld [vmem:[%s5 + $0x63c] sm:$0xff]
        %v8931 = vld [vmem:[%s5 + $0x644] sm:$0xff]
        %v8932 = vld [vmem:[%s5 + $0x64c] sm:$0xff]
        %v8933 = vld [vmem:[%s5 + $0x654] sm:$0xf]
        %v8934 = vld [vmem:[%s5 + $0x658] sm:$0xff]
        %v8935 = vld [vmem:[%s5 + $0x660] sm:$0xff]
        %v8936 = vld [vmem:[%s5 + $0x668] sm:$0xff]
        %v8937 = vld [vmem:[%s5 + $0x670] sm:$0xf]
        %v8938 = vld [vmem:[%s5 + $0x674] sm:$0xff]
        %v8939 = vld [vmem:[%s5 + $0x67c] sm:$0xff]
        %v8940 = vld [vmem:[%s5 + $0x684] sm:$0xff]
        %v8941 = vld [vmem:[%s5 + $0x68c] sm:$0xf]
        %v8942 = vld [vmem:[%s5 + $0x690] sm:$0xff]
        %v8943 = vld [vmem:[%s5 + $0x698] sm:$0xff]
        %v8944 = vld [vmem:[%s5 + $0x6a0] sm:$0xff]
        %v8945 = vld [vmem:[%s5 + $0x6a8] sm:$0xf]
        %v8946 = vld [vmem:[%s5 + $0x6ac] sm:$0xff]
        %v8947 = vld [vmem:[%s5 + $0x6b4] sm:$0xff]
        %v8948 = vld [vmem:[%s5 + $0x6bc] sm:$0xff]
        %v8949 = vld [vmem:[%s5 + $0x6c4] sm:$0xf]
        %v8950 = vld [vmem:[%s5 + $0x6c8] sm:$0xff]
        %v8951 = vld [vmem:[%s5 + $0x6d0] sm:$0xff]
        %v8952 = vld [vmem:[%s5 + $0x6d8] sm:$0xff]
        %v8953 = vld [vmem:[%s5 + $0x6e0] sm:$0xf]
        %v8954 = vld [vmem:[%s5 + $0x6e4] sm:$0xff]
        %v8955 = vld [vmem:[%s5 + $0x6ec] sm:$0xff]
        %v8956 = vld [vmem:[%s5 + $0x6f4] sm:$0xff]
        %v8957 = vld [vmem:[%s5 + $0x6fc] sm:$0xf]
        %v8958 = vld [vmem:[%s5 + $0x700] sm:$0xff]
        %v8959 = vld [vmem:[%s5 + $0x708] sm:$0xff]
        %v8960 = vld [vmem:[%s5 + $0x710] sm:$0xff]
        %v8961 = vld [vmem:[%s5 + $0x718] sm:$0xf]
        %v8962 = vld [vmem:[%s5 + $0x71c] sm:$0xff]
        %v8963 = vld [vmem:[%s5 + $0x724] sm:$0xff]
        %v8964 = vld [vmem:[%s5 + $0x72c] sm:$0xff]
        %v8965 = vld [vmem:[%s5 + $0x734] sm:$0xf]
        %v8966 = vld [vmem:[%s5 + $0x738] sm:$0xff]
        %v8967 = vld [vmem:[%s5 + $0x740] sm:$0xff]
        %v8968 = vld [vmem:[%s5 + $0x748] sm:$0xff]
        %v8969 = vld [vmem:[%s5 + $0x750] sm:$0xf]
        %v8970 = vld [vmem:[%s5 + $0x754] sm:$0xff]
        %v8971 = vld [vmem:[%s5 + $0x75c] sm:$0xff]
        %v8972 = vld [vmem:[%s5 + $0x764] sm:$0xff]
        %v8973 = vld [vmem:[%s5 + $0x76c] sm:$0xf]
        %v8974 = vld [vmem:[%s5 + $0x770] sm:$0xff]
        %v8975 = vld [vmem:[%s5 + $0x778] sm:$0xff]
        %v8976 = vld [vmem:[%s5 + $0x780] sm:$0xff]
        %v8977 = vld [vmem:[%s5 + $0x788] sm:$0xf]
        %v8978 = vld [vmem:[%s5 + $0x78c] sm:$0xff]
        %v8979 = vld [vmem:[%s5 + $0x794] sm:$0xff]
        %v8980 = vld [vmem:[%s5 + $0x79c] sm:$0xff]
        %v8981 = vld [vmem:[%s5 + $0x7a4] sm:$0xf]
        %v8982 = vld [vmem:[%s5 + $0x7a8] sm:$0xff]
        %v8983 = vld [vmem:[%s5 + $0x7b0] sm:$0xff]
        %v8984 = vld [vmem:[%s5 + $0x7b8] sm:$0xff]
        %v8985 = vld [vmem:[%s5 + $0x7c0] sm:$0xf]
        %v8986 = vld [vmem:[%s5 + $0x7c4] sm:$0xff]
        %v8987 = vld [vmem:[%s5 + $0x7cc] sm:$0xff]
        %v8988 = vld [vmem:[%s5 + $0x7d4] sm:$0xff]
        %v8989 = vld [vmem:[%s5 + $0x7dc] sm:$0xf]
        %v8990 = vld [vmem:[%s5 + $0x7e0] sm:$0xff]
        %v8991 = vld [vmem:[%s5 + $0x7e8] sm:$0xff]
        %v8992 = vld [vmem:[%s5 + $0x7f0] sm:$0xff]
        %v8993 = vld [vmem:[%s5 + $0x7f8] sm:$0xf]
        %v8994 = vld [vmem:[%s5 + $0x7fc] sm:$0xff]
        %v8995 = vld [vmem:[%s5 + $0x804] sm:$0xff]
        %v8996 = vld [vmem:[%s5 + $0x80c] sm:$0xff]
        %v8997 = vld [vmem:[%s5 + $0x814] sm:$0xf]
        %v8998 = vld [vmem:[%s5 + $0x818] sm:$0xff]
        %v8999 = vld [vmem:[%s5 + $0x820] sm:$0xff]
        %v9000 = vld [vmem:[%s5 + $0x828] sm:$0xff]
        %v9001 = vld [vmem:[%s5 + $0x830] sm:$0xf]
        %v9002 = vld [vmem:[%s5 + $0x834] sm:$0xff]
        %v9003 = vld [vmem:[%s5 + $0x83c] sm:$0xff]
        %v9004 = vld [vmem:[%s5 + $0x844] sm:$0xff]
        %v9005 = vld [vmem:[%s5 + $0x84c] sm:$0xf]
        %v9006 = vld [vmem:[%s5 + $0x850] sm:$0xff]
        %v9007 = vld [vmem:[%s5 + $0x858] sm:$0xff]
        %v9008 = vld [vmem:[%s5 + $0x860] sm:$0xff]
        %v9009 = vld [vmem:[%s5 + $0x868] sm:$0xf]
        %v9010 = vld [vmem:[%s5 + $0x86c] sm:$0xff]
        %v9011 = vld [vmem:[%s5 + $0x874] sm:$0xff]
        %v9012 = vld [vmem:[%s5 + $0x87c] sm:$0xff]
        %v9013 = vld [vmem:[%s5 + $0x884] sm:$0xf]
        %v9014 = vld [vmem:[%s5 + $0x888] sm:$0xff]
        %v9015 = vld [vmem:[%s5 + $0x890] sm:$0xff]
        %v9016 = vld [vmem:[%s5 + $0x898] sm:$0xff]
        %v9017 = vld [vmem:[%s5 + $0x8a0] sm:$0xf]
        %v9018 = vld [vmem:[%s5 + $0x8a4] sm:$0xff]
        %v9019 = vld [vmem:[%s5 + $0x8ac] sm:$0xff]
        %v9020 = vld [vmem:[%s5 + $0x8b4] sm:$0xff]
        %v9021 = vld [vmem:[%s5 + $0x8bc] sm:$0xf]
        %v9022 = vld [vmem:[%s5 + $0x8c0] sm:$0xff]
        %v9023 = vld [vmem:[%s5 + $0x8c8] sm:$0xff]
        %v9024 = vld [vmem:[%s5 + $0x8d0] sm:$0xff]
        %v9025 = vld [vmem:[%s5 + $0x8d8] sm:$0xf]
        %v9026 = vld [vmem:[%s5 + $0x8dc] sm:$0xff]
        %v9027 = vld [vmem:[%s5 + $0x8e4] sm:$0xff]
        %v9028 = vld [vmem:[%s5 + $0x8ec] sm:$0xff]
        %v9029 = vld [vmem:[%s5 + $0x8f4] sm:$0xf]
        %v9030 = vld [vmem:[%s5 + $0x8f8] sm:$0xff]
        %v9031 = vld [vmem:[%s5 + $0x900] sm:$0xff]
        %v9032 = vld [vmem:[%s5 + $0x908] sm:$0xff]
        %v9033 = vld [vmem:[%s5 + $0x910] sm:$0xf]
        %v9034 = vld [vmem:[%s5 + $0x914] sm:$0xff]
        %v9035 = vld [vmem:[%s5 + $0x91c] sm:$0xff]
        %v9036 = vld [vmem:[%s5 + $0x924] sm:$0xff]
        %v9037 = vld [vmem:[%s5 + $0x92c] sm:$0xf]
        %v9038 = vld [vmem:[%s5 + $0x930] sm:$0xff]
        %v9039 = vld [vmem:[%s5 + $0x938] sm:$0xff]
        %v9040 = vld [vmem:[%s5 + $0x940] sm:$0xff]
        %v9041 = vld [vmem:[%s5 + $0x948] sm:$0xf]
        %v9042 = vld [vmem:[%s5 + $0x94c] sm:$0xff]
        %v9043 = vld [vmem:[%s5 + $0x954] sm:$0xff]
        %v9044 = vld [vmem:[%s5 + $0x95c] sm:$0xff]
        %v9045 = vld [vmem:[%s5 + $0x964] sm:$0xf]
        %v9046 = vld [vmem:[%s5 + $0x968] sm:$0xff]
        %v9047 = vld [vmem:[%s5 + $0x970] sm:$0xff]
        %v9048 = vld [vmem:[%s5 + $0x978] sm:$0xff]
        %v9049 = vld [vmem:[%s5 + $0x980] sm:$0xf]
        %v9050 = vld [vmem:[%s5 + $0x984] sm:$0xff]
        %v9051 = vld [vmem:[%s5 + $0x98c] sm:$0xff]
        %v9052 = vld [vmem:[%s5 + $0x994] sm:$0xff]
        %v9053 = vld [vmem:[%s5 + $0x99c] sm:$0xf]
        %v9054 = vld [vmem:[%s5 + $0x9a0] sm:$0xff]
        %v9055 = vld [vmem:[%s5 + $0x9a8] sm:$0xff]
        %v9056 = vld [vmem:[%s5 + $0x9b0] sm:$0xff]
        %v9057 = vld [vmem:[%s5 + $0x9b8] sm:$0xf]
        %v9058 = vld [vmem:[%s5 + $0x9bc] sm:$0xff]
        %v9059 = vld [vmem:[%s5 + $0x9c4] sm:$0xff]
        %v9060 = vld [vmem:[%s5 + $0x9cc] sm:$0xff]
        %v9061 = vld [vmem:[%s5 + $0x9d4] sm:$0xf]
        %v9062 = vld [vmem:[%s5 + $0x9d8] sm:$0xff]
        %v9063 = vld [vmem:[%s5 + $0x9e0] sm:$0xff]
        %v9064 = vld [vmem:[%s5 + $0x9e8] sm:$0xff]
        %v9065 = vld [vmem:[%s5 + $0x9f0] sm:$0xf]
        %v9066 = vld [vmem:[%s5 + $0x9f4] sm:$0xff]
        %v9067 = vld [vmem:[%s5 + $0x9fc] sm:$0xff]
        %v9068 = vld [vmem:[%s5 + $0xa04] sm:$0xff]
        %v9069 = vld [vmem:[%s5 + $0xa0c] sm:$0xf]
        %v9070 = vld [vmem:[%s5 + $0xa10] sm:$0xff]
        %v9071 = vld [vmem:[%s5 + $0xa18] sm:$0xff]
        %v9072 = vld [vmem:[%s5 + $0xa20] sm:$0xff]
        %v9073 = vld [vmem:[%s5 + $0xa28] sm:$0xf]
        %v9074 = vld [vmem:[%s5 + $0xa2c] sm:$0xff]
        %v9075 = vld [vmem:[%s5 + $0xa34] sm:$0xff]
        %v9076 = vld [vmem:[%s5 + $0xa3c] sm:$0xff]
        %v9077 = vld [vmem:[%s5 + $0xa44] sm:$0xf]
        %v9078 = vld [vmem:[%s5 + $0xa48] sm:$0xff]
        %v9079 = vld [vmem:[%s5 + $0xa50] sm:$0xff]
        %v9080 = vld [vmem:[%s5 + $0xa58] sm:$0xff]
        %v9081 = vld [vmem:[%s5 + $0xa60] sm:$0xf]
        %v9082 = vld [vmem:[%s5 + $0xa64] sm:$0xff]
        %v9083 = vld [vmem:[%s5 + $0xa6c] sm:$0xff]
        %v9084 = vld [vmem:[%s5 + $0xa74] sm:$0xff]
        %v9085 = vld [vmem:[%s5 + $0xa7c] sm:$0xf]
        %v9086 = vld [vmem:[%s5 + $0xa80] sm:$0xff]
        %v9087 = vld [vmem:[%s5 + $0xa88] sm:$0xff]
        %v9088 = vld [vmem:[%s5 + $0xa90] sm:$0xff]
        %v9089 = vld [vmem:[%s5 + $0xa98] sm:$0xf]
        %v9090 = vld [vmem:[%s5 + $0xa9c] sm:$0xff]
        %v9091 = vld [vmem:[%s5 + $0xaa4] sm:$0xff]
        %v9092 = vld [vmem:[%s5 + $0xaac] sm:$0xff]
        %v9093 = vld [vmem:[%s5 + $0xab4] sm:$0xf]
        %v9094 = vld [vmem:[%s5 + $0xab8] sm:$0xff]
        %v9095 = vld [vmem:[%s5 + $0xac0] sm:$0xff]
        %v9096 = vld [vmem:[%s5 + $0xac8] sm:$0xff]
        %v9097 = vld [vmem:[%s5 + $0xad0] sm:$0xf]
        %v9098 = vld [vmem:[%s5 + $0xad4] sm:$0xff]
        %v9099 = vld [vmem:[%s5 + $0xadc] sm:$0xff]
        %v9100 = vld [vmem:[%s5 + $0xae4] sm:$0xff]
        %v9101 = vld [vmem:[%s5 + $0xaec] sm:$0xf]
        %v9102 = vld [vmem:[%s5 + $0xaf0] sm:$0xff]
        %v9103 = vld [vmem:[%s5 + $0xaf8] sm:$0xff]
        %v9104 = vld [vmem:[%s5 + $0xb00] sm:$0xff]
        %v9105 = vld [vmem:[%s5 + $0xb08] sm:$0xf]
        %v9106 = vld [vmem:[%s5 + $0xb0c] sm:$0xff]
        %v9107 = vld [vmem:[%s5 + $0xb14] sm:$0xff]
        %v9108 = vld [vmem:[%s5 + $0xb1c] sm:$0xff]
        %v9109 = vld [vmem:[%s5 + $0xb24] sm:$0xf]
        %v9110 = vld [vmem:[%s5 + $0xb28] sm:$0xff]
        %v9111 = vld [vmem:[%s5 + $0xb30] sm:$0xff]
        %v9112 = vld [vmem:[%s5 + $0xb38] sm:$0xff]
        %v9113 = vld [vmem:[%s5 + $0xb40] sm:$0xf]
        %v9114 = vld [vmem:[%s5 + $0xb44] sm:$0xff]
        %v9115 = vld [vmem:[%s5 + $0xb4c] sm:$0xff]
        %v9116 = vld [vmem:[%s5 + $0xb54] sm:$0xff]
        %v9117 = vld [vmem:[%s5 + $0xb5c] sm:$0xf]
        %v9118 = vld [vmem:[%s5 + $0xb60] sm:$0xff]
        %v9119 = vld [vmem:[%s5 + $0xb68] sm:$0xff]
        %v9120 = vld [vmem:[%s5 + $0xb70] sm:$0xff]
        %v9121 = vld [vmem:[%s5 + $0xb78] sm:$0xf]
        %v9122 = vld [vmem:[%s5 + $0xb7c] sm:$0xff]
        %v9123 = vld [vmem:[%s5 + $0xb84] sm:$0xff]
        %v9124 = vld [vmem:[%s5 + $0xb8c] sm:$0xff]
        %v9125 = vld [vmem:[%s5 + $0xb94] sm:$0xf]
        %v9126 = vld [vmem:[%s5 + $0xb98] sm:$0xff]
        %v9127 = vld [vmem:[%s5 + $0xba0] sm:$0xff]
        %v9128 = vld [vmem:[%s5 + $0xba8] sm:$0xff]
        %v9129 = vld [vmem:[%s5 + $0xbb0] sm:$0xf]
        %v9130 = vld [vmem:[%s5 + $0xbb4] sm:$0xff]
        %v9131 = vld [vmem:[%s5 + $0xbbc] sm:$0xff]
        %v9132 = vld [vmem:[%s5 + $0xbc4] sm:$0xff]
        %v9133 = vld [vmem:[%s5 + $0xbcc] sm:$0xf]
        %v9134 = vld [vmem:[%s5 + $0xbd0] sm:$0xff]
        %v9135 = vld [vmem:[%s5 + $0xbd8] sm:$0xff]
        %v9136 = vld [vmem:[%s5 + $0xbe0] sm:$0xff]
        %v9137 = vld [vmem:[%s5 + $0xbe8] sm:$0xf]
        %v9138 = vld [vmem:[%s5 + $0xbec] sm:$0xff]
        %v9139 = vld [vmem:[%s5 + $0xbf4] sm:$0xff]
        %v9140 = vld [vmem:[%s5 + $0xbfc] sm:$0xff]
        %v9141 = vld [vmem:[%s5 + $0xc04] sm:$0xf]
        %v9142 = vld [vmem:[%s5 + $0xc08] sm:$0xff]
        %v9143 = vld [vmem:[%s5 + $0xc10] sm:$0xff]
        %v9144 = vld [vmem:[%s5 + $0xc18] sm:$0xff]
        %v9145 = vld [vmem:[%s5 + $0xc20] sm:$0xf]
        %v9146 = vld [vmem:[%s5 + $0xc24] sm:$0xff]
        %v9147 = vld [vmem:[%s5 + $0xc2c] sm:$0xff]
        %v9148 = vld [vmem:[%s5 + $0xc34] sm:$0xff]
        %v9149 = vld [vmem:[%s5 + $0xc3c] sm:$0xf]
        %v9150 = vld [vmem:[%s5 + $0xc40] sm:$0xff]
        %v9151 = vld [vmem:[%s5 + $0xc48] sm:$0xff]
        %v9152 = vld [vmem:[%s5 + $0xc50] sm:$0xff]
        %v9153 = vld [vmem:[%s5 + $0xc58] sm:$0xf]
        %v9154 = vld [vmem:[%s5 + $0xc5c] sm:$0xff]
        %v9155 = vld [vmem:[%s5 + $0xc64] sm:$0xff]
        %v9156 = vld [vmem:[%s5 + $0xc6c] sm:$0xff]
        %v9157 = vld [vmem:[%s5 + $0xc74] sm:$0xf]
        %v9158 = vld [vmem:[%s5 + $0xc78] sm:$0xff]
        %v9159 = vld [vmem:[%s5 + $0xc80] sm:$0xff]
        %v9160 = vld [vmem:[%s5 + $0xc88] sm:$0xff]
        %v9161 = vld [vmem:[%s5 + $0xc90] sm:$0xf]
        %v9162 = vld [vmem:[%s5 + $0xc94] sm:$0xff]
        %v9163 = vld [vmem:[%s5 + $0xc9c] sm:$0xff]
        %v9164 = vld [vmem:[%s5 + $0xca4] sm:$0xff]
        %v9165 = vld [vmem:[%s5 + $0xcac] sm:$0xf]
        %v9166 = vld [vmem:[%s5 + $0xcb0] sm:$0xff]
        %v9167 = vld [vmem:[%s5 + $0xcb8] sm:$0xff]
        %v9168 = vld [vmem:[%s5 + $0xcc0] sm:$0xff]
        %v9169 = vld [vmem:[%s5 + $0xcc8] sm:$0xf]
        %v9170 = vld [vmem:[%s5 + $0xccc] sm:$0xff]
        %v9171 = vld [vmem:[%s5 + $0xcd4] sm:$0xff]
        %v9172 = vld [vmem:[%s5 + $0xcdc] sm:$0xff]
        %v9173 = vld [vmem:[%s5 + $0xce4] sm:$0xf]
        %v9174 = vld [vmem:[%s5 + $0xce8] sm:$0xff]
        %v9175 = vld [vmem:[%s5 + $0xcf0] sm:$0xff]
        %v9176 = vld [vmem:[%s5 + $0xcf8] sm:$0xff]
        %v9177 = vld [vmem:[%s5 + $0xd00] sm:$0xf]
        %v9178 = vld [vmem:[%s5 + $0xd04] sm:$0xff]
        %v9179 = vld [vmem:[%s5 + $0xd0c] sm:$0xff]
        %v9180 = vld [vmem:[%s5 + $0xd14] sm:$0xff]
        %v9181 = vld [vmem:[%s5 + $0xd1c] sm:$0xf]
        %v9182 = vld [vmem:[%s5 + $0xd20] sm:$0xff]
        %v9183 = vld [vmem:[%s5 + $0xd28] sm:$0xff]
        %v9184 = vld [vmem:[%s5 + $0xd30] sm:$0xff]
        %v9185 = vld [vmem:[%s5 + $0xd38] sm:$0xf]
        %v9186 = vld [vmem:[%s5 + $0xd3c] sm:$0xff]
        %v9187 = vld [vmem:[%s5 + $0xd44] sm:$0xff]
        %v9188 = vld [vmem:[%s5 + $0xd4c] sm:$0xff]
        %v9189 = vld [vmem:[%s5 + $0xd54] sm:$0xf]
        %v9190 = vld [vmem:[%s5 + $0xd58] sm:$0xff]
        %v9191 = vld [vmem:[%s5 + $0xd60] sm:$0xff]
        %v9192 = vld [vmem:[%s5 + $0xd68] sm:$0xff]
        %v9193 = vld [vmem:[%s5 + $0xd70] sm:$0xf]
        %v9194 = vld [vmem:[%s5 + $0xd74] sm:$0xff]
        %v9195 = vld [vmem:[%s5 + $0xd7c] sm:$0xff]
        %v9196 = vld [vmem:[%s5 + $0xd84] sm:$0xff]
        %v9197 = vld [vmem:[%s5 + $0xd8c] sm:$0xf]
        %v9198 = vld [vmem:[%s5 + $0xd90] sm:$0xff]
        %v9199 = vld [vmem:[%s5 + $0xd98] sm:$0xff]
        %v9200 = vld [vmem:[%s5 + $0xda0] sm:$0xff]
        %v9201 = vld [vmem:[%s5 + $0xda8] sm:$0xf]
        %v9202 = vld [vmem:[%s5 + $0xdac] sm:$0xff]
        %v9203 = vld [vmem:[%s5 + $0xdb4] sm:$0xff]
        %v9204 = vld [vmem:[%s5 + $0xdbc] sm:$0xff]
        %v9205 = vld [vmem:[%s5 + $0xdc4] sm:$0xf]
        %v9206 = vld [vmem:[%s5 + $0xdc8] sm:$0xff]
        %v9207 = vld [vmem:[%s5 + $0xdd0] sm:$0xff]
        %v9208 = vld [vmem:[%s5 + $0xdd8] sm:$0xff]
        %v9209 = vld [vmem:[%s5 + $0xde0] sm:$0xf]
        %v9210 = vld [vmem:[%s5 + $0xde4] sm:$0xff]
        %v9211 = vld [vmem:[%s5 + $0xdec] sm:$0xff]
        %v9212 = vld [vmem:[%s5 + $0xdf4] sm:$0xff]
        %v9213 = vld [vmem:[%s5 + $0xdfc] sm:$0xf]
        %v9214 = vld [vmem:[%s6] sm:$0x7f]
        %v9216 = vperm.slane %v9214, 0
        %v9217 = vperm.slane %v9214, 1
        %v9218 = vperm.slane %v9214, 2
        %v9219 = vperm.slane %v9214, 3
        %v9220 = vperm.slane %v9214, 4
        %v9221 = vperm.slane %v9214, 5
        %v9222 = vperm.slane %v9214, 6
        %v9742 = vunpack.c.l.b16 %v8702
        %v9743 = vunpack.c.h.b16 %v8702
        %v9744 = vunpack.c.l.b16 %v8703
        %v9745 = vunpack.c.h.b16 %v8703
        %v9746 = vunpack.c.l.b16 %v8704
        %v9747 = vunpack.c.h.b16 %v8704
        %v9748 = vunpack.c.l.b16 %v8705
        %v9749 = vunpack.c.l.b16 %v8706
        %v9750 = vunpack.c.h.b16 %v8706
        %v9751 = vunpack.c.l.b16 %v8707
        %v9752 = vunpack.c.h.b16 %v8707
        %v9753 = vunpack.c.l.b16 %v8708
        %v9754 = vunpack.c.h.b16 %v8708
        %v9755 = vunpack.c.l.b16 %v8709
        %v9756 = vunpack.c.l.b16 %v8710
        %v9757 = vunpack.c.h.b16 %v8710
        %v9758 = vunpack.c.l.b16 %v8711
        %v9759 = vunpack.c.h.b16 %v8711
        %v9760 = vunpack.c.l.b16 %v8712
        %v9761 = vunpack.c.h.b16 %v8712
        %v9762 = vunpack.c.l.b16 %v8713
        %v9763 = vunpack.c.l.b16 %v8714
        %v9764 = vunpack.c.h.b16 %v8714
        %v9765 = vunpack.c.l.b16 %v8715
        %v9766 = vunpack.c.h.b16 %v8715
        %v9767 = vunpack.c.l.b16 %v8716
        %v9768 = vunpack.c.h.b16 %v8716
        %v9769 = vunpack.c.l.b16 %v8717
        %v9770 = vunpack.c.l.b16 %v8718
        %v9771 = vunpack.c.h.b16 %v8718
        %v9772 = vunpack.c.l.b16 %v8719
        %v9773 = vunpack.c.h.b16 %v8719
        %v9774 = vunpack.c.l.b16 %v8720
        %v9775 = vunpack.c.h.b16 %v8720
        %v9776 = vunpack.c.l.b16 %v8721
        %v9777 = vunpack.c.l.b16 %v8722
        %v9778 = vunpack.c.h.b16 %v8722
        %v9779 = vunpack.c.l.b16 %v8723
        %v9780 = vunpack.c.h.b16 %v8723
        %v9781 = vunpack.c.l.b16 %v8724
        %v9782 = vunpack.c.h.b16 %v8724
        %v9783 = vunpack.c.l.b16 %v8725
        %v9784 = vunpack.c.l.b16 %v8726
        %v9785 = vunpack.c.h.b16 %v8726
        %v9786 = vunpack.c.l.b16 %v8727
        %v9787 = vunpack.c.h.b16 %v8727
        %v9788 = vunpack.c.l.b16 %v8728
        %v9789 = vunpack.c.h.b16 %v8728
        %v9790 = vunpack.c.l.b16 %v8729
        %v9791 = vunpack.c.l.b16 %v8730
        %v9792 = vunpack.c.h.b16 %v8730
        %v9793 = vunpack.c.l.b16 %v8731
        %v9794 = vunpack.c.h.b16 %v8731
        %v9795 = vunpack.c.l.b16 %v8732
        %v9796 = vunpack.c.h.b16 %v8732
        %v9797 = vunpack.c.l.b16 %v8733
        %v9798 = vunpack.c.l.b16 %v8734
        %v9799 = vunpack.c.h.b16 %v8734
        %v9800 = vunpack.c.l.b16 %v8735
        %v9801 = vunpack.c.h.b16 %v8735
        %v9802 = vunpack.c.l.b16 %v8736
        %v9803 = vunpack.c.h.b16 %v8736
        %v9804 = vunpack.c.l.b16 %v8737
        %v9805 = vunpack.c.l.b16 %v8738
        %v9806 = vunpack.c.h.b16 %v8738
        %v9807 = vunpack.c.l.b16 %v8739
        %v9808 = vunpack.c.h.b16 %v8739
        %v9809 = vunpack.c.l.b16 %v8740
        %v9810 = vunpack.c.h.b16 %v8740
        %v9811 = vunpack.c.l.b16 %v8741
        %v9812 = vunpack.c.l.b16 %v8742
        %v9813 = vunpack.c.h.b16 %v8742
        %v9814 = vunpack.c.l.b16 %v8743
        %v9815 = vunpack.c.h.b16 %v8743
        %v9816 = vunpack.c.l.b16 %v8744
        %v9817 = vunpack.c.h.b16 %v8744
        %v9818 = vunpack.c.l.b16 %v8745
        %v9819 = vunpack.c.l.b16 %v8746
        %v9820 = vunpack.c.h.b16 %v8746
        %v9821 = vunpack.c.l.b16 %v8747
        %v9822 = vunpack.c.h.b16 %v8747
        %v9823 = vunpack.c.l.b16 %v8748
        %v9824 = vunpack.c.h.b16 %v8748
        %v9825 = vunpack.c.l.b16 %v8749
        %v9826 = vunpack.c.l.b16 %v8750
        %v9827 = vunpack.c.h.b16 %v8750
        %v9828 = vunpack.c.l.b16 %v8751
        %v9829 = vunpack.c.h.b16 %v8751
        %v9830 = vunpack.c.l.b16 %v8752
        %v9831 = vunpack.c.h.b16 %v8752
        %v9832 = vunpack.c.l.b16 %v8753
        %v9833 = vunpack.c.l.b16 %v8754
        %v9834 = vunpack.c.h.b16 %v8754
        %v9835 = vunpack.c.l.b16 %v8755
        %v9836 = vunpack.c.h.b16 %v8755
        %v9837 = vunpack.c.l.b16 %v8756
        %v9838 = vunpack.c.h.b16 %v8756
        %v9839 = vunpack.c.l.b16 %v8757
        %v9840 = vunpack.c.l.b16 %v8758
        %v9841 = vunpack.c.h.b16 %v8758
        %v9842 = vunpack.c.l.b16 %v8759
        %v9843 = vunpack.c.h.b16 %v8759
        %v9844 = vunpack.c.l.b16 %v8760
        %v9845 = vunpack.c.h.b16 %v8760
        %v9846 = vunpack.c.l.b16 %v8761
        %v9847 = vunpack.c.l.b16 %v8762
        %v9848 = vunpack.c.h.b16 %v8762
        %v9849 = vunpack.c.l.b16 %v8763
        %v9850 = vunpack.c.h.b16 %v8763
        %v9851 = vunpack.c.l.b16 %v8764
        %v9852 = vunpack.c.h.b16 %v8764
        %v9853 = vunpack.c.l.b16 %v8765
        %v9854 = vunpack.c.l.b16 %v8766
        %v9855 = vunpack.c.h.b16 %v8766
        %v9856 = vunpack.c.l.b16 %v8767
        %v9857 = vunpack.c.h.b16 %v8767
        %v9858 = vunpack.c.l.b16 %v8768
        %v9859 = vunpack.c.h.b16 %v8768
        %v9860 = vunpack.c.l.b16 %v8769
        %v9861 = vunpack.c.l.b16 %v8770
        %v9862 = vunpack.c.h.b16 %v8770
        %v9863 = vunpack.c.l.b16 %v8771
        %v9864 = vunpack.c.h.b16 %v8771
        %v9865 = vunpack.c.l.b16 %v8772
        %v9866 = vunpack.c.h.b16 %v8772
        %v9867 = vunpack.c.l.b16 %v8773
        %v9868 = vunpack.c.l.b16 %v8774
        %v9869 = vunpack.c.h.b16 %v8774
        %v9870 = vunpack.c.l.b16 %v8775
        %v9871 = vunpack.c.h.b16 %v8775
        %v9872 = vunpack.c.l.b16 %v8776
        %v9873 = vunpack.c.h.b16 %v8776
        %v9874 = vunpack.c.l.b16 %v8777
        %v9875 = vunpack.c.l.b16 %v8778
        %v9876 = vunpack.c.h.b16 %v8778
        %v9877 = vunpack.c.l.b16 %v8779
        %v9878 = vunpack.c.h.b16 %v8779
        %v9879 = vunpack.c.l.b16 %v8780
        %v9880 = vunpack.c.h.b16 %v8780
        %v9881 = vunpack.c.l.b16 %v8781
        %v9882 = vunpack.c.l.b16 %v8782
        %v9883 = vunpack.c.h.b16 %v8782
        %v9884 = vunpack.c.l.b16 %v8783
        %v9885 = vunpack.c.h.b16 %v8783
        %v9886 = vunpack.c.l.b16 %v8784
        %v9887 = vunpack.c.h.b16 %v8784
        %v9888 = vunpack.c.l.b16 %v8785
        %v9889 = vunpack.c.l.b16 %v8786
        %v9890 = vunpack.c.h.b16 %v8786
        %v9891 = vunpack.c.l.b16 %v8787
        %v9892 = vunpack.c.h.b16 %v8787
        %v9893 = vunpack.c.l.b16 %v8788
        %v9894 = vunpack.c.h.b16 %v8788
        %v9895 = vunpack.c.l.b16 %v8789
        %v9896 = vunpack.c.l.b16 %v8790
        %v9897 = vunpack.c.h.b16 %v8790
        %v9898 = vunpack.c.l.b16 %v8791
        %v9899 = vunpack.c.h.b16 %v8791
        %v9900 = vunpack.c.l.b16 %v8792
        %v9901 = vunpack.c.h.b16 %v8792
        %v9902 = vunpack.c.l.b16 %v8793
        %v9903 = vunpack.c.l.b16 %v8794
        %v9904 = vunpack.c.h.b16 %v8794
        %v9905 = vunpack.c.l.b16 %v8795
        %v9906 = vunpack.c.h.b16 %v8795
        %v9907 = vunpack.c.l.b16 %v8796
        %v9908 = vunpack.c.h.b16 %v8796
        %v9909 = vunpack.c.l.b16 %v8797
        %v9910 = vunpack.c.l.b16 %v8798
        %v9911 = vunpack.c.h.b16 %v8798
        %v9912 = vunpack.c.l.b16 %v8799
        %v9913 = vunpack.c.h.b16 %v8799
        %v9914 = vunpack.c.l.b16 %v8800
        %v9915 = vunpack.c.h.b16 %v8800
        %v9916 = vunpack.c.l.b16 %v8801
        %v9917 = vunpack.c.l.b16 %v8802
        %v9918 = vunpack.c.h.b16 %v8802
        %v9919 = vunpack.c.l.b16 %v8803
        %v9920 = vunpack.c.h.b16 %v8803
        %v9921 = vunpack.c.l.b16 %v8804
        %v9922 = vunpack.c.h.b16 %v8804
        %v9923 = vunpack.c.l.b16 %v8805
        %v9924 = vunpack.c.l.b16 %v8806
        %v9925 = vunpack.c.h.b16 %v8806
        %v9926 = vunpack.c.l.b16 %v8807
        %v9927 = vunpack.c.h.b16 %v8807
        %v9928 = vunpack.c.l.b16 %v8808
        %v9929 = vunpack.c.h.b16 %v8808
        %v9930 = vunpack.c.l.b16 %v8809
        %v9931 = vunpack.c.l.b16 %v8810
        %v9932 = vunpack.c.h.b16 %v8810
        %v9933 = vunpack.c.l.b16 %v8811
        %v9934 = vunpack.c.h.b16 %v8811
        %v9935 = vunpack.c.l.b16 %v8812
        %v9936 = vunpack.c.h.b16 %v8812
        %v9937 = vunpack.c.l.b16 %v8813
        %v9938 = vunpack.c.l.b16 %v8814
        %v9939 = vunpack.c.h.b16 %v8814
        %v9940 = vunpack.c.l.b16 %v8815
        %v9941 = vunpack.c.h.b16 %v8815
        %v9942 = vunpack.c.l.b16 %v8816
        %v9943 = vunpack.c.h.b16 %v8816
        %v9944 = vunpack.c.l.b16 %v8817
        %v9945 = vunpack.c.l.b16 %v8818
        %v9946 = vunpack.c.h.b16 %v8818
        %v9947 = vunpack.c.l.b16 %v8819
        %v9948 = vunpack.c.h.b16 %v8819
        %v9949 = vunpack.c.l.b16 %v8820
        %v9950 = vunpack.c.h.b16 %v8820
        %v9951 = vunpack.c.l.b16 %v8821
        %v9952 = vunpack.c.l.b16 %v8822
        %v9953 = vunpack.c.h.b16 %v8822
        %v9954 = vunpack.c.l.b16 %v8823
        %v9955 = vunpack.c.h.b16 %v8823
        %v9956 = vunpack.c.l.b16 %v8824
        %v9957 = vunpack.c.h.b16 %v8824
        %v9958 = vunpack.c.l.b16 %v8825
        %v9959 = vunpack.c.l.b16 %v8826
        %v9960 = vunpack.c.h.b16 %v8826
        %v9961 = vunpack.c.l.b16 %v8827
        %v9962 = vunpack.c.h.b16 %v8827
        %v9963 = vunpack.c.l.b16 %v8828
        %v9964 = vunpack.c.h.b16 %v8828
        %v9965 = vunpack.c.l.b16 %v8829
        %v9966 = vunpack.c.l.b16 %v8830
        %v9967 = vunpack.c.h.b16 %v8830
        %v9968 = vunpack.c.l.b16 %v8831
        %v9969 = vunpack.c.h.b16 %v8831
        %v9970 = vunpack.c.l.b16 %v8832
        %v9971 = vunpack.c.h.b16 %v8832
        %v9972 = vunpack.c.l.b16 %v8833
        %v9973 = vunpack.c.l.b16 %v8834
        %v9974 = vunpack.c.h.b16 %v8834
        %v9975 = vunpack.c.l.b16 %v8835
        %v9976 = vunpack.c.h.b16 %v8835
        %v9977 = vunpack.c.l.b16 %v8836
        %v9978 = vunpack.c.h.b16 %v8836
        %v9979 = vunpack.c.l.b16 %v8837
        %v9980 = vunpack.c.l.b16 %v8838
        %v9981 = vunpack.c.h.b16 %v8838
        %v9982 = vunpack.c.l.b16 %v8839
        %v9983 = vunpack.c.h.b16 %v8839
        %v9984 = vunpack.c.l.b16 %v8840
        %v9985 = vunpack.c.h.b16 %v8840
        %v9986 = vunpack.c.l.b16 %v8841
        %v9987 = vunpack.c.l.b16 %v8842
        %v9988 = vunpack.c.h.b16 %v8842
        %v9989 = vunpack.c.l.b16 %v8843
        %v9990 = vunpack.c.h.b16 %v8843
        %v9991 = vunpack.c.l.b16 %v8844
        %v9992 = vunpack.c.h.b16 %v8844
        %v9993 = vunpack.c.l.b16 %v8845
        %v9994 = vunpack.c.l.b16 %v8846
        %v9995 = vunpack.c.h.b16 %v8846
        %v9996 = vunpack.c.l.b16 %v8847
        %v9997 = vunpack.c.h.b16 %v8847
        %v9998 = vunpack.c.l.b16 %v8848
        %v9999 = vunpack.c.h.b16 %v8848
        %v10000 = vunpack.c.l.b16 %v8849
        %v10001 = vunpack.c.l.b16 %v8850
        %v10002 = vunpack.c.h.b16 %v8850
        %v10003 = vunpack.c.l.b16 %v8851
        %v10004 = vunpack.c.h.b16 %v8851
        %v10005 = vunpack.c.l.b16 %v8852
        %v10006 = vunpack.c.h.b16 %v8852
        %v10007 = vunpack.c.l.b16 %v8853
        %v10008 = vunpack.c.l.b16 %v8854
        %v10009 = vunpack.c.h.b16 %v8854
        %v10010 = vunpack.c.l.b16 %v8855
        %v10011 = vunpack.c.h.b16 %v8855
        %v10012 = vunpack.c.l.b16 %v8856
        %v10013 = vunpack.c.h.b16 %v8856
        %v10014 = vunpack.c.l.b16 %v8857
        %v10015 = vunpack.c.l.b16 %v8858
        %v10016 = vunpack.c.h.b16 %v8858
        %v10017 = vunpack.c.l.b16 %v8859
        %v10018 = vunpack.c.h.b16 %v8859
        %v10019 = vunpack.c.l.b16 %v8860
        %v10020 = vunpack.c.h.b16 %v8860
        %v10021 = vunpack.c.l.b16 %v8861
        %v10022 = vunpack.c.l.b16 %v8862
        %v10023 = vunpack.c.h.b16 %v8862
        %v10024 = vunpack.c.l.b16 %v8863
        %v10025 = vunpack.c.h.b16 %v8863
        %v10026 = vunpack.c.l.b16 %v8864
        %v10027 = vunpack.c.h.b16 %v8864
        %v10028 = vunpack.c.l.b16 %v8865
        %v10029 = vunpack.c.l.b16 %v8866
        %v10030 = vunpack.c.h.b16 %v8866
        %v10031 = vunpack.c.l.b16 %v8867
        %v10032 = vunpack.c.h.b16 %v8867
        %v10033 = vunpack.c.l.b16 %v8868
        %v10034 = vunpack.c.h.b16 %v8868
        %v10035 = vunpack.c.l.b16 %v8869
        %v10036 = vunpack.c.l.b16 %v8870
        %v10037 = vunpack.c.h.b16 %v8870
        %v10038 = vunpack.c.l.b16 %v8871
        %v10039 = vunpack.c.h.b16 %v8871
        %v10040 = vunpack.c.l.b16 %v8872
        %v10041 = vunpack.c.h.b16 %v8872
        %v10042 = vunpack.c.l.b16 %v8873
        %v10043 = vunpack.c.l.b16 %v8874
        %v10044 = vunpack.c.h.b16 %v8874
        %v10045 = vunpack.c.l.b16 %v8875
        %v10046 = vunpack.c.h.b16 %v8875
        %v10047 = vunpack.c.l.b16 %v8876
        %v10048 = vunpack.c.h.b16 %v8876
        %v10049 = vunpack.c.l.b16 %v8877
        %v10050 = vunpack.c.l.b16 %v8878
        %v10051 = vunpack.c.h.b16 %v8878
        %v10052 = vunpack.c.l.b16 %v8879
        %v10053 = vunpack.c.h.b16 %v8879
        %v10054 = vunpack.c.l.b16 %v8880
        %v10055 = vunpack.c.h.b16 %v8880
        %v10056 = vunpack.c.l.b16 %v8881
        %v10057 = vunpack.c.l.b16 %v8882
        %v10058 = vunpack.c.h.b16 %v8882
        %v10059 = vunpack.c.l.b16 %v8883
        %v10060 = vunpack.c.h.b16 %v8883
        %v10061 = vunpack.c.l.b16 %v8884
        %v10062 = vunpack.c.h.b16 %v8884
        %v10063 = vunpack.c.l.b16 %v8885
        %v10064 = vunpack.c.l.b16 %v8886
        %v10065 = vunpack.c.h.b16 %v8886
        %v10066 = vunpack.c.l.b16 %v8887
        %v10067 = vunpack.c.h.b16 %v8887
        %v10068 = vunpack.c.l.b16 %v8888
        %v10069 = vunpack.c.h.b16 %v8888
        %v10070 = vunpack.c.l.b16 %v8889
        %v10071 = vunpack.c.l.b16 %v8890
        %v10072 = vunpack.c.h.b16 %v8890
        %v10073 = vunpack.c.l.b16 %v8891
        %v10074 = vunpack.c.h.b16 %v8891
        %v10075 = vunpack.c.l.b16 %v8892
        %v10076 = vunpack.c.h.b16 %v8892
        %v10077 = vunpack.c.l.b16 %v8893
        %v10078 = vunpack.c.l.b16 %v8894
        %v10079 = vunpack.c.h.b16 %v8894
        %v10080 = vunpack.c.l.b16 %v8895
        %v10081 = vunpack.c.h.b16 %v8895
        %v10082 = vunpack.c.l.b16 %v8896
        %v10083 = vunpack.c.h.b16 %v8896
        %v10084 = vunpack.c.l.b16 %v8897
        %v10085 = vunpack.c.l.b16 %v8898
        %v10086 = vunpack.c.h.b16 %v8898
        %v10087 = vunpack.c.l.b16 %v8899
        %v10088 = vunpack.c.h.b16 %v8899
        %v10089 = vunpack.c.l.b16 %v8900
        %v10090 = vunpack.c.h.b16 %v8900
        %v10091 = vunpack.c.l.b16 %v8901
        %v10092 = vunpack.c.l.b16 %v8902
        %v10093 = vunpack.c.h.b16 %v8902
        %v10094 = vunpack.c.l.b16 %v8903
        %v10095 = vunpack.c.h.b16 %v8903
        %v10096 = vunpack.c.l.b16 %v8904
        %v10097 = vunpack.c.h.b16 %v8904
        %v10098 = vunpack.c.l.b16 %v8905
        %v10099 = vunpack.c.l.b16 %v8906
        %v10100 = vunpack.c.h.b16 %v8906
        %v10101 = vunpack.c.l.b16 %v8907
        %v10102 = vunpack.c.h.b16 %v8907
        %v10103 = vunpack.c.l.b16 %v8908
        %v10104 = vunpack.c.h.b16 %v8908
        %v10105 = vunpack.c.l.b16 %v8909
        %v10106 = vunpack.c.l.b16 %v8910
        %v10107 = vunpack.c.h.b16 %v8910
        %v10108 = vunpack.c.l.b16 %v8911
        %v10109 = vunpack.c.h.b16 %v8911
        %v10110 = vunpack.c.l.b16 %v8912
        %v10111 = vunpack.c.h.b16 %v8912
        %v10112 = vunpack.c.l.b16 %v8913
        %v10113 = vunpack.c.l.b16 %v8914
        %v10114 = vunpack.c.h.b16 %v8914
        %v10115 = vunpack.c.l.b16 %v8915
        %v10116 = vunpack.c.h.b16 %v8915
        %v10117 = vunpack.c.l.b16 %v8916
        %v10118 = vunpack.c.h.b16 %v8916
        %v10119 = vunpack.c.l.b16 %v8917
        %v10120 = vunpack.c.l.b16 %v8918
        %v10121 = vunpack.c.h.b16 %v8918
        %v10122 = vunpack.c.l.b16 %v8919
        %v10123 = vunpack.c.h.b16 %v8919
        %v10124 = vunpack.c.l.b16 %v8920
        %v10125 = vunpack.c.h.b16 %v8920
        %v10126 = vunpack.c.l.b16 %v8921
        %v10127 = vunpack.c.l.b16 %v8922
        %v10128 = vunpack.c.h.b16 %v8922
        %v10129 = vunpack.c.l.b16 %v8923
        %v10130 = vunpack.c.h.b16 %v8923
        %v10131 = vunpack.c.l.b16 %v8924
        %v10132 = vunpack.c.h.b16 %v8924
        %v10133 = vunpack.c.l.b16 %v8925
        %v10134 = vunpack.c.l.b16 %v8926
        %v10135 = vunpack.c.h.b16 %v8926
        %v10136 = vunpack.c.l.b16 %v8927
        %v10137 = vunpack.c.h.b16 %v8927
        %v10138 = vunpack.c.l.b16 %v8928
        %v10139 = vunpack.c.h.b16 %v8928
        %v10140 = vunpack.c.l.b16 %v8929
        %v10141 = vunpack.c.l.b16 %v8930
        %v10142 = vunpack.c.h.b16 %v8930
        %v10143 = vunpack.c.l.b16 %v8931
        %v10144 = vunpack.c.h.b16 %v8931
        %v10145 = vunpack.c.l.b16 %v8932
        %v10146 = vunpack.c.h.b16 %v8932
        %v10147 = vunpack.c.l.b16 %v8933
        %v10148 = vunpack.c.l.b16 %v8934
        %v10149 = vunpack.c.h.b16 %v8934
        %v10150 = vunpack.c.l.b16 %v8935
        %v10151 = vunpack.c.h.b16 %v8935
        %v10152 = vunpack.c.l.b16 %v8936
        %v10153 = vunpack.c.h.b16 %v8936
        %v10154 = vunpack.c.l.b16 %v8937
        %v10155 = vunpack.c.l.b16 %v8938
        %v10156 = vunpack.c.h.b16 %v8938
        %v10157 = vunpack.c.l.b16 %v8939
        %v10158 = vunpack.c.h.b16 %v8939
        %v10159 = vunpack.c.l.b16 %v8940
        %v10160 = vunpack.c.h.b16 %v8940
        %v10161 = vunpack.c.l.b16 %v8941
        %v10162 = vunpack.c.l.b16 %v8942
        %v10163 = vunpack.c.h.b16 %v8942
        %v10164 = vunpack.c.l.b16 %v8943
        %v10165 = vunpack.c.h.b16 %v8943
        %v10166 = vunpack.c.l.b16 %v8944
        %v10167 = vunpack.c.h.b16 %v8944
        %v10168 = vunpack.c.l.b16 %v8945
        %v10169 = vunpack.c.l.b16 %v8946
        %v10170 = vunpack.c.h.b16 %v8946
        %v10171 = vunpack.c.l.b16 %v8947
        %v10172 = vunpack.c.h.b16 %v8947
        %v10173 = vunpack.c.l.b16 %v8948
        %v10174 = vunpack.c.h.b16 %v8948
        %v10175 = vunpack.c.l.b16 %v8949
        %v10176 = vunpack.c.l.b16 %v8950
        %v10177 = vunpack.c.h.b16 %v8950
        %v10178 = vunpack.c.l.b16 %v8951
        %v10179 = vunpack.c.h.b16 %v8951
        %v10180 = vunpack.c.l.b16 %v8952
        %v10181 = vunpack.c.h.b16 %v8952
        %v10182 = vunpack.c.l.b16 %v8953
        %v10183 = vunpack.c.l.b16 %v8954
        %v10184 = vunpack.c.h.b16 %v8954
        %v10185 = vunpack.c.l.b16 %v8955
        %v10186 = vunpack.c.h.b16 %v8955
        %v10187 = vunpack.c.l.b16 %v8956
        %v10188 = vunpack.c.h.b16 %v8956
        %v10189 = vunpack.c.l.b16 %v8957
        %v10190 = vunpack.c.l.b16 %v8958
        %v10191 = vunpack.c.h.b16 %v8958
        %v10192 = vunpack.c.l.b16 %v8959
        %v10193 = vunpack.c.h.b16 %v8959
        %v10194 = vunpack.c.l.b16 %v8960
        %v10195 = vunpack.c.h.b16 %v8960
        %v10196 = vunpack.c.l.b16 %v8961
        %v10197 = vunpack.c.l.b16 %v8962
        %v10198 = vunpack.c.h.b16 %v8962
        %v10199 = vunpack.c.l.b16 %v8963
        %v10200 = vunpack.c.h.b16 %v8963
        %v10201 = vunpack.c.l.b16 %v8964
        %v10202 = vunpack.c.h.b16 %v8964
        %v10203 = vunpack.c.l.b16 %v8965
        %v10204 = vunpack.c.l.b16 %v8966
        %v10205 = vunpack.c.h.b16 %v8966
        %v10206 = vunpack.c.l.b16 %v8967
        %v10207 = vunpack.c.h.b16 %v8967
        %v10208 = vunpack.c.l.b16 %v8968
        %v10209 = vunpack.c.h.b16 %v8968
        %v10210 = vunpack.c.l.b16 %v8969
        %v10211 = vunpack.c.l.b16 %v8970
        %v10212 = vunpack.c.h.b16 %v8970
        %v10213 = vunpack.c.l.b16 %v8971
        %v10214 = vunpack.c.h.b16 %v8971
        %v10215 = vunpack.c.l.b16 %v8972
        %v10216 = vunpack.c.h.b16 %v8972
        %v10217 = vunpack.c.l.b16 %v8973
        %v10218 = vunpack.c.l.b16 %v8974
        %v10219 = vunpack.c.h.b16 %v8974
        %v10220 = vunpack.c.l.b16 %v8975
        %v10221 = vunpack.c.h.b16 %v8975
        %v10222 = vunpack.c.l.b16 %v8976
        %v10223 = vunpack.c.h.b16 %v8976
        %v10224 = vunpack.c.l.b16 %v8977
        %v10225 = vunpack.c.l.b16 %v8978
        %v10226 = vunpack.c.h.b16 %v8978
        %v10227 = vunpack.c.l.b16 %v8979
        %v10228 = vunpack.c.h.b16 %v8979
        %v10229 = vunpack.c.l.b16 %v8980
        %v10230 = vunpack.c.h.b16 %v8980
        %v10231 = vunpack.c.l.b16 %v8981
        %v10232 = vunpack.c.l.b16 %v8982
        %v10233 = vunpack.c.h.b16 %v8982
        %v10234 = vunpack.c.l.b16 %v8983
        %v10235 = vunpack.c.h.b16 %v8983
        %v10236 = vunpack.c.l.b16 %v8984
        %v10237 = vunpack.c.h.b16 %v8984
        %v10238 = vunpack.c.l.b16 %v8985
        %v10239 = vunpack.c.l.b16 %v8986
        %v10240 = vunpack.c.h.b16 %v8986
        %v10241 = vunpack.c.l.b16 %v8987
        %v10242 = vunpack.c.h.b16 %v8987
        %v10243 = vunpack.c.l.b16 %v8988
        %v10244 = vunpack.c.h.b16 %v8988
        %v10245 = vunpack.c.l.b16 %v8989
        %v10246 = vunpack.c.l.b16 %v8990
        %v10247 = vunpack.c.h.b16 %v8990
        %v10248 = vunpack.c.l.b16 %v8991
        %v10249 = vunpack.c.h.b16 %v8991
        %v10250 = vunpack.c.l.b16 %v8992
        %v10251 = vunpack.c.h.b16 %v8992
        %v10252 = vunpack.c.l.b16 %v8993
        %v10253 = vunpack.c.l.b16 %v8994
        %v10254 = vunpack.c.h.b16 %v8994
        %v10255 = vunpack.c.l.b16 %v8995
        %v10256 = vunpack.c.h.b16 %v8995
        %v10257 = vunpack.c.l.b16 %v8996
        %v10258 = vunpack.c.h.b16 %v8996
        %v10259 = vunpack.c.l.b16 %v8997
        %v10260 = vunpack.c.l.b16 %v8998
        %v10261 = vunpack.c.h.b16 %v8998
        %v10262 = vunpack.c.l.b16 %v8999
        %v10263 = vunpack.c.h.b16 %v8999
        %v10264 = vunpack.c.l.b16 %v9000
        %v10265 = vunpack.c.h.b16 %v9000
        %v10266 = vunpack.c.l.b16 %v9001
        %v10267 = vunpack.c.l.b16 %v9002
        %v10268 = vunpack.c.h.b16 %v9002
        %v10269 = vunpack.c.l.b16 %v9003
        %v10270 = vunpack.c.h.b16 %v9003
        %v10271 = vunpack.c.l.b16 %v9004
        %v10272 = vunpack.c.h.b16 %v9004
        %v10273 = vunpack.c.l.b16 %v9005
        %v10274 = vunpack.c.l.b16 %v9006
        %v10275 = vunpack.c.h.b16 %v9006
        %v10276 = vunpack.c.l.b16 %v9007
        %v10277 = vunpack.c.h.b16 %v9007
        %v10278 = vunpack.c.l.b16 %v9008
        %v10279 = vunpack.c.h.b16 %v9008
        %v10280 = vunpack.c.l.b16 %v9009
        %v10281 = vunpack.c.l.b16 %v9010
        %v10282 = vunpack.c.h.b16 %v9010
        %v10283 = vunpack.c.l.b16 %v9011
        %v10284 = vunpack.c.h.b16 %v9011
        %v10285 = vunpack.c.l.b16 %v9012
        %v10286 = vunpack.c.h.b16 %v9012
        %v10287 = vunpack.c.l.b16 %v9013
        %v10288 = vunpack.c.l.b16 %v9014
        %v10289 = vunpack.c.h.b16 %v9014
        %v10290 = vunpack.c.l.b16 %v9015
        %v10291 = vunpack.c.h.b16 %v9015
        %v10292 = vunpack.c.l.b16 %v9016
        %v10293 = vunpack.c.h.b16 %v9016
        %v10294 = vunpack.c.l.b16 %v9017
        %v10295 = vunpack.c.l.b16 %v9018
        %v10296 = vunpack.c.h.b16 %v9018
        %v10297 = vunpack.c.l.b16 %v9019
        %v10298 = vunpack.c.h.b16 %v9019
        %v10299 = vunpack.c.l.b16 %v9020
        %v10300 = vunpack.c.h.b16 %v9020
        %v10301 = vunpack.c.l.b16 %v9021
        %v10302 = vunpack.c.l.b16 %v9022
        %v10303 = vunpack.c.h.b16 %v9022
        %v10304 = vunpack.c.l.b16 %v9023
        %v10305 = vunpack.c.h.b16 %v9023
        %v10306 = vunpack.c.l.b16 %v9024
        %v10307 = vunpack.c.h.b16 %v9024
        %v10308 = vunpack.c.l.b16 %v9025
        %v10309 = vunpack.c.l.b16 %v9026
        %v10310 = vunpack.c.h.b16 %v9026
        %v10311 = vunpack.c.l.b16 %v9027
        %v10312 = vunpack.c.h.b16 %v9027
        %v10313 = vunpack.c.l.b16 %v9028
        %v10314 = vunpack.c.h.b16 %v9028
        %v10315 = vunpack.c.l.b16 %v9029
        %v10316 = vunpack.c.l.b16 %v9030
        %v10317 = vunpack.c.h.b16 %v9030
        %v10318 = vunpack.c.l.b16 %v9031
        %v10319 = vunpack.c.h.b16 %v9031
        %v10320 = vunpack.c.l.b16 %v9032
        %v10321 = vunpack.c.h.b16 %v9032
        %v10322 = vunpack.c.l.b16 %v9033
        %v10323 = vunpack.c.l.b16 %v9034
        %v10324 = vunpack.c.h.b16 %v9034
        %v10325 = vunpack.c.l.b16 %v9035
        %v10326 = vunpack.c.h.b16 %v9035
        %v10327 = vunpack.c.l.b16 %v9036
        %v10328 = vunpack.c.h.b16 %v9036
        %v10329 = vunpack.c.l.b16 %v9037
        %v10330 = vunpack.c.l.b16 %v9038
        %v10331 = vunpack.c.h.b16 %v9038
        %v10332 = vunpack.c.l.b16 %v9039
        %v10333 = vunpack.c.h.b16 %v9039
        %v10334 = vunpack.c.l.b16 %v9040
        %v10335 = vunpack.c.h.b16 %v9040
        %v10336 = vunpack.c.l.b16 %v9041
        %v10337 = vunpack.c.l.b16 %v9042
        %v10338 = vunpack.c.h.b16 %v9042
        %v10339 = vunpack.c.l.b16 %v9043
        %v10340 = vunpack.c.h.b16 %v9043
        %v10341 = vunpack.c.l.b16 %v9044
        %v10342 = vunpack.c.h.b16 %v9044
        %v10343 = vunpack.c.l.b16 %v9045
        %v10344 = vunpack.c.l.b16 %v9046
        %v10345 = vunpack.c.h.b16 %v9046
        %v10346 = vunpack.c.l.b16 %v9047
        %v10347 = vunpack.c.h.b16 %v9047
        %v10348 = vunpack.c.l.b16 %v9048
        %v10349 = vunpack.c.h.b16 %v9048
        %v10350 = vunpack.c.l.b16 %v9049
        %v10351 = vunpack.c.l.b16 %v9050
        %v10352 = vunpack.c.h.b16 %v9050
        %v10353 = vunpack.c.l.b16 %v9051
        %v10354 = vunpack.c.h.b16 %v9051
        %v10355 = vunpack.c.l.b16 %v9052
        %v10356 = vunpack.c.h.b16 %v9052
        %v10357 = vunpack.c.l.b16 %v9053
        %v10358 = vunpack.c.l.b16 %v9054
        %v10359 = vunpack.c.h.b16 %v9054
        %v10360 = vunpack.c.l.b16 %v9055
        %v10361 = vunpack.c.h.b16 %v9055
        %v10362 = vunpack.c.l.b16 %v9056
        %v10363 = vunpack.c.h.b16 %v9056
        %v10364 = vunpack.c.l.b16 %v9057
        %v10365 = vunpack.c.l.b16 %v9058
        %v10366 = vunpack.c.h.b16 %v9058
        %v10367 = vunpack.c.l.b16 %v9059
        %v10368 = vunpack.c.h.b16 %v9059
        %v10369 = vunpack.c.l.b16 %v9060
        %v10370 = vunpack.c.h.b16 %v9060
        %v10371 = vunpack.c.l.b16 %v9061
        %v10372 = vunpack.c.l.b16 %v9062
        %v10373 = vunpack.c.h.b16 %v9062
        %v10374 = vunpack.c.l.b16 %v9063
        %v10375 = vunpack.c.h.b16 %v9063
        %v10376 = vunpack.c.l.b16 %v9064
        %v10377 = vunpack.c.h.b16 %v9064
        %v10378 = vunpack.c.l.b16 %v9065
        %v10379 = vunpack.c.l.b16 %v9066
        %v10380 = vunpack.c.h.b16 %v9066
        %v10381 = vunpack.c.l.b16 %v9067
        %v10382 = vunpack.c.h.b16 %v9067
        %v10383 = vunpack.c.l.b16 %v9068
        %v10384 = vunpack.c.h.b16 %v9068
        %v10385 = vunpack.c.l.b16 %v9069
        %v10386 = vunpack.c.l.b16 %v9070
        %v10387 = vunpack.c.h.b16 %v9070
        %v10388 = vunpack.c.l.b16 %v9071
        %v10389 = vunpack.c.h.b16 %v9071
        %v10390 = vunpack.c.l.b16 %v9072
        %v10391 = vunpack.c.h.b16 %v9072
        %v10392 = vunpack.c.l.b16 %v9073
        %v10393 = vunpack.c.l.b16 %v9074
        %v10394 = vunpack.c.h.b16 %v9074
        %v10395 = vunpack.c.l.b16 %v9075
        %v10396 = vunpack.c.h.b16 %v9075
        %v10397 = vunpack.c.l.b16 %v9076
        %v10398 = vunpack.c.h.b16 %v9076
        %v10399 = vunpack.c.l.b16 %v9077
        %v10400 = vunpack.c.l.b16 %v9078
        %v10401 = vunpack.c.h.b16 %v9078
        %v10402 = vunpack.c.l.b16 %v9079
        %v10403 = vunpack.c.h.b16 %v9079
        %v10404 = vunpack.c.l.b16 %v9080
        %v10405 = vunpack.c.h.b16 %v9080
        %v10406 = vunpack.c.l.b16 %v9081
        %v10407 = vunpack.c.l.b16 %v9082
        %v10408 = vunpack.c.h.b16 %v9082
        %v10409 = vunpack.c.l.b16 %v9083
        %v10410 = vunpack.c.h.b16 %v9083
        %v10411 = vunpack.c.l.b16 %v9084
        %v10412 = vunpack.c.h.b16 %v9084
        %v10413 = vunpack.c.l.b16 %v9085
        %v10414 = vunpack.c.l.b16 %v9086
        %v10415 = vunpack.c.h.b16 %v9086
        %v10416 = vunpack.c.l.b16 %v9087
        %v10417 = vunpack.c.h.b16 %v9087
        %v10418 = vunpack.c.l.b16 %v9088
        %v10419 = vunpack.c.h.b16 %v9088
        %v10420 = vunpack.c.l.b16 %v9089
        %v10421 = vunpack.c.l.b16 %v9090
        %v10422 = vunpack.c.h.b16 %v9090
        %v10423 = vunpack.c.l.b16 %v9091
        %v10424 = vunpack.c.h.b16 %v9091
        %v10425 = vunpack.c.l.b16 %v9092
        %v10426 = vunpack.c.h.b16 %v9092
        %v10427 = vunpack.c.l.b16 %v9093
        %v10428 = vunpack.c.l.b16 %v9094
        %v10429 = vunpack.c.h.b16 %v9094
        %v10430 = vunpack.c.l.b16 %v9095
        %v10431 = vunpack.c.h.b16 %v9095
        %v10432 = vunpack.c.l.b16 %v9096
        %v10433 = vunpack.c.h.b16 %v9096
        %v10434 = vunpack.c.l.b16 %v9097
        %v10435 = vunpack.c.l.b16 %v9098
        %v10436 = vunpack.c.h.b16 %v9098
        %v10437 = vunpack.c.l.b16 %v9099
        %v10438 = vunpack.c.h.b16 %v9099
        %v10439 = vunpack.c.l.b16 %v9100
        %v10440 = vunpack.c.h.b16 %v9100
        %v10441 = vunpack.c.l.b16 %v9101
        %v10442 = vunpack.c.l.b16 %v9102
        %v10443 = vunpack.c.h.b16 %v9102
        %v10444 = vunpack.c.l.b16 %v9103
        %v10445 = vunpack.c.h.b16 %v9103
        %v10446 = vunpack.c.l.b16 %v9104
        %v10447 = vunpack.c.h.b16 %v9104
        %v10448 = vunpack.c.l.b16 %v9105
        %v10449 = vunpack.c.l.b16 %v9106
        %v10450 = vunpack.c.h.b16 %v9106
        %v10451 = vunpack.c.l.b16 %v9107
        %v10452 = vunpack.c.h.b16 %v9107
        %v10453 = vunpack.c.l.b16 %v9108
        %v10454 = vunpack.c.h.b16 %v9108
        %v10455 = vunpack.c.l.b16 %v9109
        %v10456 = vunpack.c.l.b16 %v9110
        %v10457 = vunpack.c.h.b16 %v9110
        %v10458 = vunpack.c.l.b16 %v9111
        %v10459 = vunpack.c.h.b16 %v9111
        %v10460 = vunpack.c.l.b16 %v9112
        %v10461 = vunpack.c.h.b16 %v9112
        %v10462 = vunpack.c.l.b16 %v9113
        %v10463 = vunpack.c.l.b16 %v9114
        %v10464 = vunpack.c.h.b16 %v9114
        %v10465 = vunpack.c.l.b16 %v9115
        %v10466 = vunpack.c.h.b16 %v9115
        %v10467 = vunpack.c.l.b16 %v9116
        %v10468 = vunpack.c.h.b16 %v9116
        %v10469 = vunpack.c.l.b16 %v9117
        %v10470 = vunpack.c.l.b16 %v9118
        %v10471 = vunpack.c.h.b16 %v9118
        %v10472 = vunpack.c.l.b16 %v9119
        %v10473 = vunpack.c.h.b16 %v9119
        %v10474 = vunpack.c.l.b16 %v9120
        %v10475 = vunpack.c.h.b16 %v9120
        %v10476 = vunpack.c.l.b16 %v9121
        %v10477 = vunpack.c.l.b16 %v9122
        %v10478 = vunpack.c.h.b16 %v9122
        %v10479 = vunpack.c.l.b16 %v9123
        %v10480 = vunpack.c.h.b16 %v9123
        %v10481 = vunpack.c.l.b16 %v9124
        %v10482 = vunpack.c.h.b16 %v9124
        %v10483 = vunpack.c.l.b16 %v9125
        %v10484 = vunpack.c.l.b16 %v9126
        %v10485 = vunpack.c.h.b16 %v9126
        %v10486 = vunpack.c.l.b16 %v9127
        %v10487 = vunpack.c.h.b16 %v9127
        %v10488 = vunpack.c.l.b16 %v9128
        %v10489 = vunpack.c.h.b16 %v9128
        %v10490 = vunpack.c.l.b16 %v9129
        %v10491 = vunpack.c.l.b16 %v9130
        %v10492 = vunpack.c.h.b16 %v9130
        %v10493 = vunpack.c.l.b16 %v9131
        %v10494 = vunpack.c.h.b16 %v9131
        %v10495 = vunpack.c.l.b16 %v9132
        %v10496 = vunpack.c.h.b16 %v9132
        %v10497 = vunpack.c.l.b16 %v9133
        %v10498 = vunpack.c.l.b16 %v9134
        %v10499 = vunpack.c.h.b16 %v9134
        %v10500 = vunpack.c.l.b16 %v9135
        %v10501 = vunpack.c.h.b16 %v9135
        %v10502 = vunpack.c.l.b16 %v9136
        %v10503 = vunpack.c.h.b16 %v9136
        %v10504 = vunpack.c.l.b16 %v9137
        %v10505 = vunpack.c.l.b16 %v9138
        %v10506 = vunpack.c.h.b16 %v9138
        %v10507 = vunpack.c.l.b16 %v9139
        %v10508 = vunpack.c.h.b16 %v9139
        %v10509 = vunpack.c.l.b16 %v9140
        %v10510 = vunpack.c.h.b16 %v9140
        %v10511 = vunpack.c.l.b16 %v9141
        %v10512 = vunpack.c.l.b16 %v9142
        %v10513 = vunpack.c.h.b16 %v9142
        %v10514 = vunpack.c.l.b16 %v9143
        %v10515 = vunpack.c.h.b16 %v9143
        %v10516 = vunpack.c.l.b16 %v9144
        %v10517 = vunpack.c.h.b16 %v9144
        %v10518 = vunpack.c.l.b16 %v9145
        %v10519 = vunpack.c.l.b16 %v9146
        %v10520 = vunpack.c.h.b16 %v9146
        %v10521 = vunpack.c.l.b16 %v9147
        %v10522 = vunpack.c.h.b16 %v9147
        %v10523 = vunpack.c.l.b16 %v9148
        %v10524 = vunpack.c.h.b16 %v9148
        %v10525 = vunpack.c.l.b16 %v9149
        %v10526 = vunpack.c.l.b16 %v9150
        %v10527 = vunpack.c.h.b16 %v9150
        %v10528 = vunpack.c.l.b16 %v9151
        %v10529 = vunpack.c.h.b16 %v9151
        %v10530 = vunpack.c.l.b16 %v9152
        %v10531 = vunpack.c.h.b16 %v9152
        %v10532 = vunpack.c.l.b16 %v9153
        %v10533 = vunpack.c.l.b16 %v9154
        %v10534 = vunpack.c.h.b16 %v9154
        %v10535 = vunpack.c.l.b16 %v9155
        %v10536 = vunpack.c.h.b16 %v9155
        %v10537 = vunpack.c.l.b16 %v9156
        %v10538 = vunpack.c.h.b16 %v9156
        %v10539 = vunpack.c.l.b16 %v9157
        %v10540 = vunpack.c.l.b16 %v9158
        %v10541 = vunpack.c.h.b16 %v9158
        %v10542 = vunpack.c.l.b16 %v9159
        %v10543 = vunpack.c.h.b16 %v9159
        %v10544 = vunpack.c.l.b16 %v9160
        %v10545 = vunpack.c.h.b16 %v9160
        %v10546 = vunpack.c.l.b16 %v9161
        %v10547 = vunpack.c.l.b16 %v9162
        %v10548 = vunpack.c.h.b16 %v9162
        %v10549 = vunpack.c.l.b16 %v9163
        %v10550 = vunpack.c.h.b16 %v9163
        %v10551 = vunpack.c.l.b16 %v9164
        %v10552 = vunpack.c.h.b16 %v9164
        %v10553 = vunpack.c.l.b16 %v9165
        %v10554 = vunpack.c.l.b16 %v9166
        %v10555 = vunpack.c.h.b16 %v9166
        %v10556 = vunpack.c.l.b16 %v9167
        %v10557 = vunpack.c.h.b16 %v9167
        %v10558 = vunpack.c.l.b16 %v9168
        %v10559 = vunpack.c.h.b16 %v9168
        %v10560 = vunpack.c.l.b16 %v9169
        %v10561 = vunpack.c.l.b16 %v9170
        %v10562 = vunpack.c.h.b16 %v9170
        %v10563 = vunpack.c.l.b16 %v9171
        %v10564 = vunpack.c.h.b16 %v9171
        %v10565 = vunpack.c.l.b16 %v9172
        %v10566 = vunpack.c.h.b16 %v9172
        %v10567 = vunpack.c.l.b16 %v9173
        %v10568 = vunpack.c.l.b16 %v9174
        %v10569 = vunpack.c.h.b16 %v9174
        %v10570 = vunpack.c.l.b16 %v9175
        %v10571 = vunpack.c.h.b16 %v9175
        %v10572 = vunpack.c.l.b16 %v9176
        %v10573 = vunpack.c.h.b16 %v9176
        %v10574 = vunpack.c.l.b16 %v9177
        %v10575 = vunpack.c.l.b16 %v9178
        %v10576 = vunpack.c.h.b16 %v9178
        %v10577 = vunpack.c.l.b16 %v9179
        %v10578 = vunpack.c.h.b16 %v9179
        %v10579 = vunpack.c.l.b16 %v9180
        %v10580 = vunpack.c.h.b16 %v9180
        %v10581 = vunpack.c.l.b16 %v9181
        %v10582 = vunpack.c.l.b16 %v9182
        %v10583 = vunpack.c.h.b16 %v9182
        %v10584 = vunpack.c.l.b16 %v9183
        %v10585 = vunpack.c.h.b16 %v9183
        %v10586 = vunpack.c.l.b16 %v9184
        %v10587 = vunpack.c.h.b16 %v9184
        %v10588 = vunpack.c.l.b16 %v9185
        %v10589 = vunpack.c.l.b16 %v9186
        %v10590 = vunpack.c.h.b16 %v9186
        %v10591 = vunpack.c.l.b16 %v9187
        %v10592 = vunpack.c.h.b16 %v9187
        %v10593 = vunpack.c.l.b16 %v9188
        %v10594 = vunpack.c.h.b16 %v9188
        %v10595 = vunpack.c.l.b16 %v9189
        %v10596 = vunpack.c.l.b16 %v9190
        %v10597 = vunpack.c.h.b16 %v9190
        %v10598 = vunpack.c.l.b16 %v9191
        %v10599 = vunpack.c.h.b16 %v9191
        %v10600 = vunpack.c.l.b16 %v9192
        %v10601 = vunpack.c.h.b16 %v9192
        %v10602 = vunpack.c.l.b16 %v9193
        %v10603 = vunpack.c.l.b16 %v9194
        %v10604 = vunpack.c.h.b16 %v9194
        %v10605 = vunpack.c.l.b16 %v9195
        %v10606 = vunpack.c.h.b16 %v9195
        %v10607 = vunpack.c.l.b16 %v9196
        %v10608 = vunpack.c.h.b16 %v9196
        %v10609 = vunpack.c.l.b16 %v9197
        %v10610 = vunpack.c.l.b16 %v9198
        %v10611 = vunpack.c.h.b16 %v9198
        %v10612 = vunpack.c.l.b16 %v9199
        %v10613 = vunpack.c.h.b16 %v9199
        %v10614 = vunpack.c.l.b16 %v9200
        %v10615 = vunpack.c.h.b16 %v9200
        %v10616 = vunpack.c.l.b16 %v9201
        %v10617 = vunpack.c.l.b16 %v9202
        %v10618 = vunpack.c.h.b16 %v9202
        %v10619 = vunpack.c.l.b16 %v9203
        %v10620 = vunpack.c.h.b16 %v9203
        %v10621 = vunpack.c.l.b16 %v9204
        %v10622 = vunpack.c.h.b16 %v9204
        %v10623 = vunpack.c.l.b16 %v9205
        %v10624 = vunpack.c.l.b16 %v9206
        %v10625 = vunpack.c.h.b16 %v9206
        %v10626 = vunpack.c.l.b16 %v9207
        %v10627 = vunpack.c.h.b16 %v9207
        %v10628 = vunpack.c.l.b16 %v9208
        %v10629 = vunpack.c.h.b16 %v9208
        %v10630 = vunpack.c.l.b16 %v9209
        %v10631 = vunpack.c.l.b16 %v9210
        %v10632 = vunpack.c.h.b16 %v9210
        %v10633 = vunpack.c.l.b16 %v9211
        %v10634 = vunpack.c.h.b16 %v9211
        %v10635 = vunpack.c.l.b16 %v9212
        %v10636 = vunpack.c.h.b16 %v9212
        %v10637 = vunpack.c.l.b16 %v9213
        %v10638 = vpack.c.b16 %v9749, %v9742
        %v10639 = vpack.c.b16 %v9750, %v9743
        %v10640 = vpack.c.b16 %v9751, %v9744
        %v10641 = vpack.c.b16 %v9752, %v9745
        %v10642 = vpack.c.b16 %v9753, %v9746
        %v10643 = vpack.c.b16 %v9754, %v9747
        %v10644 = vpack.c.b16 %v9755, %v9748
        %v10645 = vpack.c.b16 %v9763, %v9756
        %v10646 = vpack.c.b16 %v9764, %v9757
        %v10647 = vpack.c.b16 %v9765, %v9758
        %v10648 = vpack.c.b16 %v9766, %v9759
        %v10649 = vpack.c.b16 %v9767, %v9760
        %v10650 = vpack.c.b16 %v9768, %v9761
        %v10651 = vpack.c.b16 %v9769, %v9762
        %v10652 = vpack.c.b16 %v9777, %v9770
        %v10653 = vpack.c.b16 %v9778, %v9771
        %v10654 = vpack.c.b16 %v9779, %v9772
        %v10655 = vpack.c.b16 %v9780, %v9773
        %v10656 = vpack.c.b16 %v9781, %v9774
        %v10657 = vpack.c.b16 %v9782, %v9775
        %v10658 = vpack.c.b16 %v9783, %v9776
        %v10659 = vpack.c.b16 %v9791, %v9784
        %v10660 = vpack.c.b16 %v9792, %v9785
        %v10661 = vpack.c.b16 %v9793, %v9786
        %v10662 = vpack.c.b16 %v9794, %v9787
        %v10663 = vpack.c.b16 %v9795, %v9788
        %v10664 = vpack.c.b16 %v9796, %v9789
        %v10665 = vpack.c.b16 %v9797, %v9790
        %v10666 = vpack.c.b16 %v9805, %v9798
        %v10667 = vpack.c.b16 %v9806, %v9799
        %v10668 = vpack.c.b16 %v9807, %v9800
        %v10669 = vpack.c.b16 %v9808, %v9801
        %v10670 = vpack.c.b16 %v9809, %v9802
        %v10671 = vpack.c.b16 %v9810, %v9803
        %v10672 = vpack.c.b16 %v9811, %v9804
        %v10673 = vpack.c.b16 %v9819, %v9812
        %v10674 = vpack.c.b16 %v9820, %v9813
        %v10675 = vpack.c.b16 %v9821, %v9814
        %v10676 = vpack.c.b16 %v9822, %v9815
        %v10677 = vpack.c.b16 %v9823, %v9816
        %v10678 = vpack.c.b16 %v9824, %v9817
        %v10679 = vpack.c.b16 %v9825, %v9818
        %v10680 = vpack.c.b16 %v9833, %v9826
        %v10681 = vpack.c.b16 %v9834, %v9827
        %v10682 = vpack.c.b16 %v9835, %v9828
        %v10683 = vpack.c.b16 %v9836, %v9829
        %v10684 = vpack.c.b16 %v9837, %v9830
        %v10685 = vpack.c.b16 %v9838, %v9831
        %v10686 = vpack.c.b16 %v9839, %v9832
        %v10687 = vpack.c.b16 %v9847, %v9840
        %v10688 = vpack.c.b16 %v9848, %v9841
        %v10689 = vpack.c.b16 %v9849, %v9842
        %v10690 = vpack.c.b16 %v9850, %v9843
        %v10691 = vpack.c.b16 %v9851, %v9844
        %v10692 = vpack.c.b16 %v9852, %v9845
        %v10693 = vpack.c.b16 %v9853, %v9846
        %v10694 = vpack.c.b16 %v9861, %v9854
        %v10695 = vpack.c.b16 %v9862, %v9855
        %v10696 = vpack.c.b16 %v9863, %v9856
        %v10697 = vpack.c.b16 %v9864, %v9857
        %v10698 = vpack.c.b16 %v9865, %v9858
        %v10699 = vpack.c.b16 %v9866, %v9859
        %v10700 = vpack.c.b16 %v9867, %v9860
        %v10701 = vpack.c.b16 %v9875, %v9868
        %v10702 = vpack.c.b16 %v9876, %v9869
        %v10703 = vpack.c.b16 %v9877, %v9870
        %v10704 = vpack.c.b16 %v9878, %v9871
        %v10705 = vpack.c.b16 %v9879, %v9872
        %v10706 = vpack.c.b16 %v9880, %v9873
        %v10707 = vpack.c.b16 %v9881, %v9874
        %v10708 = vpack.c.b16 %v9889, %v9882
        %v10709 = vpack.c.b16 %v9890, %v9883
        %v10710 = vpack.c.b16 %v9891, %v9884
        %v10711 = vpack.c.b16 %v9892, %v9885
        %v10712 = vpack.c.b16 %v9893, %v9886
        %v10713 = vpack.c.b16 %v9894, %v9887
        %v10714 = vpack.c.b16 %v9895, %v9888
        %v10715 = vpack.c.b16 %v9903, %v9896
        %v10716 = vpack.c.b16 %v9904, %v9897
        %v10717 = vpack.c.b16 %v9905, %v9898
        %v10718 = vpack.c.b16 %v9906, %v9899
        %v10719 = vpack.c.b16 %v9907, %v9900
        %v10720 = vpack.c.b16 %v9908, %v9901
        %v10721 = vpack.c.b16 %v9909, %v9902
        %v10722 = vpack.c.b16 %v9917, %v9910
        %v10723 = vpack.c.b16 %v9918, %v9911
        %v10724 = vpack.c.b16 %v9919, %v9912
        %v10725 = vpack.c.b16 %v9920, %v9913
        %v10726 = vpack.c.b16 %v9921, %v9914
        %v10727 = vpack.c.b16 %v9922, %v9915
        %v10728 = vpack.c.b16 %v9923, %v9916
        %v10729 = vpack.c.b16 %v9931, %v9924
        %v10730 = vpack.c.b16 %v9932, %v9925
        %v10731 = vpack.c.b16 %v9933, %v9926
        %v10732 = vpack.c.b16 %v9934, %v9927
        %v10733 = vpack.c.b16 %v9935, %v9928
        %v10734 = vpack.c.b16 %v9936, %v9929
        %v10735 = vpack.c.b16 %v9937, %v9930
        %v10736 = vpack.c.b16 %v9945, %v9938
        %v10737 = vpack.c.b16 %v9946, %v9939
        %v10738 = vpack.c.b16 %v9947, %v9940
        %v10739 = vpack.c.b16 %v9948, %v9941
        %v10740 = vpack.c.b16 %v9949, %v9942
        %v10741 = vpack.c.b16 %v9950, %v9943
        %v10742 = vpack.c.b16 %v9951, %v9944
        %v10743 = vpack.c.b16 %v9959, %v9952
        %v10744 = vpack.c.b16 %v9960, %v9953
        %v10745 = vpack.c.b16 %v9961, %v9954
        %v10746 = vpack.c.b16 %v9962, %v9955
        %v10747 = vpack.c.b16 %v9963, %v9956
        %v10748 = vpack.c.b16 %v9964, %v9957
        %v10749 = vpack.c.b16 %v9965, %v9958
        %v10750 = vpack.c.b16 %v9973, %v9966
        %v10751 = vpack.c.b16 %v9974, %v9967
        %v10752 = vpack.c.b16 %v9975, %v9968
        %v10753 = vpack.c.b16 %v9976, %v9969
        %v10754 = vpack.c.b16 %v9977, %v9970
        %v10755 = vpack.c.b16 %v9978, %v9971
        %v10756 = vpack.c.b16 %v9979, %v9972
        %v10757 = vpack.c.b16 %v9987, %v9980
        %v10758 = vpack.c.b16 %v9988, %v9981
        %v10759 = vpack.c.b16 %v9989, %v9982
        %v10760 = vpack.c.b16 %v9990, %v9983
        %v10761 = vpack.c.b16 %v9991, %v9984
        %v10762 = vpack.c.b16 %v9992, %v9985
        %v10763 = vpack.c.b16 %v9993, %v9986
        %v10764 = vpack.c.b16 %v10001, %v9994
        %v10765 = vpack.c.b16 %v10002, %v9995
        %v10766 = vpack.c.b16 %v10003, %v9996
        %v10767 = vpack.c.b16 %v10004, %v9997
        %v10768 = vpack.c.b16 %v10005, %v9998
        %v10769 = vpack.c.b16 %v10006, %v9999
        %v10770 = vpack.c.b16 %v10007, %v10000
        %v10771 = vpack.c.b16 %v10015, %v10008
        %v10772 = vpack.c.b16 %v10016, %v10009
        %v10773 = vpack.c.b16 %v10017, %v10010
        %v10774 = vpack.c.b16 %v10018, %v10011
        %v10775 = vpack.c.b16 %v10019, %v10012
        %v10776 = vpack.c.b16 %v10020, %v10013
        %v10777 = vpack.c.b16 %v10021, %v10014
        %v10778 = vpack.c.b16 %v10029, %v10022
        %v10779 = vpack.c.b16 %v10030, %v10023
        %v10780 = vpack.c.b16 %v10031, %v10024
        %v10781 = vpack.c.b16 %v10032, %v10025
        %v10782 = vpack.c.b16 %v10033, %v10026
        %v10783 = vpack.c.b16 %v10034, %v10027
        %v10784 = vpack.c.b16 %v10035, %v10028
        %v10785 = vpack.c.b16 %v10043, %v10036
        %v10786 = vpack.c.b16 %v10044, %v10037
        %v10787 = vpack.c.b16 %v10045, %v10038
        %v10788 = vpack.c.b16 %v10046, %v10039
        %v10789 = vpack.c.b16 %v10047, %v10040
        %v10790 = vpack.c.b16 %v10048, %v10041
        %v10791 = vpack.c.b16 %v10049, %v10042
        %v10792 = vpack.c.b16 %v10057, %v10050
        %v10793 = vpack.c.b16 %v10058, %v10051
        %v10794 = vpack.c.b16 %v10059, %v10052
        %v10795 = vpack.c.b16 %v10060, %v10053
        %v10796 = vpack.c.b16 %v10061, %v10054
        %v10797 = vpack.c.b16 %v10062, %v10055
        %v10798 = vpack.c.b16 %v10063, %v10056
        %v10799 = vpack.c.b16 %v10071, %v10064
        %v10800 = vpack.c.b16 %v10072, %v10065
        %v10801 = vpack.c.b16 %v10073, %v10066
        %v10802 = vpack.c.b16 %v10074, %v10067
        %v10803 = vpack.c.b16 %v10075, %v10068
        %v10804 = vpack.c.b16 %v10076, %v10069
        %v10805 = vpack.c.b16 %v10077, %v10070
        %v10806 = vpack.c.b16 %v10085, %v10078
        %v10807 = vpack.c.b16 %v10086, %v10079
        %v10808 = vpack.c.b16 %v10087, %v10080
        %v10809 = vpack.c.b16 %v10088, %v10081
        %v10810 = vpack.c.b16 %v10089, %v10082
        %v10811 = vpack.c.b16 %v10090, %v10083
        %v10812 = vpack.c.b16 %v10091, %v10084
        %v10813 = vpack.c.b16 %v10099, %v10092
        %v10814 = vpack.c.b16 %v10100, %v10093
        %v10815 = vpack.c.b16 %v10101, %v10094
        %v10816 = vpack.c.b16 %v10102, %v10095
        %v10817 = vpack.c.b16 %v10103, %v10096
        %v10818 = vpack.c.b16 %v10104, %v10097
        %v10819 = vpack.c.b16 %v10105, %v10098
        %v10820 = vpack.c.b16 %v10113, %v10106
        %v10821 = vpack.c.b16 %v10114, %v10107
        %v10822 = vpack.c.b16 %v10115, %v10108
        %v10823 = vpack.c.b16 %v10116, %v10109
        %v10824 = vpack.c.b16 %v10117, %v10110
        %v10825 = vpack.c.b16 %v10118, %v10111
        %v10826 = vpack.c.b16 %v10119, %v10112
        %v10827 = vpack.c.b16 %v10127, %v10120
        %v10828 = vpack.c.b16 %v10128, %v10121
        %v10829 = vpack.c.b16 %v10129, %v10122
        %v10830 = vpack.c.b16 %v10130, %v10123
        %v10831 = vpack.c.b16 %v10131, %v10124
        %v10832 = vpack.c.b16 %v10132, %v10125
        %v10833 = vpack.c.b16 %v10133, %v10126
        %v10834 = vpack.c.b16 %v10141, %v10134
        %v10835 = vpack.c.b16 %v10142, %v10135
        %v10836 = vpack.c.b16 %v10143, %v10136
        %v10837 = vpack.c.b16 %v10144, %v10137
        %v10838 = vpack.c.b16 %v10145, %v10138
        %v10839 = vpack.c.b16 %v10146, %v10139
        %v10840 = vpack.c.b16 %v10147, %v10140
        %v10841 = vpack.c.b16 %v10155, %v10148
        %v10842 = vpack.c.b16 %v10156, %v10149
        %v10843 = vpack.c.b16 %v10157, %v10150
        %v10844 = vpack.c.b16 %v10158, %v10151
        %v10845 = vpack.c.b16 %v10159, %v10152
        %v10846 = vpack.c.b16 %v10160, %v10153
        %v10847 = vpack.c.b16 %v10161, %v10154
        %v10848 = vpack.c.b16 %v10169, %v10162
        %v10849 = vpack.c.b16 %v10170, %v10163
        %v10850 = vpack.c.b16 %v10171, %v10164
        %v10851 = vpack.c.b16 %v10172, %v10165
        %v10852 = vpack.c.b16 %v10173, %v10166
        %v10853 = vpack.c.b16 %v10174, %v10167
        %v10854 = vpack.c.b16 %v10175, %v10168
        %v10855 = vpack.c.b16 %v10183, %v10176
        %v10856 = vpack.c.b16 %v10184, %v10177
        %v10857 = vpack.c.b16 %v10185, %v10178
        %v10858 = vpack.c.b16 %v10186, %v10179
        %v10859 = vpack.c.b16 %v10187, %v10180
        %v10860 = vpack.c.b16 %v10188, %v10181
        %v10861 = vpack.c.b16 %v10189, %v10182
        %v10862 = vpack.c.b16 %v10197, %v10190
        %v10863 = vpack.c.b16 %v10198, %v10191
        %v10864 = vpack.c.b16 %v10199, %v10192
        %v10865 = vpack.c.b16 %v10200, %v10193
        %v10866 = vpack.c.b16 %v10201, %v10194
        %v10867 = vpack.c.b16 %v10202, %v10195
        %v10868 = vpack.c.b16 %v10203, %v10196
        %v10869 = vpack.c.b16 %v10211, %v10204
        %v10870 = vpack.c.b16 %v10212, %v10205
        %v10871 = vpack.c.b16 %v10213, %v10206
        %v10872 = vpack.c.b16 %v10214, %v10207
        %v10873 = vpack.c.b16 %v10215, %v10208
        %v10874 = vpack.c.b16 %v10216, %v10209
        %v10875 = vpack.c.b16 %v10217, %v10210
        %v10876 = vpack.c.b16 %v10225, %v10218
        %v10877 = vpack.c.b16 %v10226, %v10219
        %v10878 = vpack.c.b16 %v10227, %v10220
        %v10879 = vpack.c.b16 %v10228, %v10221
        %v10880 = vpack.c.b16 %v10229, %v10222
        %v10881 = vpack.c.b16 %v10230, %v10223
        %v10882 = vpack.c.b16 %v10231, %v10224
        %v10883 = vpack.c.b16 %v10239, %v10232
        %v10884 = vpack.c.b16 %v10240, %v10233
        %v10885 = vpack.c.b16 %v10241, %v10234
        %v10886 = vpack.c.b16 %v10242, %v10235
        %v10887 = vpack.c.b16 %v10243, %v10236
        %v10888 = vpack.c.b16 %v10244, %v10237
        %v10889 = vpack.c.b16 %v10245, %v10238
        %v10890 = vpack.c.b16 %v10253, %v10246
        %v10891 = vpack.c.b16 %v10254, %v10247
        %v10892 = vpack.c.b16 %v10255, %v10248
        %v10893 = vpack.c.b16 %v10256, %v10249
        %v10894 = vpack.c.b16 %v10257, %v10250
        %v10895 = vpack.c.b16 %v10258, %v10251
        %v10896 = vpack.c.b16 %v10259, %v10252
        %v10897 = vpack.c.b16 %v10267, %v10260
        %v10898 = vpack.c.b16 %v10268, %v10261
        %v10899 = vpack.c.b16 %v10269, %v10262
        %v10900 = vpack.c.b16 %v10270, %v10263
        %v10901 = vpack.c.b16 %v10271, %v10264
        %v10902 = vpack.c.b16 %v10272, %v10265
        %v10903 = vpack.c.b16 %v10273, %v10266
        %v10904 = vpack.c.b16 %v10281, %v10274
        %v10905 = vpack.c.b16 %v10282, %v10275
        %v10906 = vpack.c.b16 %v10283, %v10276
        %v10907 = vpack.c.b16 %v10284, %v10277
        %v10908 = vpack.c.b16 %v10285, %v10278
        %v10909 = vpack.c.b16 %v10286, %v10279
        %v10910 = vpack.c.b16 %v10287, %v10280
        %v10911 = vpack.c.b16 %v10295, %v10288
        %v10912 = vpack.c.b16 %v10296, %v10289
        %v10913 = vpack.c.b16 %v10297, %v10290
        %v10914 = vpack.c.b16 %v10298, %v10291
        %v10915 = vpack.c.b16 %v10299, %v10292
        %v10916 = vpack.c.b16 %v10300, %v10293
        %v10917 = vpack.c.b16 %v10301, %v10294
        %v10918 = vpack.c.b16 %v10309, %v10302
        %v10919 = vpack.c.b16 %v10310, %v10303
        %v10920 = vpack.c.b16 %v10311, %v10304
        %v10921 = vpack.c.b16 %v10312, %v10305
        %v10922 = vpack.c.b16 %v10313, %v10306
        %v10923 = vpack.c.b16 %v10314, %v10307
        %v10924 = vpack.c.b16 %v10315, %v10308
        %v10925 = vpack.c.b16 %v10323, %v10316
        %v10926 = vpack.c.b16 %v10324, %v10317
        %v10927 = vpack.c.b16 %v10325, %v10318
        %v10928 = vpack.c.b16 %v10326, %v10319
        %v10929 = vpack.c.b16 %v10327, %v10320
        %v10930 = vpack.c.b16 %v10328, %v10321
        %v10931 = vpack.c.b16 %v10329, %v10322
        %v10932 = vpack.c.b16 %v10337, %v10330
        %v10933 = vpack.c.b16 %v10338, %v10331
        %v10934 = vpack.c.b16 %v10339, %v10332
        %v10935 = vpack.c.b16 %v10340, %v10333
        %v10936 = vpack.c.b16 %v10341, %v10334
        %v10937 = vpack.c.b16 %v10342, %v10335
        %v10938 = vpack.c.b16 %v10343, %v10336
        %v10939 = vpack.c.b16 %v10351, %v10344
        %v10940 = vpack.c.b16 %v10352, %v10345
        %v10941 = vpack.c.b16 %v10353, %v10346
        %v10942 = vpack.c.b16 %v10354, %v10347
        %v10943 = vpack.c.b16 %v10355, %v10348
        %v10944 = vpack.c.b16 %v10356, %v10349
        %v10945 = vpack.c.b16 %v10357, %v10350
        %v10946 = vpack.c.b16 %v10365, %v10358
        %v10947 = vpack.c.b16 %v10366, %v10359
        %v10948 = vpack.c.b16 %v10367, %v10360
        %v10949 = vpack.c.b16 %v10368, %v10361
        %v10950 = vpack.c.b16 %v10369, %v10362
        %v10951 = vpack.c.b16 %v10370, %v10363
        %v10952 = vpack.c.b16 %v10371, %v10364
        %v10953 = vpack.c.b16 %v10379, %v10372
        %v10954 = vpack.c.b16 %v10380, %v10373
        %v10955 = vpack.c.b16 %v10381, %v10374
        %v10956 = vpack.c.b16 %v10382, %v10375
        %v10957 = vpack.c.b16 %v10383, %v10376
        %v10958 = vpack.c.b16 %v10384, %v10377
        %v10959 = vpack.c.b16 %v10385, %v10378
        %v10960 = vpack.c.b16 %v10393, %v10386
        %v10961 = vpack.c.b16 %v10394, %v10387
        %v10962 = vpack.c.b16 %v10395, %v10388
        %v10963 = vpack.c.b16 %v10396, %v10389
        %v10964 = vpack.c.b16 %v10397, %v10390
        %v10965 = vpack.c.b16 %v10398, %v10391
        %v10966 = vpack.c.b16 %v10399, %v10392
        %v10967 = vpack.c.b16 %v10407, %v10400
        %v10968 = vpack.c.b16 %v10408, %v10401
        %v10969 = vpack.c.b16 %v10409, %v10402
        %v10970 = vpack.c.b16 %v10410, %v10403
        %v10971 = vpack.c.b16 %v10411, %v10404
        %v10972 = vpack.c.b16 %v10412, %v10405
        %v10973 = vpack.c.b16 %v10413, %v10406
        %v10974 = vpack.c.b16 %v10421, %v10414
        %v10975 = vpack.c.b16 %v10422, %v10415
        %v10976 = vpack.c.b16 %v10423, %v10416
        %v10977 = vpack.c.b16 %v10424, %v10417
        %v10978 = vpack.c.b16 %v10425, %v10418
        %v10979 = vpack.c.b16 %v10426, %v10419
        %v10980 = vpack.c.b16 %v10427, %v10420
        %v10981 = vpack.c.b16 %v10435, %v10428
        %v10982 = vpack.c.b16 %v10436, %v10429
        %v10983 = vpack.c.b16 %v10437, %v10430
        %v10984 = vpack.c.b16 %v10438, %v10431
        %v10985 = vpack.c.b16 %v10439, %v10432
        %v10986 = vpack.c.b16 %v10440, %v10433
        %v10987 = vpack.c.b16 %v10441, %v10434
        %v10988 = vpack.c.b16 %v10449, %v10442
        %v10989 = vpack.c.b16 %v10450, %v10443
        %v10990 = vpack.c.b16 %v10451, %v10444
        %v10991 = vpack.c.b16 %v10452, %v10445
        %v10992 = vpack.c.b16 %v10453, %v10446
        %v10993 = vpack.c.b16 %v10454, %v10447
        %v10994 = vpack.c.b16 %v10455, %v10448
        %v10995 = vpack.c.b16 %v10463, %v10456
        %v10996 = vpack.c.b16 %v10464, %v10457
        %v10997 = vpack.c.b16 %v10465, %v10458
        %v10998 = vpack.c.b16 %v10466, %v10459
        %v10999 = vpack.c.b16 %v10467, %v10460
        %v11000 = vpack.c.b16 %v10468, %v10461
        %v11001 = vpack.c.b16 %v10469, %v10462
        %v11002 = vpack.c.b16 %v10477, %v10470
        %v11003 = vpack.c.b16 %v10478, %v10471
        %v11004 = vpack.c.b16 %v10479, %v10472
        %v11005 = vpack.c.b16 %v10480, %v10473
        %v11006 = vpack.c.b16 %v10481, %v10474
        %v11007 = vpack.c.b16 %v10482, %v10475
        %v11008 = vpack.c.b16 %v10483, %v10476
        %v11009 = vpack.c.b16 %v10491, %v10484
        %v11010 = vpack.c.b16 %v10492, %v10485
        %v11011 = vpack.c.b16 %v10493, %v10486
        %v11012 = vpack.c.b16 %v10494, %v10487
        %v11013 = vpack.c.b16 %v10495, %v10488
        %v11014 = vpack.c.b16 %v10496, %v10489
        %v11015 = vpack.c.b16 %v10497, %v10490
        %v11016 = vpack.c.b16 %v10505, %v10498
        %v11017 = vpack.c.b16 %v10506, %v10499
        %v11018 = vpack.c.b16 %v10507, %v10500
        %v11019 = vpack.c.b16 %v10508, %v10501
        %v11020 = vpack.c.b16 %v10509, %v10502
        %v11021 = vpack.c.b16 %v10510, %v10503
        %v11022 = vpack.c.b16 %v10511, %v10504
        %v11023 = vpack.c.b16 %v10519, %v10512
        %v11024 = vpack.c.b16 %v10520, %v10513
        %v11025 = vpack.c.b16 %v10521, %v10514
        %v11026 = vpack.c.b16 %v10522, %v10515
        %v11027 = vpack.c.b16 %v10523, %v10516
        %v11028 = vpack.c.b16 %v10524, %v10517
        %v11029 = vpack.c.b16 %v10525, %v10518
        %v11030 = vpack.c.b16 %v10533, %v10526
        %v11031 = vpack.c.b16 %v10534, %v10527
        %v11032 = vpack.c.b16 %v10535, %v10528
        %v11033 = vpack.c.b16 %v10536, %v10529
        %v11034 = vpack.c.b16 %v10537, %v10530
        %v11035 = vpack.c.b16 %v10538, %v10531
        %v11036 = vpack.c.b16 %v10539, %v10532
        %v11037 = vpack.c.b16 %v10547, %v10540
        %v11038 = vpack.c.b16 %v10548, %v10541
        %v11039 = vpack.c.b16 %v10549, %v10542
        %v11040 = vpack.c.b16 %v10550, %v10543
        %v11041 = vpack.c.b16 %v10551, %v10544
        %v11042 = vpack.c.b16 %v10552, %v10545
        %v11043 = vpack.c.b16 %v10553, %v10546
        %v11044 = vpack.c.b16 %v10561, %v10554
        %v11045 = vpack.c.b16 %v10562, %v10555
        %v11046 = vpack.c.b16 %v10563, %v10556
        %v11047 = vpack.c.b16 %v10564, %v10557
        %v11048 = vpack.c.b16 %v10565, %v10558
        %v11049 = vpack.c.b16 %v10566, %v10559
        %v11050 = vpack.c.b16 %v10567, %v10560
        %v11051 = vpack.c.b16 %v10575, %v10568
        %v11052 = vpack.c.b16 %v10576, %v10569
        %v11053 = vpack.c.b16 %v10577, %v10570
        %v11054 = vpack.c.b16 %v10578, %v10571
        %v11055 = vpack.c.b16 %v10579, %v10572
        %v11056 = vpack.c.b16 %v10580, %v10573
        %v11057 = vpack.c.b16 %v10581, %v10574
        %v11058 = vpack.c.b16 %v10589, %v10582
        %v11059 = vpack.c.b16 %v10590, %v10583
        %v11060 = vpack.c.b16 %v10591, %v10584
        %v11061 = vpack.c.b16 %v10592, %v10585
        %v11062 = vpack.c.b16 %v10593, %v10586
        %v11063 = vpack.c.b16 %v10594, %v10587
        %v11064 = vpack.c.b16 %v10595, %v10588
        %v11065 = vpack.c.b16 %v10603, %v10596
        %v11066 = vpack.c.b16 %v10604, %v10597
        %v11067 = vpack.c.b16 %v10605, %v10598
        %v11068 = vpack.c.b16 %v10606, %v10599
        %v11069 = vpack.c.b16 %v10607, %v10600
        %v11070 = vpack.c.b16 %v10608, %v10601
        %v11071 = vpack.c.b16 %v10609, %v10602
        %v11072 = vpack.c.b16 %v10617, %v10610
        %v11073 = vpack.c.b16 %v10618, %v10611
        %v11074 = vpack.c.b16 %v10619, %v10612
        %v11075 = vpack.c.b16 %v10620, %v10613
        %v11076 = vpack.c.b16 %v10621, %v10614
        %v11077 = vpack.c.b16 %v10622, %v10615
        %v11078 = vpack.c.b16 %v10623, %v10616
        %v11079 = vpack.c.b16 %v10631, %v10624
        %v11080 = vpack.c.b16 %v10632, %v10625
        %v11081 = vpack.c.b16 %v10633, %v10626
        %v11082 = vpack.c.b16 %v10634, %v10627
        %v11083 = vpack.c.b16 %v10635, %v10628
        %v11084 = vpack.c.b16 %v10636, %v10629
        %v11085 = vpack.c.b16 %v10637, %v10630
        %11534 = vmatpush.bf16.msra.mxu0 %v10687
        %11535 = vmatpush.bf16.msra.mxu0 %v10680
        %11536 = vmatpush.bf16.msra.mxu0 %v10673
        %11537 = vmatpush.bf16.msra.mxu0 %v10666
        %11538 = vmatpush.bf16.msra.mxu0 %v10659
        %11539 = vmatpush.bf16.msra.mxu0 %v10652
        %11540 = vmatpush.bf16.msra.mxu0 %v10645
        %11541 = vmatpush.bf16.msra.mxu0 %v10638
        %11542 = vmatmul.bf16.gmra.mxu0 %v8686
        %v11543 = vpop.f32.mrf.mxu0
        %v11544 = vadd.f32 %v9216, %v11543
        %v11545 = vpop.f32.mrf.mxu0
        %v11546 = vadd.f32 %v9216, %v11545
        %11547 = vmatmul.bf16.gmra.mxu0 %v8694
        %v11548 = vpop.f32.mrf.mxu0
        %v11549 = vadd.f32 %v9216, %v11548
        %v11550 = vpop.f32.mrf.mxu0
        %11551 = vdwg.mxu0
        %11552 = vmatpush.bf16.msra.mxu0 %v10743
        %11553 = vmatpush.bf16.msra.mxu0 %v10736
        %11554 = vmatpush.bf16.msra.mxu0 %v10729
        %11555 = vmatpush.bf16.msra.mxu0 %v10722
        %11556 = vmatpush.bf16.msra.mxu0 %v10715
        %11557 = vmatpush.bf16.msra.mxu0 %v10708
        %11558 = vmatpush.bf16.msra.mxu0 %v10701
        %11559 = vmatpush.bf16.msra.mxu0 %v10694
        %11560 = vmatmul.bf16.gmra.mxu0 %v8687
        %v11561 = vpop.f32.mrf.mxu0
        %v11562 = vadd.f32 %v11544, %v11561
        %v11563 = vpop.f32.mrf.mxu0
        %v11564 = vadd.f32 %v11546, %v11563
        %11565 = vmatmul.bf16.gmra.mxu0 %v8695
        %v11566 = vpop.f32.mrf.mxu0
        %v11567 = vadd.f32 %v11549, %v11566
        %v11568 = vpop.f32.mrf.mxu0
        %11569 = vdwg.mxu0
        %11570 = vmatpush.bf16.msra.mxu0 %v10799
        %11571 = vmatpush.bf16.msra.mxu0 %v10792
        %11572 = vmatpush.bf16.msra.mxu0 %v10785
        %11573 = vmatpush.bf16.msra.mxu0 %v10778
        %11574 = vmatpush.bf16.msra.mxu0 %v10771
        %11575 = vmatpush.bf16.msra.mxu0 %v10764
        %11576 = vmatpush.bf16.msra.mxu0 %v10757
        %11577 = vmatpush.bf16.msra.mxu0 %v10750
        %11578 = vmatmul.bf16.gmra.mxu0 %v8688
        %v11579 = vpop.f32.mrf.mxu0
        %v11580 = vadd.f32 %v11562, %v11579
        %v11581 = vpop.f32.mrf.mxu0
        %v11582 = vadd.f32 %v11564, %v11581
        %11583 = vmatmul.bf16.gmra.mxu0 %v8696
        %v11584 = vpop.f32.mrf.mxu0
        %v11585 = vadd.f32 %v11567, %v11584
        %v11586 = vpop.f32.mrf.mxu0
        %11587 = vdwg.mxu0
        %11588 = vmatpush.bf16.msra.mxu0 %v10855
        %11589 = vmatpush.bf16.msra.mxu0 %v10848
        %11590 = vmatpush.bf16.msra.mxu0 %v10841
        %11591 = vmatpush.bf16.msra.mxu0 %v10834
        %11592 = vmatpush.bf16.msra.mxu0 %v10827
        %11593 = vmatpush.bf16.msra.mxu0 %v10820
        %11594 = vmatpush.bf16.msra.mxu0 %v10813
        %11595 = vmatpush.bf16.msra.mxu0 %v10806
        %11596 = vmatmul.bf16.gmra.mxu0 %v8689
        %v11597 = vpop.f32.mrf.mxu0
        %v11598 = vadd.f32 %v11580, %v11597
        %v11599 = vpop.f32.mrf.mxu0
        %v11600 = vadd.f32 %v11582, %v11599
        %11601 = vmatmul.bf16.gmra.mxu0 %v8697
        %v11602 = vpop.f32.mrf.mxu0
        %v11603 = vadd.f32 %v11585, %v11602
        %v11604 = vpop.f32.mrf.mxu0
        %11605 = vdwg.mxu0
        %11606 = vmatpush.bf16.msra.mxu0 %v10911
        %11607 = vmatpush.bf16.msra.mxu0 %v10904
        %11608 = vmatpush.bf16.msra.mxu0 %v10897
        %11609 = vmatpush.bf16.msra.mxu0 %v10890
        %11610 = vmatpush.bf16.msra.mxu0 %v10883
        %11611 = vmatpush.bf16.msra.mxu0 %v10876
        %11612 = vmatpush.bf16.msra.mxu0 %v10869
        %11613 = vmatpush.bf16.msra.mxu0 %v10862
        %11614 = vmatmul.bf16.gmra.mxu0 %v8690
        %v11615 = vpop.f32.mrf.mxu0
        %v11616 = vadd.f32 %v11598, %v11615
        %v11617 = vpop.f32.mrf.mxu0
        %v11618 = vadd.f32 %v11600, %v11617
        %11619 = vmatmul.bf16.gmra.mxu0 %v8698
        %v11620 = vpop.f32.mrf.mxu0
        %v11621 = vadd.f32 %v11603, %v11620
        %v11622 = vpop.f32.mrf.mxu0
        %11623 = vdwg.mxu0
        %11624 = vmatpush.bf16.msra.mxu0 %v10967
        %11625 = vmatpush.bf16.msra.mxu0 %v10960
        %11626 = vmatpush.bf16.msra.mxu0 %v10953
        %11627 = vmatpush.bf16.msra.mxu0 %v10946
        %11628 = vmatpush.bf16.msra.mxu0 %v10939
        %11629 = vmatpush.bf16.msra.mxu0 %v10932
        %11630 = vmatpush.bf16.msra.mxu0 %v10925
        %11631 = vmatpush.bf16.msra.mxu0 %v10918
        %11632 = vmatmul.bf16.gmra.mxu0 %v8691
        %v11633 = vpop.f32.mrf.mxu0
        %v11634 = vadd.f32 %v11616, %v11633
        %v11635 = vpop.f32.mrf.mxu0
        %v11636 = vadd.f32 %v11618, %v11635
        %11637 = vmatmul.bf16.gmra.mxu0 %v8699
        %v11638 = vpop.f32.mrf.mxu0
        %v11639 = vadd.f32 %v11621, %v11638
        %v11640 = vpop.f32.mrf.mxu0
        %11641 = vdwg.mxu0
        %11642 = vmatpush.bf16.msra.mxu0 %v11023
        %11643 = vmatpush.bf16.msra.mxu0 %v11016
        %11644 = vmatpush.bf16.msra.mxu0 %v11009
        %11645 = vmatpush.bf16.msra.mxu0 %v11002
        %11646 = vmatpush.bf16.msra.mxu0 %v10995
        %11647 = vmatpush.bf16.msra.mxu0 %v10988
        %11648 = vmatpush.bf16.msra.mxu0 %v10981
        %11649 = vmatpush.bf16.msra.mxu0 %v10974
        %11650 = vmatmul.bf16.gmra.mxu0 %v8692
        %v11651 = vpop.f32.mrf.mxu0
        %v11652 = vadd.f32 %v11634, %v11651
        %v11653 = vpop.f32.mrf.mxu0
        %v11654 = vadd.f32 %v11636, %v11653
        %11655 = vmatmul.bf16.gmra.mxu0 %v8700
        %v11656 = vpop.f32.mrf.mxu0
        %v11657 = vadd.f32 %v11639, %v11656
        %v11658 = vpop.f32.mrf.mxu0
        %11659 = vdwg.mxu0
        %11660 = vmatpush.bf16.msra.mxu0 %v11079
        %11661 = vmatpush.bf16.msra.mxu0 %v11072
        %11662 = vmatpush.bf16.msra.mxu0 %v11065
        %11663 = vmatpush.bf16.msra.mxu0 %v11058
        %11664 = vmatpush.bf16.msra.mxu0 %v11051
        %11665 = vmatpush.bf16.msra.mxu0 %v11044
        %11666 = vmatpush.bf16.msra.mxu0 %v11037
        %11667 = vmatpush.bf16.msra.mxu0 %v11030
        %11668 = vmatmul.bf16.gmra.mxu0 %v8693
        %v11669 = vpop.f32.mrf.mxu0
        %v11670 = vadd.f32 %v11652, %v11669
        %v11671 = vpop.f32.mrf.mxu0
        %v11672 = vadd.f32 %v11654, %v11671
        %11673 = vmatmul.bf16.gmra.mxu0 %v8701
        %v11674 = vpop.f32.mrf.mxu0
        %v11675 = vadd.f32 %v11657, %v11674
        %v11676 = vpop.f32.mrf.mxu0
        %11677 = vdwg.mxu0
        %11678 = vmatpush.bf16.msra.mxu0 %v10688
        %11679 = vmatpush.bf16.msra.mxu0 %v10681
        %11680 = vmatpush.bf16.msra.mxu0 %v10674
        %11681 = vmatpush.bf16.msra.mxu0 %v10667
        %11682 = vmatpush.bf16.msra.mxu0 %v10660
        %11683 = vmatpush.bf16.msra.mxu0 %v10653
        %11684 = vmatpush.bf16.msra.mxu0 %v10646
        %11685 = vmatpush.bf16.msra.mxu0 %v10639
        %11686 = vmatmul.bf16.gmra.mxu0 %v8686
        %v11687 = vpop.f32.mrf.mxu0
        %v11688 = vadd.f32 %v9217, %v11687
        %v11689 = vpop.f32.mrf.mxu0
        %v11690 = vadd.f32 %v9217, %v11689
        %11691 = vmatmul.bf16.gmra.mxu0 %v8694
        %v11692 = vpop.f32.mrf.mxu0
        %v11693 = vadd.f32 %v9217, %v11692
        %v11694 = vpop.f32.mrf.mxu0
        %11695 = vdwg.mxu0
        %11696 = vmatpush.bf16.msra.mxu0 %v10744
        %11697 = vmatpush.bf16.msra.mxu0 %v10737
        %11698 = vmatpush.bf16.msra.mxu0 %v10730
        %11699 = vmatpush.bf16.msra.mxu0 %v10723
        %11700 = vmatpush.bf16.msra.mxu0 %v10716
        %11701 = vmatpush.bf16.msra.mxu0 %v10709
        %11702 = vmatpush.bf16.msra.mxu0 %v10702
        %11703 = vmatpush.bf16.msra.mxu0 %v10695
        %11704 = vmatmul.bf16.gmra.mxu0 %v8687
        %v11705 = vpop.f32.mrf.mxu0
        %v11706 = vadd.f32 %v11688, %v11705
        %v11707 = vpop.f32.mrf.mxu0
        %v11708 = vadd.f32 %v11690, %v11707
        %11709 = vmatmul.bf16.gmra.mxu0 %v8695
        %v11710 = vpop.f32.mrf.mxu0
        %v11711 = vadd.f32 %v11693, %v11710
        %v11712 = vpop.f32.mrf.mxu0
        %11713 = vdwg.mxu0
        %11714 = vmatpush.bf16.msra.mxu0 %v10800
        %11715 = vmatpush.bf16.msra.mxu0 %v10793
        %11716 = vmatpush.bf16.msra.mxu0 %v10786
        %11717 = vmatpush.bf16.msra.mxu0 %v10779
        %11718 = vmatpush.bf16.msra.mxu0 %v10772
        %11719 = vmatpush.bf16.msra.mxu0 %v10765
        %11720 = vmatpush.bf16.msra.mxu0 %v10758
        %11721 = vmatpush.bf16.msra.mxu0 %v10751
        %11722 = vmatmul.bf16.gmra.mxu0 %v8688
        %v11723 = vpop.f32.mrf.mxu0
        %v11724 = vadd.f32 %v11706, %v11723
        %v11725 = vpop.f32.mrf.mxu0
        %v11726 = vadd.f32 %v11708, %v11725
        %11727 = vmatmul.bf16.gmra.mxu0 %v8696
        %v11728 = vpop.f32.mrf.mxu0
        %v11729 = vadd.f32 %v11711, %v11728
        %v11730 = vpop.f32.mrf.mxu0
        %11731 = vdwg.mxu0
        %11732 = vmatpush.bf16.msra.mxu0 %v10856
        %11733 = vmatpush.bf16.msra.mxu0 %v10849
        %11734 = vmatpush.bf16.msra.mxu0 %v10842
        %11735 = vmatpush.bf16.msra.mxu0 %v10835
        %11736 = vmatpush.bf16.msra.mxu0 %v10828
        %11737 = vmatpush.bf16.msra.mxu0 %v10821
        %11738 = vmatpush.bf16.msra.mxu0 %v10814
        %11739 = vmatpush.bf16.msra.mxu0 %v10807
        %11740 = vmatmul.bf16.gmra.mxu0 %v8689
        %v11741 = vpop.f32.mrf.mxu0
        %v11742 = vadd.f32 %v11724, %v11741
        %v11743 = vpop.f32.mrf.mxu0
        %v11744 = vadd.f32 %v11726, %v11743
        %11745 = vmatmul.bf16.gmra.mxu0 %v8697
        %v11746 = vpop.f32.mrf.mxu0
        %v11747 = vadd.f32 %v11729, %v11746
        %v11748 = vpop.f32.mrf.mxu0
        %11749 = vdwg.mxu0
        %11750 = vmatpush.bf16.msra.mxu0 %v10912
        %11751 = vmatpush.bf16.msra.mxu0 %v10905
        %11752 = vmatpush.bf16.msra.mxu0 %v10898
        %11753 = vmatpush.bf16.msra.mxu0 %v10891
        %11754 = vmatpush.bf16.msra.mxu0 %v10884
        %11755 = vmatpush.bf16.msra.mxu0 %v10877
        %11756 = vmatpush.bf16.msra.mxu0 %v10870
        %11757 = vmatpush.bf16.msra.mxu0 %v10863
        %11758 = vmatmul.bf16.gmra.mxu0 %v8690
        %v11759 = vpop.f32.mrf.mxu0
        %v11760 = vadd.f32 %v11742, %v11759
        %v11761 = vpop.f32.mrf.mxu0
        %v11762 = vadd.f32 %v11744, %v11761
        %11763 = vmatmul.bf16.gmra.mxu0 %v8698
        %v11764 = vpop.f32.mrf.mxu0
        %v11765 = vadd.f32 %v11747, %v11764
        %v11766 = vpop.f32.mrf.mxu0
        %11767 = vdwg.mxu0
        %11768 = vmatpush.bf16.msra.mxu0 %v10968
        %11769 = vmatpush.bf16.msra.mxu0 %v10961
        %11770 = vmatpush.bf16.msra.mxu0 %v10954
        %11771 = vmatpush.bf16.msra.mxu0 %v10947
        %11772 = vmatpush.bf16.msra.mxu0 %v10940
        %11773 = vmatpush.bf16.msra.mxu0 %v10933
        %11774 = vmatpush.bf16.msra.mxu0 %v10926
        %11775 = vmatpush.bf16.msra.mxu0 %v10919
        %11776 = vmatmul.bf16.gmra.mxu0 %v8691
        %v11777 = vpop.f32.mrf.mxu0
        %v11778 = vadd.f32 %v11760, %v11777
        %v11779 = vpop.f32.mrf.mxu0
        %v11780 = vadd.f32 %v11762, %v11779
        %11781 = vmatmul.bf16.gmra.mxu0 %v8699
        %v11782 = vpop.f32.mrf.mxu0
        %v11783 = vadd.f32 %v11765, %v11782
        %v11784 = vpop.f32.mrf.mxu0
        %11785 = vdwg.mxu0
        %11786 = vmatpush.bf16.msra.mxu0 %v11024
        %11787 = vmatpush.bf16.msra.mxu0 %v11017
        %11788 = vmatpush.bf16.msra.mxu0 %v11010
        %11789 = vmatpush.bf16.msra.mxu0 %v11003
        %11790 = vmatpush.bf16.msra.mxu0 %v10996
        %11791 = vmatpush.bf16.msra.mxu0 %v10989
        %11792 = vmatpush.bf16.msra.mxu0 %v10982
        %11793 = vmatpush.bf16.msra.mxu0 %v10975
        %11794 = vmatmul.bf16.gmra.mxu0 %v8692
        %v11795 = vpop.f32.mrf.mxu0
        %v11796 = vadd.f32 %v11778, %v11795
        %v11797 = vpop.f32.mrf.mxu0
        %v11798 = vadd.f32 %v11780, %v11797
        %11799 = vmatmul.bf16.gmra.mxu0 %v8700
        %v11800 = vpop.f32.mrf.mxu0
        %v11801 = vadd.f32 %v11783, %v11800
        %v11802 = vpop.f32.mrf.mxu0
        %11803 = vdwg.mxu0
        %11804 = vmatpush.bf16.msra.mxu0 %v11080
        %11805 = vmatpush.bf16.msra.mxu0 %v11073
        %11806 = vmatpush.bf16.msra.mxu0 %v11066
        %11807 = vmatpush.bf16.msra.mxu0 %v11059
        %11808 = vmatpush.bf16.msra.mxu0 %v11052
        %11809 = vmatpush.bf16.msra.mxu0 %v11045
        %11810 = vmatpush.bf16.msra.mxu0 %v11038
        %11811 = vmatpush.bf16.msra.mxu0 %v11031
        %11812 = vmatmul.bf16.gmra.mxu0 %v8693
        %v11813 = vpop.f32.mrf.mxu0
        %v11814 = vadd.f32 %v11796, %v11813
        %v11815 = vpop.f32.mrf.mxu0
        %v11816 = vadd.f32 %v11798, %v11815
        %11817 = vmatmul.bf16.gmra.mxu0 %v8701
        %v11818 = vpop.f32.mrf.mxu0
        %v11819 = vadd.f32 %v11801, %v11818
        %v11820 = vpop.f32.mrf.mxu0
        %11821 = vdwg.mxu0
        %11822 = vmatpush.bf16.msra.mxu0 %v10689
        %11823 = vmatpush.bf16.msra.mxu0 %v10682
        %11824 = vmatpush.bf16.msra.mxu0 %v10675
        %11825 = vmatpush.bf16.msra.mxu0 %v10668
        %11826 = vmatpush.bf16.msra.mxu0 %v10661
        %11827 = vmatpush.bf16.msra.mxu0 %v10654
        %11828 = vmatpush.bf16.msra.mxu0 %v10647
        %11829 = vmatpush.bf16.msra.mxu0 %v10640
        %11830 = vmatmul.bf16.gmra.mxu0 %v8686
        %v11831 = vpop.f32.mrf.mxu0
        %v11832 = vadd.f32 %v9218, %v11831
        %v11833 = vpop.f32.mrf.mxu0
        %v11834 = vadd.f32 %v9218, %v11833
        %11835 = vmatmul.bf16.gmra.mxu0 %v8694
        %v11836 = vpop.f32.mrf.mxu0
        %v11837 = vadd.f32 %v9218, %v11836
        %v11838 = vpop.f32.mrf.mxu0
        %11839 = vdwg.mxu0
        %11840 = vmatpush.bf16.msra.mxu0 %v10745
        %11841 = vmatpush.bf16.msra.mxu0 %v10738
        %11842 = vmatpush.bf16.msra.mxu0 %v10731
        %11843 = vmatpush.bf16.msra.mxu0 %v10724
        %11844 = vmatpush.bf16.msra.mxu0 %v10717
        %11845 = vmatpush.bf16.msra.mxu0 %v10710
        %11846 = vmatpush.bf16.msra.mxu0 %v10703
        %11847 = vmatpush.bf16.msra.mxu0 %v10696
        %11848 = vmatmul.bf16.gmra.mxu0 %v8687
        %v11849 = vpop.f32.mrf.mxu0
        %v11850 = vadd.f32 %v11832, %v11849
        %v11851 = vpop.f32.mrf.mxu0
        %v11852 = vadd.f32 %v11834, %v11851
        %11853 = vmatmul.bf16.gmra.mxu0 %v8695
        %v11854 = vpop.f32.mrf.mxu0
        %v11855 = vadd.f32 %v11837, %v11854
        %v11856 = vpop.f32.mrf.mxu0
        %11857 = vdwg.mxu0
        %11858 = vmatpush.bf16.msra.mxu0 %v10801
        %11859 = vmatpush.bf16.msra.mxu0 %v10794
        %11860 = vmatpush.bf16.msra.mxu0 %v10787
        %11861 = vmatpush.bf16.msra.mxu0 %v10780
        %11862 = vmatpush.bf16.msra.mxu0 %v10773
        %11863 = vmatpush.bf16.msra.mxu0 %v10766
        %11864 = vmatpush.bf16.msra.mxu0 %v10759
        %11865 = vmatpush.bf16.msra.mxu0 %v10752
        %11866 = vmatmul.bf16.gmra.mxu0 %v8688
        %v11867 = vpop.f32.mrf.mxu0
        %v11868 = vadd.f32 %v11850, %v11867
        %v11869 = vpop.f32.mrf.mxu0
        %v11870 = vadd.f32 %v11852, %v11869
        %11871 = vmatmul.bf16.gmra.mxu0 %v8696
        %v11872 = vpop.f32.mrf.mxu0
        %v11873 = vadd.f32 %v11855, %v11872
        %v11874 = vpop.f32.mrf.mxu0
        %11875 = vdwg.mxu0
        %11876 = vmatpush.bf16.msra.mxu0 %v10857
        %11877 = vmatpush.bf16.msra.mxu0 %v10850
        %11878 = vmatpush.bf16.msra.mxu0 %v10843
        %11879 = vmatpush.bf16.msra.mxu0 %v10836
        %11880 = vmatpush.bf16.msra.mxu0 %v10829
        %11881 = vmatpush.bf16.msra.mxu0 %v10822
        %11882 = vmatpush.bf16.msra.mxu0 %v10815
        %11883 = vmatpush.bf16.msra.mxu0 %v10808
        %11884 = vmatmul.bf16.gmra.mxu0 %v8689
        %v11885 = vpop.f32.mrf.mxu0
        %v11886 = vadd.f32 %v11868, %v11885
        %v11887 = vpop.f32.mrf.mxu0
        %v11888 = vadd.f32 %v11870, %v11887
        %11889 = vmatmul.bf16.gmra.mxu0 %v8697
        %v11890 = vpop.f32.mrf.mxu0
        %v11891 = vadd.f32 %v11873, %v11890
        %v11892 = vpop.f32.mrf.mxu0
        %11893 = vdwg.mxu0
        %11894 = vmatpush.bf16.msra.mxu0 %v10913
        %11895 = vmatpush.bf16.msra.mxu0 %v10906
        %11896 = vmatpush.bf16.msra.mxu0 %v10899
        %11897 = vmatpush.bf16.msra.mxu0 %v10892
        %11898 = vmatpush.bf16.msra.mxu0 %v10885
        %11899 = vmatpush.bf16.msra.mxu0 %v10878
        %11900 = vmatpush.bf16.msra.mxu0 %v10871
        %11901 = vmatpush.bf16.msra.mxu0 %v10864
        %11902 = vmatmul.bf16.gmra.mxu0 %v8690
        %v11903 = vpop.f32.mrf.mxu0
        %v11904 = vadd.f32 %v11886, %v11903
        %v11905 = vpop.f32.mrf.mxu0
        %v11906 = vadd.f32 %v11888, %v11905
        %11907 = vmatmul.bf16.gmra.mxu0 %v8698
        %v11908 = vpop.f32.mrf.mxu0
        %v11909 = vadd.f32 %v11891, %v11908
        %v11910 = vpop.f32.mrf.mxu0
        %11911 = vdwg.mxu0
        %11912 = vmatpush.bf16.msra.mxu0 %v10969
        %11913 = vmatpush.bf16.msra.mxu0 %v10962
        %11914 = vmatpush.bf16.msra.mxu0 %v10955
        %11915 = vmatpush.bf16.msra.mxu0 %v10948
        %11916 = vmatpush.bf16.msra.mxu0 %v10941
        %11917 = vmatpush.bf16.msra.mxu0 %v10934
        %11918 = vmatpush.bf16.msra.mxu0 %v10927
        %11919 = vmatpush.bf16.msra.mxu0 %v10920
        %11920 = vmatmul.bf16.gmra.mxu0 %v8691
        %v11921 = vpop.f32.mrf.mxu0
        %v11922 = vadd.f32 %v11904, %v11921
        %v11923 = vpop.f32.mrf.mxu0
        %v11924 = vadd.f32 %v11906, %v11923
        %11925 = vmatmul.bf16.gmra.mxu0 %v8699
        %v11926 = vpop.f32.mrf.mxu0
        %v11927 = vadd.f32 %v11909, %v11926
        %v11928 = vpop.f32.mrf.mxu0
        %11929 = vdwg.mxu0
        %11930 = vmatpush.bf16.msra.mxu0 %v11025
        %11931 = vmatpush.bf16.msra.mxu0 %v11018
        %11932 = vmatpush.bf16.msra.mxu0 %v11011
        %11933 = vmatpush.bf16.msra.mxu0 %v11004
        %11934 = vmatpush.bf16.msra.mxu0 %v10997
        %11935 = vmatpush.bf16.msra.mxu0 %v10990
        %11936 = vmatpush.bf16.msra.mxu0 %v10983
        %11937 = vmatpush.bf16.msra.mxu0 %v10976
        %11938 = vmatmul.bf16.gmra.mxu0 %v8692
        %v11939 = vpop.f32.mrf.mxu0
        %v11940 = vadd.f32 %v11922, %v11939
        %v11941 = vpop.f32.mrf.mxu0
        %v11942 = vadd.f32 %v11924, %v11941
        %11943 = vmatmul.bf16.gmra.mxu0 %v8700
        %v11944 = vpop.f32.mrf.mxu0
        %v11945 = vadd.f32 %v11927, %v11944
        %v11946 = vpop.f32.mrf.mxu0
        %11947 = vdwg.mxu0
        %11948 = vmatpush.bf16.msra.mxu0 %v11081
        %11949 = vmatpush.bf16.msra.mxu0 %v11074
        %11950 = vmatpush.bf16.msra.mxu0 %v11067
        %11951 = vmatpush.bf16.msra.mxu0 %v11060
        %11952 = vmatpush.bf16.msra.mxu0 %v11053
        %11953 = vmatpush.bf16.msra.mxu0 %v11046
        %11954 = vmatpush.bf16.msra.mxu0 %v11039
        %11955 = vmatpush.bf16.msra.mxu0 %v11032
        %11956 = vmatmul.bf16.gmra.mxu0 %v8693
        %v11957 = vpop.f32.mrf.mxu0
        %v11958 = vadd.f32 %v11940, %v11957
        %v11959 = vpop.f32.mrf.mxu0
        %v11960 = vadd.f32 %v11942, %v11959
        %11961 = vmatmul.bf16.gmra.mxu0 %v8701
        %v11962 = vpop.f32.mrf.mxu0
        %v11963 = vadd.f32 %v11945, %v11962
        %v11964 = vpop.f32.mrf.mxu0
        %11965 = vdwg.mxu0
        %11966 = vmatpush.bf16.msra.mxu0 %v10690
        %11967 = vmatpush.bf16.msra.mxu0 %v10683
        %11968 = vmatpush.bf16.msra.mxu0 %v10676
        %11969 = vmatpush.bf16.msra.mxu0 %v10669
        %11970 = vmatpush.bf16.msra.mxu0 %v10662
        %11971 = vmatpush.bf16.msra.mxu0 %v10655
        %11972 = vmatpush.bf16.msra.mxu0 %v10648
        %11973 = vmatpush.bf16.msra.mxu0 %v10641
        %11974 = vmatmul.bf16.gmra.mxu0 %v8686
        %v11975 = vpop.f32.mrf.mxu0
        %v11976 = vadd.f32 %v9219, %v11975
        %v11977 = vpop.f32.mrf.mxu0
        %v11978 = vadd.f32 %v9219, %v11977
        %11979 = vmatmul.bf16.gmra.mxu0 %v8694
        %v11980 = vpop.f32.mrf.mxu0
        %v11981 = vadd.f32 %v9219, %v11980
        %v11982 = vpop.f32.mrf.mxu0
        %11983 = vdwg.mxu0
        %11984 = vmatpush.bf16.msra.mxu0 %v10746
        %11985 = vmatpush.bf16.msra.mxu0 %v10739
        %11986 = vmatpush.bf16.msra.mxu0 %v10732
        %11987 = vmatpush.bf16.msra.mxu0 %v10725
        %11988 = vmatpush.bf16.msra.mxu0 %v10718
        %11989 = vmatpush.bf16.msra.mxu0 %v10711
        %11990 = vmatpush.bf16.msra.mxu0 %v10704
        %11991 = vmatpush.bf16.msra.mxu0 %v10697
        %11992 = vmatmul.bf16.gmra.mxu0 %v8687
        %v11993 = vpop.f32.mrf.mxu0
        %v11994 = vadd.f32 %v11976, %v11993
        %v11995 = vpop.f32.mrf.mxu0
        %v11996 = vadd.f32 %v11978, %v11995
        %11997 = vmatmul.bf16.gmra.mxu0 %v8695
        %v11998 = vpop.f32.mrf.mxu0
        %v11999 = vadd.f32 %v11981, %v11998
        %v12000 = vpop.f32.mrf.mxu0
        %12001 = vdwg.mxu0
        %12002 = vmatpush.bf16.msra.mxu0 %v10802
        %12003 = vmatpush.bf16.msra.mxu0 %v10795
        %12004 = vmatpush.bf16.msra.mxu0 %v10788
        %12005 = vmatpush.bf16.msra.mxu0 %v10781
        %12006 = vmatpush.bf16.msra.mxu0 %v10774
        %12007 = vmatpush.bf16.msra.mxu0 %v10767
        %12008 = vmatpush.bf16.msra.mxu0 %v10760
        %12009 = vmatpush.bf16.msra.mxu0 %v10753
        %12010 = vmatmul.bf16.gmra.mxu0 %v8688
        %v12011 = vpop.f32.mrf.mxu0
        %v12012 = vadd.f32 %v11994, %v12011
        %v12013 = vpop.f32.mrf.mxu0
        %v12014 = vadd.f32 %v11996, %v12013
        %12015 = vmatmul.bf16.gmra.mxu0 %v8696
        %v12016 = vpop.f32.mrf.mxu0
        %v12017 = vadd.f32 %v11999, %v12016
        %v12018 = vpop.f32.mrf.mxu0
        %12019 = vdwg.mxu0
        %12020 = vmatpush.bf16.msra.mxu0 %v10858
        %12021 = vmatpush.bf16.msra.mxu0 %v10851
        %12022 = vmatpush.bf16.msra.mxu0 %v10844
        %12023 = vmatpush.bf16.msra.mxu0 %v10837
        %12024 = vmatpush.bf16.msra.mxu0 %v10830
        %12025 = vmatpush.bf16.msra.mxu0 %v10823
        %12026 = vmatpush.bf16.msra.mxu0 %v10816
        %12027 = vmatpush.bf16.msra.mxu0 %v10809
        %12028 = vmatmul.bf16.gmra.mxu0 %v8689
        %v12029 = vpop.f32.mrf.mxu0
        %v12030 = vadd.f32 %v12012, %v12029
        %v12031 = vpop.f32.mrf.mxu0
        %v12032 = vadd.f32 %v12014, %v12031
        %12033 = vmatmul.bf16.gmra.mxu0 %v8697
        %v12034 = vpop.f32.mrf.mxu0
        %v12035 = vadd.f32 %v12017, %v12034
        %v12036 = vpop.f32.mrf.mxu0
        %12037 = vdwg.mxu0
        %12038 = vmatpush.bf16.msra.mxu0 %v10914
        %12039 = vmatpush.bf16.msra.mxu0 %v10907
        %12040 = vmatpush.bf16.msra.mxu0 %v10900
        %12041 = vmatpush.bf16.msra.mxu0 %v10893
        %12042 = vmatpush.bf16.msra.mxu0 %v10886
        %12043 = vmatpush.bf16.msra.mxu0 %v10879
        %12044 = vmatpush.bf16.msra.mxu0 %v10872
        %12045 = vmatpush.bf16.msra.mxu0 %v10865
        %12046 = vmatmul.bf16.gmra.mxu0 %v8690
        %v12047 = vpop.f32.mrf.mxu0
        %v12048 = vadd.f32 %v12030, %v12047
        %v12049 = vpop.f32.mrf.mxu0
        %v12050 = vadd.f32 %v12032, %v12049
        %12051 = vmatmul.bf16.gmra.mxu0 %v8698
        %v12052 = vpop.f32.mrf.mxu0
        %v12053 = vadd.f32 %v12035, %v12052
        %v12054 = vpop.f32.mrf.mxu0
        %12055 = vdwg.mxu0
        %12056 = vmatpush.bf16.msra.mxu0 %v10970
        %12057 = vmatpush.bf16.msra.mxu0 %v10963
        %12058 = vmatpush.bf16.msra.mxu0 %v10956
        %12059 = vmatpush.bf16.msra.mxu0 %v10949
        %12060 = vmatpush.bf16.msra.mxu0 %v10942
        %12061 = vmatpush.bf16.msra.mxu0 %v10935
        %12062 = vmatpush.bf16.msra.mxu0 %v10928
        %12063 = vmatpush.bf16.msra.mxu0 %v10921
        %12064 = vmatmul.bf16.gmra.mxu0 %v8691
        %v12065 = vpop.f32.mrf.mxu0
        %v12066 = vadd.f32 %v12048, %v12065
        %v12067 = vpop.f32.mrf.mxu0
        %v12068 = vadd.f32 %v12050, %v12067
        %12069 = vmatmul.bf16.gmra.mxu0 %v8699
        %v12070 = vpop.f32.mrf.mxu0
        %v12071 = vadd.f32 %v12053, %v12070
        %v12072 = vpop.f32.mrf.mxu0
        %12073 = vdwg.mxu0
        %12074 = vmatpush.bf16.msra.mxu0 %v11026
        %12075 = vmatpush.bf16.msra.mxu0 %v11019
        %12076 = vmatpush.bf16.msra.mxu0 %v11012
        %12077 = vmatpush.bf16.msra.mxu0 %v11005
        %12078 = vmatpush.bf16.msra.mxu0 %v10998
        %12079 = vmatpush.bf16.msra.mxu0 %v10991
        %12080 = vmatpush.bf16.msra.mxu0 %v10984
        %12081 = vmatpush.bf16.msra.mxu0 %v10977
        %12082 = vmatmul.bf16.gmra.mxu0 %v8692
        %v12083 = vpop.f32.mrf.mxu0
        %v12084 = vadd.f32 %v12066, %v12083
        %v12085 = vpop.f32.mrf.mxu0
        %v12086 = vadd.f32 %v12068, %v12085
        %12087 = vmatmul.bf16.gmra.mxu0 %v8700
        %v12088 = vpop.f32.mrf.mxu0
        %v12089 = vadd.f32 %v12071, %v12088
        %v12090 = vpop.f32.mrf.mxu0
        %12091 = vdwg.mxu0
        %12092 = vmatpush.bf16.msra.mxu0 %v11082
        %12093 = vmatpush.bf16.msra.mxu0 %v11075
        %12094 = vmatpush.bf16.msra.mxu0 %v11068
        %12095 = vmatpush.bf16.msra.mxu0 %v11061
        %12096 = vmatpush.bf16.msra.mxu0 %v11054
        %12097 = vmatpush.bf16.msra.mxu0 %v11047
        %12098 = vmatpush.bf16.msra.mxu0 %v11040
        %12099 = vmatpush.bf16.msra.mxu0 %v11033
        %12100 = vmatmul.bf16.gmra.mxu0 %v8693
        %v12101 = vpop.f32.mrf.mxu0
        %v12102 = vadd.f32 %v12084, %v12101
        %v12103 = vpop.f32.mrf.mxu0
        %v12104 = vadd.f32 %v12086, %v12103
        %12105 = vmatmul.bf16.gmra.mxu0 %v8701
        %v12106 = vpop.f32.mrf.mxu0
        %v12107 = vadd.f32 %v12089, %v12106
        %v12108 = vpop.f32.mrf.mxu0
        %12109 = vdwg.mxu0
        %12110 = vmatpush.bf16.msra.mxu0 %v10691
        %12111 = vmatpush.bf16.msra.mxu0 %v10684
        %12112 = vmatpush.bf16.msra.mxu0 %v10677
        %12113 = vmatpush.bf16.msra.mxu0 %v10670
        %12114 = vmatpush.bf16.msra.mxu0 %v10663
        %12115 = vmatpush.bf16.msra.mxu0 %v10656
        %12116 = vmatpush.bf16.msra.mxu0 %v10649
        %12117 = vmatpush.bf16.msra.mxu0 %v10642
        %12118 = vmatmul.bf16.gmra.mxu0 %v8686
        %v12119 = vpop.f32.mrf.mxu0
        %v12120 = vadd.f32 %v9220, %v12119
        %v12121 = vpop.f32.mrf.mxu0
        %v12122 = vadd.f32 %v9220, %v12121
        %12123 = vmatmul.bf16.gmra.mxu0 %v8694
        %v12124 = vpop.f32.mrf.mxu0
        %v12125 = vadd.f32 %v9220, %v12124
        %v12126 = vpop.f32.mrf.mxu0
        %12127 = vdwg.mxu0
        %12128 = vmatpush.bf16.msra.mxu0 %v10747
        %12129 = vmatpush.bf16.msra.mxu0 %v10740
        %12130 = vmatpush.bf16.msra.mxu0 %v10733
        %12131 = vmatpush.bf16.msra.mxu0 %v10726
        %12132 = vmatpush.bf16.msra.mxu0 %v10719
        %12133 = vmatpush.bf16.msra.mxu0 %v10712
        %12134 = vmatpush.bf16.msra.mxu0 %v10705
        %12135 = vmatpush.bf16.msra.mxu0 %v10698
        %12136 = vmatmul.bf16.gmra.mxu0 %v8687
        %v12137 = vpop.f32.mrf.mxu0
        %v12138 = vadd.f32 %v12120, %v12137
        %v12139 = vpop.f32.mrf.mxu0
        %v12140 = vadd.f32 %v12122, %v12139
        %12141 = vmatmul.bf16.gmra.mxu0 %v8695
        %v12142 = vpop.f32.mrf.mxu0
        %v12143 = vadd.f32 %v12125, %v12142
        %v12144 = vpop.f32.mrf.mxu0
        %12145 = vdwg.mxu0
        %12146 = vmatpush.bf16.msra.mxu0 %v10803
        %12147 = vmatpush.bf16.msra.mxu0 %v10796
        %12148 = vmatpush.bf16.msra.mxu0 %v10789
        %12149 = vmatpush.bf16.msra.mxu0 %v10782
        %12150 = vmatpush.bf16.msra.mxu0 %v10775
        %12151 = vmatpush.bf16.msra.mxu0 %v10768
        %12152 = vmatpush.bf16.msra.mxu0 %v10761
        %12153 = vmatpush.bf16.msra.mxu0 %v10754
        %12154 = vmatmul.bf16.gmra.mxu0 %v8688
        %v12155 = vpop.f32.mrf.mxu0
        %v12156 = vadd.f32 %v12138, %v12155
        %v12157 = vpop.f32.mrf.mxu0
        %v12158 = vadd.f32 %v12140, %v12157
        %12159 = vmatmul.bf16.gmra.mxu0 %v8696
        %v12160 = vpop.f32.mrf.mxu0
        %v12161 = vadd.f32 %v12143, %v12160
        %v12162 = vpop.f32.mrf.mxu0
        %12163 = vdwg.mxu0
        %12164 = vmatpush.bf16.msra.mxu0 %v10859
        %12165 = vmatpush.bf16.msra.mxu0 %v10852
        %12166 = vmatpush.bf16.msra.mxu0 %v10845
        %12167 = vmatpush.bf16.msra.mxu0 %v10838
        %12168 = vmatpush.bf16.msra.mxu0 %v10831
        %12169 = vmatpush.bf16.msra.mxu0 %v10824
        %12170 = vmatpush.bf16.msra.mxu0 %v10817
        %12171 = vmatpush.bf16.msra.mxu0 %v10810
        %12172 = vmatmul.bf16.gmra.mxu0 %v8689
        %v12173 = vpop.f32.mrf.mxu0
        %v12174 = vadd.f32 %v12156, %v12173
        %v12175 = vpop.f32.mrf.mxu0
        %v12176 = vadd.f32 %v12158, %v12175
        %12177 = vmatmul.bf16.gmra.mxu0 %v8697
        %v12178 = vpop.f32.mrf.mxu0
        %v12179 = vadd.f32 %v12161, %v12178
        %v12180 = vpop.f32.mrf.mxu0
        %12181 = vdwg.mxu0
        %12182 = vmatpush.bf16.msra.mxu0 %v10915
        %12183 = vmatpush.bf16.msra.mxu0 %v10908
        %12184 = vmatpush.bf16.msra.mxu0 %v10901
        %12185 = vmatpush.bf16.msra.mxu0 %v10894
        %12186 = vmatpush.bf16.msra.mxu0 %v10887
        %12187 = vmatpush.bf16.msra.mxu0 %v10880
        %12188 = vmatpush.bf16.msra.mxu0 %v10873
        %12189 = vmatpush.bf16.msra.mxu0 %v10866
        %12190 = vmatmul.bf16.gmra.mxu0 %v8690
        %v12191 = vpop.f32.mrf.mxu0
        %v12192 = vadd.f32 %v12174, %v12191
        %v12193 = vpop.f32.mrf.mxu0
        %v12194 = vadd.f32 %v12176, %v12193
        %12195 = vmatmul.bf16.gmra.mxu0 %v8698
        %v12196 = vpop.f32.mrf.mxu0
        %v12197 = vadd.f32 %v12179, %v12196
        %v12198 = vpop.f32.mrf.mxu0
        %12199 = vdwg.mxu0
        %12200 = vmatpush.bf16.msra.mxu0 %v10971
        %12201 = vmatpush.bf16.msra.mxu0 %v10964
        %12202 = vmatpush.bf16.msra.mxu0 %v10957
        %12203 = vmatpush.bf16.msra.mxu0 %v10950
        %12204 = vmatpush.bf16.msra.mxu0 %v10943
        %12205 = vmatpush.bf16.msra.mxu0 %v10936
        %12206 = vmatpush.bf16.msra.mxu0 %v10929
        %12207 = vmatpush.bf16.msra.mxu0 %v10922
        %12208 = vmatmul.bf16.gmra.mxu0 %v8691
        %v12209 = vpop.f32.mrf.mxu0
        %v12210 = vadd.f32 %v12192, %v12209
        %v12211 = vpop.f32.mrf.mxu0
        %v12212 = vadd.f32 %v12194, %v12211
        %12213 = vmatmul.bf16.gmra.mxu0 %v8699
        %v12214 = vpop.f32.mrf.mxu0
        %v12215 = vadd.f32 %v12197, %v12214
        %v12216 = vpop.f32.mrf.mxu0
        %12217 = vdwg.mxu0
        %12218 = vmatpush.bf16.msra.mxu0 %v11027
        %12219 = vmatpush.bf16.msra.mxu0 %v11020
        %12220 = vmatpush.bf16.msra.mxu0 %v11013
        %12221 = vmatpush.bf16.msra.mxu0 %v11006
        %12222 = vmatpush.bf16.msra.mxu0 %v10999
        %12223 = vmatpush.bf16.msra.mxu0 %v10992
        %12224 = vmatpush.bf16.msra.mxu0 %v10985
        %12225 = vmatpush.bf16.msra.mxu0 %v10978
        %12226 = vmatmul.bf16.gmra.mxu0 %v8692
        %v12227 = vpop.f32.mrf.mxu0
        %v12228 = vadd.f32 %v12210, %v12227
        %v12229 = vpop.f32.mrf.mxu0
        %v12230 = vadd.f32 %v12212, %v12229
        %12231 = vmatmul.bf16.gmra.mxu0 %v8700
        %v12232 = vpop.f32.mrf.mxu0
        %v12233 = vadd.f32 %v12215, %v12232
        %v12234 = vpop.f32.mrf.mxu0
        %12235 = vdwg.mxu0
        %12236 = vmatpush.bf16.msra.mxu0 %v11083
        %12237 = vmatpush.bf16.msra.mxu0 %v11076
        %12238 = vmatpush.bf16.msra.mxu0 %v11069
        %12239 = vmatpush.bf16.msra.mxu0 %v11062
        %12240 = vmatpush.bf16.msra.mxu0 %v11055
        %12241 = vmatpush.bf16.msra.mxu0 %v11048
        %12242 = vmatpush.bf16.msra.mxu0 %v11041
        %12243 = vmatpush.bf16.msra.mxu0 %v11034
        %12244 = vmatmul.bf16.gmra.mxu0 %v8693
        %v12245 = vpop.f32.mrf.mxu0
        %v12246 = vadd.f32 %v12228, %v12245
        %v12247 = vpop.f32.mrf.mxu0
        %v12248 = vadd.f32 %v12230, %v12247
        %12249 = vmatmul.bf16.gmra.mxu0 %v8701
        %v12250 = vpop.f32.mrf.mxu0
        %v12251 = vadd.f32 %v12233, %v12250
        %v12252 = vpop.f32.mrf.mxu0
        %12253 = vdwg.mxu0
        %12254 = vmatpush.bf16.msra.mxu0 %v10692
        %12255 = vmatpush.bf16.msra.mxu0 %v10685
        %12256 = vmatpush.bf16.msra.mxu0 %v10678
        %12257 = vmatpush.bf16.msra.mxu0 %v10671
        %12258 = vmatpush.bf16.msra.mxu0 %v10664
        %12259 = vmatpush.bf16.msra.mxu0 %v10657
        %12260 = vmatpush.bf16.msra.mxu0 %v10650
        %12261 = vmatpush.bf16.msra.mxu0 %v10643
        %12262 = vmatmul.bf16.gmra.mxu0 %v8686
        %v12263 = vpop.f32.mrf.mxu0
        %v12264 = vadd.f32 %v9221, %v12263
        %v12265 = vpop.f32.mrf.mxu0
        %v12266 = vadd.f32 %v9221, %v12265
        %12267 = vmatmul.bf16.gmra.mxu0 %v8694
        %v12268 = vpop.f32.mrf.mxu0
        %v12269 = vadd.f32 %v9221, %v12268
        %v12270 = vpop.f32.mrf.mxu0
        %12271 = vdwg.mxu0
        %12272 = vmatpush.bf16.msra.mxu0 %v10748
        %12273 = vmatpush.bf16.msra.mxu0 %v10741
        %12274 = vmatpush.bf16.msra.mxu0 %v10734
        %12275 = vmatpush.bf16.msra.mxu0 %v10727
        %12276 = vmatpush.bf16.msra.mxu0 %v10720
        %12277 = vmatpush.bf16.msra.mxu0 %v10713
        %12278 = vmatpush.bf16.msra.mxu0 %v10706
        %12279 = vmatpush.bf16.msra.mxu0 %v10699
        %12280 = vmatmul.bf16.gmra.mxu0 %v8687
        %v12281 = vpop.f32.mrf.mxu0
        %v12282 = vadd.f32 %v12264, %v12281
        %v12283 = vpop.f32.mrf.mxu0
        %v12284 = vadd.f32 %v12266, %v12283
        %12285 = vmatmul.bf16.gmra.mxu0 %v8695
        %v12286 = vpop.f32.mrf.mxu0
        %v12287 = vadd.f32 %v12269, %v12286
        %v12288 = vpop.f32.mrf.mxu0
        %12289 = vdwg.mxu0
        %12290 = vmatpush.bf16.msra.mxu0 %v10804
        %12291 = vmatpush.bf16.msra.mxu0 %v10797
        %12292 = vmatpush.bf16.msra.mxu0 %v10790
        %12293 = vmatpush.bf16.msra.mxu0 %v10783
        %12294 = vmatpush.bf16.msra.mxu0 %v10776
        %12295 = vmatpush.bf16.msra.mxu0 %v10769
        %12296 = vmatpush.bf16.msra.mxu0 %v10762
        %12297 = vmatpush.bf16.msra.mxu0 %v10755
        %12298 = vmatmul.bf16.gmra.mxu0 %v8688
        %v12299 = vpop.f32.mrf.mxu0
        %v12300 = vadd.f32 %v12282, %v12299
        %v12301 = vpop.f32.mrf.mxu0
        %v12302 = vadd.f32 %v12284, %v12301
        %12303 = vmatmul.bf16.gmra.mxu0 %v8696
        %v12304 = vpop.f32.mrf.mxu0
        %v12305 = vadd.f32 %v12287, %v12304
        %v12306 = vpop.f32.mrf.mxu0
        %12307 = vdwg.mxu0
        %12308 = vmatpush.bf16.msra.mxu0 %v10860
        %12309 = vmatpush.bf16.msra.mxu0 %v10853
        %12310 = vmatpush.bf16.msra.mxu0 %v10846
        %12311 = vmatpush.bf16.msra.mxu0 %v10839
        %12312 = vmatpush.bf16.msra.mxu0 %v10832
        %12313 = vmatpush.bf16.msra.mxu0 %v10825
        %12314 = vmatpush.bf16.msra.mxu0 %v10818
        %12315 = vmatpush.bf16.msra.mxu0 %v10811
        %12316 = vmatmul.bf16.gmra.mxu0 %v8689
        %v12317 = vpop.f32.mrf.mxu0
        %v12318 = vadd.f32 %v12300, %v12317
        %v12319 = vpop.f32.mrf.mxu0
        %v12320 = vadd.f32 %v12302, %v12319
        %12321 = vmatmul.bf16.gmra.mxu0 %v8697
        %v12322 = vpop.f32.mrf.mxu0
        %v12323 = vadd.f32 %v12305, %v12322
        %v12324 = vpop.f32.mrf.mxu0
        %12325 = vdwg.mxu0
        %12326 = vmatpush.bf16.msra.mxu0 %v10916
        %12327 = vmatpush.bf16.msra.mxu0 %v10909
        %12328 = vmatpush.bf16.msra.mxu0 %v10902
        %12329 = vmatpush.bf16.msra.mxu0 %v10895
        %12330 = vmatpush.bf16.msra.mxu0 %v10888
        %12331 = vmatpush.bf16.msra.mxu0 %v10881
        %12332 = vmatpush.bf16.msra.mxu0 %v10874
        %12333 = vmatpush.bf16.msra.mxu0 %v10867
        %12334 = vmatmul.bf16.gmra.mxu0 %v8690
        %v12335 = vpop.f32.mrf.mxu0
        %v12336 = vadd.f32 %v12318, %v12335
        %v12337 = vpop.f32.mrf.mxu0
        %v12338 = vadd.f32 %v12320, %v12337
        %12339 = vmatmul.bf16.gmra.mxu0 %v8698
        %v12340 = vpop.f32.mrf.mxu0
        %v12341 = vadd.f32 %v12323, %v12340
        %v12342 = vpop.f32.mrf.mxu0
        %12343 = vdwg.mxu0
        %12344 = vmatpush.bf16.msra.mxu0 %v10972
        %12345 = vmatpush.bf16.msra.mxu0 %v10965
        %12346 = vmatpush.bf16.msra.mxu0 %v10958
        %12347 = vmatpush.bf16.msra.mxu0 %v10951
        %12348 = vmatpush.bf16.msra.mxu0 %v10944
        %12349 = vmatpush.bf16.msra.mxu0 %v10937
        %12350 = vmatpush.bf16.msra.mxu0 %v10930
        %12351 = vmatpush.bf16.msra.mxu0 %v10923
        %12352 = vmatmul.bf16.gmra.mxu0 %v8691
        %v12353 = vpop.f32.mrf.mxu0
        %v12354 = vadd.f32 %v12336, %v12353
        %v12355 = vpop.f32.mrf.mxu0
        %v12356 = vadd.f32 %v12338, %v12355
        %12357 = vmatmul.bf16.gmra.mxu0 %v8699
        %v12358 = vpop.f32.mrf.mxu0
        %v12359 = vadd.f32 %v12341, %v12358
        %v12360 = vpop.f32.mrf.mxu0
        %12361 = vdwg.mxu0
        %12362 = vmatpush.bf16.msra.mxu0 %v11028
        %12363 = vmatpush.bf16.msra.mxu0 %v11021
        %12364 = vmatpush.bf16.msra.mxu0 %v11014
        %12365 = vmatpush.bf16.msra.mxu0 %v11007
        %12366 = vmatpush.bf16.msra.mxu0 %v11000
        %12367 = vmatpush.bf16.msra.mxu0 %v10993
        %12368 = vmatpush.bf16.msra.mxu0 %v10986
        %12369 = vmatpush.bf16.msra.mxu0 %v10979
        %12370 = vmatmul.bf16.gmra.mxu0 %v8692
        %v12371 = vpop.f32.mrf.mxu0
        %v12372 = vadd.f32 %v12354, %v12371
        %v12373 = vpop.f32.mrf.mxu0
        %v12374 = vadd.f32 %v12356, %v12373
        %12375 = vmatmul.bf16.gmra.mxu0 %v8700
        %v12376 = vpop.f32.mrf.mxu0
        %v12377 = vadd.f32 %v12359, %v12376
        %v12378 = vpop.f32.mrf.mxu0
        %12379 = vdwg.mxu0
        %12380 = vmatpush.bf16.msra.mxu0 %v11084
        %12381 = vmatpush.bf16.msra.mxu0 %v11077
        %12382 = vmatpush.bf16.msra.mxu0 %v11070
        %12383 = vmatpush.bf16.msra.mxu0 %v11063
        %12384 = vmatpush.bf16.msra.mxu0 %v11056
        %12385 = vmatpush.bf16.msra.mxu0 %v11049
        %12386 = vmatpush.bf16.msra.mxu0 %v11042
        %12387 = vmatpush.bf16.msra.mxu0 %v11035
        %12388 = vmatmul.bf16.gmra.mxu0 %v8693
        %v12389 = vpop.f32.mrf.mxu0
        %v12390 = vadd.f32 %v12372, %v12389
        %v12391 = vpop.f32.mrf.mxu0
        %v12392 = vadd.f32 %v12374, %v12391
        %12393 = vmatmul.bf16.gmra.mxu0 %v8701
        %v12394 = vpop.f32.mrf.mxu0
        %v12395 = vadd.f32 %v12377, %v12394
        %v12396 = vpop.f32.mrf.mxu0
        %12397 = vdwg.mxu0
        %12398 = vmatpush.bf16.msra.mxu0 %v10693
        %12399 = vmatpush.bf16.msra.mxu0 %v10686
        %12400 = vmatpush.bf16.msra.mxu0 %v10679
        %12401 = vmatpush.bf16.msra.mxu0 %v10672
        %12402 = vmatpush.bf16.msra.mxu0 %v10665
        %12403 = vmatpush.bf16.msra.mxu0 %v10658
        %12404 = vmatpush.bf16.msra.mxu0 %v10651
        %12405 = vmatpush.bf16.msra.mxu0 %v10644
        %12406 = vmatmul.bf16.gmra.mxu0 %v8686
        %v12407 = vpop.f32.mrf.mxu0
        %v12408 = vadd.f32 %v9222, %v12407
        %v12409 = vpop.f32.mrf.mxu0
        %v12410 = vadd.f32 %v9222, %v12409
        %12411 = vmatmul.bf16.gmra.mxu0 %v8694
        %v12412 = vpop.f32.mrf.mxu0
        %v12413 = vadd.f32 %v9222, %v12412
        %v12414 = vpop.f32.mrf.mxu0
        %12415 = vdwg.mxu0
        %12416 = vmatpush.bf16.msra.mxu0 %v10749
        %12417 = vmatpush.bf16.msra.mxu0 %v10742
        %12418 = vmatpush.bf16.msra.mxu0 %v10735
        %12419 = vmatpush.bf16.msra.mxu0 %v10728
        %12420 = vmatpush.bf16.msra.mxu0 %v10721
        %12421 = vmatpush.bf16.msra.mxu0 %v10714
        %12422 = vmatpush.bf16.msra.mxu0 %v10707
        %12423 = vmatpush.bf16.msra.mxu0 %v10700
        %12424 = vmatmul.bf16.gmra.mxu0 %v8687
        %v12425 = vpop.f32.mrf.mxu0
        %v12426 = vadd.f32 %v12408, %v12425
        %v12427 = vpop.f32.mrf.mxu0
        %v12428 = vadd.f32 %v12410, %v12427
        %12429 = vmatmul.bf16.gmra.mxu0 %v8695
        %v12430 = vpop.f32.mrf.mxu0
        %v12431 = vadd.f32 %v12413, %v12430
        %v12432 = vpop.f32.mrf.mxu0
        %12433 = vdwg.mxu0
        %12434 = vmatpush.bf16.msra.mxu0 %v10805
        %12435 = vmatpush.bf16.msra.mxu0 %v10798
        %12436 = vmatpush.bf16.msra.mxu0 %v10791
        %12437 = vmatpush.bf16.msra.mxu0 %v10784
        %12438 = vmatpush.bf16.msra.mxu0 %v10777
        %12439 = vmatpush.bf16.msra.mxu0 %v10770
        %12440 = vmatpush.bf16.msra.mxu0 %v10763
        %12441 = vmatpush.bf16.msra.mxu0 %v10756
        %12442 = vmatmul.bf16.gmra.mxu0 %v8688
        %v12443 = vpop.f32.mrf.mxu0
        %v12444 = vadd.f32 %v12426, %v12443
        %v12445 = vpop.f32.mrf.mxu0
        %v12446 = vadd.f32 %v12428, %v12445
        %12447 = vmatmul.bf16.gmra.mxu0 %v8696
        %v12448 = vpop.f32.mrf.mxu0
        %v12449 = vadd.f32 %v12431, %v12448
        %v12450 = vpop.f32.mrf.mxu0
        %12451 = vdwg.mxu0
        %12452 = vmatpush.bf16.msra.mxu0 %v10861
        %12453 = vmatpush.bf16.msra.mxu0 %v10854
        %12454 = vmatpush.bf16.msra.mxu0 %v10847
        %12455 = vmatpush.bf16.msra.mxu0 %v10840
        %12456 = vmatpush.bf16.msra.mxu0 %v10833
        %12457 = vmatpush.bf16.msra.mxu0 %v10826
        %12458 = vmatpush.bf16.msra.mxu0 %v10819
        %12459 = vmatpush.bf16.msra.mxu0 %v10812
        %12460 = vmatmul.bf16.gmra.mxu0 %v8689
        %v12461 = vpop.f32.mrf.mxu0
        %v12462 = vadd.f32 %v12444, %v12461
        %v12463 = vpop.f32.mrf.mxu0
        %v12464 = vadd.f32 %v12446, %v12463
        %12465 = vmatmul.bf16.gmra.mxu0 %v8697
        %v12466 = vpop.f32.mrf.mxu0
        %v12467 = vadd.f32 %v12449, %v12466
        %v12468 = vpop.f32.mrf.mxu0
        %12469 = vdwg.mxu0
        %12470 = vmatpush.bf16.msra.mxu0 %v10917
        %12471 = vmatpush.bf16.msra.mxu0 %v10910
        %12472 = vmatpush.bf16.msra.mxu0 %v10903
        %12473 = vmatpush.bf16.msra.mxu0 %v10896
        %12474 = vmatpush.bf16.msra.mxu0 %v10889
        %12475 = vmatpush.bf16.msra.mxu0 %v10882
        %12476 = vmatpush.bf16.msra.mxu0 %v10875
        %12477 = vmatpush.bf16.msra.mxu0 %v10868
        %12478 = vmatmul.bf16.gmra.mxu0 %v8690
        %v12479 = vpop.f32.mrf.mxu0
        %v12480 = vadd.f32 %v12462, %v12479
        %v12481 = vpop.f32.mrf.mxu0
        %v12482 = vadd.f32 %v12464, %v12481
        %12483 = vmatmul.bf16.gmra.mxu0 %v8698
        %v12484 = vpop.f32.mrf.mxu0
        %v12485 = vadd.f32 %v12467, %v12484
        %v12486 = vpop.f32.mrf.mxu0
        %12487 = vdwg.mxu0
        %12488 = vmatpush.bf16.msra.mxu0 %v10973
        %12489 = vmatpush.bf16.msra.mxu0 %v10966
        %12490 = vmatpush.bf16.msra.mxu0 %v10959
        %12491 = vmatpush.bf16.msra.mxu0 %v10952
        %12492 = vmatpush.bf16.msra.mxu0 %v10945
        %12493 = vmatpush.bf16.msra.mxu0 %v10938
        %12494 = vmatpush.bf16.msra.mxu0 %v10931
        %12495 = vmatpush.bf16.msra.mxu0 %v10924
        %12496 = vmatmul.bf16.gmra.mxu0 %v8691
        %v12497 = vpop.f32.mrf.mxu0
        %v12498 = vadd.f32 %v12480, %v12497
        %v12499 = vpop.f32.mrf.mxu0
        %v12500 = vadd.f32 %v12482, %v12499
        %12501 = vmatmul.bf16.gmra.mxu0 %v8699
        %v12502 = vpop.f32.mrf.mxu0
        %v12503 = vadd.f32 %v12485, %v12502
        %v12504 = vpop.f32.mrf.mxu0
        %12505 = vdwg.mxu0
        %12506 = vmatpush.bf16.msra.mxu0 %v11029
        %12507 = vmatpush.bf16.msra.mxu0 %v11022
        %12508 = vmatpush.bf16.msra.mxu0 %v11015
        %12509 = vmatpush.bf16.msra.mxu0 %v11008
        %12510 = vmatpush.bf16.msra.mxu0 %v11001
        %12511 = vmatpush.bf16.msra.mxu0 %v10994
        %12512 = vmatpush.bf16.msra.mxu0 %v10987
        %12513 = vmatpush.bf16.msra.mxu0 %v10980
        %12514 = vmatmul.bf16.gmra.mxu0 %v8692
        %v12515 = vpop.f32.mrf.mxu0
        %v12516 = vadd.f32 %v12498, %v12515
        %v12517 = vpop.f32.mrf.mxu0
        %v12518 = vadd.f32 %v12500, %v12517
        %12519 = vmatmul.bf16.gmra.mxu0 %v8700
        %v12520 = vpop.f32.mrf.mxu0
        %v12521 = vadd.f32 %v12503, %v12520
        %v12522 = vpop.f32.mrf.mxu0
        %12523 = vdwg.mxu0
        %12524 = vmatpush.bf16.msra.mxu0 %v11085
        %12525 = vmatpush.bf16.msra.mxu0 %v11078
        %12526 = vmatpush.bf16.msra.mxu0 %v11071
        %12527 = vmatpush.bf16.msra.mxu0 %v11064
        %12528 = vmatpush.bf16.msra.mxu0 %v11057
        %12529 = vmatpush.bf16.msra.mxu0 %v11050
        %12530 = vmatpush.bf16.msra.mxu0 %v11043
        %12531 = vmatpush.bf16.msra.mxu0 %v11036
        %12532 = vmatmul.bf16.gmra.mxu0 %v8693
        %v12533 = vpop.f32.mrf.mxu0
        %v12534 = vadd.f32 %v12516, %v12533
        %v12535 = vpop.f32.mrf.mxu0
        %v12536 = vadd.f32 %v12518, %v12535
        %12537 = vmatmul.bf16.gmra.mxu0 %v8701
        %v12538 = vpop.f32.mrf.mxu0
        %v12539 = vadd.f32 %v12521, %v12538
        %v12540 = vpop.f32.mrf.mxu0
        %12541 = vdwg.mxu0
        %v12542 = vpack.c.bf16 %v11814, %v11670
        %v12543 = vpack.c.bf16 %v12102, %v11958
        %v12544 = vpack.c.bf16 %v12390, %v12246
        %v12545 = vpack.c.bf16 %v12534, %v12534
        %v12546 = vpack.c.bf16 %v11816, %v11672
        %v12547 = vpack.c.bf16 %v12104, %v11960
        %v12548 = vpack.c.bf16 %v12392, %v12248
        %v12549 = vpack.c.bf16 %v12536, %v12536
        %v12550 = vpack.c.bf16 %v11819, %v11675
        %v12551 = vpack.c.bf16 %v12107, %v11963
        %v12552 = vpack.c.bf16 %v12395, %v12251
        %v12553 = vpack.c.bf16 %v12539, %v12539
        %v12554 = vxor.u32 %v12542, 2147516416
        %v12555 = vxor.u32 %v12543, 2147516416
        %v12556 = vxor.u32 %v12544, 2147516416
        %v12557 = vxor.u32 %v12545, 2147516416
        %v12558 = vxor.u32 %v12546, 2147516416
        %v12559 = vxor.u32 %v12547, 2147516416
        %v12560 = vxor.u32 %v12548, 2147516416
        %v12561 = vxor.u32 %v12549, 2147516416
        %v12562 = vxor.u32 %v12550, 2147516416
        %v12563 = vxor.u32 %v12551, 2147516416
        %v12564 = vxor.u32 %v12552, 2147516416
        %v12565 = vxor.u32 %v12553, 2147516416
        %v12566 = vunpack.c.l.bf16 %v12554
        %v12567 = vunpack.c.h.bf16 %v12554
        %v12568 = vunpack.c.l.bf16 %v12555
        %v12569 = vunpack.c.h.bf16 %v12555
        %v12570 = vunpack.c.l.bf16 %v12556
        %v12571 = vunpack.c.h.bf16 %v12556
        %v12572 = vunpack.c.l.bf16 %v12557
        %v12573 = vunpack.c.l.bf16 %v12558
        %v12574 = vunpack.c.h.bf16 %v12558
        %v12575 = vunpack.c.l.bf16 %v12559
        %v12576 = vunpack.c.h.bf16 %v12559
        %v12577 = vunpack.c.l.bf16 %v12560
        %v12578 = vunpack.c.h.bf16 %v12560
        %v12579 = vunpack.c.l.bf16 %v12561
        %v12580 = vunpack.c.l.bf16 %v12562
        %v12581 = vunpack.c.h.bf16 %v12562
        %v12582 = vunpack.c.l.bf16 %v12563
        %v12583 = vunpack.c.h.bf16 %v12563
        %v12584 = vunpack.c.l.bf16 %v12564
        %v12585 = vunpack.c.h.bf16 %v12564
        %v12586 = vunpack.c.l.bf16 %v12565
        %v12587 = vmul.f32 %v12566, 1.442695
        %v12588 = vpow.pop %v12587
        %v12589 = vmul.f32 %v12567, 1.442695
        %v12590 = vpow.pop %v12589
        %v12591 = vmul.f32 %v12568, 1.442695
        %v12592 = vpow.pop %v12591
        %v12593 = vmul.f32 %v12569, 1.442695
        %v12594 = vpow.pop %v12593
        %v12595 = vmul.f32 %v12570, 1.442695
        %v12596 = vpow.pop %v12595
        %v12597 = vmul.f32 %v12571, 1.442695
        %v12598 = vpow.pop %v12597
        %v12599 = vmul.f32 %v12572, 1.442695
        %v12600 = vpow.pop %v12599
        %v12601 = vmul.f32 %v12573, 1.442695
        %v12602 = vpow.pop %v12601
        %v12603 = vmul.f32 %v12574, 1.442695
        %v12604 = vpow.pop %v12603
        %v12605 = vmul.f32 %v12575, 1.442695
        %v12606 = vpow.pop %v12605
        %v12607 = vmul.f32 %v12576, 1.442695
        %v12608 = vpow.pop %v12607
        %v12609 = vmul.f32 %v12577, 1.442695
        %v12610 = vpow.pop %v12609
        %v12611 = vmul.f32 %v12578, 1.442695
        %v12612 = vpow.pop %v12611
        %v12613 = vmul.f32 %v12579, 1.442695
        %v12614 = vpow.pop %v12613
        %v12615 = vmul.f32 %v12580, 1.442695
        %v12616 = vpow.pop %v12615
        %v12617 = vmul.f32 %v12581, 1.442695
        %v12618 = vpow.pop %v12617
        %v12619 = vmul.f32 %v12582, 1.442695
        %v12620 = vpow.pop %v12619
        %v12621 = vmul.f32 %v12583, 1.442695
        %v12622 = vpow.pop %v12621
        %v12623 = vmul.f32 %v12584, 1.442695
        %v12624 = vpow.pop %v12623
        %v12625 = vmul.f32 %v12585, 1.442695
        %v12626 = vpow.pop %v12625
        %v12627 = vmul.f32 %v12586, 1.442695
        %v12628 = vpow.pop %v12627
        %v12629 = vpack.c.bf16 %v12590, %v12588
        %v12630 = vpack.c.bf16 %v12594, %v12592
        %v12631 = vpack.c.bf16 %v12598, %v12596
        %v12632 = vpack.c.bf16 %v12600, %v12600
        %v12633 = vpack.c.bf16 %v12604, %v12602
        %v12634 = vpack.c.bf16 %v12608, %v12606
        %v12635 = vpack.c.bf16 %v12612, %v12610
        %v12636 = vpack.c.bf16 %v12614, %v12614
        %v12637 = vpack.c.bf16 %v12618, %v12616
        %v12638 = vpack.c.bf16 %v12622, %v12620
        %v12639 = vpack.c.bf16 %v12626, %v12624
        %v12640 = vpack.c.bf16 %v12628, %v12628
        %v12641 = vunpack.c.l.bf16 %v12629
        %v12642 = vunpack.c.h.bf16 %v12629
        %v12643 = vunpack.c.l.bf16 %v12630
        %v12644 = vunpack.c.h.bf16 %v12630
        %v12645 = vunpack.c.l.bf16 %v12631
        %v12646 = vunpack.c.h.bf16 %v12631
        %v12647 = vunpack.c.l.bf16 %v12632
        %v12648 = vunpack.c.l.bf16 %v12633
        %v12649 = vunpack.c.h.bf16 %v12633
        %v12650 = vunpack.c.l.bf16 %v12634
        %v12651 = vunpack.c.h.bf16 %v12634
        %v12652 = vunpack.c.l.bf16 %v12635
        %v12653 = vunpack.c.h.bf16 %v12635
        %v12654 = vunpack.c.l.bf16 %v12636
        %v12655 = vunpack.c.l.bf16 %v12637
        %v12656 = vunpack.c.h.bf16 %v12637
        %v12657 = vunpack.c.l.bf16 %v12638
        %v12658 = vunpack.c.h.bf16 %v12638
        %v12659 = vunpack.c.l.bf16 %v12639
        %v12660 = vunpack.c.h.bf16 %v12639
        %v12661 = vunpack.c.l.bf16 %v12640
        %v12662 = vadd.f32 %v12641, 1.0
        %v12663 = vadd.f32 %v12642, 1.0
        %v12664 = vadd.f32 %v12643, 1.0
        %v12665 = vadd.f32 %v12644, 1.0
        %v12666 = vadd.f32 %v12645, 1.0
        %v12667 = vadd.f32 %v12646, 1.0
        %v12668 = vadd.f32 %v12647, 1.0
        %v12669 = vadd.f32 %v12648, 1.0
        %v12670 = vadd.f32 %v12649, 1.0
        %v12671 = vadd.f32 %v12650, 1.0
        %v12672 = vadd.f32 %v12651, 1.0
        %v12673 = vadd.f32 %v12652, 1.0
        %v12674 = vadd.f32 %v12653, 1.0
        %v12675 = vadd.f32 %v12654, 1.0
        %v12676 = vadd.f32 %v12655, 1.0
        %v12677 = vadd.f32 %v12656, 1.0
        %v12678 = vadd.f32 %v12657, 1.0
        %v12679 = vadd.f32 %v12658, 1.0
        %v12680 = vadd.f32 %v12659, 1.0
        %v12681 = vadd.f32 %v12660, 1.0
        %v12682 = vadd.f32 %v12661, 1.0
        %v12683 = vpack.c.bf16 %v12663, %v12662
        %v12684 = vpack.c.bf16 %v12665, %v12664
        %v12685 = vpack.c.bf16 %v12667, %v12666
        %v12686 = vpack.c.bf16 %v12668, %v12668
        %v12687 = vpack.c.bf16 %v12670, %v12669
        %v12688 = vpack.c.bf16 %v12672, %v12671
        %v12689 = vpack.c.bf16 %v12674, %v12673
        %v12690 = vpack.c.bf16 %v12675, %v12675
        %v12691 = vpack.c.bf16 %v12677, %v12676
        %v12692 = vpack.c.bf16 %v12679, %v12678
        %v12693 = vpack.c.bf16 %v12681, %v12680
        %v12694 = vpack.c.bf16 %v12682, %v12682
        %v12695 = vunpack.c.h.bf16 %v12683
        %v12696 = vunpack.c.l.bf16 %v12683
        %v12697 = vrcp.pop %v12695
        %v12698 = vmul.f32 %v3946, %v12697
        %v12699 = vrcp.pop %v12696
        %v12700 = vmul.f32 %v3947, %v12699
        %v12701 = vpack.c.bf16 %v12698, %v12700
        %v12702 = vunpack.c.h.bf16 %v12684
        %v12703 = vunpack.c.l.bf16 %v12684
        %v12704 = vrcp.pop %v12702
        %v12705 = vmul.f32 %v3946, %v12704
        %v12706 = vrcp.pop %v12703
        %v12707 = vmul.f32 %v3947, %v12706
        %v12708 = vpack.c.bf16 %v12705, %v12707
        %v12709 = vunpack.c.h.bf16 %v12685
        %v12710 = vunpack.c.l.bf16 %v12685
        %v12711 = vrcp.pop %v12709
        %v12712 = vmul.f32 %v3946, %v12711
        %v12713 = vrcp.pop %v12710
        %v12714 = vmul.f32 %v3947, %v12713
        %v12715 = vpack.c.bf16 %v12712, %v12714
        %v12716 = vunpack.c.h.bf16 %v12686
        %v12717 = vunpack.c.l.bf16 %v12686
        %v12718 = vrcp.pop %v12716
        %v12719 = vmul.f32 %v3946, %v12718
        %v12720 = vrcp.pop %v12717
        %v12721 = vmul.f32 %v3947, %v12720
        %v12722 = vpack.c.bf16 %v12719, %v12721
        %v12723 = vunpack.c.h.bf16 %v12687
        %v12724 = vunpack.c.l.bf16 %v12687
        %v12725 = vrcp.pop %v12723
        %v12726 = vmul.f32 %v3946, %v12725
        %v12727 = vrcp.pop %v12724
        %v12728 = vmul.f32 %v3947, %v12727
        %v12729 = vpack.c.bf16 %v12726, %v12728
        %v12730 = vunpack.c.h.bf16 %v12688
        %v12731 = vunpack.c.l.bf16 %v12688
        %v12732 = vrcp.pop %v12730
        %v12733 = vmul.f32 %v3946, %v12732
        %v12734 = vrcp.pop %v12731
        %v12735 = vmul.f32 %v3947, %v12734
        %v12736 = vpack.c.bf16 %v12733, %v12735
        %v12737 = vunpack.c.h.bf16 %v12689
        %v12738 = vunpack.c.l.bf16 %v12689
        %v12739 = vrcp.pop %v12737
        %v12740 = vmul.f32 %v3946, %v12739
        %v12741 = vrcp.pop %v12738
        %v12742 = vmul.f32 %v3947, %v12741
        %v12743 = vpack.c.bf16 %v12740, %v12742
        %v12744 = vunpack.c.h.bf16 %v12690
        %v12745 = vunpack.c.l.bf16 %v12690
        %v12746 = vrcp.pop %v12744
        %v12747 = vmul.f32 %v3946, %v12746
        %v12748 = vrcp.pop %v12745
        %v12749 = vmul.f32 %v3947, %v12748
        %v12750 = vpack.c.bf16 %v12747, %v12749
        %v12751 = vunpack.c.h.bf16 %v12691
        %v12752 = vunpack.c.l.bf16 %v12691
        %v12753 = vrcp.pop %v12751
        %v12754 = vmul.f32 %v3946, %v12753
        %v12755 = vrcp.pop %v12752
        %v12756 = vmul.f32 %v3947, %v12755
        %v12757 = vpack.c.bf16 %v12754, %v12756
        %v12758 = vunpack.c.h.bf16 %v12692
        %v12759 = vunpack.c.l.bf16 %v12692
        %v12760 = vrcp.pop %v12758
        %v12761 = vmul.f32 %v3946, %v12760
        %v12762 = vrcp.pop %v12759
        %v12763 = vmul.f32 %v3947, %v12762
        %v12764 = vpack.c.bf16 %v12761, %v12763
        %v12765 = vunpack.c.h.bf16 %v12693
        %v12766 = vunpack.c.l.bf16 %v12693
        %v12767 = vrcp.pop %v12765
        %v12768 = vmul.f32 %v3946, %v12767
        %v12769 = vrcp.pop %v12766
        %v12770 = vmul.f32 %v3947, %v12769
        %v12771 = vpack.c.bf16 %v12768, %v12770
        %v12772 = vunpack.c.h.bf16 %v12694
        %v12773 = vunpack.c.l.bf16 %v12694
        %v12774 = vrcp.pop %v12772
        %v12775 = vmul.f32 %v3946, %v12774
        %v12776 = vrcp.pop %v12773
        %v12777 = vmul.f32 %v3947, %v12776
        %v12778 = vpack.c.bf16 %v12775, %v12777
        %v12779 = vunpack.c.l.bf16 %v12542
        %v12780 = vunpack.c.h.bf16 %v12542
        %v12781 = vunpack.c.l.bf16 %v12543
        %v12782 = vunpack.c.h.bf16 %v12543
        %v12783 = vunpack.c.l.bf16 %v12544
        %v12784 = vunpack.c.h.bf16 %v12544
        %v12785 = vunpack.c.l.bf16 %v12545
        %v12786 = vunpack.c.l.bf16 %v12546
        %v12787 = vunpack.c.h.bf16 %v12546
        %v12788 = vunpack.c.l.bf16 %v12547
        %v12789 = vunpack.c.h.bf16 %v12547
        %v12790 = vunpack.c.l.bf16 %v12548
        %v12791 = vunpack.c.h.bf16 %v12548
        %v12792 = vunpack.c.l.bf16 %v12549
        %v12793 = vunpack.c.l.bf16 %v12550
        %v12794 = vunpack.c.h.bf16 %v12550
        %v12795 = vunpack.c.l.bf16 %v12551
        %v12796 = vunpack.c.h.bf16 %v12551
        %v12797 = vunpack.c.l.bf16 %v12552
        %v12798 = vunpack.c.h.bf16 %v12552
        %v12799 = vunpack.c.l.bf16 %v12553
        %v12800 = vunpack.c.l.bf16 %v12701
        %v12801 = vunpack.c.h.bf16 %v12701
        %v12802 = vunpack.c.l.bf16 %v12708
        %v12803 = vunpack.c.h.bf16 %v12708
        %v12804 = vunpack.c.l.bf16 %v12715
        %v12805 = vunpack.c.h.bf16 %v12715
        %v12806 = vunpack.c.l.bf16 %v12722
        %v12807 = vunpack.c.l.bf16 %v12729
        %v12808 = vunpack.c.h.bf16 %v12729
        %v12809 = vunpack.c.l.bf16 %v12736
        %v12810 = vunpack.c.h.bf16 %v12736
        %v12811 = vunpack.c.l.bf16 %v12743
        %v12812 = vunpack.c.h.bf16 %v12743
        %v12813 = vunpack.c.l.bf16 %v12750
        %v12814 = vunpack.c.l.bf16 %v12757
        %v12815 = vunpack.c.h.bf16 %v12757
        %v12816 = vunpack.c.l.bf16 %v12764
        %v12817 = vunpack.c.h.bf16 %v12764
        %v12818 = vunpack.c.l.bf16 %v12771
        %v12819 = vunpack.c.h.bf16 %v12771
        %v12820 = vunpack.c.l.bf16 %v12778
        %v12821 = vmul.f32 %v12779, %v12800
        %v12822 = vmul.f32 %v12780, %v12801
        %v12823 = vmul.f32 %v12781, %v12802
        %v12824 = vmul.f32 %v12782, %v12803
        %v12825 = vmul.f32 %v12783, %v12804
        %v12826 = vmul.f32 %v12784, %v12805
        %v12827 = vmul.f32 %v12785, %v12806
        %v12828 = vmul.f32 %v12786, %v12807
        %v12829 = vmul.f32 %v12787, %v12808
        %v12830 = vmul.f32 %v12788, %v12809
        %v12831 = vmul.f32 %v12789, %v12810
        %v12832 = vmul.f32 %v12790, %v12811
        %v12833 = vmul.f32 %v12791, %v12812
        %v12834 = vmul.f32 %v12792, %v12813
        %v12835 = vmul.f32 %v12793, %v12814
        %v12836 = vmul.f32 %v12794, %v12815
        %v12837 = vmul.f32 %v12795, %v12816
        %v12838 = vmul.f32 %v12796, %v12817
        %v12839 = vmul.f32 %v12797, %v12818
        %v12840 = vmul.f32 %v12798, %v12819
        %v12841 = vmul.f32 %v12799, %v12820
        %v12842 = vpack.c.bf16 %v12828, %v12821
        %v12843 = vpack.c.bf16 %v12829, %v12822
        %v12844 = vpack.c.bf16 %v12830, %v12823
        %v12845 = vpack.c.bf16 %v12831, %v12824
        %v12846 = vpack.c.bf16 %v12832, %v12825
        %v12847 = vpack.c.bf16 %v12833, %v12826
        %v12848 = vpack.c.bf16 %v12834, %v12827
        %v12849 = vpack.c.bf16 %v12835, %v12835
        %v12850 = vpack.c.bf16 %v12836, %v12836
        %v12851 = vpack.c.bf16 %v12837, %v12837
        %v12852 = vpack.c.bf16 %v12838, %v12838
        %v12853 = vpack.c.bf16 %v12839, %v12839
        %v12854 = vpack.c.bf16 %v12840, %v12840
        %v12855 = vpack.c.bf16 %v12841, %v12841
        %v12856 = vld [vmem:[#allocation2] sm:$0xf]
        %v12857 = vld [vmem:[#allocation2 + $0x4] sm:$0xf]
        %v12858 = vld [vmem:[#allocation2 + $0x8] sm:$0xf]
        %v12859 = vld [vmem:[#allocation2 + $0xc] sm:$0xf]
        %v12860 = vld [vmem:[#allocation2 + $0x10] sm:$0xf]
        %v12861 = vld [vmem:[#allocation2 + $0x14] sm:$0xf]
        %v12862 = vld [vmem:[#allocation2 + $0x18] sm:$0xf]
        %v12863 = vld [vmem:[#allocation2 + $0x1c] sm:$0xf]
        %v12864 = vld [vmem:[#allocation2 + $0x20] sm:$0xf]
        %v12865 = vld [vmem:[#allocation2 + $0x24] sm:$0xf]
        %v12866 = vld [vmem:[#allocation2 + $0x28] sm:$0xf]
        %v12867 = vld [vmem:[#allocation2 + $0x2c] sm:$0xf]
        %v12868 = vld [vmem:[#allocation2 + $0x30] sm:$0xf]
        %v12869 = vld [vmem:[#allocation2 + $0x34] sm:$0xf]
        %v12870 = vld [vmem:[#allocation2 + $0x38] sm:$0xf]
        %v12871 = vld [vmem:[#allocation2 + $0x3c] sm:$0xf]
        %v12872 = vld [vmem:[#allocation2 + $0x40] sm:$0xf]
        %v12873 = vld [vmem:[#allocation2 + $0x44] sm:$0xf]
        %v12874 = vld [vmem:[#allocation2 + $0x48] sm:$0xf]
        %v12875 = vld [vmem:[#allocation2 + $0x4c] sm:$0xf]
        %v12876 = vld [vmem:[#allocation2 + $0x50] sm:$0xf]
        %v12877 = vld [vmem:[#allocation2 + $0x54] sm:$0xf]
        %v12878 = vld [vmem:[#allocation2 + $0x58] sm:$0xf]
        %v12879 = vld [vmem:[#allocation2 + $0x5c] sm:$0xf]
        %v12880 = vld [vmem:[#allocation2 + $0x60] sm:$0xf]
        %v12881 = vld [vmem:[#allocation2 + $0x64] sm:$0xf]
        %v12882 = vld [vmem:[#allocation2 + $0x68] sm:$0xf]
        %v12883 = vld [vmem:[#allocation2 + $0x6c] sm:$0xf]
        %v12884 = vld [vmem:[#allocation2 + $0x70] sm:$0xf]
        %v12885 = vld [vmem:[#allocation2 + $0x74] sm:$0xf]
        %v12886 = vld [vmem:[#allocation2 + $0x78] sm:$0xf]
        %v12887 = vld [vmem:[#allocation2 + $0x7c] sm:$0xf]
        %v12888 = vld [vmem:[#allocation2 + $0x80] sm:$0xf]
        %v12889 = vld [vmem:[#allocation2 + $0x84] sm:$0xf]
        %v12890 = vld [vmem:[#allocation2 + $0x88] sm:$0xf]
        %v12891 = vld [vmem:[#allocation2 + $0x8c] sm:$0xf]
        %v12892 = vld [vmem:[#allocation2 + $0x90] sm:$0xf]
        %v12893 = vld [vmem:[#allocation2 + $0x94] sm:$0xf]
        %v12894 = vld [vmem:[#allocation2 + $0x98] sm:$0xf]
        %v12895 = vld [vmem:[#allocation2 + $0x9c] sm:$0xf]
        %v12896 = vld [vmem:[#allocation2 + $0xa0] sm:$0xf]
        %v12897 = vld [vmem:[#allocation2 + $0xa4] sm:$0xf]
        %v12898 = vld [vmem:[#allocation2 + $0xa8] sm:$0xf]
        %v12899 = vld [vmem:[#allocation2 + $0xac] sm:$0xf]
        %v12900 = vld [vmem:[#allocation2 + $0xb0] sm:$0xf]
        %v12901 = vld [vmem:[#allocation2 + $0xb4] sm:$0xf]
        %v12902 = vld [vmem:[#allocation2 + $0xb8] sm:$0xf]
        %v12903 = vld [vmem:[#allocation2 + $0xbc] sm:$0xf]
        %v12904 = vld [vmem:[#allocation2 + $0xc0] sm:$0xf]
        %v12905 = vld [vmem:[#allocation2 + $0xc4] sm:$0xf]
        %v12906 = vld [vmem:[#allocation2 + $0xc8] sm:$0xf]
        %v12907 = vld [vmem:[#allocation2 + $0xcc] sm:$0xf]
        %v12908 = vld [vmem:[#allocation2 + $0xd0] sm:$0xf]
        %v12909 = vld [vmem:[#allocation2 + $0xd4] sm:$0xf]
        %v12910 = vld [vmem:[#allocation2 + $0xd8] sm:$0xf]
        %v12911 = vld [vmem:[#allocation2 + $0xdc] sm:$0xf]
        %v12912 = vld [vmem:[#allocation2 + $0xe0] sm:$0xf]
        %v12913 = vld [vmem:[#allocation2 + $0xe4] sm:$0xf]
        %v12914 = vld [vmem:[#allocation2 + $0xe8] sm:$0xf]
        %v12915 = vld [vmem:[#allocation2 + $0xec] sm:$0xf]
        %v12916 = vld [vmem:[#allocation2 + $0xf0] sm:$0xf]
        %v12917 = vld [vmem:[#allocation2 + $0xf4] sm:$0xf]
        %v12918 = vld [vmem:[#allocation2 + $0xf8] sm:$0xf]
        %v12919 = vld [vmem:[#allocation2 + $0xfc] sm:$0xf]
        %v12920 = vld [vmem:[#allocation2 + $0x100] sm:$0xf]
        %v12921 = vld [vmem:[#allocation2 + $0x104] sm:$0xf]
        %v12922 = vld [vmem:[#allocation2 + $0x108] sm:$0xf]
        %v12923 = vld [vmem:[#allocation2 + $0x10c] sm:$0xf]
        %v12924 = vld [vmem:[#allocation2 + $0x110] sm:$0xf]
        %v12925 = vld [vmem:[#allocation2 + $0x114] sm:$0xf]
        %v12926 = vld [vmem:[#allocation2 + $0x118] sm:$0xf]
        %v12927 = vld [vmem:[#allocation2 + $0x11c] sm:$0xf]
        %v12928 = vld [vmem:[#allocation2 + $0x120] sm:$0xf]
        %v12929 = vld [vmem:[#allocation2 + $0x124] sm:$0xf]
        %v12930 = vld [vmem:[#allocation2 + $0x128] sm:$0xf]
        %v12931 = vld [vmem:[#allocation2 + $0x12c] sm:$0xf]
        %v12932 = vld [vmem:[#allocation2 + $0x130] sm:$0xf]
        %v12933 = vld [vmem:[#allocation2 + $0x134] sm:$0xf]
        %v12934 = vld [vmem:[#allocation2 + $0x138] sm:$0xf]
        %v12935 = vld [vmem:[#allocation2 + $0x13c] sm:$0xf]
        %v12936 = vld [vmem:[#allocation2 + $0x140] sm:$0xf]
        %v12937 = vld [vmem:[#allocation2 + $0x144] sm:$0xf]
        %v12938 = vld [vmem:[#allocation2 + $0x148] sm:$0xf]
        %v12939 = vld [vmem:[#allocation2 + $0x14c] sm:$0xf]
        %v12940 = vld [vmem:[#allocation2 + $0x150] sm:$0xf]
        %v12941 = vld [vmem:[#allocation2 + $0x154] sm:$0xf]
        %v12942 = vld [vmem:[#allocation2 + $0x158] sm:$0xf]
        %v12943 = vld [vmem:[#allocation2 + $0x15c] sm:$0xf]
        %v12944 = vld [vmem:[#allocation2 + $0x160] sm:$0xf]
        %v12945 = vld [vmem:[#allocation2 + $0x164] sm:$0xf]
        %v12946 = vld [vmem:[#allocation2 + $0x168] sm:$0xf]
        %v12947 = vld [vmem:[#allocation2 + $0x16c] sm:$0xf]
        %v12948 = vld [vmem:[#allocation2 + $0x170] sm:$0xf]
        %v12949 = vld [vmem:[#allocation2 + $0x174] sm:$0xf]
        %v12950 = vld [vmem:[#allocation2 + $0x178] sm:$0xf]
        %v12951 = vld [vmem:[#allocation2 + $0x17c] sm:$0xf]
        %v12952 = vld [vmem:[#allocation2 + $0x180] sm:$0xf]
        %v12953 = vld [vmem:[#allocation2 + $0x184] sm:$0xf]
        %v12954 = vld [vmem:[%s8] sm:$0x1]
        %v12956 = vperm.slane %v12954, 0
        %v13056 = vunpack.c.l.b16 %v12856
        %v13057 = vunpack.c.l.b16 %v12857
        %v13058 = vunpack.c.l.b16 %v12858
        %v13059 = vunpack.c.l.b16 %v12859
        %v13060 = vunpack.c.l.b16 %v12860
        %v13061 = vunpack.c.l.b16 %v12861
        %v13062 = vunpack.c.l.b16 %v12862
        %v13063 = vunpack.c.l.b16 %v12863
        %v13064 = vunpack.c.l.b16 %v12864
        %v13065 = vunpack.c.l.b16 %v12865
        %v13066 = vunpack.c.l.b16 %v12866
        %v13067 = vunpack.c.l.b16 %v12867
        %v13068 = vunpack.c.l.b16 %v12868
        %v13069 = vunpack.c.l.b16 %v12869
        %v13070 = vunpack.c.l.b16 %v12870
        %v13071 = vunpack.c.l.b16 %v12871
        %v13072 = vunpack.c.l.b16 %v12872
        %v13073 = vunpack.c.l.b16 %v12873
        %v13074 = vunpack.c.l.b16 %v12874
        %v13075 = vunpack.c.l.b16 %v12875
        %v13076 = vunpack.c.l.b16 %v12876
        %v13077 = vunpack.c.l.b16 %v12877
        %v13078 = vunpack.c.l.b16 %v12878
        %v13079 = vunpack.c.l.b16 %v12879
        %v13080 = vunpack.c.l.b16 %v12880
        %v13081 = vunpack.c.l.b16 %v12881
        %v13082 = vunpack.c.l.b16 %v12882
        %v13083 = vunpack.c.l.b16 %v12883
        %v13084 = vunpack.c.l.b16 %v12884
        %v13085 = vunpack.c.l.b16 %v12885
        %v13086 = vunpack.c.l.b16 %v12886
        %v13087 = vunpack.c.l.b16 %v12887
        %v13088 = vunpack.c.l.b16 %v12888
        %v13089 = vunpack.c.l.b16 %v12889
        %v13090 = vunpack.c.l.b16 %v12890
        %v13091 = vunpack.c.l.b16 %v12891
        %v13092 = vunpack.c.l.b16 %v12892
        %v13093 = vunpack.c.l.b16 %v12893
        %v13094 = vunpack.c.l.b16 %v12894
        %v13095 = vunpack.c.l.b16 %v12895
        %v13096 = vunpack.c.l.b16 %v12896
        %v13097 = vunpack.c.l.b16 %v12897
        %v13098 = vunpack.c.l.b16 %v12898
        %v13099 = vunpack.c.l.b16 %v12899
        %v13100 = vunpack.c.l.b16 %v12900
        %v13101 = vunpack.c.l.b16 %v12901
        %v13102 = vunpack.c.l.b16 %v12902
        %v13103 = vunpack.c.l.b16 %v12903
        %v13104 = vunpack.c.l.b16 %v12904
        %v13105 = vunpack.c.l.b16 %v12905
        %v13106 = vunpack.c.l.b16 %v12906
        %v13107 = vunpack.c.l.b16 %v12907
        %v13108 = vunpack.c.l.b16 %v12908
        %v13109 = vunpack.c.l.b16 %v12909
        %v13110 = vunpack.c.l.b16 %v12910
        %v13111 = vunpack.c.l.b16 %v12911
        %v13112 = vunpack.c.l.b16 %v12912
        %v13113 = vunpack.c.l.b16 %v12913
        %v13114 = vunpack.c.l.b16 %v12914
        %v13115 = vunpack.c.l.b16 %v12915
        %v13116 = vunpack.c.l.b16 %v12916
        %v13117 = vunpack.c.l.b16 %v12917
        %v13118 = vunpack.c.l.b16 %v12918
        %v13119 = vunpack.c.l.b16 %v12919
        %v13120 = vunpack.c.l.b16 %v12920
        %v13121 = vunpack.c.l.b16 %v12921
        %v13122 = vunpack.c.l.b16 %v12922
        %v13123 = vunpack.c.l.b16 %v12923
        %v13124 = vunpack.c.l.b16 %v12924
        %v13125 = vunpack.c.l.b16 %v12925
        %v13126 = vunpack.c.l.b16 %v12926
        %v13127 = vunpack.c.l.b16 %v12927
        %v13128 = vunpack.c.l.b16 %v12928
        %v13129 = vunpack.c.l.b16 %v12929
        %v13130 = vunpack.c.l.b16 %v12930
        %v13131 = vunpack.c.l.b16 %v12931
        %v13132 = vunpack.c.l.b16 %v12932
        %v13133 = vunpack.c.l.b16 %v12933
        %v13134 = vunpack.c.l.b16 %v12934
        %v13135 = vunpack.c.l.b16 %v12935
        %v13136 = vunpack.c.l.b16 %v12936
        %v13137 = vunpack.c.l.b16 %v12937
        %v13138 = vunpack.c.l.b16 %v12938
        %v13139 = vunpack.c.l.b16 %v12939
        %v13140 = vunpack.c.l.b16 %v12940
        %v13141 = vunpack.c.l.b16 %v12941
        %v13142 = vunpack.c.l.b16 %v12942
        %v13143 = vunpack.c.l.b16 %v12943
        %v13144 = vunpack.c.l.b16 %v12944
        %v13145 = vunpack.c.l.b16 %v12945
        %v13146 = vunpack.c.l.b16 %v12946
        %v13147 = vunpack.c.l.b16 %v12947
        %v13148 = vunpack.c.l.b16 %v12948
        %v13149 = vunpack.c.l.b16 %v12949
        %v13150 = vunpack.c.l.b16 %v12950
        %v13151 = vunpack.c.l.b16 %v12951
        %v13152 = vunpack.c.l.b16 %v12952
        %v13153 = vunpack.c.l.b16 %v12953
        %v13154 = vpack.c.b16 %v13057, %v13056
        %v13155 = vpack.c.b16 %v13059, %v13058
        %v13156 = vpack.c.b16 %v13061, %v13060
        %v13157 = vpack.c.b16 %v13063, %v13062
        %v13158 = vpack.c.b16 %v13065, %v13064
        %v13159 = vpack.c.b16 %v13067, %v13066
        %v13160 = vpack.c.b16 %v13069, %v13068
        %v13161 = vpack.c.b16 %v13071, %v13070
        %v13162 = vpack.c.b16 %v13073, %v13072
        %v13163 = vpack.c.b16 %v13075, %v13074
        %v13164 = vpack.c.b16 %v13077, %v13076
        %v13165 = vpack.c.b16 %v13079, %v13078
        %v13166 = vpack.c.b16 %v13081, %v13080
        %v13167 = vpack.c.b16 %v13083, %v13082
        %v13168 = vpack.c.b16 %v13085, %v13084
        %v13169 = vpack.c.b16 %v13087, %v13086
        %v13170 = vpack.c.b16 %v13089, %v13088
        %v13171 = vpack.c.b16 %v13091, %v13090
        %v13172 = vpack.c.b16 %v13093, %v13092
        %v13173 = vpack.c.b16 %v13095, %v13094
        %v13174 = vpack.c.b16 %v13097, %v13096
        %v13175 = vpack.c.b16 %v13099, %v13098
        %v13176 = vpack.c.b16 %v13101, %v13100
        %v13177 = vpack.c.b16 %v13103, %v13102
        %v13178 = vpack.c.b16 %v13105, %v13104
        %v13179 = vpack.c.b16 %v13107, %v13106
        %v13180 = vpack.c.b16 %v13109, %v13108
        %v13181 = vpack.c.b16 %v13111, %v13110
        %v13182 = vpack.c.b16 %v13113, %v13112
        %v13183 = vpack.c.b16 %v13115, %v13114
        %v13184 = vpack.c.b16 %v13117, %v13116
        %v13185 = vpack.c.b16 %v13119, %v13118
        %v13186 = vpack.c.b16 %v13121, %v13120
        %v13187 = vpack.c.b16 %v13123, %v13122
        %v13188 = vpack.c.b16 %v13125, %v13124
        %v13189 = vpack.c.b16 %v13127, %v13126
        %v13190 = vpack.c.b16 %v13129, %v13128
        %v13191 = vpack.c.b16 %v13131, %v13130
        %v13192 = vpack.c.b16 %v13133, %v13132
        %v13193 = vpack.c.b16 %v13135, %v13134
        %v13194 = vpack.c.b16 %v13137, %v13136
        %v13195 = vpack.c.b16 %v13139, %v13138
        %v13196 = vpack.c.b16 %v13141, %v13140
        %v13197 = vpack.c.b16 %v13143, %v13142
        %v13198 = vpack.c.b16 %v13145, %v13144
        %v13199 = vpack.c.b16 %v13147, %v13146
        %v13200 = vpack.c.b16 %v13149, %v13148
        %v13201 = vpack.c.b16 %v13151, %v13150
        %v13202 = vpack.c.b16 %v13153, %v13152
        %v13253 = vsel %vm2763, %v12848, 0
        %v13256 = vsel %vm2763, %v12855, 0
        %13258 = vmatpush.bf16.msra.mxu0 %v13161
        %13259 = vmatpush.bf16.msra.mxu0 %v13160
        %13260 = vmatpush.bf16.msra.mxu0 %v13159
        %13261 = vmatpush.bf16.msra.mxu0 %v13158
        %13262 = vmatpush.bf16.msra.mxu0 %v13157
        %13263 = vmatpush.bf16.msra.mxu0 %v13156
        %13264 = vmatpush.bf16.msra.mxu0 %v13155
        %13265 = vmatpush.bf16.msra.mxu0 %v13154
        %13266 = vmatmul.bf16.gmra.mxu0 %v12842
        %v13267 = vpop.f32.mrf.mxu0
        %v13268 = vadd.f32 %v12956, %v13267
        %v13269 = vpop.f32.mrf.mxu0
        %v13270 = vadd.f32 %v12956, %v13269
        %13271 = vmatmul.bf16.gmra.mxu0 %v12849
        %v13272 = vpop.f32.mrf.mxu0
        %v13273 = vadd.f32 %v12956, %v13272
        %v13274 = vpop.f32.mrf.mxu0
        %13275 = vdwg.mxu0
        %13276 = vmatpush.bf16.msra.mxu0 %v13169
        %13277 = vmatpush.bf16.msra.mxu0 %v13168
        %13278 = vmatpush.bf16.msra.mxu0 %v13167
        %13279 = vmatpush.bf16.msra.mxu0 %v13166
        %13280 = vmatpush.bf16.msra.mxu0 %v13165
        %13281 = vmatpush.bf16.msra.mxu0 %v13164
        %13282 = vmatpush.bf16.msra.mxu0 %v13163
        %13283 = vmatpush.bf16.msra.mxu0 %v13162
        %13284 = vmatmul.bf16.gmra.mxu0 %v12843
        %v13285 = vpop.f32.mrf.mxu0
        %v13286 = vadd.f32 %v13268, %v13285
        %v13287 = vpop.f32.mrf.mxu0
        %v13288 = vadd.f32 %v13270, %v13287
        %13289 = vmatmul.bf16.gmra.mxu0 %v12850
        %v13290 = vpop.f32.mrf.mxu0
        %v13291 = vadd.f32 %v13273, %v13290
        %v13292 = vpop.f32.mrf.mxu0
        %13293 = vdwg.mxu0
        %13294 = vmatpush.bf16.msra.mxu0 %v13177
        %13295 = vmatpush.bf16.msra.mxu0 %v13176
        %13296 = vmatpush.bf16.msra.mxu0 %v13175
        %13297 = vmatpush.bf16.msra.mxu0 %v13174
        %13298 = vmatpush.bf16.msra.mxu0 %v13173
        %13299 = vmatpush.bf16.msra.mxu0 %v13172
        %13300 = vmatpush.bf16.msra.mxu0 %v13171
        %13301 = vmatpush.bf16.msra.mxu0 %v13170
        %13302 = vmatmul.bf16.gmra.mxu0 %v12844
        %v13303 = vpop.f32.mrf.mxu0
        %v13304 = vadd.f32 %v13286, %v13303
        %v13305 = vpop.f32.mrf.mxu0
        %v13306 = vadd.f32 %v13288, %v13305
        %13307 = vmatmul.bf16.gmra.mxu0 %v12851
        %v13308 = vpop.f32.mrf.mxu0
        %v13309 = vadd.f32 %v13291, %v13308
        %v13310 = vpop.f32.mrf.mxu0
        %13311 = vdwg.mxu0
        %13312 = vmatpush.bf16.msra.mxu0 %v13185
        %13313 = vmatpush.bf16.msra.mxu0 %v13184
        %13314 = vmatpush.bf16.msra.mxu0 %v13183
        %13315 = vmatpush.bf16.msra.mxu0 %v13182
        %13316 = vmatpush.bf16.msra.mxu0 %v13181
        %13317 = vmatpush.bf16.msra.mxu0 %v13180
        %13318 = vmatpush.bf16.msra.mxu0 %v13179
        %13319 = vmatpush.bf16.msra.mxu0 %v13178
        %13320 = vmatmul.bf16.gmra.mxu0 %v12845
        %v13321 = vpop.f32.mrf.mxu0
        %v13322 = vadd.f32 %v13304, %v13321
        %v13323 = vpop.f32.mrf.mxu0
        %v13324 = vadd.f32 %v13306, %v13323
        %13325 = vmatmul.bf16.gmra.mxu0 %v12852
        %v13326 = vpop.f32.mrf.mxu0
        %v13327 = vadd.f32 %v13309, %v13326
        %v13328 = vpop.f32.mrf.mxu0
        %13329 = vdwg.mxu0
        %13330 = vmatpush.bf16.msra.mxu0 %v13193
        %13331 = vmatpush.bf16.msra.mxu0 %v13192
        %13332 = vmatpush.bf16.msra.mxu0 %v13191
        %13333 = vmatpush.bf16.msra.mxu0 %v13190
        %13334 = vmatpush.bf16.msra.mxu0 %v13189
        %13335 = vmatpush.bf16.msra.mxu0 %v13188
        %13336 = vmatpush.bf16.msra.mxu0 %v13187
        %13337 = vmatpush.bf16.msra.mxu0 %v13186
        %13338 = vmatmul.bf16.gmra.mxu0 %v12846
        %v13339 = vpop.f32.mrf.mxu0
        %v13340 = vadd.f32 %v13322, %v13339
        %v13341 = vpop.f32.mrf.mxu0
        %v13342 = vadd.f32 %v13324, %v13341
        %13343 = vmatmul.bf16.gmra.mxu0 %v12853
        %v13344 = vpop.f32.mrf.mxu0
        %v13345 = vadd.f32 %v13327, %v13344
        %v13346 = vpop.f32.mrf.mxu0
        %13347 = vdwg.mxu0
        %13348 = vmatpush.bf16.msra.mxu0 %v13201
        %13349 = vmatpush.bf16.msra.mxu0 %v13200
        %13350 = vmatpush.bf16.msra.mxu0 %v13199
        %13351 = vmatpush.bf16.msra.mxu0 %v13198
        %13352 = vmatpush.bf16.msra.mxu0 %v13197
        %13353 = vmatpush.bf16.msra.mxu0 %v13196
        %13354 = vmatpush.bf16.msra.mxu0 %v13195
        %13355 = vmatpush.bf16.msra.mxu0 %v13194
        %13356 = vmatmul.bf16.gmra.mxu0 %v12847
        %v13357 = vpop.f32.mrf.mxu0
        %v13358 = vadd.f32 %v13340, %v13357
        %v13359 = vpop.f32.mrf.mxu0
        %v13360 = vadd.f32 %v13342, %v13359
        %13361 = vmatmul.bf16.gmra.mxu0 %v12854
        %v13362 = vpop.f32.mrf.mxu0
        %v13363 = vadd.f32 %v13345, %v13362
        %v13364 = vpop.f32.mrf.mxu0
        %13365 = vdwg.mxu0
        %13366 = vmatpush.bf16.msra.mxu0 0
        %13367 = vmatpush.bf16.msra.mxu0 0
        %13368 = vmatpush.bf16.msra.mxu0 0
        %13369 = vmatpush.bf16.msra.mxu0 0
        %13370 = vmatpush.bf16.msra.mxu0 0
        %13371 = vmatpush.bf16.msra.mxu0 0
        %13372 = vmatpush.bf16.msra.mxu0 0
        %13373 = vmatpush.bf16.msra.mxu0 %v13202
        %13374 = vmatmul.bf16.gmra.mxu0 %v13253
        %v13375 = vpop.f32.mrf.mxu0
        %v13376 = vadd.f32 %v13358, %v13375
        %v13377 = vpop.f32.mrf.mxu0
        %v13378 = vadd.f32 %v13360, %v13377
        %13379 = vmatmul.bf16.gmra.mxu0 %v13256
        %v13380 = vpop.f32.mrf.mxu0
        %v13381 = vadd.f32 %v13363, %v13380
        %v13382 = vpop.f32.mrf.mxu0
        %13383 = vdwg.mxu0
        %13384 = vmax.xlane.f32.xlu0 %v13376
        %v13385 = vpop.xlane.xlu0 %13384
        %13386 = vmax.xlane.f32.xlu0 %v13378
        %v13387 = vpop.xlane.xlu0 %13386
        %13388 = vmax.xlane.f32.xlu0 %v13381
        %v13389 = vpop.xlane.xlu0 %13388
        %v13390 = vsub.f32 %v13376, %v13385
        %v13391 = vsub.f32 %v13378, %v13387
        %v13392 = vsub.f32 %v13381, %v13389
        %v13393 = vmul.f32 %v13390, 1.442695
        %v13394 = vpow.pop %v13393
        %v13395 = vmul.f32 %v13391, 1.442695
        %v13396 = vpow.pop %v13395
        %v13397 = vmul.f32 %v13392, 1.442695
        %v13398 = vpow.pop %v13397
        %13399 = vadd.xlane.f32.xlu0 %v13394
        %v13400 = vpop.xlane.xlu0 %13399
        %13401 = vadd.xlane.f32.xlu0 %v13396
        %v13402 = vpop.xlane.xlu0 %13401
        %13403 = vadd.xlane.f32.xlu0 %v13398
        %v13404 = vpop.xlane.xlu0 %13403
        %v13405 = vrcp.pop %v13400
        %v13406 = vrcp.pop %v13402
        %v13407 = vrcp.pop %v13404
        %v13408 = vmul.f32 %v13394, %v13405
        %v13409 = vmul.f32 %v13396, %v13406
        %v13410 = vmul.f32 %v13398, %v13407
        %13411 = vst [vmem:[%s354] sm:$0xff] %v13408
        %13412 = vst [vmem:[%s354 + $0x8] sm:$0xff] %v13409
        %13413 = vst [vmem:[%s354 + $0x10] sm:$0xff] %v13410
        %s13414 = smul.u32 3, %s21
        %p13415 = scmp.lt.s32.totalorder %s13414, 5
        %s13416 = scalar_select %p13415, %s13414, 5
        %s13417 = smul.addr %s13416, 8
        %s13418 = scalar_lea.vmem %s9, %s13417
        // Predicated region
        $region61: #{fcnn_forward.1} parent=55 // pred_check
          %p13419 = pneg %p233
        $region62: #{fcnn_forward.1} parent=55 // pred_check_branch
          %13421 = sbr.rel (%p13419) target = $region64
        $region63: #{fcnn_forward.1} parent=55 // pred_region
          %s13422 = smul.u32 3, %s21
        $region64: #{fcnn_forward.1} parent=55 // pred_fallthru
          _
      $region56: #{fcnn_forward.1} parent=5 // pred_fallthru
        _
      %p13423 = scmp.le.s32.totalorder 2, %s16
      // Predicated region
      $region65: #{fcnn_forward.1} parent=5 // pred_check
        %p13424 = pneg %p13423
      $region66: #{fcnn_forward.1} parent=5 // pred_check_branch
        %13426 = sbr.rel (%p13424) target = $region68
      $region67: #{fcnn_forward.1} parent=5 // pred_region
        %s13427 = ssub.s32 %s16, 2
        // Predicated region
        $region69: #{fcnn_forward.1} parent=67 // pred_check
          %p13428 = pneg %p239
        $region70: #{fcnn_forward.1} parent=67 // pred_check_branch
          %13430 = sbr.rel (%p13428) target = $region72
        $region71: #{fcnn_forward.1} parent=67 // pred_region
          %s13431 = smul.u32 3, %s22
          %p13432 = scmp.lt.s32.totalorder %s13431, 5
          %s13433 = scalar_select %p13432, %s13431, 5
          %s13434 = smul.addr %s13433, 8
          %s13435 = scalar_lea.vmem %s9, %s13434
        $region72: #{fcnn_forward.1} parent=67 // pred_fallthru
          _
      $region68: #{fcnn_forward.1} parent=5 // pred_fallthru
        _
    $region6: #{fcnn_forward.1} parent=1 // loop_footer
      %s20 = sadd.s32 1, %s16
    $region7: #{fcnn_forward.1} parent=1 // loop_footer_branch
      %15 = sbr.rel target = $region3
    $region8: #{fcnn_forward.1} parent=1 // loop_exit
      _
    %13436 = vsyncpa [#allocation3], 1
    %s13437 = scalar_lea.sflag [#allocation3], 1
    %13438 = vsyncpa %s13437, 1

</llo_original>
